<compile_context>
chip_gen: v5e
topology: v5e:2x2
jax: 0.10.0
libtpu: 0.0.40
codegen_flags: <defaults>
</compile_context>

<pallas_src>
import math
from functools import partial

import jax
import jax.numpy as jnp
from jax.experimental import pallas as pl
from jax.experimental.pallas import tpu as pltpu


# ----------------------------------------------------------------------------
# Pallas kernel 1: row-tiled matmul + bias (the 1x1 `down` conv)
# ----------------------------------------------------------------------------
def _matmul_bias_kernel(x_ref, w_ref, b_ref, o_ref):
    acc = jnp.dot(x_ref[...], w_ref[...], preferred_element_type=jnp.float32)
    o_ref[...] = (acc + b_ref[...].astype(jnp.float32)).astype(o_ref.dtype)


def pointwise_conv(x2d, w, b, out_dtype=None, tm=512):
    rows, cin = x2d.shape
    cout = w.shape[1]
    out_dtype = out_dtype or x2d.dtype
    if rows <= tm:
        tm = rows                 # single block == full dim (always legal)
    else:
        tm = (tm // 8) * 8        # 8-sublane aligned tile; Pallas masks the ragged tail
    # TODO(synk): also tile K (cin) when cin is in the thousands so the
    # (tm, cin) + (cin, cout) block set stays inside the v7x 64 MiB VMEM budget.
    return pl.pallas_call(
        _matmul_bias_kernel,
        out_shape=jax.ShapeDtypeStruct((rows, cout), out_dtype),
        grid=(pl.cdiv(rows, tm),),
        in_specs=[
            pl.BlockSpec((tm, cin), lambda i: (i, 0)),
            pl.BlockSpec((cin, cout), lambda i: (0, 0)),
            pl.BlockSpec((1, cout), lambda i: (0, 0)),
        ],
        out_specs=pl.BlockSpec((tm, cout), lambda i: (i, 0)),
        compiler_params=pltpu.CompilerParams(
            dimension_semantics=("parallel",),
            vmem_limit_bytes=64 * 1024 * 1024),
    )(x2d, w, b.reshape(1, cout))


# ----------------------------------------------------------------------------
# Pallas kernel 2: fused encoder conv + softmax + reassembly + pixel shuffle
#                  + final 1x1 `out` conv, row-tiled over H.
# ----------------------------------------------------------------------------
def _carafe_fused_kernel(k, up, dpad_ref, xpad_ref, ew_ref, eb_ref,
                         ow_ref, ob_ref, o_ref):
    # dpad_ref: (1, H+2p, W+2p, cmid)  zero-padded down-projected features (bf16)
    # xpad_ref: (1, H+2p, W+2p, C)     zero-padded input features (bf16)
    # ew_ref  : (k*k*cmid, k*k*up*up)  encoder weights (col = q*k^2 + kk)
    # ow_ref  : (C, c2)                `out` 1x1 conv weights
    # o_ref   : (1, TH*up, W*up, c2)   final upsampled output rows for this tile
    k2, up2 = k * k, up * up
    cmid = dpad_ref.shape[3]
    C = xpad_ref.shape[3]
    kenc = ew_ref.shape[1]
    c2 = o_ref.shape[3]
    TH = o_ref.shape[1] // up
    W = o_ref.shape[2] // up
    rows = TH * W

    row0 = pl.program_id(1) * TH           # first (unpadded) input row of this tile
    if TH % 8 == 0:
        row0 = pl.multiple_of(row0, 8)

    # --- 3x3 encoder conv: accumulate k*k shifted (rows, cmid)@(cmid, kenc)
    #     matmuls on the MXU (im2col never leaves VMEM). ---
    enc = jnp.zeros((rows, kenc), jnp.float32)
    for dy in range(k):                     # k2 = 9: tiny static unroll
        for dx in range(k):
            kk = dy * k + dx
            d_sl = dpad_ref[0, pl.ds(row0 + dy, TH), dx:dx + W, :]
            enc = enc + jnp.dot(d_sl.reshape(rows, cmid),
                                ew_ref[kk * cmid:(kk + 1) * cmid, :],
                                preferred_element_type=jnp.float32)
    enc = enc + eb_ref[...].astype(jnp.float32)        # (rows, kenc), lane-dense

    # --- per-sub-pixel softmax over the k*k taps (reduction over lanes) ---
    wker = []
    for q in range(up2):
        lg = enc[:, q * k2:(q + 1) * k2]               # (rows, k2)
        m = jnp.max(lg, axis=1, keepdims=True)
        e = jnp.exp(lg - m)
        s = jnp.sum(e, axis=1, keepdims=True)
        wker.append(e * pl.reciprocal(s, approx=True))  # divide on the EUP slot

    # --- content-aware reassembly: 9-tap weighted neighborhood sum (VPU,
    #     lanes = C, f32 accumulate). MXU stays free for the conv matmuls. ---
    accs = [jnp.zeros((rows, C), jnp.float32) for _ in range(up2)]
    for dy in range(k):
        for dx in range(k):
            kk = dy * k + dx
            patch = xpad_ref[0, pl.ds(row0 + dy, TH), dx:dx + W, :]
            patch = patch.reshape(rows, C).astype(jnp.float32)
            for q in range(up2):
                accs[q] = accs[q] + wker[q][:, kk:kk + 1] * patch

    # --- fused 1x1 `out` conv (MXU, bf16 operands) + pixel shuffle; the store
    #     is lane-dense on c2 and already in the final (2H, 2W) layout. ---
    ob = ob_ref[...].astype(jnp.float32)
    res = []
    for q in range(up2):
        rq = jnp.dot(accs[q].astype(ow_ref.dtype), ow_ref[...],
                     preferred_element_type=jnp.float32) + ob       # (rows, c2)
        res.append(rq.reshape(TH, W, c2))
    planes = []
    for i in range(up):
        ri = jnp.stack([res[i * up + j] for j in range(up)], axis=2)  # (TH, W, up, c2)
        planes.append(ri.reshape(TH, W * up, c2))
    tile = jnp.stack(planes, axis=1).reshape(TH * up, W * up, c2)
    o_ref[0] = tile.astype(o_ref.dtype)


def _row_tile(h, target):
    if h <= target:
        return h
    for t in range(target, 0, -1):
        if h % t == 0:
            return t
    return h


def carafe_reassemble_fused(dpad, xpad, enc_w, enc_b, out_w, out_b,
                            kernel_size, up_factor, row_tile=8,
                            out_dtype=jnp.float32):
    k, up = kernel_size, up_factor
    N, Hp, Wp, C = xpad.shape
    cmid = dpad.shape[3]
    pad = k // 2
    H, W = Hp - 2 * pad, Wp - 2 * pad
    kenc = enc_w.shape[1]
    c2 = out_w.shape[1]
    TH = _row_tile(H, row_tile)
    T = H // TH
    # The padded x / d images are kept resident per batch (their block index is
    # constant across the row-tile axis, so they are DMA'd once per n), while
    # the compute/accumulator/output are row-tiled so per-step VMEM stays small.
    # TODO(synk): for very large feature maps, stream xpad/dpad row tiles with an
    # explicit halo via pl.ANY + pltpu.make_async_copy instead of keeping the
    # whole padded image resident in VMEM per batch.
    return pl.pallas_call(
        partial(_carafe_fused_kernel, k, up),
        out_shape=jax.ShapeDtypeStruct((N, H * up, W * up, c2), out_dtype),
        grid=(N, T),
        in_specs=[
            pl.BlockSpec((1, Hp, Wp, cmid), lambda n, t: (n, 0, 0, 0)),
            pl.BlockSpec((1, Hp, Wp, C), lambda n, t: (n, 0, 0, 0)),
            pl.BlockSpec((k * k * cmid, kenc), lambda n, t: (0, 0)),
            pl.BlockSpec((1, kenc), lambda n, t: (0, 0)),
            pl.BlockSpec((C, c2), lambda n, t: (0, 0)),
            pl.BlockSpec((1, c2), lambda n, t: (0, 0)),
        ],
        out_specs=pl.BlockSpec((1, TH * up, W * up, c2), lambda n, t: (n, t, 0, 0)),
        compiler_params=pltpu.CompilerParams(
            dimension_semantics=("parallel", "parallel"),   # v7x: both TCs get work
            vmem_limit_bytes=64 * 1024 * 1024),              # v7x physical budget
    )(dpad, xpad, enc_w, enc_b.reshape(1, kenc), out_w, out_b.reshape(1, c2))


# ----------------------------------------------------------------------------
# Parameters (deterministic synthetic init; matmul-ready layouts)
# ----------------------------------------------------------------------------
def init_params(key, c1, c2, kernel_size=3, up_factor=2, dtype=jnp.float32):
    cmid = c1 // 4
    k2 = kernel_size ** 2
    kenc = up_factor ** 2 * k2
    k0, k1, k2_, k3, k4, k5 = jax.random.split(key, 6)
    return {
        # down: 1x1 conv (c1 -> c1//4), stored as (Cin, Cout)
        "down_w": jax.random.normal(k0, (c1, cmid), dtype) * (1.0 / math.sqrt(c1)),
        "down_b": jax.random.normal(k1, (cmid,), dtype) * 0.01,
        # encoder: 3x3 conv (c1//4 -> up^2*k^2) as a matmul:
        #   row index = (dy*k + dx)*cmid + ci ; col index = q*k^2 + kk
        # (synthetic channel ordering; the softmax is over the k^2 taps kk and
        #  sub-pixel q = i*up + j lands at output pixel (h*up+i, w*up+j), which
        #  matches the pixel_shuffle/unfold semantics of the PyTorch module)
        "enc_w": jax.random.normal(k2_, (k2 * cmid, kenc), dtype)
                 * (1.0 / math.sqrt(k2 * cmid)),
        "enc_b": jax.random.normal(k3, (kenc,), dtype) * 0.01,
        # out: 1x1 conv (c1 -> c2), stored as (Cin, Cout)
        "out_w": jax.random.normal(k4, (c1, c2), dtype) * (1.0 / math.sqrt(c1)),
        "out_b": jax.random.normal(k5, (c2,), dtype) * 0.01,
    }


# ----------------------------------------------------------------------------
# Forward pass
# ----------------------------------------------------------------------------
def carafe_forward(params, x_nchw, kernel_size=3, up_factor=2, row_tile=8):
    N, C, H, W = x_nchw.shape
    k, up, pad = kernel_size, up_factor, kernel_size // 2
    cmid = C // 4
    bf = jnp.bfloat16

    x = jnp.transpose(x_nchw, (0, 2, 3, 1)).astype(bf)              # (N,H,W,C) bf16

    # --- down: 1x1 conv (Pallas matmul, bf16 operands, f32 accumulate) ---
    d = pointwise_conv(x.reshape(N * H * W, C),
                       params["down_w"].astype(bf), params["down_b"],
                       out_dtype=bf)
    d = d.reshape(N, H, W, cmid)

    # zero padding for the 3x3 encoder window and the k*k reassembly window
    dpad = jnp.pad(d, ((0, 0), (pad, pad), (pad, pad), (0, 0)))
    xpad = jnp.pad(x, ((0, 0), (pad, pad), (pad, pad), (0, 0)))

    # --- fused encoder + softmax + reassembly + pixel-shuffle + `out` conv ---
    y = carafe_reassemble_fused(dpad, xpad,
                                params["enc_w"].astype(bf), params["enc_b"],
                                params["out_w"].astype(bf), params["out_b"],
                                k, up, row_tile=row_tile,
                                out_dtype=jnp.float32)               # (N, 2H, 2W, c2)

    return jnp.transpose(y, (0, 3, 1, 2))                            # (N, c2, 2H, 2W)


# Pure-JAX reference mirroring the kernel's bf16-operand / f32-accumulate math.
def carafe_forward_ref(params, x_nchw, kernel_size=3, up_factor=2):
    bf = jnp.bfloat16
    N, C, H, W = x_nchw.shape
    k, up, pad = kernel_size, up_factor, kernel_size // 2
    k2, up2 = k * k, up * up
    cmid = C // 4
    x = jnp.transpose(x_nchw, (0, 2, 3, 1)).astype(bf).astype(jnp.float32)
    dw = params["down_w"].astype(bf).astype(jnp.float32)
    d = (x.reshape(-1, C) @ dw + params["down_b"]).astype(bf).astype(jnp.float32)
    d = d.reshape(N, H, W, cmid)
    dpad = jnp.pad(d, ((0, 0), (pad, pad), (pad, pad), (0, 0)))
    patches = jnp.concatenate(
        [dpad[:, dy:dy + H, dx:dx + W, :] for dy in range(k) for dx in range(k)],
        axis=-1)
    ew = params["enc_w"].astype(bf).astype(jnp.float32)
    enc = patches.reshape(-1, k2 * cmid) @ ew + params["enc_b"]
    wker = jax.nn.softmax(enc.reshape(N, H, W, up2, k2), axis=4)     # over the k^2 taps
    xpad = jnp.pad(x, ((0, 0), (pad, pad), (pad, pad), (0, 0)))
    xunf = jnp.stack(
        [xpad[:, dy:dy + H, dx:dx + W, :] for dy in range(k) for dx in range(k)],
        axis=-1)                                                     # (N,H,W,C,k2)
    reass = jnp.einsum("nhwck,nhwqk->nhwqc", xunf, wker,
                       precision=jax.lax.Precision.HIGHEST)
    reass = reass.astype(bf).astype(jnp.float32)
    ow = params["out_w"].astype(bf).astype(jnp.float32)
    c2 = ow.shape[1]
    y = reass.reshape(N, H, W, up, up, C)
    y = jnp.transpose(y, (0, 1, 3, 2, 4, 5)).reshape(N, H * up, W * up, C)
    out = y.reshape(-1, C) @ ow + params["out_b"]
    return jnp.transpose(out.reshape(N, H * up, W * up, c2), (0, 3, 1, 2))


if __name__ == "__main__":
    key = jax.random.PRNGKey(0)
    kx, kp = jax.random.split(key)
    N, c1, H, W = 2, 16, 16, 16
    c2 = 16
    x = jax.random.normal(kx, (N, c1, H, W), jnp.float32)
    params = init_params(kp, c1, c2, kernel_size=3, up_factor=2)

    fwd = jax.jit(partial(carafe_forward, kernel_size=3, up_factor=2, row_tile=8))
    out = fwd(params, x)
    jax.block_until_ready(out)
    assert out.shape == (N, c2, 2 * H, 2 * W), out.shape

    ref = carafe_forward_ref(params, x)
    max_err = float(jnp.max(jnp.abs(out - ref)))
    assert jnp.allclose(out, ref, atol=1e-2, rtol=1e-2), f"mismatch vs reference: {max_err}"

    print("KERNEL_OK")
</pallas_src>

<mosaic_0001>
module attributes {stable_mosaic.version = 11 : i64} {
  func.func @_matmul_bias_kernel(%arg0: i32, %arg1: memref<512x16xbf16, #tpu.memory_space<vmem>>, %arg2: memref<16x4xbf16, #tpu.memory_space<vmem>>, %arg3: memref<1x4xf32, #tpu.memory_space<vmem>>, %arg4: memref<512x4xbf16, #tpu.memory_space<vmem>>) attributes {dimension_semantics = [#tpu.dimension_semantics<parallel>], iteration_bounds = array<i64: 1>, scalar_prefetch = 0 : i64, scratch_operands = 0 : i64, tpu.core_type = #tpu.core_type<tc>, window_params = [{transform_indices = @transform_0, window_bounds = array<i64: 512, 16>}, {pipeline_mode = #tpu.pipeline_mode<synchronous>, transform_indices = @transform_1, window_bounds = array<i64: 16, 4>}, {pipeline_mode = #tpu.pipeline_mode<synchronous>, transform_indices = @transform_2, window_bounds = array<i64: 1, 4>}, {transform_indices = @transform_3, window_bounds = array<i64: 512, 4>}]} {
    %c0 = arith.constant 0 : index
    %c0_0 = arith.constant 0 : index
    %0 = vector.load %arg1[%c0, %c0_0] : memref<512x16xbf16, #tpu.memory_space<vmem>>, vector<512x16xbf16>
    %c0_1 = arith.constant 0 : index
    %c0_2 = arith.constant 0 : index
    %1 = vector.load %arg2[%c0_1, %c0_2] : memref<16x4xbf16, #tpu.memory_space<vmem>>, vector<16x4xbf16>
    %cst = arith.constant dense<0.000000e+00> : vector<512x4xf32>
    %2 = tpu.matmul %0, %1, %cst {dimension_numbers = #tpu.dot_dimension_numbers<[1], [0], [0], [1], [0, 0, 1, 1], [], []>} : vector<512x16xbf16>, vector<16x4xbf16>, vector<512x4xf32> -> vector<512x4xf32>
    %c0_3 = arith.constant 0 : index
    %c0_4 = arith.constant 0 : index
    %3 = vector.load %arg3[%c0_3, %c0_4] : memref<1x4xf32, #tpu.memory_space<vmem>>, vector<1x4xf32>
    %4 = vector.broadcast %3 : vector<1x4xf32> to vector<512x4xf32>
    %5 = arith.addf %2, %4 : vector<512x4xf32>
    %6 = arith.truncf %5 : vector<512x4xf32> to vector<512x4xbf16>
    %c0_5 = arith.constant 0 : index
    %c0_6 = arith.constant 0 : index
    %7 = vector.load %arg4[%c0_5, %c0_6] : memref<512x4xbf16, #tpu.memory_space<vmem>>, vector<512x4xbf16>
    tpu.vector_store %arg4[%c0_5, %c0_6], %6 {strides = array<i32>} : memref<512x4xbf16, #tpu.memory_space<vmem>>, vector<512x4xbf16>,
    return
  }
  func.func @transform_0(%arg0: i32) -> (i32, i32) {
    %c0_i32 = arith.constant 0 : i32
    %c0_i32_0 = arith.constant 0 : i32
    return %arg0, %c0_i32 : i32, i32
  }
  func.func @transform_1(%arg0: i32) -> (i32, i32) {
    %c0_i32 = arith.constant 0 : i32
    %c0_i32_0 = arith.constant 0 : i32
    %c0_i32_1 = arith.constant 0 : i32
    return %c0_i32, %c0_i32_0 : i32, i32
  }
  func.func @transform_2(%arg0: i32) -> (i32, i32) {
    %c0_i32 = arith.constant 0 : i32
    %c0_i32_0 = arith.constant 0 : i32
    %c0_i32_1 = arith.constant 0 : i32
    return %c0_i32, %c0_i32_0 : i32, i32
  }
  func.func @transform_3(%arg0: i32) -> (i32, i32) {
    %c0_i32 = arith.constant 0 : i32
    %c0_i32_0 = arith.constant 0 : i32
    return %arg0, %c0_i32 : i32, i32
  }
}

module attributes {stable_mosaic.version = 11 : i64} {
  func.func @_carafe_fused_kernel(%arg0: i32, %arg1: i32, %arg2: memref<1x18x18x4xbf16, #tpu.memory_space<vmem>>, %arg3: memref<1x18x18x16xbf16, #tpu.memory_space<vmem>>, %arg4: memref<36x36xbf16, #tpu.memory_space<vmem>>, %arg5: memref<1x36xf32, #tpu.memory_space<vmem>>, %arg6: memref<16x16xbf16, #tpu.memory_space<vmem>>, %arg7: memref<1x16xf32, #tpu.memory_space<vmem>>, %arg8: memref<1x16x32x16xf32, #tpu.memory_space<vmem>>) attributes {dimension_semantics = [#tpu.dimension_semantics<parallel>, #tpu.dimension_semantics<parallel>], iteration_bounds = array<i64: 2, 2>, scalar_prefetch = 0 : i64, scratch_operands = 0 : i64, tpu.core_type = #tpu.core_type<tc>, window_params = [{transform_indices = @transform_0, window_bounds = array<i64: 1, 18, 18, 4>}, {transform_indices = @transform_1, window_bounds = array<i64: 1, 18, 18, 16>}, {pipeline_mode = #tpu.pipeline_mode<synchronous>, transform_indices = @transform_2, window_bounds = array<i64: 36, 36>}, {pipeline_mode = #tpu.pipeline_mode<synchronous>, transform_indices = @transform_3, window_bounds = array<i64: 1, 36>}, {pipeline_mode = #tpu.pipeline_mode<synchronous>, transform_indices = @transform_4, window_bounds = array<i64: 16, 16>}, {pipeline_mode = #tpu.pipeline_mode<synchronous>, transform_indices = @transform_5, window_bounds = array<i64: 1, 16>}, {transform_indices = @transform_6, window_bounds = array<i64: 1, 16, 32, 16>}]} {
    %c8_i32 = arith.constant 8 : i32
    %0 = arith.muli %arg1, %c8_i32 : i32
    %1 = tpu.assume_multiple %0, 8 : i32
    %cst = arith.constant 0.000000e+00 : f32
    %2 = vector.broadcast %cst : f32 to vector<128x36xf32>
    %c0_i32 = arith.constant 0 : i32
    %3 = arith.addi %1, %c0_i32 : i32
    %c0 = arith.constant 0 : index
    %4 = arith.index_cast %3 : i32 to index
    %c0_0 = arith.constant 0 : index
    %c0_1 = arith.constant 0 : index
    %5 = vector.load %arg2[%c0, %4, %c0_0, %c0_1] : memref<1x18x18x4xbf16, #tpu.memory_space<vmem>>, vector<1x8x16x4xbf16>
    %6 = vector.shape_cast %5 : vector<1x8x16x4xbf16> to vector<8x16x4xbf16>
    %7 = vector.shape_cast %6 : vector<8x16x4xbf16> to vector<128x4xbf16>
    %c0_2 = arith.constant 0 : index
    %c0_3 = arith.constant 0 : index
    %8 = vector.load %arg4[%c0_2, %c0_3] : memref<36x36xbf16, #tpu.memory_space<vmem>>, vector<4x36xbf16>
    %cst_4 = arith.constant dense<0.000000e+00> : vector<128x36xf32>
    %9 = tpu.matmul %7, %8, %cst_4 {dimension_numbers = #tpu.dot_dimension_numbers<[1], [0], [0], [1], [0, 0, 1, 1], [], []>} : vector<128x4xbf16>, vector<4x36xbf16>, vector<128x36xf32> -> vector<128x36xf32>
    %10 = arith.addf %2, %9 : vector<128x36xf32>
    %c0_i32_5 = arith.constant 0 : i32
    %11 = arith.addi %1, %c0_i32_5 : i32
    %c0_6 = arith.constant 0 : index
    %12 = arith.index_cast %11 : i32 to index
    %c1 = arith.constant 1 : index
    %c0_7 = arith.constant 0 : index
    %13 = vector.load %arg2[%c0_6, %12, %c1, %c0_7] : memref<1x18x18x4xbf16, #tpu.memory_space<vmem>>, vector<1x8x16x4xbf16>
    %14 = vector.shape_cast %13 : vector<1x8x16x4xbf16> to vector<8x16x4xbf16>
    %15 = vector.shape_cast %14 : vector<8x16x4xbf16> to vector<128x4xbf16>
    %c4 = arith.constant 4 : index
    %c0_8 = arith.constant 0 : index
    %16 = vector.load %arg4[%c4, %c0_8] : memref<36x36xbf16, #tpu.memory_space<vmem>>, vector<4x36xbf16>
    %cst_9 = arith.constant dense<0.000000e+00> : vector<128x36xf32>
    %17 = tpu.matmul %15, %16, %cst_9 {dimension_numbers = #tpu.dot_dimension_numbers<[1], [0], [0], [1], [0, 0, 1, 1], [], []>} : vector<128x4xbf16>, vector<4x36xbf16>, vector<128x36xf32> -> vector<128x36xf32>
    %18 = arith.addf %10, %17 : vector<128x36xf32>
    %c0_i32_10 = arith.constant 0 : i32
    %19 = arith.addi %1, %c0_i32_10 : i32
    %c0_11 = arith.constant 0 : index
    %20 = arith.index_cast %19 : i32 to index
    %c2 = arith.constant 2 : index
    %c0_12 = arith.constant 0 : index
    %21 = vector.load %arg2[%c0_11, %20, %c2, %c0_12] : memref<1x18x18x4xbf16, #tpu.memory_space<vmem>>, vector<1x8x16x4xbf16>
    %22 = vector.shape_cast %21 : vector<1x8x16x4xbf16> to vector<8x16x4xbf16>
    %23 = vector.shape_cast %22 : vector<8x16x4xbf16> to vector<128x4xbf16>
    %c8 = arith.constant 8 : index
    %c0_13 = arith.constant 0 : index
    %24 = vector.load %arg4[%c8, %c0_13] : memref<36x36xbf16, #tpu.memory_space<vmem>>, vector<4x36xbf16>
    %cst_14 = arith.constant dense<0.000000e+00> : vector<128x36xf32>
    %25 = tpu.matmul %23, %24, %cst_14 {dimension_numbers = #tpu.dot_dimension_numbers<[1], [0], [0], [1], [0, 0, 1, 1], [], []>} : vector<128x4xbf16>, vector<4x36xbf16>, vector<128x36xf32> -> vector<128x36xf32>
    %26 = arith.addf %18, %25 : vector<128x36xf32>
    %c1_i32 = arith.constant 1 : i32
    %27 = arith.addi %1, %c1_i32 : i32
    %c0_15 = arith.constant 0 : index
    %28 = arith.index_cast %27 : i32 to index
    %c0_16 = arith.constant 0 : index
    %c0_17 = arith.constant 0 : index
    %29 = vector.load %arg2[%c0_15, %28, %c0_16, %c0_17] : memref<1x18x18x4xbf16, #tpu.memory_space<vmem>>, vector<1x8x16x4xbf16>
    %30 = vector.shape_cast %29 : vector<1x8x16x4xbf16> to vector<8x16x4xbf16>
    %31 = vector.shape_cast %30 : vector<8x16x4xbf16> to vector<128x4xbf16>
    %c12 = arith.constant 12 : index
    %c0_18 = arith.constant 0 : index
    %32 = vector.load %arg4[%c12, %c0_18] : memref<36x36xbf16, #tpu.memory_space<vmem>>, vector<4x36xbf16>
    %cst_19 = arith.constant dense<0.000000e+00> : vector<128x36xf32>
    %33 = tpu.matmul %31, %32, %cst_19 {dimension_numbers = #tpu.dot_dimension_numbers<[1], [0], [0], [1], [0, 0, 1, 1], [], []>} : vector<128x4xbf16>, vector<4x36xbf16>, vector<128x36xf32> -> vector<128x36xf32>
    %34 = arith.addf %26, %33 : vector<128x36xf32>
    %c1_i32_20 = arith.constant 1 : i32
    %35 = arith.addi %1, %c1_i32_20 : i32
    %c0_21 = arith.constant 0 : index
    %36 = arith.index_cast %35 : i32 to index
    %c1_22 = arith.constant 1 : index
    %c0_23 = arith.constant 0 : index
    %37 = vector.load %arg2[%c0_21, %36, %c1_22, %c0_23] : memref<1x18x18x4xbf16, #tpu.memory_space<vmem>>, vector<1x8x16x4xbf16>
    %38 = vector.shape_cast %37 : vector<1x8x16x4xbf16> to vector<8x16x4xbf16>
    %39 = vector.shape_cast %38 : vector<8x16x4xbf16> to vector<128x4xbf16>
    %c16 = arith.constant 16 : index
    %c0_24 = arith.constant 0 : index
    %40 = vector.load %arg4[%c16, %c0_24] : memref<36x36xbf16, #tpu.memory_space<vmem>>, vector<4x36xbf16>
    %cst_25 = arith.constant dense<0.000000e+00> : vector<128x36xf32>
    %41 = tpu.matmul %39, %40, %cst_25 {dimension_numbers = #tpu.dot_dimension_numbers<[1], [0], [0], [1], [0, 0, 1, 1], [], []>} : vector<128x4xbf16>, vector<4x36xbf16>, vector<128x36xf32> -> vector<128x36xf32>
    %42 = arith.addf %34, %41 : vector<128x36xf32>
    %c1_i32_26 = arith.constant 1 : i32
    %43 = arith.addi %1, %c1_i32_26 : i32
    %c0_27 = arith.constant 0 : index
    %44 = arith.index_cast %43 : i32 to index
    %c2_28 = arith.constant 2 : index
    %c0_29 = arith.constant 0 : index
    %45 = vector.load %arg2[%c0_27, %44, %c2_28, %c0_29] : memref<1x18x18x4xbf16, #tpu.memory_space<vmem>>, vector<1x8x16x4xbf16>
    %46 = vector.shape_cast %45 : vector<1x8x16x4xbf16> to vector<8x16x4xbf16>
    %47 = vector.shape_cast %46 : vector<8x16x4xbf16> to vector<128x4xbf16>
    %c20 = arith.constant 20 : index
    %c0_30 = arith.constant 0 : index
    %48 = vector.load %arg4[%c20, %c0_30] : memref<36x36xbf16, #tpu.memory_space<vmem>>, vector<4x36xbf16>
    %cst_31 = arith.constant dense<0.000000e+00> : vector<128x36xf32>
    %49 = tpu.matmul %47, %48, %cst_31 {dimension_numbers = #tpu.dot_dimension_numbers<[1], [0], [0], [1], [0, 0, 1, 1], [], []>} : vector<128x4xbf16>, vector<4x36xbf16>, vector<128x36xf32> -> vector<128x36xf32>
    %50 = arith.addf %42, %49 : vector<128x36xf32>
    %c2_i32 = arith.constant 2 : i32
    %51 = arith.addi %1, %c2_i32 : i32
    %c0_32 = arith.constant 0 : index
    %52 = arith.index_cast %51 : i32 to index
    %c0_33 = arith.constant 0 : index
    %c0_34 = arith.constant 0 : index
    %53 = vector.load %arg2[%c0_32, %52, %c0_33, %c0_34] : memref<1x18x18x4xbf16, #tpu.memory_space<vmem>>, vector<1x8x16x4xbf16>
    %54 = vector.shape_cast %53 : vector<1x8x16x4xbf16> to vector<8x16x4xbf16>
    %55 = vector.shape_cast %54 : vector<8x16x4xbf16> to vector<128x4xbf16>
    %c24 = arith.constant 24 : index
    %c0_35 = arith.constant 0 : index
    %56 = vector.load %arg4[%c24, %c0_35] : memref<36x36xbf16, #tpu.memory_space<vmem>>, vector<4x36xbf16>
    %cst_36 = arith.constant dense<0.000000e+00> : vector<128x36xf32>
    %57 = tpu.matmul %55, %56, %cst_36 {dimension_numbers = #tpu.dot_dimension_numbers<[1], [0], [0], [1], [0, 0, 1, 1], [], []>} : vector<128x4xbf16>, vector<4x36xbf16>, vector<128x36xf32> -> vector<128x36xf32>
    %58 = arith.addf %50, %57 : vector<128x36xf32>
    %c2_i32_37 = arith.constant 2 : i32
    %59 = arith.addi %1, %c2_i32_37 : i32
    %c0_38 = arith.constant 0 : index
    %60 = arith.index_cast %59 : i32 to index
    %c1_39 = arith.constant 1 : index
    %c0_40 = arith.constant 0 : index
    %61 = vector.load %arg2[%c0_38, %60, %c1_39, %c0_40] : memref<1x18x18x4xbf16, #tpu.memory_space<vmem>>, vector<1x8x16x4xbf16>
    %62 = vector.shape_cast %61 : vector<1x8x16x4xbf16> to vector<8x16x4xbf16>
    %63 = vector.shape_cast %62 : vector<8x16x4xbf16> to vector<128x4xbf16>
    %c28 = arith.constant 28 : index
    %c0_41 = arith.constant 0 : index
    %64 = vector.load %arg4[%c28, %c0_41] : memref<36x36xbf16, #tpu.memory_space<vmem>>, vector<4x36xbf16>
    %cst_42 = arith.constant dense<0.000000e+00> : vector<128x36xf32>
    %65 = tpu.matmul %63, %64, %cst_42 {dimension_numbers = #tpu.dot_dimension_numbers<[1], [0], [0], [1], [0, 0, 1, 1], [], []>} : vector<128x4xbf16>, vector<4x36xbf16>, vector<128x36xf32> -> vector<128x36xf32>
    %66 = arith.addf %58, %65 : vector<128x36xf32>
    %c2_i32_43 = arith.constant 2 : i32
    %67 = arith.addi %1, %c2_i32_43 : i32
    %c0_44 = arith.constant 0 : index
    %68 = arith.index_cast %67 : i32 to index
    %c2_45 = arith.constant 2 : index
    %c0_46 = arith.constant 0 : index
    %69 = vector.load %arg2[%c0_44, %68, %c2_45, %c0_46] : memref<1x18x18x4xbf16, #tpu.memory_space<vmem>>, vector<1x8x16x4xbf16>
    %70 = vector.shape_cast %69 : vector<1x8x16x4xbf16> to vector<8x16x4xbf16>
    %71 = vector.shape_cast %70 : vector<8x16x4xbf16> to vector<128x4xbf16>
    %c32 = arith.constant 32 : index
    %c0_47 = arith.constant 0 : index
    %72 = vector.load %arg4[%c32, %c0_47] : memref<36x36xbf16, #tpu.memory_space<vmem>>, vector<4x36xbf16>
    %cst_48 = arith.constant dense<0.000000e+00> : vector<128x36xf32>
    %73 = tpu.matmul %71, %72, %cst_48 {dimension_numbers = #tpu.dot_dimension_numbers<[1], [0], [0], [1], [0, 0, 1, 1], [], []>} : vector<128x4xbf16>, vector<4x36xbf16>, vector<128x36xf32> -> vector<128x36xf32>
    %74 = arith.addf %66, %73 : vector<128x36xf32>
    %c0_49 = arith.constant 0 : index
    %c0_50 = arith.constant 0 : index
    %75 = vector.load %arg5[%c0_49, %c0_50] : memref<1x36xf32, #tpu.memory_space<vmem>>, vector<1x36xf32>
    %76 = vector.broadcast %75 : vector<1x36xf32> to vector<128x36xf32>
    %77 = arith.addf %74, %76 : vector<128x36xf32>
    %78 = vector.extract_strided_slice %77 {offsets = [0, 0], sizes = [128, 9], strides = [1, 1]} : vector<128x36xf32> to vector<128x9xf32>
    %cst_51 = arith.constant dense<0xFF800000> : vector<128xf32>
    %79 = vector.multi_reduction <maximumf>, %78, %cst_51 [1] : vector<128x9xf32> to vector<128xf32>
    %80 = vector.shape_cast %79 : vector<128xf32> to vector<128x1xf32>
    %81 = vector.broadcast %80 : vector<128x1xf32> to vector<128x9xf32>
    %82 = arith.subf %78, %81 : vector<128x9xf32>
    %83 = math.exp %82 : vector<128x9xf32>
    %cst_52 = arith.constant dense<0.000000e+00> : vector<128xf32>
    %84 = vector.multi_reduction <add>, %83, %cst_52 [1] : vector<128x9xf32> to vector<128xf32>
    %85 = vector.shape_cast %84 : vector<128xf32> to vector<128x1xf32>
    %86 = tpu.reciprocal %85 {approx = true} : vector<128x1xf32> -> vector<128x1xf32>
    %87 = vector.broadcast %86 : vector<128x1xf32> to vector<128x9xf32>
    %88 = arith.mulf %83, %87 : vector<128x9xf32>
    %89 = vector.extract_strided_slice %77 {offsets = [0, 9], sizes = [128, 9], strides = [1, 1]} : vector<128x36xf32> to vector<128x9xf32>
    %cst_53 = arith.constant dense<0xFF800000> : vector<128xf32>
    %90 = vector.multi_reduction <maximumf>, %89, %cst_53 [1] : vector<128x9xf32> to vector<128xf32>
    %91 = vector.shape_cast %90 : vector<128xf32> to vector<128x1xf32>
    %92 = vector.broadcast %91 : vector<128x1xf32> to vector<128x9xf32>
    %93 = arith.subf %89, %92 : vector<128x9xf32>
    %94 = math.exp %93 : vector<128x9xf32>
    %cst_54 = arith.constant dense<0.000000e+00> : vector<128xf32>
    %95 = vector.multi_reduction <add>, %94, %cst_54 [1] : vector<128x9xf32> to vector<128xf32>
    %96 = vector.shape_cast %95 : vector<128xf32> to vector<128x1xf32>
    %97 = tpu.reciprocal %96 {approx = true} : vector<128x1xf32> -> vector<128x1xf32>
    %98 = vector.broadcast %97 : vector<128x1xf32> to vector<128x9xf32>
    %99 = arith.mulf %94, %98 : vector<128x9xf32>
    %100 = vector.extract_strided_slice %77 {offsets = [0, 18], sizes = [128, 9], strides = [1, 1]} : vector<128x36xf32> to vector<128x9xf32>
    %cst_55 = arith.constant dense<0xFF800000> : vector<128xf32>
    %101 = vector.multi_reduction <maximumf>, %100, %cst_55 [1] : vector<128x9xf32> to vector<128xf32>
    %102 = vector.shape_cast %101 : vector<128xf32> to vector<128x1xf32>
    %103 = vector.broadcast %102 : vector<128x1xf32> to vector<128x9xf32>
    %104 = arith.subf %100, %103 : vector<128x9xf32>
    %105 = math.exp %104 : vector<128x9xf32>
    %cst_56 = arith.constant dense<0.000000e+00> : vector<128xf32>
    %106 = vector.multi_reduction <add>, %105, %cst_56 [1] : vector<128x9xf32> to vector<128xf32>
    %107 = vector.shape_cast %106 : vector<128xf32> to vector<128x1xf32>
    %108 = tpu.reciprocal %107 {approx = true} : vector<128x1xf32> -> vector<128x1xf32>
    %109 = vector.broadcast %108 : vector<128x1xf32> to vector<128x9xf32>
    %110 = arith.mulf %105, %109 : vector<128x9xf32>
    %111 = vector.extract_strided_slice %77 {offsets = [0, 27], sizes = [128, 9], strides = [1, 1]} : vector<128x36xf32> to vector<128x9xf32>
    %cst_57 = arith.constant dense<0xFF800000> : vector<128xf32>
    %112 = vector.multi_reduction <maximumf>, %111, %cst_57 [1] : vector<128x9xf32> to vector<128xf32>
    %113 = vector.shape_cast %112 : vector<128xf32> to vector<128x1xf32>
    %114 = vector.broadcast %113 : vector<128x1xf32> to vector<128x9xf32>
    %115 = arith.subf %111, %114 : vector<128x9xf32>
    %116 = math.exp %115 : vector<128x9xf32>
    %cst_58 = arith.constant dense<0.000000e+00> : vector<128xf32>
    %117 = vector.multi_reduction <add>, %116, %cst_58 [1] : vector<128x9xf32> to vector<128xf32>
    %118 = vector.shape_cast %117 : vector<128xf32> to vector<128x1xf32>
    %119 = tpu.reciprocal %118 {approx = true} : vector<128x1xf32> -> vector<128x1xf32>
    %120 = vector.broadcast %119 : vector<128x1xf32> to vector<128x9xf32>
    %121 = arith.mulf %116, %120 : vector<128x9xf32>
    %cst_59 = arith.constant 0.000000e+00 : f32
    %122 = vector.broadcast %cst_59 : f32 to vector<128x16xf32>
    %cst_60 = arith.constant 0.000000e+00 : f32
    %123 = vector.broadcast %cst_60 : f32 to vector<128x16xf32>
    %cst_61 = arith.constant 0.000000e+00 : f32
    %124 = vector.broadcast %cst_61 : f32 to vector<128x16xf32>
    %cst_62 = arith.constant 0.000000e+00 : f32
    %125 = vector.broadcast %cst_62 : f32 to vector<128x16xf32>
    %c0_i32_63 = arith.constant 0 : i32
    %126 = arith.addi %1, %c0_i32_63 : i32
    %c0_64 = arith.constant 0 : index
    %127 = arith.index_cast %126 : i32 to index
    %c0_65 = arith.constant 0 : index
    %c0_66 = arith.constant 0 : index
    %128 = vector.load %arg3[%c0_64, %127, %c0_65, %c0_66] : memref<1x18x18x16xbf16, #tpu.memory_space<vmem>>, vector<1x8x16x16xbf16>
    %129 = vector.shape_cast %128 : vector<1x8x16x16xbf16> to vector<8x16x16xbf16>
    %130 = vector.shape_cast %129 : vector<8x16x16xbf16> to vector<128x16xbf16>
    %131 = arith.extf %130 : vector<128x16xbf16> to vector<128x16xf32>
    %132 = vector.extract_strided_slice %88 {offsets = [0, 0], sizes = [128, 1], strides = [1, 1]} : vector<128x9xf32> to vector<128x1xf32>
    %133 = vector.broadcast %132 : vector<128x1xf32> to vector<128x16xf32>
    %134 = arith.mulf %133, %131 : vector<128x16xf32>
    %135 = arith.addf %122, %134 : vector<128x16xf32>
    %136 = vector.extract_strided_slice %99 {offsets = [0, 0], sizes = [128, 1], strides = [1, 1]} : vector<128x9xf32> to vector<128x1xf32>
    %137 = vector.broadcast %136 : vector<128x1xf32> to vector<128x16xf32>
    %138 = arith.mulf %137, %131 : vector<128x16xf32>
    %139 = arith.addf %123, %138 : vector<128x16xf32>
    %140 = vector.extract_strided_slice %110 {offsets = [0, 0], sizes = [128, 1], strides = [1, 1]} : vector<128x9xf32> to vector<128x1xf32>
    %141 = vector.broadcast %140 : vector<128x1xf32> to vector<128x16xf32>
    %142 = arith.mulf %141, %131 : vector<128x16xf32>
    %143 = arith.addf %124, %142 : vector<128x16xf32>
    %144 = vector.extract_strided_slice %121 {offsets = [0, 0], sizes = [128, 1], strides = [1, 1]} : vector<128x9xf32> to vector<128x1xf32>
    %145 = vector.broadcast %144 : vector<128x1xf32> to vector<128x16xf32>
    %146 = arith.mulf %145, %131 : vector<128x16xf32>
    %147 = arith.addf %125, %146 : vector<128x16xf32>
    %c0_i32_67 = arith.constant 0 : i32
    %148 = arith.addi %1, %c0_i32_67 : i32
    %c0_68 = arith.constant 0 : index
    %149 = arith.index_cast %148 : i32 to index
    %c1_69 = arith.constant 1 : index
    %c0_70 = arith.constant 0 : index
    %150 = vector.load %arg3[%c0_68, %149, %c1_69, %c0_70] : memref<1x18x18x16xbf16, #tpu.memory_space<vmem>>, vector<1x8x16x16xbf16>
    %151 = vector.shape_cast %150 : vector<1x8x16x16xbf16> to vector<8x16x16xbf16>
    %152 = vector.shape_cast %151 : vector<8x16x16xbf16> to vector<128x16xbf16>
    %153 = arith.extf %152 : vector<128x16xbf16> to vector<128x16xf32>
    %154 = vector.extract_strided_slice %88 {offsets = [0, 1], sizes = [128, 1], strides = [1, 1]} : vector<128x9xf32> to vector<128x1xf32>
    %155 = vector.broadcast %154 : vector<128x1xf32> to vector<128x16xf32>
    %156 = arith.mulf %155, %153 : vector<128x16xf32>
    %157 = arith.addf %135, %156 : vector<128x16xf32>
    %158 = vector.extract_strided_slice %99 {offsets = [0, 1], sizes = [128, 1], strides = [1, 1]} : vector<128x9xf32> to vector<128x1xf32>
    %159 = vector.broadcast %158 : vector<128x1xf32> to vector<128x16xf32>
    %160 = arith.mulf %159, %153 : vector<128x16xf32>
    %161 = arith.addf %139, %160 : vector<128x16xf32>
    %162 = vector.extract_strided_slice %110 {offsets = [0, 1], sizes = [128, 1], strides = [1, 1]} : vector<128x9xf32> to vector<128x1xf32>
    %163 = vector.broadcast %162 : vector<128x1xf32> to vector<128x16xf32>
    %164 = arith.mulf %163, %153 : vector<128x16xf32>
    %165 = arith.addf %143, %164 : vector<128x16xf32>
    %166 = vector.extract_strided_slice %121 {offsets = [0, 1], sizes = [128, 1], strides = [1, 1]} : vector<128x9xf32> to vector<128x1xf32>
    %167 = vector.broadcast %166 : vector<128x1xf32> to vector<128x16xf32>
    %168 = arith.mulf %167, %153 : vector<128x16xf32>
    %169 = arith.addf %147, %168 : vector<128x16xf32>
    %c0_i32_71 = arith.constant 0 : i32
    %170 = arith.addi %1, %c0_i32_71 : i32
    %c0_72 = arith.constant 0 : index
    %171 = arith.index_cast %170 : i32 to index
    %c2_73 = arith.constant 2 : index
    %c0_74 = arith.constant 0 : index
    %172 = vector.load %arg3[%c0_72, %171, %c2_73, %c0_74] : memref<1x18x18x16xbf16, #tpu.memory_space<vmem>>, vector<1x8x16x16xbf16>
    %173 = vector.shape_cast %172 : vector<1x8x16x16xbf16> to vector<8x16x16xbf16>
    %174 = vector.shape_cast %173 : vector<8x16x16xbf16> to vector<128x16xbf16>
    %175 = arith.extf %174 : vector<128x16xbf16> to vector<128x16xf32>
    %176 = vector.extract_strided_slice %88 {offsets = [0, 2], sizes = [128, 1], strides = [1, 1]} : vector<128x9xf32> to vector<128x1xf32>
    %177 = vector.broadcast %176 : vector<128x1xf32> to vector<128x16xf32>
    %178 = arith.mulf %177, %175 : vector<128x16xf32>
    %179 = arith.addf %157, %178 : vector<128x16xf32>
    %180 = vector.extract_strided_slice %99 {offsets = [0, 2], sizes = [128, 1], strides = [1, 1]} : vector<128x9xf32> to vector<128x1xf32>
    %181 = vector.broadcast %180 : vector<128x1xf32> to vector<128x16xf32>
    %182 = arith.mulf %181, %175 : vector<128x16xf32>
    %183 = arith.addf %161, %182 : vector<128x16xf32>
    %184 = vector.extract_strided_slice %110 {offsets = [0, 2], sizes = [128, 1], strides = [1, 1]} : vector<128x9xf32> to vector<128x1xf32>
    %185 = vector.broadcast %184 : vector<128x1xf32> to vector<128x16xf32>
    %186 = arith.mulf %185, %175 : vector<128x16xf32>
    %187 = arith.addf %165, %186 : vector<128x16xf32>
    %188 = vector.extract_strided_slice %121 {offsets = [0, 2], sizes = [128, 1], strides = [1, 1]} : vector<128x9xf32> to vector<128x1xf32>
    %189 = vector.broadcast %188 : vector<128x1xf32> to vector<128x16xf32>
    %190 = arith.mulf %189, %175 : vector<128x16xf32>
    %191 = arith.addf %169, %190 : vector<128x16xf32>
    %c1_i32_75 = arith.constant 1 : i32
    %192 = arith.addi %1, %c1_i32_75 : i32
    %c0_76 = arith.constant 0 : index
    %193 = arith.index_cast %192 : i32 to index
    %c0_77 = arith.constant 0 : index
    %c0_78 = arith.constant 0 : index
    %194 = vector.load %arg3[%c0_76, %193, %c0_77, %c0_78] : memref<1x18x18x16xbf16, #tpu.memory_space<vmem>>, vector<1x8x16x16xbf16>
    %195 = vector.shape_cast %194 : vector<1x8x16x16xbf16> to vector<8x16x16xbf16>
    %196 = vector.shape_cast %195 : vector<8x16x16xbf16> to vector<128x16xbf16>
    %197 = arith.extf %196 : vector<128x16xbf16> to vector<128x16xf32>
    %198 = vector.extract_strided_slice %88 {offsets = [0, 3], sizes = [128, 1], strides = [1, 1]} : vector<128x9xf32> to vector<128x1xf32>
    %199 = vector.broadcast %198 : vector<128x1xf32> to vector<128x16xf32>
    %200 = arith.mulf %199, %197 : vector<128x16xf32>
    %201 = arith.addf %179, %200 : vector<128x16xf32>
    %202 = vector.extract_strided_slice %99 {offsets = [0, 3], sizes = [128, 1], strides = [1, 1]} : vector<128x9xf32> to vector<128x1xf32>
    %203 = vector.broadcast %202 : vector<128x1xf32> to vector<128x16xf32>
    %204 = arith.mulf %203, %197 : vector<128x16xf32>
    %205 = arith.addf %183, %204 : vector<128x16xf32>
    %206 = vector.extract_strided_slice %110 {offsets = [0, 3], sizes = [128, 1], strides = [1, 1]} : vector<128x9xf32> to vector<128x1xf32>
    %207 = vector.broadcast %206 : vector<128x1xf32> to vector<128x16xf32>
    %208 = arith.mulf %207, %197 : vector<128x16xf32>
    %209 = arith.addf %187, %208 : vector<128x16xf32>
    %210 = vector.extract_strided_slice %121 {offsets = [0, 3], sizes = [128, 1], strides = [1, 1]} : vector<128x9xf32> to vector<128x1xf32>
    %211 = vector.broadcast %210 : vector<128x1xf32> to vector<128x16xf32>
    %212 = arith.mulf %211, %197 : vector<128x16xf32>
    %213 = arith.addf %191, %212 : vector<128x16xf32>
    %c1_i32_79 = arith.constant 1 : i32
    %214 = arith.addi %1, %c1_i32_79 : i32
    %c0_80 = arith.constant 0 : index
    %215 = arith.index_cast %214 : i32 to index
    %c1_81 = arith.constant 1 : index
    %c0_82 = arith.constant 0 : index
    %216 = vector.load %arg3[%c0_80, %215, %c1_81, %c0_82] : memref<1x18x18x16xbf16, #tpu.memory_space<vmem>>, vector<1x8x16x16xbf16>
    %217 = vector.shape_cast %216 : vector<1x8x16x16xbf16> to vector<8x16x16xbf16>
    %218 = vector.shape_cast %217 : vector<8x16x16xbf16> to vector<128x16xbf16>
    %219 = arith.extf %218 : vector<128x16xbf16> to vector<128x16xf32>
    %220 = vector.extract_strided_slice %88 {offsets = [0, 4], sizes = [128, 1], strides = [1, 1]} : vector<128x9xf32> to vector<128x1xf32>
    %221 = vector.broadcast %220 : vector<128x1xf32> to vector<128x16xf32>
    %222 = arith.mulf %221, %219 : vector<128x16xf32>
    %223 = arith.addf %201, %222 : vector<128x16xf32>
    %224 = vector.extract_strided_slice %99 {offsets = [0, 4], sizes = [128, 1], strides = [1, 1]} : vector<128x9xf32> to vector<128x1xf32>
    %225 = vector.broadcast %224 : vector<128x1xf32> to vector<128x16xf32>
    %226 = arith.mulf %225, %219 : vector<128x16xf32>
    %227 = arith.addf %205, %226 : vector<128x16xf32>
    %228 = vector.extract_strided_slice %110 {offsets = [0, 4], sizes = [128, 1], strides = [1, 1]} : vector<128x9xf32> to vector<128x1xf32>
    %229 = vector.broadcast %228 : vector<128x1xf32> to vector<128x16xf32>
    %230 = arith.mulf %229, %219 : vector<128x16xf32>
    %231 = arith.addf %209, %230 : vector<128x16xf32>
    %232 = vector.extract_strided_slice %121 {offsets = [0, 4], sizes = [128, 1], strides = [1, 1]} : vector<128x9xf32> to vector<128x1xf32>
    %233 = vector.broadcast %232 : vector<128x1xf32> to vector<128x16xf32>
    %234 = arith.mulf %233, %219 : vector<128x16xf32>
    %235 = arith.addf %213, %234 : vector<128x16xf32>
    %c1_i32_83 = arith.constant 1 : i32
    %236 = arith.addi %1, %c1_i32_83 : i32
    %c0_84 = arith.constant 0 : index
    %237 = arith.index_cast %236 : i32 to index
    %c2_85 = arith.constant 2 : index
    %c0_86 = arith.constant 0 : index
    %238 = vector.load %arg3[%c0_84, %237, %c2_85, %c0_86] : memref<1x18x18x16xbf16, #tpu.memory_space<vmem>>, vector<1x8x16x16xbf16>
    %239 = vector.shape_cast %238 : vector<1x8x16x16xbf16> to vector<8x16x16xbf16>
    %240 = vector.shape_cast %239 : vector<8x16x16xbf16> to vector<128x16xbf16>
    %241 = arith.extf %240 : vector<128x16xbf16> to vector<128x16xf32>
    %242 = vector.extract_strided_slice %88 {offsets = [0, 5], sizes = [128, 1], strides = [1, 1]} : vector<128x9xf32> to vector<128x1xf32>
    %243 = vector.broadcast %242 : vector<128x1xf32> to vector<128x16xf32>
    %244 = arith.mulf %243, %241 : vector<128x16xf32>
    %245 = arith.addf %223, %244 : vector<128x16xf32>
    %246 = vector.extract_strided_slice %99 {offsets = [0, 5], sizes = [128, 1], strides = [1, 1]} : vector<128x9xf32> to vector<128x1xf32>
    %247 = vector.broadcast %246 : vector<128x1xf32> to vector<128x16xf32>
    %248 = arith.mulf %247, %241 : vector<128x16xf32>
    %249 = arith.addf %227, %248 : vector<128x16xf32>
    %250 = vector.extract_strided_slice %110 {offsets = [0, 5], sizes = [128, 1], strides = [1, 1]} : vector<128x9xf32> to vector<128x1xf32>
    %251 = vector.broadcast %250 : vector<128x1xf32> to vector<128x16xf32>
    %252 = arith.mulf %251, %241 : vector<128x16xf32>
    %253 = arith.addf %231, %252 : vector<128x16xf32>
    %254 = vector.extract_strided_slice %121 {offsets = [0, 5], sizes = [128, 1], strides = [1, 1]} : vector<128x9xf32> to vector<128x1xf32>
    %255 = vector.broadcast %254 : vector<128x1xf32> to vector<128x16xf32>
    %256 = arith.mulf %255, %241 : vector<128x16xf32>
    %257 = arith.addf %235, %256 : vector<128x16xf32>
    %c2_i32_87 = arith.constant 2 : i32
    %258 = arith.addi %1, %c2_i32_87 : i32
    %c0_88 = arith.constant 0 : index
    %259 = arith.index_cast %258 : i32 to index
    %c0_89 = arith.constant 0 : index
    %c0_90 = arith.constant 0 : index
    %260 = vector.load %arg3[%c0_88, %259, %c0_89, %c0_90] : memref<1x18x18x16xbf16, #tpu.memory_space<vmem>>, vector<1x8x16x16xbf16>
    %261 = vector.shape_cast %260 : vector<1x8x16x16xbf16> to vector<8x16x16xbf16>
    %262 = vector.shape_cast %261 : vector<8x16x16xbf16> to vector<128x16xbf16>
    %263 = arith.extf %262 : vector<128x16xbf16> to vector<128x16xf32>
    %264 = vector.extract_strided_slice %88 {offsets = [0, 6], sizes = [128, 1], strides = [1, 1]} : vector<128x9xf32> to vector<128x1xf32>
    %265 = vector.broadcast %264 : vector<128x1xf32> to vector<128x16xf32>
    %266 = arith.mulf %265, %263 : vector<128x16xf32>
    %267 = arith.addf %245, %266 : vector<128x16xf32>
    %268 = vector.extract_strided_slice %99 {offsets = [0, 6], sizes = [128, 1], strides = [1, 1]} : vector<128x9xf32> to vector<128x1xf32>
    %269 = vector.broadcast %268 : vector<128x1xf32> to vector<128x16xf32>
    %270 = arith.mulf %269, %263 : vector<128x16xf32>
    %271 = arith.addf %249, %270 : vector<128x16xf32>
    %272 = vector.extract_strided_slice %110 {offsets = [0, 6], sizes = [128, 1], strides = [1, 1]} : vector<128x9xf32> to vector<128x1xf32>
    %273 = vector.broadcast %272 : vector<128x1xf32> to vector<128x16xf32>
    %274 = arith.mulf %273, %263 : vector<128x16xf32>
    %275 = arith.addf %253, %274 : vector<128x16xf32>
    %276 = vector.extract_strided_slice %121 {offsets = [0, 6], sizes = [128, 1], strides = [1, 1]} : vector<128x9xf32> to vector<128x1xf32>
    %277 = vector.broadcast %276 : vector<128x1xf32> to vector<128x16xf32>
    %278 = arith.mulf %277, %263 : vector<128x16xf32>
    %279 = arith.addf %257, %278 : vector<128x16xf32>
    %c2_i32_91 = arith.constant 2 : i32
    %280 = arith.addi %1, %c2_i32_91 : i32
    %c0_92 = arith.constant 0 : index
    %281 = arith.index_cast %280 : i32 to index
    %c1_93 = arith.constant 1 : index
    %c0_94 = arith.constant 0 : index
    %282 = vector.load %arg3[%c0_92, %281, %c1_93, %c0_94] : memref<1x18x18x16xbf16, #tpu.memory_space<vmem>>, vector<1x8x16x16xbf16>
    %283 = vector.shape_cast %282 : vector<1x8x16x16xbf16> to vector<8x16x16xbf16>
    %284 = vector.shape_cast %283 : vector<8x16x16xbf16> to vector<128x16xbf16>
    %285 = arith.extf %284 : vector<128x16xbf16> to vector<128x16xf32>
    %286 = vector.extract_strided_slice %88 {offsets = [0, 7], sizes = [128, 1], strides = [1, 1]} : vector<128x9xf32> to vector<128x1xf32>
    %287 = vector.broadcast %286 : vector<128x1xf32> to vector<128x16xf32>
    %288 = arith.mulf %287, %285 : vector<128x16xf32>
    %289 = arith.addf %267, %288 : vector<128x16xf32>
    %290 = vector.extract_strided_slice %99 {offsets = [0, 7], sizes = [128, 1], strides = [1, 1]} : vector<128x9xf32> to vector<128x1xf32>
    %291 = vector.broadcast %290 : vector<128x1xf32> to vector<128x16xf32>
    %292 = arith.mulf %291, %285 : vector<128x16xf32>
    %293 = arith.addf %271, %292 : vector<128x16xf32>
    %294 = vector.extract_strided_slice %110 {offsets = [0, 7], sizes = [128, 1], strides = [1, 1]} : vector<128x9xf32> to vector<128x1xf32>
    %295 = vector.broadcast %294 : vector<128x1xf32> to vector<128x16xf32>
    %296 = arith.mulf %295, %285 : vector<128x16xf32>
    %297 = arith.addf %275, %296 : vector<128x16xf32>
    %298 = vector.extract_strided_slice %121 {offsets = [0, 7], sizes = [128, 1], strides = [1, 1]} : vector<128x9xf32> to vector<128x1xf32>
    %299 = vector.broadcast %298 : vector<128x1xf32> to vector<128x16xf32>
    %300 = arith.mulf %299, %285 : vector<128x16xf32>
    %301 = arith.addf %279, %300 : vector<128x16xf32>
    %c2_i32_95 = arith.constant 2 : i32
    %302 = arith.addi %1, %c2_i32_95 : i32
    %c0_96 = arith.constant 0 : index
    %303 = arith.index_cast %302 : i32 to index
    %c2_97 = arith.constant 2 : index
    %c0_98 = arith.constant 0 : index
    %304 = vector.load %arg3[%c0_96, %303, %c2_97, %c0_98] : memref<1x18x18x16xbf16, #tpu.memory_space<vmem>>, vector<1x8x16x16xbf16>
    %305 = vector.shape_cast %304 : vector<1x8x16x16xbf16> to vector<8x16x16xbf16>
    %306 = vector.shape_cast %305 : vector<8x16x16xbf16> to vector<128x16xbf16>
    %307 = arith.extf %306 : vector<128x16xbf16> to vector<128x16xf32>
    %308 = vector.extract_strided_slice %88 {offsets = [0, 8], sizes = [128, 1], strides = [1, 1]} : vector<128x9xf32> to vector<128x1xf32>
    %309 = vector.broadcast %308 : vector<128x1xf32> to vector<128x16xf32>
    %310 = arith.mulf %309, %307 : vector<128x16xf32>
    %311 = arith.addf %289, %310 : vector<128x16xf32>
    %312 = vector.extract_strided_slice %99 {offsets = [0, 8], sizes = [128, 1], strides = [1, 1]} : vector<128x9xf32> to vector<128x1xf32>
    %313 = vector.broadcast %312 : vector<128x1xf32> to vector<128x16xf32>
    %314 = arith.mulf %313, %307 : vector<128x16xf32>
    %315 = arith.addf %293, %314 : vector<128x16xf32>
    %316 = vector.extract_strided_slice %110 {offsets = [0, 8], sizes = [128, 1], strides = [1, 1]} : vector<128x9xf32> to vector<128x1xf32>
    %317 = vector.broadcast %316 : vector<128x1xf32> to vector<128x16xf32>
    %318 = arith.mulf %317, %307 : vector<128x16xf32>
    %319 = arith.addf %297, %318 : vector<128x16xf32>
    %320 = vector.extract_strided_slice %121 {offsets = [0, 8], sizes = [128, 1], strides = [1, 1]} : vector<128x9xf32> to vector<128x1xf32>
    %321 = vector.broadcast %320 : vector<128x1xf32> to vector<128x16xf32>
    %322 = arith.mulf %321, %307 : vector<128x16xf32>
    %323 = arith.addf %301, %322 : vector<128x16xf32>
    %c0_99 = arith.constant 0 : index
    %c0_100 = arith.constant 0 : index
    %324 = vector.load %arg7[%c0_99, %c0_100] : memref<1x16xf32, #tpu.memory_space<vmem>>, vector<1x16xf32>
    %325 = arith.truncf %311 : vector<128x16xf32> to vector<128x16xbf16>
    %c0_101 = arith.constant 0 : index
    %c0_102 = arith.constant 0 : index
    %326 = vector.load %arg6[%c0_101, %c0_102] : memref<16x16xbf16, #tpu.memory_space<vmem>>, vector<16x16xbf16>
    %cst_103 = arith.constant dense<0.000000e+00> : vector<128x16xf32>
    %327 = tpu.matmul %325, %326, %cst_103 {dimension_numbers = #tpu.dot_dimension_numbers<[1], [0], [0], [1], [0, 0, 1, 1], [], []>} : vector<128x16xbf16>, vector<16x16xbf16>, vector<128x16xf32> -> vector<128x16xf32>
    %328 = vector.broadcast %324 : vector<1x16xf32> to vector<128x16xf32>
    %329 = arith.addf %327, %328 : vector<128x16xf32>
    %330 = vector.shape_cast %329 : vector<128x16xf32> to vector<8x16x16xf32>
    %331 = arith.truncf %315 : vector<128x16xf32> to vector<128x16xbf16>
    %c0_104 = arith.constant 0 : index
    %c0_105 = arith.constant 0 : index
    %332 = vector.load %arg6[%c0_104, %c0_105] : memref<16x16xbf16, #tpu.memory_space<vmem>>, vector<16x16xbf16>
    %cst_106 = arith.constant dense<0.000000e+00> : vector<128x16xf32>
    %333 = tpu.matmul %331, %332, %cst_106 {dimension_numbers = #tpu.dot_dimension_numbers<[1], [0], [0], [1], [0, 0, 1, 1], [], []>} : vector<128x16xbf16>, vector<16x16xbf16>, vector<128x16xf32> -> vector<128x16xf32>
    %334 = vector.broadcast %324 : vector<1x16xf32> to vector<128x16xf32>
    %335 = arith.addf %333, %334 : vector<128x16xf32>
    %336 = vector.shape_cast %335 : vector<128x16xf32> to vector<8x16x16xf32>
    %337 = arith.truncf %319 : vector<128x16xf32> to vector<128x16xbf16>
    %c0_107 = arith.constant 0 : index
    %c0_108 = arith.constant 0 : index
    %338 = vector.load %arg6[%c0_107, %c0_108] : memref<16x16xbf16, #tpu.memory_space<vmem>>, vector<16x16xbf16>
    %cst_109 = arith.constant dense<0.000000e+00> : vector<128x16xf32>
    %339 = tpu.matmul %337, %338, %cst_109 {dimension_numbers = #tpu.dot_dimension_numbers<[1], [0], [0], [1], [0, 0, 1, 1], [], []>} : vector<128x16xbf16>, vector<16x16xbf16>, vector<128x16xf32> -> vector<128x16xf32>
    %340 = vector.broadcast %324 : vector<1x16xf32> to vector<128x16xf32>
    %341 = arith.addf %339, %340 : vector<128x16xf32>
    %342 = vector.shape_cast %341 : vector<128x16xf32> to vector<8x16x16xf32>
    %343 = arith.truncf %323 : vector<128x16xf32> to vector<128x16xbf16>
    %c0_110 = arith.constant 0 : index
    %c0_111 = arith.constant 0 : index
    %344 = vector.load %arg6[%c0_110, %c0_111] : memref<16x16xbf16, #tpu.memory_space<vmem>>, vector<16x16xbf16>
    %cst_112 = arith.constant dense<0.000000e+00> : vector<128x16xf32>
    %345 = tpu.matmul %343, %344, %cst_112 {dimension_numbers = #tpu.dot_dimension_numbers<[1], [0], [0], [1], [0, 0, 1, 1], [], []>} : vector<128x16xbf16>, vector<16x16xbf16>, vector<128x16xf32> -> vector<128x16xf32>
    %346 = vector.broadcast %324 : vector<1x16xf32> to vector<128x16xf32>
    %347 = arith.addf %345, %346 : vector<128x16xf32>
    %348 = vector.shape_cast %347 : vector<128x16xf32> to vector<8x16x16xf32>
    %349 = vector.shape_cast %330 : vector<8x16x16xf32> to vector<8x16x1x16xf32>
    %350 = vector.shape_cast %336 : vector<8x16x16xf32> to vector<8x16x1x16xf32>
    %351 = tpu.concatenate %349, %350 in 2 : vector<8x16x1x16xf32>, vector<8x16x1x16xf32> -> vector<8x16x2x16xf32>
    %352 = vector.shape_cast %351 : vector<8x16x2x16xf32> to vector<8x32x16xf32>
    %353 = vector.shape_cast %342 : vector<8x16x16xf32> to vector<8x16x1x16xf32>
    %354 = vector.shape_cast %348 : vector<8x16x16xf32> to vector<8x16x1x16xf32>
    %355 = tpu.concatenate %353, %354 in 2 : vector<8x16x1x16xf32>, vector<8x16x1x16xf32> -> vector<8x16x2x16xf32>
    %356 = vector.shape_cast %355 : vector<8x16x2x16xf32> to vector<8x32x16xf32>
    %357 = vector.shape_cast %352 : vector<8x32x16xf32> to vector<8x1x32x16xf32>
    %358 = vector.shape_cast %356 : vector<8x32x16xf32> to vector<8x1x32x16xf32>
    %359 = tpu.concatenate %357, %358 in 1 : vector<8x1x32x16xf32>, vector<8x1x32x16xf32> -> vector<8x2x32x16xf32>
    %360 = vector.shape_cast %359 : vector<8x2x32x16xf32> to vector<16x32x16xf32>
    %c0_113 = arith.constant 0 : index
    %c0_114 = arith.constant 0 : index
    %c0_115 = arith.constant 0 : index
    %c0_116 = arith.constant 0 : index
    %361 = vector.load %arg8[%c0_113, %c0_114, %c0_115, %c0_116] : memref<1x16x32x16xf32, #tpu.memory_space<vmem>>, vector<1x16x32x16xf32>
    %362 = vector.shape_cast %361 : vector<1x16x32x16xf32> to vector<16x32x16xf32>
    %363 = vector.shape_cast %360 : vector<16x32x16xf32> to vector<1x16x32x16xf32>
    tpu.vector_store %arg8[%c0_113, %c0_114, %c0_115, %c0_116], %363 {strides = array<i32>} : memref<1x16x32x16xf32, #tpu.memory_space<vmem>>, vector<1x16x32x16xf32>,
    return
  }
  func.func @transform_0(%arg0: i32, %arg1: i32) -> (i32, i32, i32, i32) {
    %c0_i32 = arith.constant 0 : i32
    %c0_i32_0 = arith.constant 0 : i32
    %c0_i32_1 = arith.constant 0 : i32
    %c0_i32_2 = arith.constant 0 : i32
    return %arg0, %c0_i32, %c0_i32_0, %c0_i32_1 : i32, i32, i32, i32
  }
  func.func @transform_1(%arg0: i32, %arg1: i32) -> (i32, i32, i32, i32) {
    %c0_i32 = arith.constant 0 : i32
    %c0_i32_0 = arith.constant 0 : i32
    %c0_i32_1 = arith.constant 0 : i32
    %c0_i32_2 = arith.constant 0 : i32
    return %arg0, %c0_i32, %c0_i32_0, %c0_i32_1 : i32, i32, i32, i32
  }
  func.func @transform_2(%arg0: i32, %arg1: i32) -> (i32, i32) {
    %c0_i32 = arith.constant 0 : i32
    %c0_i32_0 = arith.constant 0 : i32
    %c0_i32_1 = arith.constant 0 : i32
    return %c0_i32, %c0_i32_0 : i32, i32
  }
  func.func @transform_3(%arg0: i32, %arg1: i32) -> (i32, i32) {
    %c0_i32 = arith.constant 0 : i32
    %c0_i32_0 = arith.constant 0 : i32
    %c0_i32_1 = arith.constant 0 : i32
    return %c0_i32, %c0_i32_0 : i32, i32
  }
  func.func @transform_4(%arg0: i32, %arg1: i32) -> (i32, i32) {
    %c0_i32 = arith.constant 0 : i32
    %c0_i32_0 = arith.constant 0 : i32
    %c0_i32_1 = arith.constant 0 : i32
    return %c0_i32, %c0_i32_0 : i32, i32
  }
  func.func @transform_5(%arg0: i32, %arg1: i32) -> (i32, i32) {
    %c0_i32 = arith.constant 0 : i32
    %c0_i32_0 = arith.constant 0 : i32
    %c0_i32_1 = arith.constant 0 : i32
    return %c0_i32, %c0_i32_0 : i32, i32
  }
  func.func @transform_6(%arg0: i32, %arg1: i32) -> (i32, i32, i32, i32) {
    %c0_i32 = arith.constant 0 : i32
    %c0_i32_0 = arith.constant 0 : i32
    %c0_i32_1 = arith.constant 0 : i32
    return %arg0, %arg1, %c0_i32, %c0_i32_0 : i32, i32, i32, i32
  }
}

</mosaic_0001>

<llo_original>
// kernel: carafe_forward.2
$region0: #{carafe_forward.2}
  #allocation0 [shape = 'u32[]', space=smem, size = 0x4, offset = 0x4, fixed_abs, tag = 'smem constant byte address 0x4 - core index']
  #allocation1 [shape = 'u32[72,128]{1,0:T(1,128)}', space=vmem, size = 0x9000, scoped, tag = 'internal scratch']
  %s0 = inlined_call_operand.vmem [shape: bf16[512,16], index: 0, kind: input, shape index: {}]
  %s1 = inlined_call_operand.vmem [shape: bf16[16,4], index: 1, kind: input, shape index: {}]
  %s2 = inlined_call_operand.vmem [shape: f32[1,4], index: 2, kind: input, shape index: {}]
  %s3 = inlined_call_operand.vmem [shape: bf16[512,4], index: 3, kind: output, shape index: {}]
  %s4 = sld [smem:[#allocation0]]
  $region22: #{carafe_forward.2} parent=0
    _
  %s6 = ssub.s32 1, %s4
  %s7 = scalar_select 0, %s6, %s4
  // Predicated region
  $region2: #{carafe_forward.2} parent=0 // pred_check
    _
  $region3: #{carafe_forward.2} parent=0 // pred_check_branch
    %9 = sbr.rel (0) target = $region5
  $region4: #{carafe_forward.2} parent=0 // pred_region
    _
  $region5: #{carafe_forward.2} parent=0 // pred_fallthru
    _
  // Predicated region
  $region6: #{carafe_forward.2} parent=0 // pred_check
    _
  $region7: #{carafe_forward.2} parent=0 // pred_check_branch
    %11 = sbr.rel (0) target = $region9
  $region8: #{carafe_forward.2} parent=0 // pred_region
    _
  $region9: #{carafe_forward.2} parent=0 // pred_fallthru
    _
  // Predicated region
  $region10: #{carafe_forward.2} parent=0 // pred_check
    _
  $region11: #{carafe_forward.2} parent=0 // pred_check_branch
    %13 = sbr.rel (0) target = $region13
  $region12: #{carafe_forward.2} parent=0 // pred_region
    _
  $region13: #{carafe_forward.2} parent=0 // pred_fallthru
    _
  %v15 = vld [vmem:[%s0] sm:$0xf]
  %v16 = vld [vmem:[%s0 + $0x4] sm:$0xf]
  %v17 = vld [vmem:[%s0 + $0x8] sm:$0xf]
  %v18 = vld [vmem:[%s0 + $0xc] sm:$0xf]
  %v19 = vld [vmem:[%s0 + $0x10] sm:$0xf]
  %v20 = vld [vmem:[%s0 + $0x14] sm:$0xf]
  %v21 = vld [vmem:[%s0 + $0x18] sm:$0xf]
  %v22 = vld [vmem:[%s0 + $0x1c] sm:$0xf]
  %v23 = vld [vmem:[%s0 + $0x20] sm:$0xf]
  %v24 = vld [vmem:[%s0 + $0x24] sm:$0xf]
  %v25 = vld [vmem:[%s0 + $0x28] sm:$0xf]
  %v26 = vld [vmem:[%s0 + $0x2c] sm:$0xf]
  %v27 = vld [vmem:[%s0 + $0x30] sm:$0xf]
  %v28 = vld [vmem:[%s0 + $0x34] sm:$0xf]
  %v29 = vld [vmem:[%s0 + $0x38] sm:$0xf]
  %v30 = vld [vmem:[%s0 + $0x3c] sm:$0xf]
  %v31 = vld [vmem:[%s0 + $0x40] sm:$0xf]
  %v32 = vld [vmem:[%s0 + $0x44] sm:$0xf]
  %v33 = vld [vmem:[%s0 + $0x48] sm:$0xf]
  %v34 = vld [vmem:[%s0 + $0x4c] sm:$0xf]
  %v35 = vld [vmem:[%s0 + $0x50] sm:$0xf]
  %v36 = vld [vmem:[%s0 + $0x54] sm:$0xf]
  %v37 = vld [vmem:[%s0 + $0x58] sm:$0xf]
  %v38 = vld [vmem:[%s0 + $0x5c] sm:$0xf]
  %v39 = vld [vmem:[%s0 + $0x60] sm:$0xf]
  %v40 = vld [vmem:[%s0 + $0x64] sm:$0xf]
  %v41 = vld [vmem:[%s0 + $0x68] sm:$0xf]
  %v42 = vld [vmem:[%s0 + $0x6c] sm:$0xf]
  %v43 = vld [vmem:[%s0 + $0x70] sm:$0xf]
  %v44 = vld [vmem:[%s0 + $0x74] sm:$0xf]
  %v45 = vld [vmem:[%s0 + $0x78] sm:$0xf]
  %v46 = vld [vmem:[%s0 + $0x7c] sm:$0xf]
  %v47 = vld [vmem:[%s0 + $0x80] sm:$0xf]
  %v48 = vld [vmem:[%s0 + $0x84] sm:$0xf]
  %v49 = vld [vmem:[%s0 + $0x88] sm:$0xf]
  %v50 = vld [vmem:[%s0 + $0x8c] sm:$0xf]
  %v51 = vld [vmem:[%s0 + $0x90] sm:$0xf]
  %v52 = vld [vmem:[%s0 + $0x94] sm:$0xf]
  %v53 = vld [vmem:[%s0 + $0x98] sm:$0xf]
  %v54 = vld [vmem:[%s0 + $0x9c] sm:$0xf]
  %v55 = vld [vmem:[%s0 + $0xa0] sm:$0xf]
  %v56 = vld [vmem:[%s0 + $0xa4] sm:$0xf]
  %v57 = vld [vmem:[%s0 + $0xa8] sm:$0xf]
  %v58 = vld [vmem:[%s0 + $0xac] sm:$0xf]
  %v59 = vld [vmem:[%s0 + $0xb0] sm:$0xf]
  %v60 = vld [vmem:[%s0 + $0xb4] sm:$0xf]
  %v61 = vld [vmem:[%s0 + $0xb8] sm:$0xf]
  %v62 = vld [vmem:[%s0 + $0xbc] sm:$0xf]
  %v63 = vld [vmem:[%s0 + $0xc0] sm:$0xf]
  %v64 = vld [vmem:[%s0 + $0xc4] sm:$0xf]
  %v65 = vld [vmem:[%s0 + $0xc8] sm:$0xf]
  %v66 = vld [vmem:[%s0 + $0xcc] sm:$0xf]
  %v67 = vld [vmem:[%s0 + $0xd0] sm:$0xf]
  %v68 = vld [vmem:[%s0 + $0xd4] sm:$0xf]
  %v69 = vld [vmem:[%s0 + $0xd8] sm:$0xf]
  %v70 = vld [vmem:[%s0 + $0xdc] sm:$0xf]
  %v71 = vld [vmem:[%s0 + $0xe0] sm:$0xf]
  %v72 = vld [vmem:[%s0 + $0xe4] sm:$0xf]
  %v73 = vld [vmem:[%s0 + $0xe8] sm:$0xf]
  %v74 = vld [vmem:[%s0 + $0xec] sm:$0xf]
  %v75 = vld [vmem:[%s0 + $0xf0] sm:$0xf]
  %v76 = vld [vmem:[%s0 + $0xf4] sm:$0xf]
  %v77 = vld [vmem:[%s0 + $0xf8] sm:$0xf]
  %v78 = vld [vmem:[%s0 + $0xfc] sm:$0xf]
  %v79 = vld [vmem:[%s1] sm:$0xf]
  %v80 = vld [vmem:[%s1 + $0x4] sm:$0xf]
  %v81 = vld [vmem:[%s2] sm:$0x1]
  %v83 = vperm.slane %v81, 0
  %v149 = vunpack.c.l.b16 %v15
  %v150 = vunpack.c.l.b16 %v16
  %v151 = vunpack.c.l.b16 %v17
  %v152 = vunpack.c.l.b16 %v18
  %v153 = vunpack.c.l.b16 %v19
  %v154 = vunpack.c.l.b16 %v20
  %v155 = vunpack.c.l.b16 %v21
  %v156 = vunpack.c.l.b16 %v22
  %v157 = vunpack.c.l.b16 %v23
  %v158 = vunpack.c.l.b16 %v24
  %v159 = vunpack.c.l.b16 %v25
  %v160 = vunpack.c.l.b16 %v26
  %v161 = vunpack.c.l.b16 %v27
  %v162 = vunpack.c.l.b16 %v28
  %v163 = vunpack.c.l.b16 %v29
  %v164 = vunpack.c.l.b16 %v30
  %v165 = vunpack.c.l.b16 %v31
  %v166 = vunpack.c.l.b16 %v32
  %v167 = vunpack.c.l.b16 %v33
  %v168 = vunpack.c.l.b16 %v34
  %v169 = vunpack.c.l.b16 %v35
  %v170 = vunpack.c.l.b16 %v36
  %v171 = vunpack.c.l.b16 %v37
  %v172 = vunpack.c.l.b16 %v38
  %v173 = vunpack.c.l.b16 %v39
  %v174 = vunpack.c.l.b16 %v40
  %v175 = vunpack.c.l.b16 %v41
  %v176 = vunpack.c.l.b16 %v42
  %v177 = vunpack.c.l.b16 %v43
  %v178 = vunpack.c.l.b16 %v44
  %v179 = vunpack.c.l.b16 %v45
  %v180 = vunpack.c.l.b16 %v46
  %v181 = vunpack.c.l.b16 %v47
  %v182 = vunpack.c.l.b16 %v48
  %v183 = vunpack.c.l.b16 %v49
  %v184 = vunpack.c.l.b16 %v50
  %v185 = vunpack.c.l.b16 %v51
  %v186 = vunpack.c.l.b16 %v52
  %v187 = vunpack.c.l.b16 %v53
  %v188 = vunpack.c.l.b16 %v54
  %v189 = vunpack.c.l.b16 %v55
  %v190 = vunpack.c.l.b16 %v56
  %v191 = vunpack.c.l.b16 %v57
  %v192 = vunpack.c.l.b16 %v58
  %v193 = vunpack.c.l.b16 %v59
  %v194 = vunpack.c.l.b16 %v60
  %v195 = vunpack.c.l.b16 %v61
  %v196 = vunpack.c.l.b16 %v62
  %v197 = vunpack.c.l.b16 %v63
  %v198 = vunpack.c.l.b16 %v64
  %v199 = vunpack.c.l.b16 %v65
  %v200 = vunpack.c.l.b16 %v66
  %v201 = vunpack.c.l.b16 %v67
  %v202 = vunpack.c.l.b16 %v68
  %v203 = vunpack.c.l.b16 %v69
  %v204 = vunpack.c.l.b16 %v70
  %v205 = vunpack.c.l.b16 %v71
  %v206 = vunpack.c.l.b16 %v72
  %v207 = vunpack.c.l.b16 %v73
  %v208 = vunpack.c.l.b16 %v74
  %v209 = vunpack.c.l.b16 %v75
  %v210 = vunpack.c.l.b16 %v76
  %v211 = vunpack.c.l.b16 %v77
  %v212 = vunpack.c.l.b16 %v78
  %v213 = vpack.c.b16 %v150, %v149
  %v214 = vpack.c.b16 %v152, %v151
  %v215 = vpack.c.b16 %v154, %v153
  %v216 = vpack.c.b16 %v156, %v155
  %v217 = vpack.c.b16 %v158, %v157
  %v218 = vpack.c.b16 %v160, %v159
  %v219 = vpack.c.b16 %v162, %v161
  %v220 = vpack.c.b16 %v164, %v163
  %v221 = vpack.c.b16 %v166, %v165
  %v222 = vpack.c.b16 %v168, %v167
  %v223 = vpack.c.b16 %v170, %v169
  %v224 = vpack.c.b16 %v172, %v171
  %v225 = vpack.c.b16 %v174, %v173
  %v226 = vpack.c.b16 %v176, %v175
  %v227 = vpack.c.b16 %v178, %v177
  %v228 = vpack.c.b16 %v180, %v179
  %v229 = vpack.c.b16 %v182, %v181
  %v230 = vpack.c.b16 %v184, %v183
  %v231 = vpack.c.b16 %v186, %v185
  %v232 = vpack.c.b16 %v188, %v187
  %v233 = vpack.c.b16 %v190, %v189
  %v234 = vpack.c.b16 %v192, %v191
  %v235 = vpack.c.b16 %v194, %v193
  %v236 = vpack.c.b16 %v196, %v195
  %v237 = vpack.c.b16 %v198, %v197
  %v238 = vpack.c.b16 %v200, %v199
  %v239 = vpack.c.b16 %v202, %v201
  %v240 = vpack.c.b16 %v204, %v203
  %v241 = vpack.c.b16 %v206, %v205
  %v242 = vpack.c.b16 %v208, %v207
  %v243 = vpack.c.b16 %v210, %v209
  %v244 = vpack.c.b16 %v212, %v211
  %v247 = vunpack.c.l.b16 %v79
  %v248 = vunpack.c.l.b16 %v80
  %v249 = vpack.c.b16 %v248, %v247
  %vm251 = vcmask 130048
  %v253 = vsel %vm251, %v213, 0
  %v256 = vsel %vm251, %v214, 0
  %v259 = vsel %vm251, %v215, 0
  %v262 = vsel %vm251, %v216, 0
  %v265 = vsel %vm251, %v217, 0
  %v268 = vsel %vm251, %v218, 0
  %v271 = vsel %vm251, %v219, 0
  %v274 = vsel %vm251, %v220, 0
  %v277 = vsel %vm251, %v221, 0
  %v280 = vsel %vm251, %v222, 0
  %v283 = vsel %vm251, %v223, 0
  %v286 = vsel %vm251, %v224, 0
  %v289 = vsel %vm251, %v225, 0
  %v292 = vsel %vm251, %v226, 0
  %v295 = vsel %vm251, %v227, 0
  %v298 = vsel %vm251, %v228, 0
  %v301 = vsel %vm251, %v229, 0
  %v304 = vsel %vm251, %v230, 0
  %v307 = vsel %vm251, %v231, 0
  %v310 = vsel %vm251, %v232, 0
  %v313 = vsel %vm251, %v233, 0
  %v316 = vsel %vm251, %v234, 0
  %v319 = vsel %vm251, %v235, 0
  %v322 = vsel %vm251, %v236, 0
  %v325 = vsel %vm251, %v237, 0
  %v328 = vsel %vm251, %v238, 0
  %v331 = vsel %vm251, %v239, 0
  %v334 = vsel %vm251, %v240, 0
  %v337 = vsel %vm251, %v241, 0
  %v340 = vsel %vm251, %v242, 0
  %v343 = vsel %vm251, %v243, 0
  %v346 = vsel %vm251, %v244, 0
  %348 = vmatpush.bf16.msra.mxu0 0
  %349 = vmatpush.bf16.msra.mxu0 0
  %350 = vmatpush.bf16.msra.mxu0 0
  %351 = vmatpush.bf16.msra.mxu0 0
  %352 = vmatpush.bf16.msra.mxu0 0
  %353 = vmatpush.bf16.msra.mxu0 0
  %354 = vmatpush.bf16.msra.mxu0 0
  %355 = vmatpush.bf16.msra.mxu0 %v249
  %356 = vmatmul.bf16.gmra.mxu0 %v253
  %v357 = vpop.f32.mrf.mxu0
  %v358 = vadd.f32 %v83, %v357
  %v359 = vpop.f32.mrf.mxu0
  %v360 = vadd.f32 %v83, %v359
  %361 = vmatmul.bf16.gmra.mxu0 %v256
  %v362 = vpop.f32.mrf.mxu0
  %v363 = vadd.f32 %v83, %v362
  %v364 = vpop.f32.mrf.mxu0
  %v365 = vadd.f32 %v83, %v364
  %366 = vmatmul.bf16.gmra.mxu0 %v259
  %v367 = vpop.f32.mrf.mxu0
  %v368 = vadd.f32 %v83, %v367
  %v369 = vpop.f32.mrf.mxu0
  %v370 = vadd.f32 %v83, %v369
  %371 = vmatmul.bf16.gmra.mxu0 %v262
  %v372 = vpop.f32.mrf.mxu0
  %v373 = vadd.f32 %v83, %v372
  %v374 = vpop.f32.mrf.mxu0
  %v375 = vadd.f32 %v83, %v374
  %376 = vmatmul.bf16.gmra.mxu0 %v265
  %v377 = vpop.f32.mrf.mxu0
  %v378 = vadd.f32 %v83, %v377
  %v379 = vpop.f32.mrf.mxu0
  %v380 = vadd.f32 %v83, %v379
  %381 = vmatmul.bf16.gmra.mxu0 %v268
  %v382 = vpop.f32.mrf.mxu0
  %v383 = vadd.f32 %v83, %v382
  %v384 = vpop.f32.mrf.mxu0
  %v385 = vadd.f32 %v83, %v384
  %386 = vmatmul.bf16.gmra.mxu0 %v271
  %v387 = vpop.f32.mrf.mxu0
  %v388 = vadd.f32 %v83, %v387
  %v389 = vpop.f32.mrf.mxu0
  %v390 = vadd.f32 %v83, %v389
  %391 = vmatmul.bf16.gmra.mxu0 %v274
  %v392 = vpop.f32.mrf.mxu0
  %v393 = vadd.f32 %v83, %v392
  %v394 = vpop.f32.mrf.mxu0
  %v395 = vadd.f32 %v83, %v394
  %396 = vmatmul.bf16.gmra.mxu0 %v277
  %v397 = vpop.f32.mrf.mxu0
  %v398 = vadd.f32 %v83, %v397
  %v399 = vpop.f32.mrf.mxu0
  %v400 = vadd.f32 %v83, %v399
  %401 = vmatmul.bf16.gmra.mxu0 %v280
  %v402 = vpop.f32.mrf.mxu0
  %v403 = vadd.f32 %v83, %v402
  %v404 = vpop.f32.mrf.mxu0
  %v405 = vadd.f32 %v83, %v404
  %406 = vmatmul.bf16.gmra.mxu0 %v283
  %v407 = vpop.f32.mrf.mxu0
  %v408 = vadd.f32 %v83, %v407
  %v409 = vpop.f32.mrf.mxu0
  %v410 = vadd.f32 %v83, %v409
  %411 = vmatmul.bf16.gmra.mxu0 %v286
  %v412 = vpop.f32.mrf.mxu0
  %v413 = vadd.f32 %v83, %v412
  %v414 = vpop.f32.mrf.mxu0
  %v415 = vadd.f32 %v83, %v414
  %416 = vmatmul.bf16.gmra.mxu0 %v289
  %v417 = vpop.f32.mrf.mxu0
  %v418 = vadd.f32 %v83, %v417
  %v419 = vpop.f32.mrf.mxu0
  %v420 = vadd.f32 %v83, %v419
  %421 = vmatmul.bf16.gmra.mxu0 %v292
  %v422 = vpop.f32.mrf.mxu0
  %v423 = vadd.f32 %v83, %v422
  %v424 = vpop.f32.mrf.mxu0
  %v425 = vadd.f32 %v83, %v424
  %426 = vmatmul.bf16.gmra.mxu0 %v295
  %v427 = vpop.f32.mrf.mxu0
  %v428 = vadd.f32 %v83, %v427
  %v429 = vpop.f32.mrf.mxu0
  %v430 = vadd.f32 %v83, %v429
  %431 = vmatmul.bf16.gmra.mxu0 %v298
  %v432 = vpop.f32.mrf.mxu0
  %v433 = vadd.f32 %v83, %v432
  %v434 = vpop.f32.mrf.mxu0
  %v435 = vadd.f32 %v83, %v434
  %436 = vmatmul.bf16.gmra.mxu0 %v301
  %v437 = vpop.f32.mrf.mxu0
  %v438 = vadd.f32 %v83, %v437
  %v439 = vpop.f32.mrf.mxu0
  %v440 = vadd.f32 %v83, %v439
  %441 = vmatmul.bf16.gmra.mxu0 %v304
  %v442 = vpop.f32.mrf.mxu0
  %v443 = vadd.f32 %v83, %v442
  %v444 = vpop.f32.mrf.mxu0
  %v445 = vadd.f32 %v83, %v444
  %446 = vmatmul.bf16.gmra.mxu0 %v307
  %v447 = vpop.f32.mrf.mxu0
  %v448 = vadd.f32 %v83, %v447
  %v449 = vpop.f32.mrf.mxu0
  %v450 = vadd.f32 %v83, %v449
  %451 = vmatmul.bf16.gmra.mxu0 %v310
  %v452 = vpop.f32.mrf.mxu0
  %v453 = vadd.f32 %v83, %v452
  %v454 = vpop.f32.mrf.mxu0
  %v455 = vadd.f32 %v83, %v454
  %456 = vmatmul.bf16.gmra.mxu0 %v313
  %v457 = vpop.f32.mrf.mxu0
  %v458 = vadd.f32 %v83, %v457
  %v459 = vpop.f32.mrf.mxu0
  %v460 = vadd.f32 %v83, %v459
  %461 = vmatmul.bf16.gmra.mxu0 %v316
  %v462 = vpop.f32.mrf.mxu0
  %v463 = vadd.f32 %v83, %v462
  %v464 = vpop.f32.mrf.mxu0
  %v465 = vadd.f32 %v83, %v464
  %466 = vmatmul.bf16.gmra.mxu0 %v319
  %v467 = vpop.f32.mrf.mxu0
  %v468 = vadd.f32 %v83, %v467
  %v469 = vpop.f32.mrf.mxu0
  %v470 = vadd.f32 %v83, %v469
  %471 = vmatmul.bf16.gmra.mxu0 %v322
  %v472 = vpop.f32.mrf.mxu0
  %v473 = vadd.f32 %v83, %v472
  %v474 = vpop.f32.mrf.mxu0
  %v475 = vadd.f32 %v83, %v474
  %476 = vmatmul.bf16.gmra.mxu0 %v325
  %v477 = vpop.f32.mrf.mxu0
  %v478 = vadd.f32 %v83, %v477
  %v479 = vpop.f32.mrf.mxu0
  %v480 = vadd.f32 %v83, %v479
  %481 = vmatmul.bf16.gmra.mxu0 %v328
  %v482 = vpop.f32.mrf.mxu0
  %v483 = vadd.f32 %v83, %v482
  %v484 = vpop.f32.mrf.mxu0
  %v485 = vadd.f32 %v83, %v484
  %486 = vmatmul.bf16.gmra.mxu0 %v331
  %v487 = vpop.f32.mrf.mxu0
  %v488 = vadd.f32 %v83, %v487
  %v489 = vpop.f32.mrf.mxu0
  %v490 = vadd.f32 %v83, %v489
  %491 = vmatmul.bf16.gmra.mxu0 %v334
  %v492 = vpop.f32.mrf.mxu0
  %v493 = vadd.f32 %v83, %v492
  %v494 = vpop.f32.mrf.mxu0
  %v495 = vadd.f32 %v83, %v494
  %496 = vmatmul.bf16.gmra.mxu0 %v337
  %v497 = vpop.f32.mrf.mxu0
  %v498 = vadd.f32 %v83, %v497
  %v499 = vpop.f32.mrf.mxu0
  %v500 = vadd.f32 %v83, %v499
  %501 = vmatmul.bf16.gmra.mxu0 %v340
  %v502 = vpop.f32.mrf.mxu0
  %v503 = vadd.f32 %v83, %v502
  %v504 = vpop.f32.mrf.mxu0
  %v505 = vadd.f32 %v83, %v504
  %506 = vmatmul.bf16.gmra.mxu0 %v343
  %v507 = vpop.f32.mrf.mxu0
  %v508 = vadd.f32 %v83, %v507
  %v509 = vpop.f32.mrf.mxu0
  %v510 = vadd.f32 %v83, %v509
  %511 = vmatmul.bf16.gmra.mxu0 %v346
  %v512 = vpop.f32.mrf.mxu0
  %v513 = vadd.f32 %v83, %v512
  %v514 = vpop.f32.mrf.mxu0
  %v515 = vadd.f32 %v83, %v514
  %516 = vdwg.mxu0
  %v517 = vpack.c.bf16 %v358, %v358
  %v518 = vpack.c.bf16 %v360, %v360
  %v519 = vpack.c.bf16 %v363, %v363
  %v520 = vpack.c.bf16 %v365, %v365
  %v521 = vpack.c.bf16 %v368, %v368
  %v522 = vpack.c.bf16 %v370, %v370
  %v523 = vpack.c.bf16 %v373, %v373
  %v524 = vpack.c.bf16 %v375, %v375
  %v525 = vpack.c.bf16 %v378, %v378
  %v526 = vpack.c.bf16 %v380, %v380
  %v527 = vpack.c.bf16 %v383, %v383
  %v528 = vpack.c.bf16 %v385, %v385
  %v529 = vpack.c.bf16 %v388, %v388
  %v530 = vpack.c.bf16 %v390, %v390
  %v531 = vpack.c.bf16 %v393, %v393
  %v532 = vpack.c.bf16 %v395, %v395
  %v533 = vpack.c.bf16 %v398, %v398
  %v534 = vpack.c.bf16 %v400, %v400
  %v535 = vpack.c.bf16 %v403, %v403
  %v536 = vpack.c.bf16 %v405, %v405
  %v537 = vpack.c.bf16 %v408, %v408
  %v538 = vpack.c.bf16 %v410, %v410
  %v539 = vpack.c.bf16 %v413, %v413
  %v540 = vpack.c.bf16 %v415, %v415
  %v541 = vpack.c.bf16 %v418, %v418
  %v542 = vpack.c.bf16 %v420, %v420
  %v543 = vpack.c.bf16 %v423, %v423
  %v544 = vpack.c.bf16 %v425, %v425
  %v545 = vpack.c.bf16 %v428, %v428
  %v546 = vpack.c.bf16 %v430, %v430
  %v547 = vpack.c.bf16 %v433, %v433
  %v548 = vpack.c.bf16 %v435, %v435
  %v549 = vpack.c.bf16 %v438, %v438
  %v550 = vpack.c.bf16 %v440, %v440
  %v551 = vpack.c.bf16 %v443, %v443
  %v552 = vpack.c.bf16 %v445, %v445
  %v553 = vpack.c.bf16 %v448, %v448
  %v554 = vpack.c.bf16 %v450, %v450
  %v555 = vpack.c.bf16 %v453, %v453
  %v556 = vpack.c.bf16 %v455, %v455
  %v557 = vpack.c.bf16 %v458, %v458
  %v558 = vpack.c.bf16 %v460, %v460
  %v559 = vpack.c.bf16 %v463, %v463
  %v560 = vpack.c.bf16 %v465, %v465
  %v561 = vpack.c.bf16 %v468, %v468
  %v562 = vpack.c.bf16 %v470, %v470
  %v563 = vpack.c.bf16 %v473, %v473
  %v564 = vpack.c.bf16 %v475, %v475
  %v565 = vpack.c.bf16 %v478, %v478
  %v566 = vpack.c.bf16 %v480, %v480
  %v567 = vpack.c.bf16 %v483, %v483
  %v568 = vpack.c.bf16 %v485, %v485
  %v569 = vpack.c.bf16 %v488, %v488
  %v570 = vpack.c.bf16 %v490, %v490
  %v571 = vpack.c.bf16 %v493, %v493
  %v572 = vpack.c.bf16 %v495, %v495
  %v573 = vpack.c.bf16 %v498, %v498
  %v574 = vpack.c.bf16 %v500, %v500
  %v575 = vpack.c.bf16 %v503, %v503
  %v576 = vpack.c.bf16 %v505, %v505
  %v577 = vpack.c.bf16 %v508, %v508
  %v578 = vpack.c.bf16 %v510, %v510
  %v579 = vpack.c.bf16 %v513, %v513
  %v580 = vpack.c.bf16 %v515, %v515
  %vm581 = vcmask 27648
  %582 = vst.msk [vmem:[%s3] sm:$0xf] %vm581, %v517
  %583 = vst.msk [vmem:[%s3 + $0x4] sm:$0xf] %vm581, %v518
  %584 = vst.msk [vmem:[%s3 + $0x8] sm:$0xf] %vm581, %v519
  %585 = vst.msk [vmem:[%s3 + $0xc] sm:$0xf] %vm581, %v520
  %586 = vst.msk [vmem:[%s3 + $0x10] sm:$0xf] %vm581, %v521
  %587 = vst.msk [vmem:[%s3 + $0x14] sm:$0xf] %vm581, %v522
  %588 = vst.msk [vmem:[%s3 + $0x18] sm:$0xf] %vm581, %v523
  %589 = vst.msk [vmem:[%s3 + $0x1c] sm:$0xf] %vm581, %v524
  %590 = vst.msk [vmem:[%s3 + $0x20] sm:$0xf] %vm581, %v525
  %591 = vst.msk [vmem:[%s3 + $0x24] sm:$0xf] %vm581, %v526
  %592 = vst.msk [vmem:[%s3 + $0x28] sm:$0xf] %vm581, %v527
  %593 = vst.msk [vmem:[%s3 + $0x2c] sm:$0xf] %vm581, %v528
  %594 = vst.msk [vmem:[%s3 + $0x30] sm:$0xf] %vm581, %v529
  %595 = vst.msk [vmem:[%s3 + $0x34] sm:$0xf] %vm581, %v530
  %596 = vst.msk [vmem:[%s3 + $0x38] sm:$0xf] %vm581, %v531
  %597 = vst.msk [vmem:[%s3 + $0x3c] sm:$0xf] %vm581, %v532
  %598 = vst.msk [vmem:[%s3 + $0x40] sm:$0xf] %vm581, %v533
  %599 = vst.msk [vmem:[%s3 + $0x44] sm:$0xf] %vm581, %v534
  %600 = vst.msk [vmem:[%s3 + $0x48] sm:$0xf] %vm581, %v535
  %601 = vst.msk [vmem:[%s3 + $0x4c] sm:$0xf] %vm581, %v536
  %602 = vst.msk [vmem:[%s3 + $0x50] sm:$0xf] %vm581, %v537
  %603 = vst.msk [vmem:[%s3 + $0x54] sm:$0xf] %vm581, %v538
  %604 = vst.msk [vmem:[%s3 + $0x58] sm:$0xf] %vm581, %v539
  %605 = vst.msk [vmem:[%s3 + $0x5c] sm:$0xf] %vm581, %v540
  %606 = vst.msk [vmem:[%s3 + $0x60] sm:$0xf] %vm581, %v541
  %607 = vst.msk [vmem:[%s3 + $0x64] sm:$0xf] %vm581, %v542
  %608 = vst.msk [vmem:[%s3 + $0x68] sm:$0xf] %vm581, %v543
  %609 = vst.msk [vmem:[%s3 + $0x6c] sm:$0xf] %vm581, %v544
  %610 = vst.msk [vmem:[%s3 + $0x70] sm:$0xf] %vm581, %v545
  %611 = vst.msk [vmem:[%s3 + $0x74] sm:$0xf] %vm581, %v546
  %612 = vst.msk [vmem:[%s3 + $0x78] sm:$0xf] %vm581, %v547
  %613 = vst.msk [vmem:[%s3 + $0x7c] sm:$0xf] %vm581, %v548
  %614 = vst.msk [vmem:[%s3 + $0x80] sm:$0xf] %vm581, %v549
  %615 = vst.msk [vmem:[%s3 + $0x84] sm:$0xf] %vm581, %v550
  %616 = vst.msk [vmem:[%s3 + $0x88] sm:$0xf] %vm581, %v551
  %617 = vst.msk [vmem:[%s3 + $0x8c] sm:$0xf] %vm581, %v552
  %618 = vst.msk [vmem:[%s3 + $0x90] sm:$0xf] %vm581, %v553
  %619 = vst.msk [vmem:[%s3 + $0x94] sm:$0xf] %vm581, %v554
  %620 = vst.msk [vmem:[%s3 + $0x98] sm:$0xf] %vm581, %v555
  %621 = vst.msk [vmem:[%s3 + $0x9c] sm:$0xf] %vm581, %v556
  %622 = vst.msk [vmem:[%s3 + $0xa0] sm:$0xf] %vm581, %v557
  %623 = vst.msk [vmem:[%s3 + $0xa4] sm:$0xf] %vm581, %v558
  %624 = vst.msk [vmem:[%s3 + $0xa8] sm:$0xf] %vm581, %v559
  %625 = vst.msk [vmem:[%s3 + $0xac] sm:$0xf] %vm581, %v560
  %626 = vst.msk [vmem:[%s3 + $0xb0] sm:$0xf] %vm581, %v561
  %627 = vst.msk [vmem:[%s3 + $0xb4] sm:$0xf] %vm581, %v562
  %628 = vst.msk [vmem:[%s3 + $0xb8] sm:$0xf] %vm581, %v563
  %629 = vst.msk [vmem:[%s3 + $0xbc] sm:$0xf] %vm581, %v564
  %630 = vst.msk [vmem:[%s3 + $0xc0] sm:$0xf] %vm581, %v565
  %631 = vst.msk [vmem:[%s3 + $0xc4] sm:$0xf] %vm581, %v566
  %632 = vst.msk [vmem:[%s3 + $0xc8] sm:$0xf] %vm581, %v567
  %633 = vst.msk [vmem:[%s3 + $0xcc] sm:$0xf] %vm581, %v568
  %634 = vst.msk [vmem:[%s3 + $0xd0] sm:$0xf] %vm581, %v569
  %635 = vst.msk [vmem:[%s3 + $0xd4] sm:$0xf] %vm581, %v570
  %636 = vst.msk [vmem:[%s3 + $0xd8] sm:$0xf] %vm581, %v571
  %637 = vst.msk [vmem:[%s3 + $0xdc] sm:$0xf] %vm581, %v572
  %638 = vst.msk [vmem:[%s3 + $0xe0] sm:$0xf] %vm581, %v573
  %639 = vst.msk [vmem:[%s3 + $0xe4] sm:$0xf] %vm581, %v574
  %640 = vst.msk [vmem:[%s3 + $0xe8] sm:$0xf] %vm581, %v575
  %641 = vst.msk [vmem:[%s3 + $0xec] sm:$0xf] %vm581, %v576
  %642 = vst.msk [vmem:[%s3 + $0xf0] sm:$0xf] %vm581, %v577
  %643 = vst.msk [vmem:[%s3 + $0xf4] sm:$0xf] %vm581, %v578
  %644 = vst.msk [vmem:[%s3 + $0xf8] sm:$0xf] %vm581, %v579
  %645 = vst.msk [vmem:[%s3 + $0xfc] sm:$0xf] %vm581, %v580
  // Predicated region
  $region14: #{carafe_forward.2} parent=0 // pred_check
    _
  $region15: #{carafe_forward.2} parent=0 // pred_check_branch
    %647 = sbr.rel (0) target = $region17
  $region16: #{carafe_forward.2} parent=0 // pred_region
    _
  $region17: #{carafe_forward.2} parent=0 // pred_fallthru
    _
  // Predicated region
  $region18: #{carafe_forward.2} parent=0 // pred_check
    _
  $region19: #{carafe_forward.2} parent=0 // pred_check_branch
    %649 = sbr.rel (0) target = $region21
  $region20: #{carafe_forward.2} parent=0 // pred_region
    _
  $region21: #{carafe_forward.2} parent=0 // pred_fallthru
    _

// kernel: carafe_forward.3
$region0: #{carafe_forward.3}
  #allocation0 [shape = 'u32[]', space=smem, size = 0x4, offset = 0x4, fixed_abs, tag = 'smem constant byte address 0x4 - core index']
  #allocation1 [shape = 'u32[72,128]{1,0:T(1,128)}', space=vmem, size = 0x9000, scoped, tag = 'internal scratch']
  %s0 = inlined_call_operand.vmem [shape: bf16[2,18,18,4], index: 0, kind: input, shape index: {}]
  %s1 = inlined_call_operand.vmem [shape: bf16[2,18,18,16], index: 1, kind: input, shape index: {}]
  %s2 = inlined_call_operand.vmem [shape: bf16[36,36], index: 2, kind: input, shape index: {}]
  %s3 = inlined_call_operand.vmem [shape: f32[1,36], index: 3, kind: input, shape index: {}]
  %s4 = inlined_call_operand.vmem [shape: bf16[16,16], index: 4, kind: input, shape index: {}]
  %s5 = inlined_call_operand.vmem [shape: f32[1,16], index: 5, kind: input, shape index: {}]
  %s6 = inlined_call_operand.vmem [shape: f32[2,32,32,16], index: 6, kind: output, shape index: {}]
  %s7 = sld [smem:[#allocation0]]
  $region57: #{carafe_forward.3} parent=0
    _
  %s9 = ssub.s32 1, %s7
  %s10 = scalar_select 0, %s9, %s7
  loop: start=0, step=1, limit=6
  $region2: #{carafe_forward.3} parent=0 // loop_pre_header
    _
  $region3: #{carafe_forward.3} parent=0 // loop_header
    %s12 = sphi 0, %s16
    %p13 = scmp.ge.s32.totalorder %s12, 6
    %s19 = sphi 0, %s31
    %s20 = sphi 0, %s27
    %s21 = sphi 0, %s19
    %s22 = sphi 0, %s20
    %s23 = sphi 0, %s21
    %s24 = sphi 0, %s22
    %s34 = sphi 0, %s36
    %s37 = sphi 0, %s34
    %s38 = sphi 0, %s37
    %s54 = sphi 0, %s38
    %s60 = sphi 0, %s62
    %s63 = sphi 0, %s60
    %s64 = sphi 0, %s63
    %s80 = sphi 0, %s64
    %s84 = sphi 0, %s84
    %s86 = sphi 0, %s84
    %s87 = sphi 0, %s86
    %s101 = sphi 0, %s87
    %s105 = sphi 0, %s105
    %s107 = sphi 0, %s105
    %s108 = sphi 0, %s107
    %s122 = sphi 0, %s108
    %s126 = sphi 0, %s126
    %s128 = sphi 0, %s126
    %s129 = sphi 0, %s128
    %s143 = sphi 0, %s129
    %s147 = sphi 0, %s147
    %s149 = sphi 0, %s147
    %s150 = sphi 0, %s149
    %s164 = sphi 0, %s150
    %s172 = sphi 0, %s174
    %s175 = sphi 0, %s172
    %s176 = sphi 0, %s175
    %s192 = sphi 0, %s176
  $region4: #{carafe_forward.3} parent=0 // loop_header_branch
    %15 = sbr.rel (%p13) target = $region8
  $region5: #{carafe_forward.3} parent=0 // loop_body
    %s17 = ssub.s32 %s12, 1
    %s18 = ssub.s32 %s12, 2
    %s25 = sadd.s32 1, %s20
    %p26 = scmp.ge.s32.totalorder %s25, 2
    %s27 = scalar_select %p26, 0, %s25
    %s28 = sadd.s32 1, %s19
    %s29 = scalar_select %p26, %s28, %s19
    %p30 = scmp.ge.s32.totalorder %s29, 2
    %s31 = scalar_select %p30, 0, %s29
    %s32 = ssub.s32 %s19, %s31
    %p33 = scmp.eq.s32.totalorder %s32, 0
    %s35 = sadd.s32 %s34, 1
    %s36 = scalar_select %p33, %s34, %s35
    %p39 = pneg %p33
    %p40 = scmp.eq.s32.totalorder %s12, 3
    %p41 = por %p39, %p40
    %p42 = scmp.ne.s32.totalorder %s34, %s37
    %p43 = scmp.eq.s32.totalorder %s12, 0
    %p44 = por %p42, %p43
    %p45 = scmp.ne.s32.totalorder %s34, %s37
    %p46 = scmp.eq.s32.totalorder %s17, 3
    %p47 = por %p45, %p46
    %p48 = scmp.ne.s32.totalorder %s37, %s38
    %p49 = scmp.eq.s32.totalorder %s17, 0
    %p50 = por %p48, %p49
    %p51 = scmp.ne.s32.totalorder %s37, %s38
    %p52 = scmp.eq.s32.totalorder %s18, 3
    %p53 = por %p51, %p52
    %p55 = scmp.ne.s32.totalorder %s38, %s54
    %p56 = scmp.eq.s32.totalorder %s18, 0
    %p57 = por %p55, %p56
    %s58 = ssub.s32 %s19, %s31
    %p59 = scmp.eq.s32.totalorder %s58, 0
    %s61 = sadd.s32 %s60, 1
    %s62 = scalar_select %p59, %s60, %s61
    %p65 = pneg %p59
    %p66 = scmp.eq.s32.totalorder %s12, 3
    %p67 = por %p65, %p66
    %p68 = scmp.ne.s32.totalorder %s60, %s63
    %p69 = scmp.eq.s32.totalorder %s12, 0
    %p70 = por %p68, %p69
    %p71 = scmp.ne.s32.totalorder %s60, %s63
    %p72 = scmp.eq.s32.totalorder %s17, 3
    %p73 = por %p71, %p72
    %p74 = scmp.ne.s32.totalorder %s63, %s64
    %p75 = scmp.eq.s32.totalorder %s17, 0
    %p76 = por %p74, %p75
    %p77 = scmp.ne.s32.totalorder %s63, %s64
    %p78 = scmp.eq.s32.totalorder %s18, 3
    %p79 = por %p77, %p78
    %p81 = scmp.ne.s32.totalorder %s64, %s80
    %p82 = scmp.eq.s32.totalorder %s18, 0
    %p83 = por %p81, %p82
    %s85 = sadd.s32 %s84, 1
    %p88 = scmp.eq.s32.totalorder %s12, 3
    %p89 = scmp.ne.s32.totalorder %s84, %s86
    %p90 = scmp.eq.s32.totalorder %s12, 0
    %p91 = por %p89, %p90
    %p92 = scmp.ne.s32.totalorder %s84, %s86
    %p93 = scmp.eq.s32.totalorder %s17, 3
    %p94 = por %p92, %p93
    %p95 = scmp.ne.s32.totalorder %s86, %s87
    %p96 = scmp.eq.s32.totalorder %s17, 0
    %p97 = por %p95, %p96
    %p98 = scmp.ne.s32.totalorder %s86, %s87
    %p99 = scmp.eq.s32.totalorder %s18, 3
    %p100 = por %p98, %p99
    %p102 = scmp.ne.s32.totalorder %s87, %s101
    %p103 = scmp.eq.s32.totalorder %s18, 0
    %p104 = por %p102, %p103
    %s106 = sadd.s32 %s105, 1
    %p109 = scmp.eq.s32.totalorder %s12, 3
    %p110 = scmp.ne.s32.totalorder %s105, %s107
    %p111 = scmp.eq.s32.totalorder %s12, 0
    %p112 = por %p110, %p111
    %p113 = scmp.ne.s32.totalorder %s105, %s107
    %p114 = scmp.eq.s32.totalorder %s17, 3
    %p115 = por %p113, %p114
    %p116 = scmp.ne.s32.totalorder %s107, %s108
    %p117 = scmp.eq.s32.totalorder %s17, 0
    %p118 = por %p116, %p117
    %p119 = scmp.ne.s32.totalorder %s107, %s108
    %p120 = scmp.eq.s32.totalorder %s18, 3
    %p121 = por %p119, %p120
    %p123 = scmp.ne.s32.totalorder %s108, %s122
    %p124 = scmp.eq.s32.totalorder %s18, 0
    %p125 = por %p123, %p124
    %s127 = sadd.s32 %s126, 1
    %p130 = scmp.eq.s32.totalorder %s12, 3
    %p131 = scmp.ne.s32.totalorder %s126, %s128
    %p132 = scmp.eq.s32.totalorder %s12, 0
    %p133 = por %p131, %p132
    %p134 = scmp.ne.s32.totalorder %s126, %s128
    %p135 = scmp.eq.s32.totalorder %s17, 3
    %p136 = por %p134, %p135
    %p137 = scmp.ne.s32.totalorder %s128, %s129
    %p138 = scmp.eq.s32.totalorder %s17, 0
    %p139 = por %p137, %p138
    %p140 = scmp.ne.s32.totalorder %s128, %s129
    %p141 = scmp.eq.s32.totalorder %s18, 3
    %p142 = por %p140, %p141
    %p144 = scmp.ne.s32.totalorder %s129, %s143
    %p145 = scmp.eq.s32.totalorder %s18, 0
    %p146 = por %p144, %p145
    %s148 = sadd.s32 %s147, 1
    %p151 = scmp.eq.s32.totalorder %s12, 3
    %p152 = scmp.ne.s32.totalorder %s147, %s149
    %p153 = scmp.eq.s32.totalorder %s12, 0
    %p154 = por %p152, %p153
    %p155 = scmp.ne.s32.totalorder %s147, %s149
    %p156 = scmp.eq.s32.totalorder %s17, 3
    %p157 = por %p155, %p156
    %p158 = scmp.ne.s32.totalorder %s149, %s150
    %p159 = scmp.eq.s32.totalorder %s17, 0
    %p160 = por %p158, %p159
    %p161 = scmp.ne.s32.totalorder %s149, %s150
    %p162 = scmp.eq.s32.totalorder %s18, 3
    %p163 = por %p161, %p162
    %p165 = scmp.ne.s32.totalorder %s150, %s164
    %p166 = scmp.eq.s32.totalorder %s18, 0
    %p167 = por %p165, %p166
    %s168 = ssub.s32 %s19, %s31
    %s169 = ssub.s32 %s20, %s27
    %s170 = sor.u32 %s168, %s169
    %p171 = scmp.eq.s32.totalorder %s170, 0
    %s173 = sadd.s32 %s172, 1
    %s174 = scalar_select %p171, %s172, %s173
    %p177 = pneg %p171
    %p178 = scmp.eq.s32.totalorder %s12, 3
    %p179 = por %p177, %p178
    %p180 = scmp.ne.s32.totalorder %s172, %s175
    %p181 = scmp.eq.s32.totalorder %s12, 0
    %p182 = por %p180, %p181
    %p183 = scmp.ne.s32.totalorder %s172, %s175
    %p184 = scmp.eq.s32.totalorder %s17, 3
    %p185 = por %p183, %p184
    %p186 = scmp.ne.s32.totalorder %s175, %s176
    %p187 = scmp.eq.s32.totalorder %s17, 0
    %p188 = por %p186, %p187
    %p189 = scmp.ne.s32.totalorder %s175, %s176
    %p190 = scmp.eq.s32.totalorder %s18, 3
    %p191 = por %p189, %p190
    %p193 = scmp.ne.s32.totalorder %s176, %s192
    %p194 = scmp.eq.s32.totalorder %s18, 0
    %p195 = por %p193, %p194
    %p196 = scmp.le.s32.totalorder 1, %s12
    %p197 = scmp.lt.s32.totalorder %s12, 5
    %p198 = pnand %p196, %p197
    %p199 = pneg %p198
    // Predicated region
    $region9: #{carafe_forward.3} parent=5 // pred_check
      _
    $region10: #{carafe_forward.3} parent=5 // pred_check_branch
      %201 = sbr.rel (%p198) target = $region12
    $region11: #{carafe_forward.3} parent=5 // pred_region
      %s202 = ssub.s32 %s12, 1
      // Predicated region
      $region13: #{carafe_forward.3} parent=11 // pred_check
        %p203 = pneg %p97
      $region14: #{carafe_forward.3} parent=11 // pred_check_branch
        %205 = sbr.rel (%p203) target = $region16
      $region15: #{carafe_forward.3} parent=11 // pred_region
        _
      $region16: #{carafe_forward.3} parent=11 // pred_fallthru
        _
      // Predicated region
      $region17: #{carafe_forward.3} parent=11 // pred_check
        %p206 = pneg %p118
      $region18: #{carafe_forward.3} parent=11 // pred_check_branch
        %208 = sbr.rel (%p206) target = $region20
      $region19: #{carafe_forward.3} parent=11 // pred_region
        _
      $region20: #{carafe_forward.3} parent=11 // pred_fallthru
        _
      // Predicated region
      $region21: #{carafe_forward.3} parent=11 // pred_check
        %p209 = pneg %p139
      $region22: #{carafe_forward.3} parent=11 // pred_check_branch
        %211 = sbr.rel (%p209) target = $region24
      $region23: #{carafe_forward.3} parent=11 // pred_region
        _
      $region24: #{carafe_forward.3} parent=11 // pred_fallthru
        _
      // Predicated region
      $region25: #{carafe_forward.3} parent=11 // pred_check
        %p212 = pneg %p160
      $region26: #{carafe_forward.3} parent=11 // pred_check_branch
        %214 = sbr.rel (%p212) target = $region28
      $region27: #{carafe_forward.3} parent=11 // pred_region
        _
      $region28: #{carafe_forward.3} parent=11 // pred_fallthru
        _
    $region12: #{carafe_forward.3} parent=5 // pred_fallthru
      _
    %p215 = scmp.lt.s32.totalorder %s12, 4
    // Predicated region
    $region29: #{carafe_forward.3} parent=5 // pred_check
      %p216 = pneg %p215
    $region30: #{carafe_forward.3} parent=5 // pred_check_branch
      %218 = sbr.rel (%p216) target = $region32
    $region31: #{carafe_forward.3} parent=5 // pred_region
      // Predicated region
      $region33: #{carafe_forward.3} parent=31 // pred_check
        %p219 = pneg %p44
      $region34: #{carafe_forward.3} parent=31 // pred_check_branch
        %221 = sbr.rel (%p219) target = $region36
      $region35: #{carafe_forward.3} parent=31 // pred_region
        %p222 = scmp.lt.s32.totalorder %s19, 1
        %s223 = scalar_select %p222, %s19, 1
        %s224 = smul.addr %s223, 54
        %s225 = smul.addr %s224, 4
        %s226 = scalar_lea.vmem %s0, %s225
      $region36: #{carafe_forward.3} parent=31 // pred_fallthru
        _
      // Predicated region
      $region37: #{carafe_forward.3} parent=31 // pred_check
        %p227 = pneg %p70
      $region38: #{carafe_forward.3} parent=31 // pred_check_branch
        %229 = sbr.rel (%p227) target = $region40
      $region39: #{carafe_forward.3} parent=31 // pred_region
        %p230 = scmp.lt.s32.totalorder %s19, 1
        %s231 = scalar_select %p230, %s19, 1
        %s232 = smul.addr %s231, 54
        %s233 = smul.addr %s232, 4
        %s234 = scalar_lea.vmem %s1, %s233
      $region40: #{carafe_forward.3} parent=31 // pred_fallthru
        _
    $region32: #{carafe_forward.3} parent=5 // pred_fallthru
      _
    %p235 = scmp.le.s32.totalorder 1, %s12
    %p236 = scmp.lt.s32.totalorder %s12, 5
    %p237 = pnand %p235, %p236
    %p238 = pneg %p237
    // Predicated region
    $region41: #{carafe_forward.3} parent=5 // pred_check
      _
    $region42: #{carafe_forward.3} parent=5 // pred_check_branch
      %240 = sbr.rel (%p237) target = $region44
    $region43: #{carafe_forward.3} parent=5 // pred_region
      %s241 = ssub.s32 %s12, 1
      %p242 = scmp.lt.s32.totalorder %s21, 1
      %s243 = scalar_select %p242, %s21, 1
      %s244 = smul.addr %s243, 54
      %s245 = smul.addr %s244, 4
      %s246 = scalar_lea.vmem %s0, %s245
      %p247 = pneg %p50
      %p248 = pneg %p47
      %p249 = scmp.lt.s32.totalorder %s21, 1
      %s250 = scalar_select %p249, %s21, 1
      %s251 = smul.addr %s250, 54
      %s252 = smul.addr %s251, 4
      %s253 = scalar_lea.vmem %s1, %s252
      %p254 = pneg %p76
      %p255 = pneg %p73
      %p256 = pneg %p97
      %p257 = pneg %p94
      %p258 = pneg %p118
      %p259 = pneg %p115
      %p260 = pneg %p139
      %p261 = pneg %p136
      %p262 = pneg %p160
      %p263 = pneg %p157
      %p264 = pneg %p188
      %p265 = pneg %p185
      %s266 = smul.u32 16, %s22
      %p267 = scmp.lt.s32.totalorder %s21, 1
      %s268 = scalar_select %p267, %s21, 1
      %p269 = scmp.lt.s32.totalorder %s266, 31
      %s270 = scalar_select %p269, %s266, 31
      %s271 = smul.addr %s270, 4
      %s272 = smul.addr %s268, 128
      %s273 = sadd.s32 %s271, %s272
      %s274 = smul.addr %s273, 8
      %s275 = scalar_lea.vmem %s6, %s274
      %p276 = scmp.lt.s32.totalorder %s21, 1
      %s277 = scalar_select %p276, %s21, 1
      %s278 = smul.addr %s277, 54
      %s279 = smul.addr %s278, 4
      %s280 = scalar_lea.vmem %s0, %s279
      %p281 = scmp.lt.s32.totalorder %s21, 1
      %s282 = scalar_select %p281, %s21, 1
      %s283 = smul.addr %s282, 54
      %s284 = smul.addr %s283, 4
      %s285 = scalar_lea.vmem %s1, %s284
      %s286 = smul.u32 16, %s22
      %p287 = scmp.lt.s32.totalorder %s21, 1
      %s288 = scalar_select %p287, %s21, 1
      %p289 = scmp.lt.s32.totalorder %s286, 31
      %s290 = scalar_select %p289, %s286, 31
      %s291 = smul.addr %s290, 4
      %s292 = smul.addr %s288, 128
      %s293 = sadd.s32 %s291, %s292
      %s294 = smul.addr %s293, 8
      %s295 = scalar_lea.vmem %s6, %s294
      %s296 = smul.u32 16, %s22
      %s298 = smul.u32 %s22, 8
      %s299 = smul.u32 %s298, 3
      %s300 = smul.addr %s299, 4
      %s301 = scalar_lea.vmem %s280, %s300
      %v302 = vld [vmem:[%s301] sm:$0xf]
      %v303 = vld [vmem:[%s301 + $0x4] sm:$0xf]
      %v304 = vld [vmem:[%s301 + $0xc] sm:$0xf]
      %v305 = vld [vmem:[%s301 + $0x10] sm:$0xf]
      %v306 = vld [vmem:[%s301 + $0x18] sm:$0xf]
      %v307 = vld [vmem:[%s301 + $0x1c] sm:$0xf]
      %v308 = vld [vmem:[%s301 + $0x24] sm:$0xf]
      %v309 = vld [vmem:[%s301 + $0x28] sm:$0xf]
      %v310 = vld [vmem:[%s301 + $0x30] sm:$0xf]
      %v311 = vld [vmem:[%s301 + $0x34] sm:$0xf]
      %v312 = vld [vmem:[%s301 + $0x3c] sm:$0xf]
      %v313 = vld [vmem:[%s301 + $0x40] sm:$0xf]
      %v314 = vld [vmem:[%s301 + $0x48] sm:$0xf]
      %v315 = vld [vmem:[%s301 + $0x4c] sm:$0xf]
      %v316 = vld [vmem:[%s301 + $0x54] sm:$0xf]
      %v317 = vld [vmem:[%s301 + $0x58] sm:$0xf]
      %v318 = vld [vmem:[%s2] sm:$0x3]
      %v319 = vld [vmem:[%s301 + $0x8] sm:$0x1]
      %v320 = vld [vmem:[%s301 + $0x14] sm:$0x1]
      %v321 = vld [vmem:[%s301 + $0x20] sm:$0x1]
      %v322 = vld [vmem:[%s301 + $0x2c] sm:$0x1]
      %v323 = vld [vmem:[%s301 + $0x38] sm:$0x1]
      %v324 = vld [vmem:[%s301 + $0x44] sm:$0x1]
      %v325 = vld [vmem:[%s301 + $0x50] sm:$0x1]
      %v326 = vld [vmem:[%s301 + $0x5c] sm:$0x1]
      %vm327 = vsmask.f32 3328
      %vm328 = vsmask.f32 7440
      %vm329 = vmor %vm327, %vm328
      %v331 = vshrl.u32 %v302, 16
      %v333 = vrot.slane %v331, 4
      %v334 = vshll.u32 %v302, 16
      %v336 = vrot.slane %v334, 5
      %v337 = vor.u32 %v333, %v336
      %v338 = vrot.slane %v337, 4
      %v340 = vshll.u32 %v303, 16
      %v342 = vrot.slane %v340, 5
      %v343 = vsel %vm329, %v338, %v342
      %v344 = vshrl.u32 %v303, 16
      %v346 = vrot.slane %v344, 4
      %v347 = vor.u32 %v346, %v342
      %v348 = vrot.slane %v347, 4
      %v350 = vshll.u32 %v319, 16
      %v352 = vrot.slane %v350, 5
      %v353 = vsel %vm329, %v348, %v352
      %v355 = vshrl.u32 %v304, 16
      %v357 = vrot.slane %v355, 4
      %v358 = vshll.u32 %v304, 16
      %v360 = vrot.slane %v358, 5
      %v361 = vor.u32 %v357, %v360
      %v362 = vrot.slane %v361, 4
      %v364 = vshll.u32 %v305, 16
      %v366 = vrot.slane %v364, 5
      %v367 = vsel %vm329, %v362, %v366
      %v368 = vshrl.u32 %v305, 16
      %v370 = vrot.slane %v368, 4
      %v371 = vor.u32 %v370, %v366
      %v372 = vrot.slane %v371, 4
      %v374 = vshll.u32 %v320, 16
      %v376 = vrot.slane %v374, 5
      %v377 = vsel %vm329, %v372, %v376
      %v379 = vshrl.u32 %v306, 16
      %v381 = vrot.slane %v379, 4
      %v382 = vshll.u32 %v306, 16
      %v384 = vrot.slane %v382, 5
      %v385 = vor.u32 %v381, %v384
      %v386 = vrot.slane %v385, 4
      %v388 = vshll.u32 %v307, 16
      %v390 = vrot.slane %v388, 5
      %v391 = vsel %vm329, %v386, %v390
      %v392 = vshrl.u32 %v307, 16
      %v394 = vrot.slane %v392, 4
      %v395 = vor.u32 %v394, %v390
      %v396 = vrot.slane %v395, 4
      %v398 = vshll.u32 %v321, 16
      %v400 = vrot.slane %v398, 5
      %v401 = vsel %vm329, %v396, %v400
      %v403 = vshrl.u32 %v308, 16
      %v405 = vrot.slane %v403, 4
      %v406 = vshll.u32 %v308, 16
      %v408 = vrot.slane %v406, 5
      %v409 = vor.u32 %v405, %v408
      %v410 = vrot.slane %v409, 4
      %v412 = vshll.u32 %v309, 16
      %v414 = vrot.slane %v412, 5
      %v415 = vsel %vm329, %v410, %v414
      %v416 = vshrl.u32 %v309, 16
      %v418 = vrot.slane %v416, 4
      %v419 = vor.u32 %v418, %v414
      %v420 = vrot.slane %v419, 4
      %v422 = vshll.u32 %v322, 16
      %v424 = vrot.slane %v422, 5
      %v425 = vsel %vm329, %v420, %v424
      %v427 = vshrl.u32 %v310, 16
      %v429 = vrot.slane %v427, 4
      %v430 = vshll.u32 %v310, 16
      %v432 = vrot.slane %v430, 5
      %v433 = vor.u32 %v429, %v432
      %v434 = vrot.slane %v433, 4
      %v436 = vshll.u32 %v311, 16
      %v438 = vrot.slane %v436, 5
      %v439 = vsel %vm329, %v434, %v438
      %v440 = vshrl.u32 %v311, 16
      %v442 = vrot.slane %v440, 4
      %v443 = vor.u32 %v442, %v438
      %v444 = vrot.slane %v443, 4
      %v446 = vshll.u32 %v323, 16
      %v448 = vrot.slane %v446, 5
      %v449 = vsel %vm329, %v444, %v448
      %v451 = vshrl.u32 %v312, 16
      %v453 = vrot.slane %v451, 4
      %v454 = vshll.u32 %v312, 16
      %v456 = vrot.slane %v454, 5
      %v457 = vor.u32 %v453, %v456
      %v458 = vrot.slane %v457, 4
      %v460 = vshll.u32 %v313, 16
      %v462 = vrot.slane %v460, 5
      %v463 = vsel %vm329, %v458, %v462
      %v464 = vshrl.u32 %v313, 16
      %v466 = vrot.slane %v464, 4
      %v467 = vor.u32 %v466, %v462
      %v468 = vrot.slane %v467, 4
      %v470 = vshll.u32 %v324, 16
      %v472 = vrot.slane %v470, 5
      %v473 = vsel %vm329, %v468, %v472
      %v475 = vshrl.u32 %v314, 16
      %v477 = vrot.slane %v475, 4
      %v478 = vshll.u32 %v314, 16
      %v480 = vrot.slane %v478, 5
      %v481 = vor.u32 %v477, %v480
      %v482 = vrot.slane %v481, 4
      %v484 = vshll.u32 %v315, 16
      %v486 = vrot.slane %v484, 5
      %v487 = vsel %vm329, %v482, %v486
      %v488 = vshrl.u32 %v315, 16
      %v490 = vrot.slane %v488, 4
      %v491 = vor.u32 %v490, %v486
      %v492 = vrot.slane %v491, 4
      %v494 = vshll.u32 %v325, 16
      %v496 = vrot.slane %v494, 5
      %v497 = vsel %vm329, %v492, %v496
      %v499 = vshrl.u32 %v316, 16
      %v501 = vrot.slane %v499, 4
      %v502 = vshll.u32 %v316, 16
      %v504 = vrot.slane %v502, 5
      %v505 = vor.u32 %v501, %v504
      %v506 = vrot.slane %v505, 4
      %v508 = vshll.u32 %v317, 16
      %v510 = vrot.slane %v508, 5
      %v511 = vsel %vm329, %v506, %v510
      %v512 = vshrl.u32 %v317, 16
      %v514 = vrot.slane %v512, 4
      %v515 = vor.u32 %v514, %v510
      %v516 = vrot.slane %v515, 4
      %v518 = vshll.u32 %v326, 16
      %v520 = vrot.slane %v518, 5
      %v521 = vsel %vm329, %v516, %v520
      %v522 = vld [vmem:[%s2] sm:$0xc]
      %v523 = vunpack.c.l.b16 %v343
      %v524 = vunpack.c.l.b16 %v353
      %v525 = vunpack.c.l.b16 %v367
      %v526 = vunpack.c.l.b16 %v377
      %v527 = vunpack.c.l.b16 %v391
      %v528 = vunpack.c.l.b16 %v401
      %v529 = vunpack.c.l.b16 %v415
      %v530 = vunpack.c.l.b16 %v425
      %v531 = vunpack.c.l.b16 %v439
      %v532 = vunpack.c.l.b16 %v449
      %v533 = vunpack.c.l.b16 %v463
      %v534 = vunpack.c.l.b16 %v473
      %v535 = vunpack.c.l.b16 %v487
      %v536 = vunpack.c.l.b16 %v497
      %v537 = vunpack.c.l.b16 %v511
      %v538 = vunpack.c.l.b16 %v521
      %v539 = vpack.c.b16 %v524, %v523
      %v540 = vpack.c.b16 %v526, %v525
      %v541 = vpack.c.b16 %v528, %v527
      %v542 = vpack.c.b16 %v530, %v529
      %v543 = vpack.c.b16 %v532, %v531
      %v544 = vpack.c.b16 %v534, %v533
      %v545 = vpack.c.b16 %v536, %v535
      %v546 = vpack.c.b16 %v538, %v537
      %v548 = vunpack.c.l.b16 %v522
      %v549 = vpack.c.b16 %v548, %v548
      %v550 = vrot.slane %v549, 2
      %vm551 = vcmask 31744
      %v553 = vsel %vm551, %v539, 0
      %v556 = vsel %vm551, %v540, 0
      %v559 = vsel %vm551, %v541, 0
      %v562 = vsel %vm551, %v542, 0
      %v565 = vsel %vm551, %v543, 0
      %v568 = vsel %vm551, %v544, 0
      %v571 = vsel %vm551, %v545, 0
      %v574 = vsel %vm551, %v546, 0
      %vm576 = vcmask 1041408
      %v578 = vsel %vm576, %v550, 0
      %580 = vmatpush.bf16.msra.mxu0 0
      %581 = vmatpush.bf16.msra.mxu0 0
      %582 = vmatpush.bf16.msra.mxu0 0
      %583 = vmatpush.bf16.msra.mxu0 0
      %584 = vmatpush.bf16.msra.mxu0 0
      %585 = vmatpush.bf16.msra.mxu0 0
      %586 = vmatpush.bf16.msra.mxu0 0
      %587 = vmatpush.bf16.msra.mxu0 %v578
      %588 = vmatmul.bf16.gmra.mxu0 %v553
      %v589 = vpop.f32.mrf.mxu0
      %v590 = vadd.f32 0.0, %v589
      %v591 = vpop.f32.mrf.mxu0
      %v592 = vadd.f32 0.0, %v591
      %593 = vmatmul.bf16.gmra.mxu0 %v556
      %v594 = vpop.f32.mrf.mxu0
      %v595 = vadd.f32 0.0, %v594
      %v596 = vpop.f32.mrf.mxu0
      %v597 = vadd.f32 0.0, %v596
      %598 = vmatmul.bf16.gmra.mxu0 %v559
      %v599 = vpop.f32.mrf.mxu0
      %v600 = vadd.f32 0.0, %v599
      %v601 = vpop.f32.mrf.mxu0
      %v602 = vadd.f32 0.0, %v601
      %603 = vmatmul.bf16.gmra.mxu0 %v562
      %v604 = vpop.f32.mrf.mxu0
      %v605 = vadd.f32 0.0, %v604
      %v606 = vpop.f32.mrf.mxu0
      %v607 = vadd.f32 0.0, %v606
      %608 = vmatmul.bf16.gmra.mxu0 %v565
      %v609 = vpop.f32.mrf.mxu0
      %v610 = vadd.f32 0.0, %v609
      %v611 = vpop.f32.mrf.mxu0
      %v612 = vadd.f32 0.0, %v611
      %613 = vmatmul.bf16.gmra.mxu0 %v568
      %v614 = vpop.f32.mrf.mxu0
      %v615 = vadd.f32 0.0, %v614
      %v616 = vpop.f32.mrf.mxu0
      %v617 = vadd.f32 0.0, %v616
      %618 = vmatmul.bf16.gmra.mxu0 %v571
      %v619 = vpop.f32.mrf.mxu0
      %v620 = vadd.f32 0.0, %v619
      %v621 = vpop.f32.mrf.mxu0
      %v622 = vadd.f32 0.0, %v621
      %623 = vmatmul.bf16.gmra.mxu0 %v574
      %v624 = vpop.f32.mrf.mxu0
      %v625 = vadd.f32 0.0, %v624
      %v626 = vpop.f32.mrf.mxu0
      %v627 = vadd.f32 0.0, %v626
      %628 = vdwg.mxu0
      %v645 = vunpack.c.l.b16 %v302
      %v646 = vunpack.c.l.b16 %v303
      %v647 = vunpack.c.l.b16 %v304
      %v648 = vunpack.c.l.b16 %v305
      %v649 = vunpack.c.l.b16 %v306
      %v650 = vunpack.c.l.b16 %v307
      %v651 = vunpack.c.l.b16 %v308
      %v652 = vunpack.c.l.b16 %v309
      %v653 = vunpack.c.l.b16 %v310
      %v654 = vunpack.c.l.b16 %v311
      %v655 = vunpack.c.l.b16 %v312
      %v656 = vunpack.c.l.b16 %v313
      %v657 = vunpack.c.l.b16 %v314
      %v658 = vunpack.c.l.b16 %v315
      %v659 = vunpack.c.l.b16 %v316
      %v660 = vunpack.c.l.b16 %v317
      %v661 = vpack.c.b16 %v646, %v645
      %v662 = vpack.c.b16 %v648, %v647
      %v663 = vpack.c.b16 %v650, %v649
      %v664 = vpack.c.b16 %v652, %v651
      %v665 = vpack.c.b16 %v654, %v653
      %v666 = vpack.c.b16 %v656, %v655
      %v667 = vpack.c.b16 %v658, %v657
      %v668 = vpack.c.b16 %v660, %v659
      %v670 = vsel %vm551, %v661, 0
      %v673 = vsel %vm551, %v662, 0
      %v676 = vsel %vm551, %v663, 0
      %v679 = vsel %vm551, %v664, 0
      %v682 = vsel %vm551, %v665, 0
      %v685 = vsel %vm551, %v666, 0
      %v688 = vsel %vm551, %v667, 0
      %v691 = vsel %vm551, %v668, 0
      %v694 = vsel %vm576, %v318, 0
      %696 = vmatpush.bf16.msra.mxu0 0
      %697 = vmatpush.bf16.msra.mxu0 0
      %698 = vmatpush.bf16.msra.mxu0 0
      %699 = vmatpush.bf16.msra.mxu0 0
      %700 = vmatpush.bf16.msra.mxu0 0
      %701 = vmatpush.bf16.msra.mxu0 0
      %702 = vmatpush.bf16.msra.mxu0 0
      %703 = vmatpush.bf16.msra.mxu0 %v694
      %704 = vmatmul.bf16.gmra.mxu0 %v670
      %v705 = vpop.f32.mrf.mxu0
      %v706 = vadd.f32 %v590, %v705
      %v707 = vpop.f32.mrf.mxu0
      %v708 = vadd.f32 %v592, %v707
      %709 = vmatmul.bf16.gmra.mxu0 %v673
      %v710 = vpop.f32.mrf.mxu0
      %v711 = vadd.f32 %v595, %v710
      %v712 = vpop.f32.mrf.mxu0
      %v713 = vadd.f32 %v597, %v712
      %714 = vmatmul.bf16.gmra.mxu0 %v676
      %v715 = vpop.f32.mrf.mxu0
      %v716 = vadd.f32 %v600, %v715
      %v717 = vpop.f32.mrf.mxu0
      %v718 = vadd.f32 %v602, %v717
      %719 = vmatmul.bf16.gmra.mxu0 %v679
      %v720 = vpop.f32.mrf.mxu0
      %v721 = vadd.f32 %v605, %v720
      %v722 = vpop.f32.mrf.mxu0
      %v723 = vadd.f32 %v607, %v722
      %724 = vmatmul.bf16.gmra.mxu0 %v682
      %v725 = vpop.f32.mrf.mxu0
      %v726 = vadd.f32 %v610, %v725
      %v727 = vpop.f32.mrf.mxu0
      %v728 = vadd.f32 %v612, %v727
      %729 = vmatmul.bf16.gmra.mxu0 %v685
      %v730 = vpop.f32.mrf.mxu0
      %v731 = vadd.f32 %v615, %v730
      %v732 = vpop.f32.mrf.mxu0
      %v733 = vadd.f32 %v617, %v732
      %734 = vmatmul.bf16.gmra.mxu0 %v688
      %v735 = vpop.f32.mrf.mxu0
      %v736 = vadd.f32 %v620, %v735
      %v737 = vpop.f32.mrf.mxu0
      %v738 = vadd.f32 %v622, %v737
      %739 = vmatmul.bf16.gmra.mxu0 %v691
      %v740 = vpop.f32.mrf.mxu0
      %v741 = vadd.f32 %v625, %v740
      %v742 = vpop.f32.mrf.mxu0
      %v743 = vadd.f32 %v627, %v742
      %744 = vdwg.mxu0
      %v745 = vld [vmem:[%s301] sm:$0xe]
      %v746 = vld [vmem:[%s301 + $0xc] sm:$0xe]
      %v747 = vld [vmem:[%s301 + $0x18] sm:$0xe]
      %v748 = vld [vmem:[%s301 + $0x24] sm:$0xe]
      %v749 = vld [vmem:[%s301 + $0x30] sm:$0xe]
      %v750 = vld [vmem:[%s301 + $0x3c] sm:$0xe]
      %v751 = vld [vmem:[%s301 + $0x48] sm:$0xe]
      %v752 = vld [vmem:[%s301 + $0x54] sm:$0xe]
      %vm769 = vcmask 1042432
      %vm770 = vcmask 1046532
      %vm771 = vmor %vm769, %vm770
      %v772 = vrot.slane %v745, 5
      %v773 = vrot.slane %v772, 4
      %v774 = vrot.slane %v303, 5
      %v775 = vsel %vm771, %v773, %v774
      %v776 = vrot.slane %v774, 4
      %v777 = vrot.slane %v319, 5
      %v778 = vsel %vm771, %v776, %v777
      %v779 = vrot.slane %v746, 5
      %v780 = vrot.slane %v779, 4
      %v781 = vrot.slane %v305, 5
      %v782 = vsel %vm771, %v780, %v781
      %v783 = vrot.slane %v781, 4
      %v784 = vrot.slane %v320, 5
      %v785 = vsel %vm771, %v783, %v784
      %v786 = vrot.slane %v747, 5
      %v787 = vrot.slane %v786, 4
      %v788 = vrot.slane %v307, 5
      %v789 = vsel %vm771, %v787, %v788
      %v790 = vrot.slane %v788, 4
      %v791 = vrot.slane %v321, 5
      %v792 = vsel %vm771, %v790, %v791
      %v793 = vrot.slane %v748, 5
      %v794 = vrot.slane %v793, 4
      %v795 = vrot.slane %v309, 5
      %v796 = vsel %vm771, %v794, %v795
      %v797 = vrot.slane %v795, 4
      %v798 = vrot.slane %v322, 5
      %v799 = vsel %vm771, %v797, %v798
      %v800 = vrot.slane %v749, 5
      %v801 = vrot.slane %v800, 4
      %v802 = vrot.slane %v311, 5
      %v803 = vsel %vm771, %v801, %v802
      %v804 = vrot.slane %v802, 4
      %v805 = vrot.slane %v323, 5
      %v806 = vsel %vm771, %v804, %v805
      %v807 = vrot.slane %v750, 5
      %v808 = vrot.slane %v807, 4
      %v809 = vrot.slane %v313, 5
      %v810 = vsel %vm771, %v808, %v809
      %v811 = vrot.slane %v809, 4
      %v812 = vrot.slane %v324, 5
      %v813 = vsel %vm771, %v811, %v812
      %v814 = vrot.slane %v751, 5
      %v815 = vrot.slane %v814, 4
      %v816 = vrot.slane %v315, 5
      %v817 = vsel %vm771, %v815, %v816
      %v818 = vrot.slane %v816, 4
      %v819 = vrot.slane %v325, 5
      %v820 = vsel %vm771, %v818, %v819
      %v821 = vrot.slane %v752, 5
      %v822 = vrot.slane %v821, 4
      %v823 = vrot.slane %v317, 5
      %v824 = vsel %vm771, %v822, %v823
      %v825 = vrot.slane %v823, 4
      %v826 = vrot.slane %v326, 5
      %v827 = vsel %vm771, %v825, %v826
      %v828 = vld [vmem:[%s2 + $0x4] sm:$0x3]
      %v829 = vunpack.c.l.b16 %v775
      %v830 = vunpack.c.l.b16 %v778
      %v831 = vunpack.c.l.b16 %v782
      %v832 = vunpack.c.l.b16 %v785
      %v833 = vunpack.c.l.b16 %v789
      %v834 = vunpack.c.l.b16 %v792
      %v835 = vunpack.c.l.b16 %v796
      %v836 = vunpack.c.l.b16 %v799
      %v837 = vunpack.c.l.b16 %v803
      %v838 = vunpack.c.l.b16 %v806
      %v839 = vunpack.c.l.b16 %v810
      %v840 = vunpack.c.l.b16 %v813
      %v841 = vunpack.c.l.b16 %v817
      %v842 = vunpack.c.l.b16 %v820
      %v843 = vunpack.c.l.b16 %v824
      %v844 = vunpack.c.l.b16 %v827
      %v845 = vpack.c.b16 %v830, %v829
      %v846 = vpack.c.b16 %v832, %v831
      %v847 = vpack.c.b16 %v834, %v833
      %v848 = vpack.c.b16 %v836, %v835
      %v849 = vpack.c.b16 %v838, %v837
      %v850 = vpack.c.b16 %v840, %v839
      %v851 = vpack.c.b16 %v842, %v841
      %v852 = vpack.c.b16 %v844, %v843
      %v854 = vsel %vm551, %v845, 0
      %v857 = vsel %vm551, %v846, 0
      %v860 = vsel %vm551, %v847, 0
      %v863 = vsel %vm551, %v848, 0
      %v866 = vsel %vm551, %v849, 0
      %v869 = vsel %vm551, %v850, 0
      %v872 = vsel %vm551, %v851, 0
      %v875 = vsel %vm551, %v852, 0
      %v878 = vsel %vm576, %v828, 0
      %880 = vmatpush.bf16.msra.mxu0 0
      %881 = vmatpush.bf16.msra.mxu0 0
      %882 = vmatpush.bf16.msra.mxu0 0
      %883 = vmatpush.bf16.msra.mxu0 0
      %884 = vmatpush.bf16.msra.mxu0 0
      %885 = vmatpush.bf16.msra.mxu0 0
      %886 = vmatpush.bf16.msra.mxu0 0
      %887 = vmatpush.bf16.msra.mxu0 %v878
      %888 = vmatmul.bf16.gmra.mxu0 %v854
      %v889 = vpop.f32.mrf.mxu0
      %v890 = vadd.f32 0.0, %v889
      %v891 = vpop.f32.mrf.mxu0
      %v892 = vadd.f32 0.0, %v891
      %893 = vmatmul.bf16.gmra.mxu0 %v857
      %v894 = vpop.f32.mrf.mxu0
      %v895 = vadd.f32 0.0, %v894
      %v896 = vpop.f32.mrf.mxu0
      %v897 = vadd.f32 0.0, %v896
      %898 = vmatmul.bf16.gmra.mxu0 %v860
      %v899 = vpop.f32.mrf.mxu0
      %v900 = vadd.f32 0.0, %v899
      %v901 = vpop.f32.mrf.mxu0
      %v902 = vadd.f32 0.0, %v901
      %903 = vmatmul.bf16.gmra.mxu0 %v863
      %v904 = vpop.f32.mrf.mxu0
      %v905 = vadd.f32 0.0, %v904
      %v906 = vpop.f32.mrf.mxu0
      %v907 = vadd.f32 0.0, %v906
      %908 = vmatmul.bf16.gmra.mxu0 %v866
      %v909 = vpop.f32.mrf.mxu0
      %v910 = vadd.f32 0.0, %v909
      %v911 = vpop.f32.mrf.mxu0
      %v912 = vadd.f32 0.0, %v911
      %913 = vmatmul.bf16.gmra.mxu0 %v869
      %v914 = vpop.f32.mrf.mxu0
      %v915 = vadd.f32 0.0, %v914
      %v916 = vpop.f32.mrf.mxu0
      %v917 = vadd.f32 0.0, %v916
      %918 = vmatmul.bf16.gmra.mxu0 %v872
      %v919 = vpop.f32.mrf.mxu0
      %v920 = vadd.f32 0.0, %v919
      %v921 = vpop.f32.mrf.mxu0
      %v922 = vadd.f32 0.0, %v921
      %923 = vmatmul.bf16.gmra.mxu0 %v875
      %v924 = vpop.f32.mrf.mxu0
      %v925 = vadd.f32 0.0, %v924
      %v926 = vpop.f32.mrf.mxu0
      %v927 = vadd.f32 0.0, %v926
      %928 = vdwg.mxu0
      %v929 = vadd.f32 %v706, %v890
      %v930 = vadd.f32 %v708, %v892
      %v931 = vadd.f32 %v711, %v895
      %v932 = vadd.f32 %v713, %v897
      %v933 = vadd.f32 %v716, %v900
      %v934 = vadd.f32 %v718, %v902
      %v935 = vadd.f32 %v721, %v905
      %v936 = vadd.f32 %v723, %v907
      %v937 = vadd.f32 %v726, %v910
      %v938 = vadd.f32 %v728, %v912
      %v939 = vadd.f32 %v731, %v915
      %v940 = vadd.f32 %v733, %v917
      %v941 = vadd.f32 %v736, %v920
      %v942 = vadd.f32 %v738, %v922
      %v943 = vadd.f32 %v741, %v925
      %v944 = vadd.f32 %v743, %v927
      %s945 = sadd.s32 %s298, 1
      %s946 = smul.u32 %s945, 3
      %s947 = smul.addr %s946, 4
      %s948 = scalar_lea.vmem %s280, %s947
      %v949 = vld [vmem:[%s948] sm:$0xf]
      %v950 = vld [vmem:[%s948 + $0x4] sm:$0xf]
      %v951 = vld [vmem:[%s948 + $0xc] sm:$0xf]
      %v952 = vld [vmem:[%s948 + $0x10] sm:$0xf]
      %v953 = vld [vmem:[%s948 + $0x18] sm:$0xf]
      %v954 = vld [vmem:[%s948 + $0x1c] sm:$0xf]
      %v955 = vld [vmem:[%s948 + $0x24] sm:$0xf]
      %v956 = vld [vmem:[%s948 + $0x28] sm:$0xf]
      %v957 = vld [vmem:[%s948 + $0x30] sm:$0xf]
      %v958 = vld [vmem:[%s948 + $0x34] sm:$0xf]
      %v959 = vld [vmem:[%s948 + $0x3c] sm:$0xf]
      %v960 = vld [vmem:[%s948 + $0x40] sm:$0xf]
      %v961 = vld [vmem:[%s948 + $0x48] sm:$0xf]
      %v962 = vld [vmem:[%s948 + $0x4c] sm:$0xf]
      %v963 = vld [vmem:[%s948 + $0x54] sm:$0xf]
      %v964 = vld [vmem:[%s948 + $0x58] sm:$0xf]
      %v965 = vld [vmem:[%s2 + $0x4] sm:$0xc]
      %v982 = vunpack.c.l.b16 %v949
      %v983 = vunpack.c.l.b16 %v950
      %v984 = vunpack.c.l.b16 %v951
      %v985 = vunpack.c.l.b16 %v952
      %v986 = vunpack.c.l.b16 %v953
      %v987 = vunpack.c.l.b16 %v954
      %v988 = vunpack.c.l.b16 %v955
      %v989 = vunpack.c.l.b16 %v956
      %v990 = vunpack.c.l.b16 %v957
      %v991 = vunpack.c.l.b16 %v958
      %v992 = vunpack.c.l.b16 %v959
      %v993 = vunpack.c.l.b16 %v960
      %v994 = vunpack.c.l.b16 %v961
      %v995 = vunpack.c.l.b16 %v962
      %v996 = vunpack.c.l.b16 %v963
      %v997 = vunpack.c.l.b16 %v964
      %v998 = vpack.c.b16 %v983, %v982
      %v999 = vpack.c.b16 %v985, %v984
      %v1000 = vpack.c.b16 %v987, %v986
      %v1001 = vpack.c.b16 %v989, %v988
      %v1002 = vpack.c.b16 %v991, %v990
      %v1003 = vpack.c.b16 %v993, %v992
      %v1004 = vpack.c.b16 %v995, %v994
      %v1005 = vpack.c.b16 %v997, %v996
      %v1007 = vunpack.c.l.b16 %v965
      %v1008 = vpack.c.b16 %v1007, %v1007
      %v1009 = vrot.slane %v1008, 2
      %v1011 = vsel %vm551, %v998, 0
      %v1014 = vsel %vm551, %v999, 0
      %v1017 = vsel %vm551, %v1000, 0
      %v1020 = vsel %vm551, %v1001, 0
      %v1023 = vsel %vm551, %v1002, 0
      %v1026 = vsel %vm551, %v1003, 0
      %v1029 = vsel %vm551, %v1004, 0
      %v1032 = vsel %vm551, %v1005, 0
      %v1035 = vsel %vm576, %v1009, 0
      %1037 = vmatpush.bf16.msra.mxu0 0
      %1038 = vmatpush.bf16.msra.mxu0 0
      %1039 = vmatpush.bf16.msra.mxu0 0
      %1040 = vmatpush.bf16.msra.mxu0 0
      %1041 = vmatpush.bf16.msra.mxu0 0
      %1042 = vmatpush.bf16.msra.mxu0 0
      %1043 = vmatpush.bf16.msra.mxu0 0
      %1044 = vmatpush.bf16.msra.mxu0 %v1035
      %1045 = vmatmul.bf16.gmra.mxu0 %v1011
      %v1046 = vpop.f32.mrf.mxu0
      %v1047 = vadd.f32 0.0, %v1046
      %v1048 = vpop.f32.mrf.mxu0
      %v1049 = vadd.f32 0.0, %v1048
      %1050 = vmatmul.bf16.gmra.mxu0 %v1014
      %v1051 = vpop.f32.mrf.mxu0
      %v1052 = vadd.f32 0.0, %v1051
      %v1053 = vpop.f32.mrf.mxu0
      %v1054 = vadd.f32 0.0, %v1053
      %1055 = vmatmul.bf16.gmra.mxu0 %v1017
      %v1056 = vpop.f32.mrf.mxu0
      %v1057 = vadd.f32 0.0, %v1056
      %v1058 = vpop.f32.mrf.mxu0
      %v1059 = vadd.f32 0.0, %v1058
      %1060 = vmatmul.bf16.gmra.mxu0 %v1020
      %v1061 = vpop.f32.mrf.mxu0
      %v1062 = vadd.f32 0.0, %v1061
      %v1063 = vpop.f32.mrf.mxu0
      %v1064 = vadd.f32 0.0, %v1063
      %1065 = vmatmul.bf16.gmra.mxu0 %v1023
      %v1066 = vpop.f32.mrf.mxu0
      %v1067 = vadd.f32 0.0, %v1066
      %v1068 = vpop.f32.mrf.mxu0
      %v1069 = vadd.f32 0.0, %v1068
      %1070 = vmatmul.bf16.gmra.mxu0 %v1026
      %v1071 = vpop.f32.mrf.mxu0
      %v1072 = vadd.f32 0.0, %v1071
      %v1073 = vpop.f32.mrf.mxu0
      %v1074 = vadd.f32 0.0, %v1073
      %1075 = vmatmul.bf16.gmra.mxu0 %v1029
      %v1076 = vpop.f32.mrf.mxu0
      %v1077 = vadd.f32 0.0, %v1076
      %v1078 = vpop.f32.mrf.mxu0
      %v1079 = vadd.f32 0.0, %v1078
      %1080 = vmatmul.bf16.gmra.mxu0 %v1032
      %v1081 = vpop.f32.mrf.mxu0
      %v1082 = vadd.f32 0.0, %v1081
      %v1083 = vpop.f32.mrf.mxu0
      %v1084 = vadd.f32 0.0, %v1083
      %1085 = vdwg.mxu0
      %v1086 = vadd.f32 %v929, %v1047
      %v1087 = vadd.f32 %v930, %v1049
      %v1088 = vadd.f32 %v931, %v1052
      %v1089 = vadd.f32 %v932, %v1054
      %v1090 = vadd.f32 %v933, %v1057
      %v1091 = vadd.f32 %v934, %v1059
      %v1092 = vadd.f32 %v935, %v1062
      %v1093 = vadd.f32 %v936, %v1064
      %v1094 = vadd.f32 %v937, %v1067
      %v1095 = vadd.f32 %v938, %v1069
      %v1096 = vadd.f32 %v939, %v1072
      %v1097 = vadd.f32 %v940, %v1074
      %v1098 = vadd.f32 %v941, %v1077
      %v1099 = vadd.f32 %v942, %v1079
      %v1100 = vadd.f32 %v943, %v1082
      %v1101 = vadd.f32 %v944, %v1084
      %v1102 = vld [vmem:[%s948] sm:$0xf]
      %v1103 = vld [vmem:[%s948 + $0x4] sm:$0xf]
      %v1104 = vld [vmem:[%s948 + $0x8] sm:$0x1]
      %v1105 = vld [vmem:[%s948 + $0xc] sm:$0xf]
      %v1106 = vld [vmem:[%s948 + $0x10] sm:$0xf]
      %v1107 = vld [vmem:[%s948 + $0x14] sm:$0x1]
      %v1108 = vld [vmem:[%s948 + $0x18] sm:$0xf]
      %v1109 = vld [vmem:[%s948 + $0x1c] sm:$0xf]
      %v1110 = vld [vmem:[%s948 + $0x20] sm:$0x1]
      %v1111 = vld [vmem:[%s948 + $0x24] sm:$0xf]
      %v1112 = vld [vmem:[%s948 + $0x28] sm:$0xf]
      %v1113 = vld [vmem:[%s948 + $0x2c] sm:$0x1]
      %v1114 = vld [vmem:[%s948 + $0x30] sm:$0xf]
      %v1115 = vld [vmem:[%s948 + $0x34] sm:$0xf]
      %v1116 = vld [vmem:[%s948 + $0x38] sm:$0x1]
      %v1117 = vld [vmem:[%s948 + $0x3c] sm:$0xf]
      %v1118 = vld [vmem:[%s948 + $0x40] sm:$0xf]
      %v1119 = vld [vmem:[%s948 + $0x44] sm:$0x1]
      %v1120 = vld [vmem:[%s948 + $0x48] sm:$0xf]
      %v1121 = vld [vmem:[%s948 + $0x4c] sm:$0xf]
      %v1122 = vld [vmem:[%s948 + $0x50] sm:$0x1]
      %v1123 = vld [vmem:[%s948 + $0x54] sm:$0xf]
      %v1124 = vld [vmem:[%s948 + $0x58] sm:$0xf]
      %v1125 = vld [vmem:[%s948 + $0x5c] sm:$0x1]
      %v1127 = vshrl.u32 %v1102, 16
      %v1129 = vrot.slane %v1127, 4
      %v1130 = vshll.u32 %v1102, 16
      %v1132 = vrot.slane %v1130, 5
      %v1133 = vor.u32 %v1129, %v1132
      %v1134 = vrot.slane %v1133, 4
      %v1136 = vshll.u32 %v1103, 16
      %v1138 = vrot.slane %v1136, 5
      %v1139 = vsel %vm329, %v1134, %v1138
      %v1140 = vshrl.u32 %v1103, 16
      %v1142 = vrot.slane %v1140, 4
      %v1143 = vor.u32 %v1142, %v1138
      %v1144 = vrot.slane %v1143, 4
      %v1146 = vshll.u32 %v1104, 16
      %v1148 = vrot.slane %v1146, 5
      %v1149 = vsel %vm329, %v1144, %v1148
      %v1151 = vshrl.u32 %v1105, 16
      %v1153 = vrot.slane %v1151, 4
      %v1154 = vshll.u32 %v1105, 16
      %v1156 = vrot.slane %v1154, 5
      %v1157 = vor.u32 %v1153, %v1156
      %v1158 = vrot.slane %v1157, 4
      %v1160 = vshll.u32 %v1106, 16
      %v1162 = vrot.slane %v1160, 5
      %v1163 = vsel %vm329, %v1158, %v1162
      %v1164 = vshrl.u32 %v1106, 16
      %v1166 = vrot.slane %v1164, 4
      %v1167 = vor.u32 %v1166, %v1162
      %v1168 = vrot.slane %v1167, 4
      %v1170 = vshll.u32 %v1107, 16
      %v1172 = vrot.slane %v1170, 5
      %v1173 = vsel %vm329, %v1168, %v1172
      %v1175 = vshrl.u32 %v1108, 16
      %v1177 = vrot.slane %v1175, 4
      %v1178 = vshll.u32 %v1108, 16
      %v1180 = vrot.slane %v1178, 5
      %v1181 = vor.u32 %v1177, %v1180
      %v1182 = vrot.slane %v1181, 4
      %v1184 = vshll.u32 %v1109, 16
      %v1186 = vrot.slane %v1184, 5
      %v1187 = vsel %vm329, %v1182, %v1186
      %v1188 = vshrl.u32 %v1109, 16
      %v1190 = vrot.slane %v1188, 4
      %v1191 = vor.u32 %v1190, %v1186
      %v1192 = vrot.slane %v1191, 4
      %v1194 = vshll.u32 %v1110, 16
      %v1196 = vrot.slane %v1194, 5
      %v1197 = vsel %vm329, %v1192, %v1196
      %v1199 = vshrl.u32 %v1111, 16
      %v1201 = vrot.slane %v1199, 4
      %v1202 = vshll.u32 %v1111, 16
      %v1204 = vrot.slane %v1202, 5
      %v1205 = vor.u32 %v1201, %v1204
      %v1206 = vrot.slane %v1205, 4
      %v1208 = vshll.u32 %v1112, 16
      %v1210 = vrot.slane %v1208, 5
      %v1211 = vsel %vm329, %v1206, %v1210
      %v1212 = vshrl.u32 %v1112, 16
      %v1214 = vrot.slane %v1212, 4
      %v1215 = vor.u32 %v1214, %v1210
      %v1216 = vrot.slane %v1215, 4
      %v1218 = vshll.u32 %v1113, 16
      %v1220 = vrot.slane %v1218, 5
      %v1221 = vsel %vm329, %v1216, %v1220
      %v1223 = vshrl.u32 %v1114, 16
      %v1225 = vrot.slane %v1223, 4
      %v1226 = vshll.u32 %v1114, 16
      %v1228 = vrot.slane %v1226, 5
      %v1229 = vor.u32 %v1225, %v1228
      %v1230 = vrot.slane %v1229, 4
      %v1232 = vshll.u32 %v1115, 16
      %v1234 = vrot.slane %v1232, 5
      %v1235 = vsel %vm329, %v1230, %v1234
      %v1236 = vshrl.u32 %v1115, 16
      %v1238 = vrot.slane %v1236, 4
      %v1239 = vor.u32 %v1238, %v1234
      %v1240 = vrot.slane %v1239, 4
      %v1242 = vshll.u32 %v1116, 16
      %v1244 = vrot.slane %v1242, 5
      %v1245 = vsel %vm329, %v1240, %v1244
      %v1247 = vshrl.u32 %v1117, 16
      %v1249 = vrot.slane %v1247, 4
      %v1250 = vshll.u32 %v1117, 16
      %v1252 = vrot.slane %v1250, 5
      %v1253 = vor.u32 %v1249, %v1252
      %v1254 = vrot.slane %v1253, 4
      %v1256 = vshll.u32 %v1118, 16
      %v1258 = vrot.slane %v1256, 5
      %v1259 = vsel %vm329, %v1254, %v1258
      %v1260 = vshrl.u32 %v1118, 16
      %v1262 = vrot.slane %v1260, 4
      %v1263 = vor.u32 %v1262, %v1258
      %v1264 = vrot.slane %v1263, 4
      %v1266 = vshll.u32 %v1119, 16
      %v1268 = vrot.slane %v1266, 5
      %v1269 = vsel %vm329, %v1264, %v1268
      %v1271 = vshrl.u32 %v1120, 16
      %v1273 = vrot.slane %v1271, 4
      %v1274 = vshll.u32 %v1120, 16
      %v1276 = vrot.slane %v1274, 5
      %v1277 = vor.u32 %v1273, %v1276
      %v1278 = vrot.slane %v1277, 4
      %v1280 = vshll.u32 %v1121, 16
      %v1282 = vrot.slane %v1280, 5
      %v1283 = vsel %vm329, %v1278, %v1282
      %v1284 = vshrl.u32 %v1121, 16
      %v1286 = vrot.slane %v1284, 4
      %v1287 = vor.u32 %v1286, %v1282
      %v1288 = vrot.slane %v1287, 4
      %v1290 = vshll.u32 %v1122, 16
      %v1292 = vrot.slane %v1290, 5
      %v1293 = vsel %vm329, %v1288, %v1292
      %v1295 = vshrl.u32 %v1123, 16
      %v1297 = vrot.slane %v1295, 4
      %v1298 = vshll.u32 %v1123, 16
      %v1300 = vrot.slane %v1298, 5
      %v1301 = vor.u32 %v1297, %v1300
      %v1302 = vrot.slane %v1301, 4
      %v1304 = vshll.u32 %v1124, 16
      %v1306 = vrot.slane %v1304, 5
      %v1307 = vsel %vm329, %v1302, %v1306
      %v1308 = vshrl.u32 %v1124, 16
      %v1310 = vrot.slane %v1308, 4
      %v1311 = vor.u32 %v1310, %v1306
      %v1312 = vrot.slane %v1311, 4
      %v1314 = vshll.u32 %v1125, 16
      %v1316 = vrot.slane %v1314, 5
      %v1317 = vsel %vm329, %v1312, %v1316
      %v1318 = vld [vmem:[%s2 + $0x8] sm:$0x3]
      %v1319 = vunpack.c.l.b16 %v1139
      %v1320 = vunpack.c.l.b16 %v1149
      %v1321 = vunpack.c.l.b16 %v1163
      %v1322 = vunpack.c.l.b16 %v1173
      %v1323 = vunpack.c.l.b16 %v1187
      %v1324 = vunpack.c.l.b16 %v1197
      %v1325 = vunpack.c.l.b16 %v1211
      %v1326 = vunpack.c.l.b16 %v1221
      %v1327 = vunpack.c.l.b16 %v1235
      %v1328 = vunpack.c.l.b16 %v1245
      %v1329 = vunpack.c.l.b16 %v1259
      %v1330 = vunpack.c.l.b16 %v1269
      %v1331 = vunpack.c.l.b16 %v1283
      %v1332 = vunpack.c.l.b16 %v1293
      %v1333 = vunpack.c.l.b16 %v1307
      %v1334 = vunpack.c.l.b16 %v1317
      %v1335 = vpack.c.b16 %v1320, %v1319
      %v1336 = vpack.c.b16 %v1322, %v1321
      %v1337 = vpack.c.b16 %v1324, %v1323
      %v1338 = vpack.c.b16 %v1326, %v1325
      %v1339 = vpack.c.b16 %v1328, %v1327
      %v1340 = vpack.c.b16 %v1330, %v1329
      %v1341 = vpack.c.b16 %v1332, %v1331
      %v1342 = vpack.c.b16 %v1334, %v1333
      %v1344 = vsel %vm551, %v1335, 0
      %v1347 = vsel %vm551, %v1336, 0
      %v1350 = vsel %vm551, %v1337, 0
      %v1353 = vsel %vm551, %v1338, 0
      %v1356 = vsel %vm551, %v1339, 0
      %v1359 = vsel %vm551, %v1340, 0
      %v1362 = vsel %vm551, %v1341, 0
      %v1365 = vsel %vm551, %v1342, 0
      %v1368 = vsel %vm576, %v1318, 0
      %1370 = vmatpush.bf16.msra.mxu0 0
      %1371 = vmatpush.bf16.msra.mxu0 0
      %1372 = vmatpush.bf16.msra.mxu0 0
      %1373 = vmatpush.bf16.msra.mxu0 0
      %1374 = vmatpush.bf16.msra.mxu0 0
      %1375 = vmatpush.bf16.msra.mxu0 0
      %1376 = vmatpush.bf16.msra.mxu0 0
      %1377 = vmatpush.bf16.msra.mxu0 %v1368
      %1378 = vmatmul.bf16.gmra.mxu0 %v1344
      %v1379 = vpop.f32.mrf.mxu0
      %v1380 = vadd.f32 0.0, %v1379
      %v1381 = vpop.f32.mrf.mxu0
      %v1382 = vadd.f32 0.0, %v1381
      %1383 = vmatmul.bf16.gmra.mxu0 %v1347
      %v1384 = vpop.f32.mrf.mxu0
      %v1385 = vadd.f32 0.0, %v1384
      %v1386 = vpop.f32.mrf.mxu0
      %v1387 = vadd.f32 0.0, %v1386
      %1388 = vmatmul.bf16.gmra.mxu0 %v1350
      %v1389 = vpop.f32.mrf.mxu0
      %v1390 = vadd.f32 0.0, %v1389
      %v1391 = vpop.f32.mrf.mxu0
      %v1392 = vadd.f32 0.0, %v1391
      %1393 = vmatmul.bf16.gmra.mxu0 %v1353
      %v1394 = vpop.f32.mrf.mxu0
      %v1395 = vadd.f32 0.0, %v1394
      %v1396 = vpop.f32.mrf.mxu0
      %v1397 = vadd.f32 0.0, %v1396
      %1398 = vmatmul.bf16.gmra.mxu0 %v1356
      %v1399 = vpop.f32.mrf.mxu0
      %v1400 = vadd.f32 0.0, %v1399
      %v1401 = vpop.f32.mrf.mxu0
      %v1402 = vadd.f32 0.0, %v1401
      %1403 = vmatmul.bf16.gmra.mxu0 %v1359
      %v1404 = vpop.f32.mrf.mxu0
      %v1405 = vadd.f32 0.0, %v1404
      %v1406 = vpop.f32.mrf.mxu0
      %v1407 = vadd.f32 0.0, %v1406
      %1408 = vmatmul.bf16.gmra.mxu0 %v1362
      %v1409 = vpop.f32.mrf.mxu0
      %v1410 = vadd.f32 0.0, %v1409
      %v1411 = vpop.f32.mrf.mxu0
      %v1412 = vadd.f32 0.0, %v1411
      %1413 = vmatmul.bf16.gmra.mxu0 %v1365
      %v1414 = vpop.f32.mrf.mxu0
      %v1415 = vadd.f32 0.0, %v1414
      %v1416 = vpop.f32.mrf.mxu0
      %v1417 = vadd.f32 0.0, %v1416
      %1418 = vdwg.mxu0
      %v1419 = vadd.f32 %v1086, %v1380
      %v1420 = vadd.f32 %v1087, %v1382
      %v1421 = vadd.f32 %v1088, %v1385
      %v1422 = vadd.f32 %v1089, %v1387
      %v1423 = vadd.f32 %v1090, %v1390
      %v1424 = vadd.f32 %v1091, %v1392
      %v1425 = vadd.f32 %v1092, %v1395
      %v1426 = vadd.f32 %v1093, %v1397
      %v1427 = vadd.f32 %v1094, %v1400
      %v1428 = vadd.f32 %v1095, %v1402
      %v1429 = vadd.f32 %v1096, %v1405
      %v1430 = vadd.f32 %v1097, %v1407
      %v1431 = vadd.f32 %v1098, %v1410
      %v1432 = vadd.f32 %v1099, %v1412
      %v1433 = vadd.f32 %v1100, %v1415
      %v1434 = vadd.f32 %v1101, %v1417
      %v1435 = vld [vmem:[%s948] sm:$0xe]
      %v1436 = vld [vmem:[%s948 + $0xc] sm:$0xe]
      %v1437 = vld [vmem:[%s948 + $0x18] sm:$0xe]
      %v1438 = vld [vmem:[%s948 + $0x24] sm:$0xe]
      %v1439 = vld [vmem:[%s948 + $0x30] sm:$0xe]
      %v1440 = vld [vmem:[%s948 + $0x3c] sm:$0xe]
      %v1441 = vld [vmem:[%s948 + $0x48] sm:$0xe]
      %v1442 = vld [vmem:[%s948 + $0x54] sm:$0xe]
      %v1467 = vrot.slane %v1435, 5
      %v1468 = vrot.slane %v1467, 4
      %v1469 = vrot.slane %v1103, 5
      %v1470 = vsel %vm771, %v1468, %v1469
      %v1471 = vrot.slane %v1469, 4
      %v1472 = vrot.slane %v1104, 5
      %v1473 = vsel %vm771, %v1471, %v1472
      %v1474 = vrot.slane %v1436, 5
      %v1475 = vrot.slane %v1474, 4
      %v1476 = vrot.slane %v1106, 5
      %v1477 = vsel %vm771, %v1475, %v1476
      %v1478 = vrot.slane %v1476, 4
      %v1479 = vrot.slane %v1107, 5
      %v1480 = vsel %vm771, %v1478, %v1479
      %v1481 = vrot.slane %v1437, 5
      %v1482 = vrot.slane %v1481, 4
      %v1483 = vrot.slane %v1109, 5
      %v1484 = vsel %vm771, %v1482, %v1483
      %v1485 = vrot.slane %v1483, 4
      %v1486 = vrot.slane %v1110, 5
      %v1487 = vsel %vm771, %v1485, %v1486
      %v1488 = vrot.slane %v1438, 5
      %v1489 = vrot.slane %v1488, 4
      %v1490 = vrot.slane %v1112, 5
      %v1491 = vsel %vm771, %v1489, %v1490
      %v1492 = vrot.slane %v1490, 4
      %v1493 = vrot.slane %v1113, 5
      %v1494 = vsel %vm771, %v1492, %v1493
      %v1495 = vrot.slane %v1439, 5
      %v1496 = vrot.slane %v1495, 4
      %v1497 = vrot.slane %v1115, 5
      %v1498 = vsel %vm771, %v1496, %v1497
      %v1499 = vrot.slane %v1497, 4
      %v1500 = vrot.slane %v1116, 5
      %v1501 = vsel %vm771, %v1499, %v1500
      %v1502 = vrot.slane %v1440, 5
      %v1503 = vrot.slane %v1502, 4
      %v1504 = vrot.slane %v1118, 5
      %v1505 = vsel %vm771, %v1503, %v1504
      %v1506 = vrot.slane %v1504, 4
      %v1507 = vrot.slane %v1119, 5
      %v1508 = vsel %vm771, %v1506, %v1507
      %v1509 = vrot.slane %v1441, 5
      %v1510 = vrot.slane %v1509, 4
      %v1511 = vrot.slane %v1121, 5
      %v1512 = vsel %vm771, %v1510, %v1511
      %v1513 = vrot.slane %v1511, 4
      %v1514 = vrot.slane %v1122, 5
      %v1515 = vsel %vm771, %v1513, %v1514
      %v1516 = vrot.slane %v1442, 5
      %v1517 = vrot.slane %v1516, 4
      %v1518 = vrot.slane %v1124, 5
      %v1519 = vsel %vm771, %v1517, %v1518
      %v1520 = vrot.slane %v1518, 4
      %v1521 = vrot.slane %v1125, 5
      %v1522 = vsel %vm771, %v1520, %v1521
      %v1523 = vld [vmem:[%s2 + $0x8] sm:$0xc]
      %v1524 = vunpack.c.l.b16 %v1470
      %v1525 = vunpack.c.l.b16 %v1473
      %v1526 = vunpack.c.l.b16 %v1477
      %v1527 = vunpack.c.l.b16 %v1480
      %v1528 = vunpack.c.l.b16 %v1484
      %v1529 = vunpack.c.l.b16 %v1487
      %v1530 = vunpack.c.l.b16 %v1491
      %v1531 = vunpack.c.l.b16 %v1494
      %v1532 = vunpack.c.l.b16 %v1498
      %v1533 = vunpack.c.l.b16 %v1501
      %v1534 = vunpack.c.l.b16 %v1505
      %v1535 = vunpack.c.l.b16 %v1508
      %v1536 = vunpack.c.l.b16 %v1512
      %v1537 = vunpack.c.l.b16 %v1515
      %v1538 = vunpack.c.l.b16 %v1519
      %v1539 = vunpack.c.l.b16 %v1522
      %v1540 = vpack.c.b16 %v1525, %v1524
      %v1541 = vpack.c.b16 %v1527, %v1526
      %v1542 = vpack.c.b16 %v1529, %v1528
      %v1543 = vpack.c.b16 %v1531, %v1530
      %v1544 = vpack.c.b16 %v1533, %v1532
      %v1545 = vpack.c.b16 %v1535, %v1534
      %v1546 = vpack.c.b16 %v1537, %v1536
      %v1547 = vpack.c.b16 %v1539, %v1538
      %v1549 = vunpack.c.l.b16 %v1523
      %v1550 = vpack.c.b16 %v1549, %v1549
      %v1551 = vrot.slane %v1550, 2
      %v1553 = vsel %vm551, %v1540, 0
      %v1556 = vsel %vm551, %v1541, 0
      %v1559 = vsel %vm551, %v1542, 0
      %v1562 = vsel %vm551, %v1543, 0
      %v1565 = vsel %vm551, %v1544, 0
      %v1568 = vsel %vm551, %v1545, 0
      %v1571 = vsel %vm551, %v1546, 0
      %v1574 = vsel %vm551, %v1547, 0
      %v1577 = vsel %vm576, %v1551, 0
      %1579 = vmatpush.bf16.msra.mxu0 0
      %1580 = vmatpush.bf16.msra.mxu0 0
      %1581 = vmatpush.bf16.msra.mxu0 0
      %1582 = vmatpush.bf16.msra.mxu0 0
      %1583 = vmatpush.bf16.msra.mxu0 0
      %1584 = vmatpush.bf16.msra.mxu0 0
      %1585 = vmatpush.bf16.msra.mxu0 0
      %1586 = vmatpush.bf16.msra.mxu0 %v1577
      %1587 = vmatmul.bf16.gmra.mxu0 %v1553
      %v1588 = vpop.f32.mrf.mxu0
      %v1589 = vadd.f32 0.0, %v1588
      %v1590 = vpop.f32.mrf.mxu0
      %v1591 = vadd.f32 0.0, %v1590
      %1592 = vmatmul.bf16.gmra.mxu0 %v1556
      %v1593 = vpop.f32.mrf.mxu0
      %v1594 = vadd.f32 0.0, %v1593
      %v1595 = vpop.f32.mrf.mxu0
      %v1596 = vadd.f32 0.0, %v1595
      %1597 = vmatmul.bf16.gmra.mxu0 %v1559
      %v1598 = vpop.f32.mrf.mxu0
      %v1599 = vadd.f32 0.0, %v1598
      %v1600 = vpop.f32.mrf.mxu0
      %v1601 = vadd.f32 0.0, %v1600
      %1602 = vmatmul.bf16.gmra.mxu0 %v1562
      %v1603 = vpop.f32.mrf.mxu0
      %v1604 = vadd.f32 0.0, %v1603
      %v1605 = vpop.f32.mrf.mxu0
      %v1606 = vadd.f32 0.0, %v1605
      %1607 = vmatmul.bf16.gmra.mxu0 %v1565
      %v1608 = vpop.f32.mrf.mxu0
      %v1609 = vadd.f32 0.0, %v1608
      %v1610 = vpop.f32.mrf.mxu0
      %v1611 = vadd.f32 0.0, %v1610
      %1612 = vmatmul.bf16.gmra.mxu0 %v1568
      %v1613 = vpop.f32.mrf.mxu0
      %v1614 = vadd.f32 0.0, %v1613
      %v1615 = vpop.f32.mrf.mxu0
      %v1616 = vadd.f32 0.0, %v1615
      %1617 = vmatmul.bf16.gmra.mxu0 %v1571
      %v1618 = vpop.f32.mrf.mxu0
      %v1619 = vadd.f32 0.0, %v1618
      %v1620 = vpop.f32.mrf.mxu0
      %v1621 = vadd.f32 0.0, %v1620
      %1622 = vmatmul.bf16.gmra.mxu0 %v1574
      %v1623 = vpop.f32.mrf.mxu0
      %v1624 = vadd.f32 0.0, %v1623
      %v1625 = vpop.f32.mrf.mxu0
      %v1626 = vadd.f32 0.0, %v1625
      %1627 = vdwg.mxu0
      %v1628 = vadd.f32 %v1419, %v1589
      %v1629 = vadd.f32 %v1420, %v1591
      %v1630 = vadd.f32 %v1421, %v1594
      %v1631 = vadd.f32 %v1422, %v1596
      %v1632 = vadd.f32 %v1423, %v1599
      %v1633 = vadd.f32 %v1424, %v1601
      %v1634 = vadd.f32 %v1425, %v1604
      %v1635 = vadd.f32 %v1426, %v1606
      %v1636 = vadd.f32 %v1427, %v1609
      %v1637 = vadd.f32 %v1428, %v1611
      %v1638 = vadd.f32 %v1429, %v1614
      %v1639 = vadd.f32 %v1430, %v1616
      %v1640 = vadd.f32 %v1431, %v1619
      %v1641 = vadd.f32 %v1432, %v1621
      %v1642 = vadd.f32 %v1433, %v1624
      %v1643 = vadd.f32 %v1434, %v1626
      %s1644 = sadd.s32 %s298, 2
      %s1645 = smul.u32 %s1644, 3
      %s1646 = smul.addr %s1645, 4
      %s1647 = scalar_lea.vmem %s280, %s1646
      %v1648 = vld [vmem:[%s1647] sm:$0xf]
      %v1649 = vld [vmem:[%s1647 + $0x4] sm:$0xf]
      %v1650 = vld [vmem:[%s1647 + $0xc] sm:$0xf]
      %v1651 = vld [vmem:[%s1647 + $0x10] sm:$0xf]
      %v1652 = vld [vmem:[%s1647 + $0x18] sm:$0xf]
      %v1653 = vld [vmem:[%s1647 + $0x1c] sm:$0xf]
      %v1654 = vld [vmem:[%s1647 + $0x24] sm:$0xf]
      %v1655 = vld [vmem:[%s1647 + $0x28] sm:$0xf]
      %v1656 = vld [vmem:[%s1647 + $0x30] sm:$0xf]
      %v1657 = vld [vmem:[%s1647 + $0x34] sm:$0xf]
      %v1658 = vld [vmem:[%s1647 + $0x3c] sm:$0xf]
      %v1659 = vld [vmem:[%s1647 + $0x40] sm:$0xf]
      %v1660 = vld [vmem:[%s1647 + $0x48] sm:$0xf]
      %v1661 = vld [vmem:[%s1647 + $0x4c] sm:$0xf]
      %v1662 = vld [vmem:[%s1647 + $0x54] sm:$0xf]
      %v1663 = vld [vmem:[%s1647 + $0x58] sm:$0xf]
      %v1664 = vld [vmem:[%s2 + $0xc] sm:$0x3]
      %v1681 = vunpack.c.l.b16 %v1648
      %v1682 = vunpack.c.l.b16 %v1649
      %v1683 = vunpack.c.l.b16 %v1650
      %v1684 = vunpack.c.l.b16 %v1651
      %v1685 = vunpack.c.l.b16 %v1652
      %v1686 = vunpack.c.l.b16 %v1653
      %v1687 = vunpack.c.l.b16 %v1654
      %v1688 = vunpack.c.l.b16 %v1655
      %v1689 = vunpack.c.l.b16 %v1656
      %v1690 = vunpack.c.l.b16 %v1657
      %v1691 = vunpack.c.l.b16 %v1658
      %v1692 = vunpack.c.l.b16 %v1659
      %v1693 = vunpack.c.l.b16 %v1660
      %v1694 = vunpack.c.l.b16 %v1661
      %v1695 = vunpack.c.l.b16 %v1662
      %v1696 = vunpack.c.l.b16 %v1663
      %v1697 = vpack.c.b16 %v1682, %v1681
      %v1698 = vpack.c.b16 %v1684, %v1683
      %v1699 = vpack.c.b16 %v1686, %v1685
      %v1700 = vpack.c.b16 %v1688, %v1687
      %v1701 = vpack.c.b16 %v1690, %v1689
      %v1702 = vpack.c.b16 %v1692, %v1691
      %v1703 = vpack.c.b16 %v1694, %v1693
      %v1704 = vpack.c.b16 %v1696, %v1695
      %v1706 = vsel %vm551, %v1697, 0
      %v1709 = vsel %vm551, %v1698, 0
      %v1712 = vsel %vm551, %v1699, 0
      %v1715 = vsel %vm551, %v1700, 0
      %v1718 = vsel %vm551, %v1701, 0
      %v1721 = vsel %vm551, %v1702, 0
      %v1724 = vsel %vm551, %v1703, 0
      %v1727 = vsel %vm551, %v1704, 0
      %v1730 = vsel %vm576, %v1664, 0
      %1732 = vmatpush.bf16.msra.mxu0 0
      %1733 = vmatpush.bf16.msra.mxu0 0
      %1734 = vmatpush.bf16.msra.mxu0 0
      %1735 = vmatpush.bf16.msra.mxu0 0
      %1736 = vmatpush.bf16.msra.mxu0 0
      %1737 = vmatpush.bf16.msra.mxu0 0
      %1738 = vmatpush.bf16.msra.mxu0 0
      %1739 = vmatpush.bf16.msra.mxu0 %v1730
      %1740 = vmatmul.bf16.gmra.mxu0 %v1706
      %v1741 = vpop.f32.mrf.mxu0
      %v1742 = vadd.f32 0.0, %v1741
      %v1743 = vpop.f32.mrf.mxu0
      %v1744 = vadd.f32 0.0, %v1743
      %1745 = vmatmul.bf16.gmra.mxu0 %v1709
      %v1746 = vpop.f32.mrf.mxu0
      %v1747 = vadd.f32 0.0, %v1746
      %v1748 = vpop.f32.mrf.mxu0
      %v1749 = vadd.f32 0.0, %v1748
      %1750 = vmatmul.bf16.gmra.mxu0 %v1712
      %v1751 = vpop.f32.mrf.mxu0
      %v1752 = vadd.f32 0.0, %v1751
      %v1753 = vpop.f32.mrf.mxu0
      %v1754 = vadd.f32 0.0, %v1753
      %1755 = vmatmul.bf16.gmra.mxu0 %v1715
      %v1756 = vpop.f32.mrf.mxu0
      %v1757 = vadd.f32 0.0, %v1756
      %v1758 = vpop.f32.mrf.mxu0
      %v1759 = vadd.f32 0.0, %v1758
      %1760 = vmatmul.bf16.gmra.mxu0 %v1718
      %v1761 = vpop.f32.mrf.mxu0
      %v1762 = vadd.f32 0.0, %v1761
      %v1763 = vpop.f32.mrf.mxu0
      %v1764 = vadd.f32 0.0, %v1763
      %1765 = vmatmul.bf16.gmra.mxu0 %v1721
      %v1766 = vpop.f32.mrf.mxu0
      %v1767 = vadd.f32 0.0, %v1766
      %v1768 = vpop.f32.mrf.mxu0
      %v1769 = vadd.f32 0.0, %v1768
      %1770 = vmatmul.bf16.gmra.mxu0 %v1724
      %v1771 = vpop.f32.mrf.mxu0
      %v1772 = vadd.f32 0.0, %v1771
      %v1773 = vpop.f32.mrf.mxu0
      %v1774 = vadd.f32 0.0, %v1773
      %1775 = vmatmul.bf16.gmra.mxu0 %v1727
      %v1776 = vpop.f32.mrf.mxu0
      %v1777 = vadd.f32 0.0, %v1776
      %v1778 = vpop.f32.mrf.mxu0
      %v1779 = vadd.f32 0.0, %v1778
      %1780 = vdwg.mxu0
      %v1781 = vadd.f32 %v1628, %v1742
      %v1782 = vadd.f32 %v1629, %v1744
      %v1783 = vadd.f32 %v1630, %v1747
      %v1784 = vadd.f32 %v1631, %v1749
      %v1785 = vadd.f32 %v1632, %v1752
      %v1786 = vadd.f32 %v1633, %v1754
      %v1787 = vadd.f32 %v1634, %v1757
      %v1788 = vadd.f32 %v1635, %v1759
      %v1789 = vadd.f32 %v1636, %v1762
      %v1790 = vadd.f32 %v1637, %v1764
      %v1791 = vadd.f32 %v1638, %v1767
      %v1792 = vadd.f32 %v1639, %v1769
      %v1793 = vadd.f32 %v1640, %v1772
      %v1794 = vadd.f32 %v1641, %v1774
      %v1795 = vadd.f32 %v1642, %v1777
      %v1796 = vadd.f32 %v1643, %v1779
      %v1797 = vld [vmem:[%s1647] sm:$0xf]
      %v1798 = vld [vmem:[%s1647 + $0x4] sm:$0xf]
      %v1799 = vld [vmem:[%s1647 + $0x8] sm:$0x1]
      %v1800 = vld [vmem:[%s1647 + $0xc] sm:$0xf]
      %v1801 = vld [vmem:[%s1647 + $0x10] sm:$0xf]
      %v1802 = vld [vmem:[%s1647 + $0x14] sm:$0x1]
      %v1803 = vld [vmem:[%s1647 + $0x18] sm:$0xf]
      %v1804 = vld [vmem:[%s1647 + $0x1c] sm:$0xf]
      %v1805 = vld [vmem:[%s1647 + $0x20] sm:$0x1]
      %v1806 = vld [vmem:[%s1647 + $0x24] sm:$0xf]
      %v1807 = vld [vmem:[%s1647 + $0x28] sm:$0xf]
      %v1808 = vld [vmem:[%s1647 + $0x2c] sm:$0x1]
      %v1809 = vld [vmem:[%s1647 + $0x30] sm:$0xf]
      %v1810 = vld [vmem:[%s1647 + $0x34] sm:$0xf]
      %v1811 = vld [vmem:[%s1647 + $0x38] sm:$0x1]
      %v1812 = vld [vmem:[%s1647 + $0x3c] sm:$0xf]
      %v1813 = vld [vmem:[%s1647 + $0x40] sm:$0xf]
      %v1814 = vld [vmem:[%s1647 + $0x44] sm:$0x1]
      %v1815 = vld [vmem:[%s1647 + $0x48] sm:$0xf]
      %v1816 = vld [vmem:[%s1647 + $0x4c] sm:$0xf]
      %v1817 = vld [vmem:[%s1647 + $0x50] sm:$0x1]
      %v1818 = vld [vmem:[%s1647 + $0x54] sm:$0xf]
      %v1819 = vld [vmem:[%s1647 + $0x58] sm:$0xf]
      %v1820 = vld [vmem:[%s1647 + $0x5c] sm:$0x1]
      %v1822 = vshrl.u32 %v1797, 16
      %v1824 = vrot.slane %v1822, 4
      %v1825 = vshll.u32 %v1797, 16
      %v1827 = vrot.slane %v1825, 5
      %v1828 = vor.u32 %v1824, %v1827
      %v1829 = vrot.slane %v1828, 4
      %v1831 = vshll.u32 %v1798, 16
      %v1833 = vrot.slane %v1831, 5
      %v1834 = vsel %vm329, %v1829, %v1833
      %v1835 = vshrl.u32 %v1798, 16
      %v1837 = vrot.slane %v1835, 4
      %v1838 = vor.u32 %v1837, %v1833
      %v1839 = vrot.slane %v1838, 4
      %v1841 = vshll.u32 %v1799, 16
      %v1843 = vrot.slane %v1841, 5
      %v1844 = vsel %vm329, %v1839, %v1843
      %v1846 = vshrl.u32 %v1800, 16
      %v1848 = vrot.slane %v1846, 4
      %v1849 = vshll.u32 %v1800, 16
      %v1851 = vrot.slane %v1849, 5
      %v1852 = vor.u32 %v1848, %v1851
      %v1853 = vrot.slane %v1852, 4
      %v1855 = vshll.u32 %v1801, 16
      %v1857 = vrot.slane %v1855, 5
      %v1858 = vsel %vm329, %v1853, %v1857
      %v1859 = vshrl.u32 %v1801, 16
      %v1861 = vrot.slane %v1859, 4
      %v1862 = vor.u32 %v1861, %v1857
      %v1863 = vrot.slane %v1862, 4
      %v1865 = vshll.u32 %v1802, 16
      %v1867 = vrot.slane %v1865, 5
      %v1868 = vsel %vm329, %v1863, %v1867
      %v1870 = vshrl.u32 %v1803, 16
      %v1872 = vrot.slane %v1870, 4
      %v1873 = vshll.u32 %v1803, 16
      %v1875 = vrot.slane %v1873, 5
      %v1876 = vor.u32 %v1872, %v1875
      %v1877 = vrot.slane %v1876, 4
      %v1879 = vshll.u32 %v1804, 16
      %v1881 = vrot.slane %v1879, 5
      %v1882 = vsel %vm329, %v1877, %v1881
      %v1883 = vshrl.u32 %v1804, 16
      %v1885 = vrot.slane %v1883, 4
      %v1886 = vor.u32 %v1885, %v1881
      %v1887 = vrot.slane %v1886, 4
      %v1889 = vshll.u32 %v1805, 16
      %v1891 = vrot.slane %v1889, 5
      %v1892 = vsel %vm329, %v1887, %v1891
      %v1894 = vshrl.u32 %v1806, 16
      %v1896 = vrot.slane %v1894, 4
      %v1897 = vshll.u32 %v1806, 16
      %v1899 = vrot.slane %v1897, 5
      %v1900 = vor.u32 %v1896, %v1899
      %v1901 = vrot.slane %v1900, 4
      %v1903 = vshll.u32 %v1807, 16
      %v1905 = vrot.slane %v1903, 5
      %v1906 = vsel %vm329, %v1901, %v1905
      %v1907 = vshrl.u32 %v1807, 16
      %v1909 = vrot.slane %v1907, 4
      %v1910 = vor.u32 %v1909, %v1905
      %v1911 = vrot.slane %v1910, 4
      %v1913 = vshll.u32 %v1808, 16
      %v1915 = vrot.slane %v1913, 5
      %v1916 = vsel %vm329, %v1911, %v1915
      %v1918 = vshrl.u32 %v1809, 16
      %v1920 = vrot.slane %v1918, 4
      %v1921 = vshll.u32 %v1809, 16
      %v1923 = vrot.slane %v1921, 5
      %v1924 = vor.u32 %v1920, %v1923
      %v1925 = vrot.slane %v1924, 4
      %v1927 = vshll.u32 %v1810, 16
      %v1929 = vrot.slane %v1927, 5
      %v1930 = vsel %vm329, %v1925, %v1929
      %v1931 = vshrl.u32 %v1810, 16
      %v1933 = vrot.slane %v1931, 4
      %v1934 = vor.u32 %v1933, %v1929
      %v1935 = vrot.slane %v1934, 4
      %v1937 = vshll.u32 %v1811, 16
      %v1939 = vrot.slane %v1937, 5
      %v1940 = vsel %vm329, %v1935, %v1939
      %v1942 = vshrl.u32 %v1812, 16
      %v1944 = vrot.slane %v1942, 4
      %v1945 = vshll.u32 %v1812, 16
      %v1947 = vrot.slane %v1945, 5
      %v1948 = vor.u32 %v1944, %v1947
      %v1949 = vrot.slane %v1948, 4
      %v1951 = vshll.u32 %v1813, 16
      %v1953 = vrot.slane %v1951, 5
      %v1954 = vsel %vm329, %v1949, %v1953
      %v1955 = vshrl.u32 %v1813, 16
      %v1957 = vrot.slane %v1955, 4
      %v1958 = vor.u32 %v1957, %v1953
      %v1959 = vrot.slane %v1958, 4
      %v1961 = vshll.u32 %v1814, 16
      %v1963 = vrot.slane %v1961, 5
      %v1964 = vsel %vm329, %v1959, %v1963
      %v1966 = vshrl.u32 %v1815, 16
      %v1968 = vrot.slane %v1966, 4
      %v1969 = vshll.u32 %v1815, 16
      %v1971 = vrot.slane %v1969, 5
      %v1972 = vor.u32 %v1968, %v1971
      %v1973 = vrot.slane %v1972, 4
      %v1975 = vshll.u32 %v1816, 16
      %v1977 = vrot.slane %v1975, 5
      %v1978 = vsel %vm329, %v1973, %v1977
      %v1979 = vshrl.u32 %v1816, 16
      %v1981 = vrot.slane %v1979, 4
      %v1982 = vor.u32 %v1981, %v1977
      %v1983 = vrot.slane %v1982, 4
      %v1985 = vshll.u32 %v1817, 16
      %v1987 = vrot.slane %v1985, 5
      %v1988 = vsel %vm329, %v1983, %v1987
      %v1990 = vshrl.u32 %v1818, 16
      %v1992 = vrot.slane %v1990, 4
      %v1993 = vshll.u32 %v1818, 16
      %v1995 = vrot.slane %v1993, 5
      %v1996 = vor.u32 %v1992, %v1995
      %v1997 = vrot.slane %v1996, 4
      %v1999 = vshll.u32 %v1819, 16
      %v2001 = vrot.slane %v1999, 5
      %v2002 = vsel %vm329, %v1997, %v2001
      %v2003 = vshrl.u32 %v1819, 16
      %v2005 = vrot.slane %v2003, 4
      %v2006 = vor.u32 %v2005, %v2001
      %v2007 = vrot.slane %v2006, 4
      %v2009 = vshll.u32 %v1820, 16
      %v2011 = vrot.slane %v2009, 5
      %v2012 = vsel %vm329, %v2007, %v2011
      %v2013 = vld [vmem:[%s2 + $0xc] sm:$0xc]
      %v2014 = vunpack.c.l.b16 %v1834
      %v2015 = vunpack.c.l.b16 %v1844
      %v2016 = vunpack.c.l.b16 %v1858
      %v2017 = vunpack.c.l.b16 %v1868
      %v2018 = vunpack.c.l.b16 %v1882
      %v2019 = vunpack.c.l.b16 %v1892
      %v2020 = vunpack.c.l.b16 %v1906
      %v2021 = vunpack.c.l.b16 %v1916
      %v2022 = vunpack.c.l.b16 %v1930
      %v2023 = vunpack.c.l.b16 %v1940
      %v2024 = vunpack.c.l.b16 %v1954
      %v2025 = vunpack.c.l.b16 %v1964
      %v2026 = vunpack.c.l.b16 %v1978
      %v2027 = vunpack.c.l.b16 %v1988
      %v2028 = vunpack.c.l.b16 %v2002
      %v2029 = vunpack.c.l.b16 %v2012
      %v2030 = vpack.c.b16 %v2015, %v2014
      %v2031 = vpack.c.b16 %v2017, %v2016
      %v2032 = vpack.c.b16 %v2019, %v2018
      %v2033 = vpack.c.b16 %v2021, %v2020
      %v2034 = vpack.c.b16 %v2023, %v2022
      %v2035 = vpack.c.b16 %v2025, %v2024
      %v2036 = vpack.c.b16 %v2027, %v2026
      %v2037 = vpack.c.b16 %v2029, %v2028
      %v2039 = vunpack.c.l.b16 %v2013
      %v2040 = vpack.c.b16 %v2039, %v2039
      %v2041 = vrot.slane %v2040, 2
      %v2043 = vsel %vm551, %v2030, 0
      %v2046 = vsel %vm551, %v2031, 0
      %v2049 = vsel %vm551, %v2032, 0
      %v2052 = vsel %vm551, %v2033, 0
      %v2055 = vsel %vm551, %v2034, 0
      %v2058 = vsel %vm551, %v2035, 0
      %v2061 = vsel %vm551, %v2036, 0
      %v2064 = vsel %vm551, %v2037, 0
      %v2067 = vsel %vm576, %v2041, 0
      %2069 = vmatpush.bf16.msra.mxu0 0
      %2070 = vmatpush.bf16.msra.mxu0 0
      %2071 = vmatpush.bf16.msra.mxu0 0
      %2072 = vmatpush.bf16.msra.mxu0 0
      %2073 = vmatpush.bf16.msra.mxu0 0
      %2074 = vmatpush.bf16.msra.mxu0 0
      %2075 = vmatpush.bf16.msra.mxu0 0
      %2076 = vmatpush.bf16.msra.mxu0 %v2067
      %2077 = vmatmul.bf16.gmra.mxu0 %v2043
      %v2078 = vpop.f32.mrf.mxu0
      %v2079 = vadd.f32 0.0, %v2078
      %v2080 = vpop.f32.mrf.mxu0
      %v2081 = vadd.f32 0.0, %v2080
      %2082 = vmatmul.bf16.gmra.mxu0 %v2046
      %v2083 = vpop.f32.mrf.mxu0
      %v2084 = vadd.f32 0.0, %v2083
      %v2085 = vpop.f32.mrf.mxu0
      %v2086 = vadd.f32 0.0, %v2085
      %2087 = vmatmul.bf16.gmra.mxu0 %v2049
      %v2088 = vpop.f32.mrf.mxu0
      %v2089 = vadd.f32 0.0, %v2088
      %v2090 = vpop.f32.mrf.mxu0
      %v2091 = vadd.f32 0.0, %v2090
      %2092 = vmatmul.bf16.gmra.mxu0 %v2052
      %v2093 = vpop.f32.mrf.mxu0
      %v2094 = vadd.f32 0.0, %v2093
      %v2095 = vpop.f32.mrf.mxu0
      %v2096 = vadd.f32 0.0, %v2095
      %2097 = vmatmul.bf16.gmra.mxu0 %v2055
      %v2098 = vpop.f32.mrf.mxu0
      %v2099 = vadd.f32 0.0, %v2098
      %v2100 = vpop.f32.mrf.mxu0
      %v2101 = vadd.f32 0.0, %v2100
      %2102 = vmatmul.bf16.gmra.mxu0 %v2058
      %v2103 = vpop.f32.mrf.mxu0
      %v2104 = vadd.f32 0.0, %v2103
      %v2105 = vpop.f32.mrf.mxu0
      %v2106 = vadd.f32 0.0, %v2105
      %2107 = vmatmul.bf16.gmra.mxu0 %v2061
      %v2108 = vpop.f32.mrf.mxu0
      %v2109 = vadd.f32 0.0, %v2108
      %v2110 = vpop.f32.mrf.mxu0
      %v2111 = vadd.f32 0.0, %v2110
      %2112 = vmatmul.bf16.gmra.mxu0 %v2064
      %v2113 = vpop.f32.mrf.mxu0
      %v2114 = vadd.f32 0.0, %v2113
      %v2115 = vpop.f32.mrf.mxu0
      %v2116 = vadd.f32 0.0, %v2115
      %2117 = vdwg.mxu0
      %v2118 = vadd.f32 %v1781, %v2079
      %v2119 = vadd.f32 %v1782, %v2081
      %v2120 = vadd.f32 %v1783, %v2084
      %v2121 = vadd.f32 %v1784, %v2086
      %v2122 = vadd.f32 %v1785, %v2089
      %v2123 = vadd.f32 %v1786, %v2091
      %v2124 = vadd.f32 %v1787, %v2094
      %v2125 = vadd.f32 %v1788, %v2096
      %v2126 = vadd.f32 %v1789, %v2099
      %v2127 = vadd.f32 %v1790, %v2101
      %v2128 = vadd.f32 %v1791, %v2104
      %v2129 = vadd.f32 %v1792, %v2106
      %v2130 = vadd.f32 %v1793, %v2109
      %v2131 = vadd.f32 %v1794, %v2111
      %v2132 = vadd.f32 %v1795, %v2114
      %v2133 = vadd.f32 %v1796, %v2116
      %v2134 = vld [vmem:[%s1647] sm:$0xe]
      %v2135 = vld [vmem:[%s1647 + $0xc] sm:$0xe]
      %v2136 = vld [vmem:[%s1647 + $0x18] sm:$0xe]
      %v2137 = vld [vmem:[%s1647 + $0x24] sm:$0xe]
      %v2138 = vld [vmem:[%s1647 + $0x30] sm:$0xe]
      %v2139 = vld [vmem:[%s1647 + $0x3c] sm:$0xe]
      %v2140 = vld [vmem:[%s1647 + $0x48] sm:$0xe]
      %v2141 = vld [vmem:[%s1647 + $0x54] sm:$0xe]
      %v2166 = vrot.slane %v2134, 5
      %v2167 = vrot.slane %v2166, 4
      %v2168 = vrot.slane %v1798, 5
      %v2169 = vsel %vm771, %v2167, %v2168
      %v2170 = vrot.slane %v2168, 4
      %v2171 = vrot.slane %v1799, 5
      %v2172 = vsel %vm771, %v2170, %v2171
      %v2173 = vrot.slane %v2135, 5
      %v2174 = vrot.slane %v2173, 4
      %v2175 = vrot.slane %v1801, 5
      %v2176 = vsel %vm771, %v2174, %v2175
      %v2177 = vrot.slane %v2175, 4
      %v2178 = vrot.slane %v1802, 5
      %v2179 = vsel %vm771, %v2177, %v2178
      %v2180 = vrot.slane %v2136, 5
      %v2181 = vrot.slane %v2180, 4
      %v2182 = vrot.slane %v1804, 5
      %v2183 = vsel %vm771, %v2181, %v2182
      %v2184 = vrot.slane %v2182, 4
      %v2185 = vrot.slane %v1805, 5
      %v2186 = vsel %vm771, %v2184, %v2185
      %v2187 = vrot.slane %v2137, 5
      %v2188 = vrot.slane %v2187, 4
      %v2189 = vrot.slane %v1807, 5
      %v2190 = vsel %vm771, %v2188, %v2189
      %v2191 = vrot.slane %v2189, 4
      %v2192 = vrot.slane %v1808, 5
      %v2193 = vsel %vm771, %v2191, %v2192
      %v2194 = vrot.slane %v2138, 5
      %v2195 = vrot.slane %v2194, 4
      %v2196 = vrot.slane %v1810, 5
      %v2197 = vsel %vm771, %v2195, %v2196
      %v2198 = vrot.slane %v2196, 4
      %v2199 = vrot.slane %v1811, 5
      %v2200 = vsel %vm771, %v2198, %v2199
      %v2201 = vrot.slane %v2139, 5
      %v2202 = vrot.slane %v2201, 4
      %v2203 = vrot.slane %v1813, 5
      %v2204 = vsel %vm771, %v2202, %v2203
      %v2205 = vrot.slane %v2203, 4
      %v2206 = vrot.slane %v1814, 5
      %v2207 = vsel %vm771, %v2205, %v2206
      %v2208 = vrot.slane %v2140, 5
      %v2209 = vrot.slane %v2208, 4
      %v2210 = vrot.slane %v1816, 5
      %v2211 = vsel %vm771, %v2209, %v2210
      %v2212 = vrot.slane %v2210, 4
      %v2213 = vrot.slane %v1817, 5
      %v2214 = vsel %vm771, %v2212, %v2213
      %v2215 = vrot.slane %v2141, 5
      %v2216 = vrot.slane %v2215, 4
      %v2217 = vrot.slane %v1819, 5
      %v2218 = vsel %vm771, %v2216, %v2217
      %v2219 = vrot.slane %v2217, 4
      %v2220 = vrot.slane %v1820, 5
      %v2221 = vsel %vm771, %v2219, %v2220
      %v2222 = vld [vmem:[%s2 + $0x10] sm:$0x3]
      %v2223 = vunpack.c.l.b16 %v2169
      %v2224 = vunpack.c.l.b16 %v2172
      %v2225 = vunpack.c.l.b16 %v2176
      %v2226 = vunpack.c.l.b16 %v2179
      %v2227 = vunpack.c.l.b16 %v2183
      %v2228 = vunpack.c.l.b16 %v2186
      %v2229 = vunpack.c.l.b16 %v2190
      %v2230 = vunpack.c.l.b16 %v2193
      %v2231 = vunpack.c.l.b16 %v2197
      %v2232 = vunpack.c.l.b16 %v2200
      %v2233 = vunpack.c.l.b16 %v2204
      %v2234 = vunpack.c.l.b16 %v2207
      %v2235 = vunpack.c.l.b16 %v2211
      %v2236 = vunpack.c.l.b16 %v2214
      %v2237 = vunpack.c.l.b16 %v2218
      %v2238 = vunpack.c.l.b16 %v2221
      %v2239 = vpack.c.b16 %v2224, %v2223
      %v2240 = vpack.c.b16 %v2226, %v2225
      %v2241 = vpack.c.b16 %v2228, %v2227
      %v2242 = vpack.c.b16 %v2230, %v2229
      %v2243 = vpack.c.b16 %v2232, %v2231
      %v2244 = vpack.c.b16 %v2234, %v2233
      %v2245 = vpack.c.b16 %v2236, %v2235
      %v2246 = vpack.c.b16 %v2238, %v2237
      %v2248 = vsel %vm551, %v2239, 0
      %v2251 = vsel %vm551, %v2240, 0
      %v2254 = vsel %vm551, %v2241, 0
      %v2257 = vsel %vm551, %v2242, 0
      %v2260 = vsel %vm551, %v2243, 0
      %v2263 = vsel %vm551, %v2244, 0
      %v2266 = vsel %vm551, %v2245, 0
      %v2269 = vsel %vm551, %v2246, 0
      %v2272 = vsel %vm576, %v2222, 0
      %2274 = vmatpush.bf16.msra.mxu0 0
      %2275 = vmatpush.bf16.msra.mxu0 0
      %2276 = vmatpush.bf16.msra.mxu0 0
      %2277 = vmatpush.bf16.msra.mxu0 0
      %2278 = vmatpush.bf16.msra.mxu0 0
      %2279 = vmatpush.bf16.msra.mxu0 0
      %2280 = vmatpush.bf16.msra.mxu0 0
      %2281 = vmatpush.bf16.msra.mxu0 %v2272
      %2282 = vmatmul.bf16.gmra.mxu0 %v2248
      %v2283 = vpop.f32.mrf.mxu0
      %v2284 = vadd.f32 0.0, %v2283
      %v2285 = vpop.f32.mrf.mxu0
      %v2286 = vadd.f32 0.0, %v2285
      %2287 = vmatmul.bf16.gmra.mxu0 %v2251
      %v2288 = vpop.f32.mrf.mxu0
      %v2289 = vadd.f32 0.0, %v2288
      %v2290 = vpop.f32.mrf.mxu0
      %v2291 = vadd.f32 0.0, %v2290
      %2292 = vmatmul.bf16.gmra.mxu0 %v2254
      %v2293 = vpop.f32.mrf.mxu0
      %v2294 = vadd.f32 0.0, %v2293
      %v2295 = vpop.f32.mrf.mxu0
      %v2296 = vadd.f32 0.0, %v2295
      %2297 = vmatmul.bf16.gmra.mxu0 %v2257
      %v2298 = vpop.f32.mrf.mxu0
      %v2299 = vadd.f32 0.0, %v2298
      %v2300 = vpop.f32.mrf.mxu0
      %v2301 = vadd.f32 0.0, %v2300
      %2302 = vmatmul.bf16.gmra.mxu0 %v2260
      %v2303 = vpop.f32.mrf.mxu0
      %v2304 = vadd.f32 0.0, %v2303
      %v2305 = vpop.f32.mrf.mxu0
      %v2306 = vadd.f32 0.0, %v2305
      %2307 = vmatmul.bf16.gmra.mxu0 %v2263
      %v2308 = vpop.f32.mrf.mxu0
      %v2309 = vadd.f32 0.0, %v2308
      %v2310 = vpop.f32.mrf.mxu0
      %v2311 = vadd.f32 0.0, %v2310
      %2312 = vmatmul.bf16.gmra.mxu0 %v2266
      %v2313 = vpop.f32.mrf.mxu0
      %v2314 = vadd.f32 0.0, %v2313
      %v2315 = vpop.f32.mrf.mxu0
      %v2316 = vadd.f32 0.0, %v2315
      %2317 = vmatmul.bf16.gmra.mxu0 %v2269
      %v2318 = vpop.f32.mrf.mxu0
      %v2319 = vadd.f32 0.0, %v2318
      %v2320 = vpop.f32.mrf.mxu0
      %v2321 = vadd.f32 0.0, %v2320
      %2322 = vdwg.mxu0
      %v2323 = vadd.f32 %v2118, %v2284
      %v2324 = vadd.f32 %v2119, %v2286
      %v2325 = vadd.f32 %v2120, %v2289
      %v2326 = vadd.f32 %v2121, %v2291
      %v2327 = vadd.f32 %v2122, %v2294
      %v2328 = vadd.f32 %v2123, %v2296
      %v2329 = vadd.f32 %v2124, %v2299
      %v2330 = vadd.f32 %v2125, %v2301
      %v2331 = vadd.f32 %v2126, %v2304
      %v2332 = vadd.f32 %v2127, %v2306
      %v2333 = vadd.f32 %v2128, %v2309
      %v2334 = vadd.f32 %v2129, %v2311
      %v2335 = vadd.f32 %v2130, %v2314
      %v2336 = vadd.f32 %v2131, %v2316
      %v2337 = vadd.f32 %v2132, %v2319
      %v2338 = vadd.f32 %v2133, %v2321
      %v2339 = vld [vmem:[%s3] sm:$0x1]
      %v2341 = vperm.slane %v2339, 0
      %v2343 = vadd.f32 %v2323, %v2341
      %v2344 = vadd.f32 %v2324, %v2341
      %v2345 = vadd.f32 %v2325, %v2341
      %v2346 = vadd.f32 %v2326, %v2341
      %v2347 = vadd.f32 %v2327, %v2341
      %v2348 = vadd.f32 %v2328, %v2341
      %v2349 = vadd.f32 %v2329, %v2341
      %v2350 = vadd.f32 %v2330, %v2341
      %v2351 = vadd.f32 %v2331, %v2341
      %v2352 = vadd.f32 %v2332, %v2341
      %v2353 = vadd.f32 %v2333, %v2341
      %v2354 = vadd.f32 %v2334, %v2341
      %v2355 = vadd.f32 %v2335, %v2341
      %v2356 = vadd.f32 %v2336, %v2341
      %v2357 = vadd.f32 %v2337, %v2341
      %v2358 = vadd.f32 %v2338, %v2341
      %vm2359 = vcmask 72704
      %v2360 = vsel %vm2359, %v2343, -inf
      %2361 = vmax.xlane.f32.xlu0 %v2360
      %v2362 = vpop.xlane.xlu0 %2361
      %v2363 = vsel %vm2359, %v2344, -inf
      %2364 = vmax.xlane.f32.xlu0 %v2363
      %v2365 = vpop.xlane.xlu0 %2364
      %v2366 = vsel %vm2359, %v2345, -inf
      %2367 = vmax.xlane.f32.xlu0 %v2366
      %v2368 = vpop.xlane.xlu0 %2367
      %v2369 = vsel %vm2359, %v2346, -inf
      %2370 = vmax.xlane.f32.xlu0 %v2369
      %v2371 = vpop.xlane.xlu0 %2370
      %v2372 = vsel %vm2359, %v2347, -inf
      %2373 = vmax.xlane.f32.xlu0 %v2372
      %v2374 = vpop.xlane.xlu0 %2373
      %v2375 = vsel %vm2359, %v2348, -inf
      %2376 = vmax.xlane.f32.xlu0 %v2375
      %v2377 = vpop.xlane.xlu0 %2376
      %v2378 = vsel %vm2359, %v2349, -inf
      %2379 = vmax.xlane.f32.xlu0 %v2378
      %v2380 = vpop.xlane.xlu0 %2379
      %v2381 = vsel %vm2359, %v2350, -inf
      %2382 = vmax.xlane.f32.xlu0 %v2381
      %v2383 = vpop.xlane.xlu0 %2382
      %v2384 = vsel %vm2359, %v2351, -inf
      %2385 = vmax.xlane.f32.xlu0 %v2384
      %v2386 = vpop.xlane.xlu0 %2385
      %v2387 = vsel %vm2359, %v2352, -inf
      %2388 = vmax.xlane.f32.xlu0 %v2387
      %v2389 = vpop.xlane.xlu0 %2388
      %v2390 = vsel %vm2359, %v2353, -inf
      %2391 = vmax.xlane.f32.xlu0 %v2390
      %v2392 = vpop.xlane.xlu0 %2391
      %v2393 = vsel %vm2359, %v2354, -inf
      %2394 = vmax.xlane.f32.xlu0 %v2393
      %v2395 = vpop.xlane.xlu0 %2394
      %v2396 = vsel %vm2359, %v2355, -inf
      %2397 = vmax.xlane.f32.xlu0 %v2396
      %v2398 = vpop.xlane.xlu0 %2397
      %v2399 = vsel %vm2359, %v2356, -inf
      %2400 = vmax.xlane.f32.xlu0 %v2399
      %v2401 = vpop.xlane.xlu0 %2400
      %v2402 = vsel %vm2359, %v2357, -inf
      %2403 = vmax.xlane.f32.xlu0 %v2402
      %v2404 = vpop.xlane.xlu0 %2403
      %v2405 = vsel %vm2359, %v2358, -inf
      %2406 = vmax.xlane.f32.xlu0 %v2405
      %v2407 = vpop.xlane.xlu0 %2406
      %v2408 = vsub.f32 %v2343, %v2362
      %v2409 = vsub.f32 %v2344, %v2365
      %v2410 = vsub.f32 %v2345, %v2368
      %v2411 = vsub.f32 %v2346, %v2371
      %v2412 = vsub.f32 %v2347, %v2374
      %v2413 = vsub.f32 %v2348, %v2377
      %v2414 = vsub.f32 %v2349, %v2380
      %v2415 = vsub.f32 %v2350, %v2383
      %v2416 = vsub.f32 %v2351, %v2386
      %v2417 = vsub.f32 %v2352, %v2389
      %v2418 = vsub.f32 %v2353, %v2392
      %v2419 = vsub.f32 %v2354, %v2395
      %v2420 = vsub.f32 %v2355, %v2398
      %v2421 = vsub.f32 %v2356, %v2401
      %v2422 = vsub.f32 %v2357, %v2404
      %v2423 = vsub.f32 %v2358, %v2407
      %v2424 = vmul.f32 %v2408, 1.442695
      %v2425 = vpow.pop %v2424
      %v2426 = vmul.f32 %v2409, 1.442695
      %v2427 = vpow.pop %v2426
      %v2428 = vmul.f32 %v2410, 1.442695
      %v2429 = vpow.pop %v2428
      %v2430 = vmul.f32 %v2411, 1.442695
      %v2431 = vpow.pop %v2430
      %v2432 = vmul.f32 %v2412, 1.442695
      %v2433 = vpow.pop %v2432
      %v2434 = vmul.f32 %v2413, 1.442695
      %v2435 = vpow.pop %v2434
      %v2436 = vmul.f32 %v2414, 1.442695
      %v2437 = vpow.pop %v2436
      %v2438 = vmul.f32 %v2415, 1.442695
      %v2439 = vpow.pop %v2438
      %v2440 = vmul.f32 %v2416, 1.442695
      %v2441 = vpow.pop %v2440
      %v2442 = vmul.f32 %v2417, 1.442695
      %v2443 = vpow.pop %v2442
      %v2444 = vmul.f32 %v2418, 1.442695
      %v2445 = vpow.pop %v2444
      %v2446 = vmul.f32 %v2419, 1.442695
      %v2447 = vpow.pop %v2446
      %v2448 = vmul.f32 %v2420, 1.442695
      %v2449 = vpow.pop %v2448
      %v2450 = vmul.f32 %v2421, 1.442695
      %v2451 = vpow.pop %v2450
      %v2452 = vmul.f32 %v2422, 1.442695
      %v2453 = vpow.pop %v2452
      %v2454 = vmul.f32 %v2423, 1.442695
      %v2455 = vpow.pop %v2454
      %v2456 = vsel %vm2359, %v2425, 0.0
      %2457 = vadd.xlane.f32.xlu0 %v2456
      %v2458 = vpop.xlane.xlu0 %2457
      %v2459 = vsel %vm2359, %v2427, 0.0
      %2460 = vadd.xlane.f32.xlu0 %v2459
      %v2461 = vpop.xlane.xlu0 %2460
      %v2462 = vsel %vm2359, %v2429, 0.0
      %2463 = vadd.xlane.f32.xlu0 %v2462
      %v2464 = vpop.xlane.xlu0 %2463
      %v2465 = vsel %vm2359, %v2431, 0.0
      %2466 = vadd.xlane.f32.xlu0 %v2465
      %v2467 = vpop.xlane.xlu0 %2466
      %v2468 = vsel %vm2359, %v2433, 0.0
      %2469 = vadd.xlane.f32.xlu0 %v2468
      %v2470 = vpop.xlane.xlu0 %2469
      %v2471 = vsel %vm2359, %v2435, 0.0
      %2472 = vadd.xlane.f32.xlu0 %v2471
      %v2473 = vpop.xlane.xlu0 %2472
      %v2474 = vsel %vm2359, %v2437, 0.0
      %2475 = vadd.xlane.f32.xlu0 %v2474
      %v2476 = vpop.xlane.xlu0 %2475
      %v2477 = vsel %vm2359, %v2439, 0.0
      %2478 = vadd.xlane.f32.xlu0 %v2477
      %v2479 = vpop.xlane.xlu0 %2478
      %v2480 = vsel %vm2359, %v2441, 0.0
      %2481 = vadd.xlane.f32.xlu0 %v2480
      %v2482 = vpop.xlane.xlu0 %2481
      %v2483 = vsel %vm2359, %v2443, 0.0
      %2484 = vadd.xlane.f32.xlu0 %v2483
      %v2485 = vpop.xlane.xlu0 %2484
      %v2486 = vsel %vm2359, %v2445, 0.0
      %2487 = vadd.xlane.f32.xlu0 %v2486
      %v2488 = vpop.xlane.xlu0 %2487
      %v2489 = vsel %vm2359, %v2447, 0.0
      %2490 = vadd.xlane.f32.xlu0 %v2489
      %v2491 = vpop.xlane.xlu0 %2490
      %v2492 = vsel %vm2359, %v2449, 0.0
      %2493 = vadd.xlane.f32.xlu0 %v2492
      %v2494 = vpop.xlane.xlu0 %2493
      %v2495 = vsel %vm2359, %v2451, 0.0
      %2496 = vadd.xlane.f32.xlu0 %v2495
      %v2497 = vpop.xlane.xlu0 %2496
      %v2498 = vsel %vm2359, %v2453, 0.0
      %2499 = vadd.xlane.f32.xlu0 %v2498
      %v2500 = vpop.xlane.xlu0 %2499
      %v2501 = vsel %vm2359, %v2455, 0.0
      %2502 = vadd.xlane.f32.xlu0 %v2501
      %v2503 = vpop.xlane.xlu0 %2502
      %v2504 = vrcp.pop %v2458
      %v2505 = vrcp.pop %v2461
      %v2506 = vrcp.pop %v2464
      %v2507 = vrcp.pop %v2467
      %v2508 = vrcp.pop %v2470
      %v2509 = vrcp.pop %v2473
      %v2510 = vrcp.pop %v2476
      %v2511 = vrcp.pop %v2479
      %v2512 = vrcp.pop %v2482
      %v2513 = vrcp.pop %v2485
      %v2514 = vrcp.pop %v2488
      %v2515 = vrcp.pop %v2491
      %v2516 = vrcp.pop %v2494
      %v2517 = vrcp.pop %v2497
      %v2518 = vrcp.pop %v2500
      %v2519 = vrcp.pop %v2503
      %v2520 = vmul.f32 %v2425, %v2504
      %v2521 = vmul.f32 %v2427, %v2505
      %v2522 = vmul.f32 %v2429, %v2506
      %v2523 = vmul.f32 %v2431, %v2507
      %v2524 = vmul.f32 %v2433, %v2508
      %v2525 = vmul.f32 %v2435, %v2509
      %v2526 = vmul.f32 %v2437, %v2510
      %v2527 = vmul.f32 %v2439, %v2511
      %v2528 = vmul.f32 %v2441, %v2512
      %v2529 = vmul.f32 %v2443, %v2513
      %v2530 = vmul.f32 %v2445, %v2514
      %v2531 = vmul.f32 %v2447, %v2515
      %v2532 = vmul.f32 %v2449, %v2516
      %v2533 = vmul.f32 %v2451, %v2517
      %v2534 = vmul.f32 %v2453, %v2518
      %v2535 = vmul.f32 %v2455, %v2519
      %vm2536 = vcmask 146504
      %v2537 = vsel %vm2536, %v2343, -inf
      %2538 = vmax.xlane.f32.xlu0 %v2537
      %v2539 = vpop.xlane.xlu0 %2538
      %v2540 = vsel %vm2536, %v2344, -inf
      %2541 = vmax.xlane.f32.xlu0 %v2540
      %v2542 = vpop.xlane.xlu0 %2541
      %v2543 = vsel %vm2536, %v2345, -inf
      %2544 = vmax.xlane.f32.xlu0 %v2543
      %v2545 = vpop.xlane.xlu0 %2544
      %v2546 = vsel %vm2536, %v2346, -inf
      %2547 = vmax.xlane.f32.xlu0 %v2546
      %v2548 = vpop.xlane.xlu0 %2547
      %v2549 = vsel %vm2536, %v2347, -inf
      %2550 = vmax.xlane.f32.xlu0 %v2549
      %v2551 = vpop.xlane.xlu0 %2550
      %v2552 = vsel %vm2536, %v2348, -inf
      %2553 = vmax.xlane.f32.xlu0 %v2552
      %v2554 = vpop.xlane.xlu0 %2553
      %v2555 = vsel %vm2536, %v2349, -inf
      %2556 = vmax.xlane.f32.xlu0 %v2555
      %v2557 = vpop.xlane.xlu0 %2556
      %v2558 = vsel %vm2536, %v2350, -inf
      %2559 = vmax.xlane.f32.xlu0 %v2558
      %v2560 = vpop.xlane.xlu0 %2559
      %v2561 = vsel %vm2536, %v2351, -inf
      %2562 = vmax.xlane.f32.xlu0 %v2561
      %v2563 = vpop.xlane.xlu0 %2562
      %v2564 = vsel %vm2536, %v2352, -inf
      %2565 = vmax.xlane.f32.xlu0 %v2564
      %v2566 = vpop.xlane.xlu0 %2565
      %v2567 = vsel %vm2536, %v2353, -inf
      %2568 = vmax.xlane.f32.xlu0 %v2567
      %v2569 = vpop.xlane.xlu0 %2568
      %v2570 = vsel %vm2536, %v2354, -inf
      %2571 = vmax.xlane.f32.xlu0 %v2570
      %v2572 = vpop.xlane.xlu0 %2571
      %v2573 = vsel %vm2536, %v2355, -inf
      %2574 = vmax.xlane.f32.xlu0 %v2573
      %v2575 = vpop.xlane.xlu0 %2574
      %v2576 = vsel %vm2536, %v2356, -inf
      %2577 = vmax.xlane.f32.xlu0 %v2576
      %v2578 = vpop.xlane.xlu0 %2577
      %v2579 = vsel %vm2536, %v2357, -inf
      %2580 = vmax.xlane.f32.xlu0 %v2579
      %v2581 = vpop.xlane.xlu0 %2580
      %v2582 = vsel %vm2536, %v2358, -inf
      %2583 = vmax.xlane.f32.xlu0 %v2582
      %v2584 = vpop.xlane.xlu0 %2583
      %v2585 = vsub.f32 %v2343, %v2539
      %v2586 = vsub.f32 %v2344, %v2542
      %v2587 = vsub.f32 %v2345, %v2545
      %v2588 = vsub.f32 %v2346, %v2548
      %v2589 = vsub.f32 %v2347, %v2551
      %v2590 = vsub.f32 %v2348, %v2554
      %v2591 = vsub.f32 %v2349, %v2557
      %v2592 = vsub.f32 %v2350, %v2560
      %v2593 = vsub.f32 %v2351, %v2563
      %v2594 = vsub.f32 %v2352, %v2566
      %v2595 = vsub.f32 %v2353, %v2569
      %v2596 = vsub.f32 %v2354, %v2572
      %v2597 = vsub.f32 %v2355, %v2575
      %v2598 = vsub.f32 %v2356, %v2578
      %v2599 = vsub.f32 %v2357, %v2581
      %v2600 = vsub.f32 %v2358, %v2584
      %v2601 = vmul.f32 %v2585, 1.442695
      %v2602 = vpow.pop %v2601
      %v2603 = vmul.f32 %v2586, 1.442695
      %v2604 = vpow.pop %v2603
      %v2605 = vmul.f32 %v2587, 1.442695
      %v2606 = vpow.pop %v2605
      %v2607 = vmul.f32 %v2588, 1.442695
      %v2608 = vpow.pop %v2607
      %v2609 = vmul.f32 %v2589, 1.442695
      %v2610 = vpow.pop %v2609
      %v2611 = vmul.f32 %v2590, 1.442695
      %v2612 = vpow.pop %v2611
      %v2613 = vmul.f32 %v2591, 1.442695
      %v2614 = vpow.pop %v2613
      %v2615 = vmul.f32 %v2592, 1.442695
      %v2616 = vpow.pop %v2615
      %v2617 = vmul.f32 %v2593, 1.442695
      %v2618 = vpow.pop %v2617
      %v2619 = vmul.f32 %v2594, 1.442695
      %v2620 = vpow.pop %v2619
      %v2621 = vmul.f32 %v2595, 1.442695
      %v2622 = vpow.pop %v2621
      %v2623 = vmul.f32 %v2596, 1.442695
      %v2624 = vpow.pop %v2623
      %v2625 = vmul.f32 %v2597, 1.442695
      %v2626 = vpow.pop %v2625
      %v2627 = vmul.f32 %v2598, 1.442695
      %v2628 = vpow.pop %v2627
      %v2629 = vmul.f32 %v2599, 1.442695
      %v2630 = vpow.pop %v2629
      %v2631 = vmul.f32 %v2600, 1.442695
      %v2632 = vpow.pop %v2631
      %2649 = vrot.lane.b32.xlu0 %v2602, 119
      %v2650 = vpop.permute.xlu0 %2649
      %2651 = vrot.lane.b32.xlu0 %v2604, 119
      %v2652 = vpop.permute.xlu0 %2651
      %2653 = vrot.lane.b32.xlu0 %v2606, 119
      %v2654 = vpop.permute.xlu0 %2653
      %2655 = vrot.lane.b32.xlu0 %v2608, 119
      %v2656 = vpop.permute.xlu0 %2655
      %2657 = vrot.lane.b32.xlu0 %v2610, 119
      %v2658 = vpop.permute.xlu0 %2657
      %2659 = vrot.lane.b32.xlu0 %v2612, 119
      %v2660 = vpop.permute.xlu0 %2659
      %2661 = vrot.lane.b32.xlu0 %v2614, 119
      %v2662 = vpop.permute.xlu0 %2661
      %2663 = vrot.lane.b32.xlu0 %v2616, 119
      %v2664 = vpop.permute.xlu0 %2663
      %2665 = vrot.lane.b32.xlu0 %v2618, 119
      %v2666 = vpop.permute.xlu0 %2665
      %2667 = vrot.lane.b32.xlu0 %v2620, 119
      %v2668 = vpop.permute.xlu0 %2667
      %2669 = vrot.lane.b32.xlu0 %v2622, 119
      %v2670 = vpop.permute.xlu0 %2669
      %2671 = vrot.lane.b32.xlu0 %v2624, 119
      %v2672 = vpop.permute.xlu0 %2671
      %2673 = vrot.lane.b32.xlu0 %v2626, 119
      %v2674 = vpop.permute.xlu0 %2673
      %2675 = vrot.lane.b32.xlu0 %v2628, 119
      %v2676 = vpop.permute.xlu0 %2675
      %2677 = vrot.lane.b32.xlu0 %v2630, 119
      %v2678 = vpop.permute.xlu0 %2677
      %2679 = vrot.lane.b32.xlu0 %v2632, 119
      %v2680 = vpop.permute.xlu0 %2679
      %v2697 = vsel %vm2359, %v2650, 0.0
      %2698 = vadd.xlane.f32.xlu0 %v2697
      %v2699 = vpop.xlane.xlu0 %2698
      %v2700 = vsel %vm2359, %v2652, 0.0
      %2701 = vadd.xlane.f32.xlu0 %v2700
      %v2702 = vpop.xlane.xlu0 %2701
      %v2703 = vsel %vm2359, %v2654, 0.0
      %2704 = vadd.xlane.f32.xlu0 %v2703
      %v2705 = vpop.xlane.xlu0 %2704
      %v2706 = vsel %vm2359, %v2656, 0.0
      %2707 = vadd.xlane.f32.xlu0 %v2706
      %v2708 = vpop.xlane.xlu0 %2707
      %v2709 = vsel %vm2359, %v2658, 0.0
      %2710 = vadd.xlane.f32.xlu0 %v2709
      %v2711 = vpop.xlane.xlu0 %2710
      %v2712 = vsel %vm2359, %v2660, 0.0
      %2713 = vadd.xlane.f32.xlu0 %v2712
      %v2714 = vpop.xlane.xlu0 %2713
      %v2715 = vsel %vm2359, %v2662, 0.0
      %2716 = vadd.xlane.f32.xlu0 %v2715
      %v2717 = vpop.xlane.xlu0 %2716
      %v2718 = vsel %vm2359, %v2664, 0.0
      %2719 = vadd.xlane.f32.xlu0 %v2718
      %v2720 = vpop.xlane.xlu0 %2719
      %v2721 = vsel %vm2359, %v2666, 0.0
      %2722 = vadd.xlane.f32.xlu0 %v2721
      %v2723 = vpop.xlane.xlu0 %2722
      %v2724 = vsel %vm2359, %v2668, 0.0
      %2725 = vadd.xlane.f32.xlu0 %v2724
      %v2726 = vpop.xlane.xlu0 %2725
      %v2727 = vsel %vm2359, %v2670, 0.0
      %2728 = vadd.xlane.f32.xlu0 %v2727
      %v2729 = vpop.xlane.xlu0 %2728
      %v2730 = vsel %vm2359, %v2672, 0.0
      %2731 = vadd.xlane.f32.xlu0 %v2730
      %v2732 = vpop.xlane.xlu0 %2731
      %v2733 = vsel %vm2359, %v2674, 0.0
      %2734 = vadd.xlane.f32.xlu0 %v2733
      %v2735 = vpop.xlane.xlu0 %2734
      %v2736 = vsel %vm2359, %v2676, 0.0
      %2737 = vadd.xlane.f32.xlu0 %v2736
      %v2738 = vpop.xlane.xlu0 %2737
      %v2739 = vsel %vm2359, %v2678, 0.0
      %2740 = vadd.xlane.f32.xlu0 %v2739
      %v2741 = vpop.xlane.xlu0 %2740
      %v2742 = vsel %vm2359, %v2680, 0.0
      %2743 = vadd.xlane.f32.xlu0 %v2742
      %v2744 = vpop.xlane.xlu0 %2743
      %v2745 = vrcp.pop %v2699
      %v2746 = vrcp.pop %v2702
      %v2747 = vrcp.pop %v2705
      %v2748 = vrcp.pop %v2708
      %v2749 = vrcp.pop %v2711
      %v2750 = vrcp.pop %v2714
      %v2751 = vrcp.pop %v2717
      %v2752 = vrcp.pop %v2720
      %v2753 = vrcp.pop %v2723
      %v2754 = vrcp.pop %v2726
      %v2755 = vrcp.pop %v2729
      %v2756 = vrcp.pop %v2732
      %v2757 = vrcp.pop %v2735
      %v2758 = vrcp.pop %v2738
      %v2759 = vrcp.pop %v2741
      %v2760 = vrcp.pop %v2744
      %v2761 = vmul.f32 %v2602, %v2745
      %v2762 = vmul.f32 %v2604, %v2746
      %v2763 = vmul.f32 %v2606, %v2747
      %v2764 = vmul.f32 %v2608, %v2748
      %v2765 = vmul.f32 %v2610, %v2749
      %v2766 = vmul.f32 %v2612, %v2750
      %v2767 = vmul.f32 %v2614, %v2751
      %v2768 = vmul.f32 %v2616, %v2752
      %v2769 = vmul.f32 %v2618, %v2753
      %v2770 = vmul.f32 %v2620, %v2754
      %v2771 = vmul.f32 %v2622, %v2755
      %v2772 = vmul.f32 %v2624, %v2756
      %v2773 = vmul.f32 %v2626, %v2757
      %v2774 = vmul.f32 %v2628, %v2758
      %v2775 = vmul.f32 %v2630, %v2759
      %v2776 = vmul.f32 %v2632, %v2760
      %vm2777 = vcmask 220304
      %v2778 = vsel %vm2777, %v2343, -inf
      %2779 = vmax.xlane.f32.xlu0 %v2778
      %v2780 = vpop.xlane.xlu0 %2779
      %v2781 = vsel %vm2777, %v2344, -inf
      %2782 = vmax.xlane.f32.xlu0 %v2781
      %v2783 = vpop.xlane.xlu0 %2782
      %v2784 = vsel %vm2777, %v2345, -inf
      %2785 = vmax.xlane.f32.xlu0 %v2784
      %v2786 = vpop.xlane.xlu0 %2785
      %v2787 = vsel %vm2777, %v2346, -inf
      %2788 = vmax.xlane.f32.xlu0 %v2787
      %v2789 = vpop.xlane.xlu0 %2788
      %v2790 = vsel %vm2777, %v2347, -inf
      %2791 = vmax.xlane.f32.xlu0 %v2790
      %v2792 = vpop.xlane.xlu0 %2791
      %v2793 = vsel %vm2777, %v2348, -inf
      %2794 = vmax.xlane.f32.xlu0 %v2793
      %v2795 = vpop.xlane.xlu0 %2794
      %v2796 = vsel %vm2777, %v2349, -inf
      %2797 = vmax.xlane.f32.xlu0 %v2796
      %v2798 = vpop.xlane.xlu0 %2797
      %v2799 = vsel %vm2777, %v2350, -inf
      %2800 = vmax.xlane.f32.xlu0 %v2799
      %v2801 = vpop.xlane.xlu0 %2800
      %v2802 = vsel %vm2777, %v2351, -inf
      %2803 = vmax.xlane.f32.xlu0 %v2802
      %v2804 = vpop.xlane.xlu0 %2803
      %v2805 = vsel %vm2777, %v2352, -inf
      %2806 = vmax.xlane.f32.xlu0 %v2805
      %v2807 = vpop.xlane.xlu0 %2806
      %v2808 = vsel %vm2777, %v2353, -inf
      %2809 = vmax.xlane.f32.xlu0 %v2808
      %v2810 = vpop.xlane.xlu0 %2809
      %v2811 = vsel %vm2777, %v2354, -inf
      %2812 = vmax.xlane.f32.xlu0 %v2811
      %v2813 = vpop.xlane.xlu0 %2812
      %v2814 = vsel %vm2777, %v2355, -inf
      %2815 = vmax.xlane.f32.xlu0 %v2814
      %v2816 = vpop.xlane.xlu0 %2815
      %v2817 = vsel %vm2777, %v2356, -inf
      %2818 = vmax.xlane.f32.xlu0 %v2817
      %v2819 = vpop.xlane.xlu0 %2818
      %v2820 = vsel %vm2777, %v2357, -inf
      %2821 = vmax.xlane.f32.xlu0 %v2820
      %v2822 = vpop.xlane.xlu0 %2821
      %v2823 = vsel %vm2777, %v2358, -inf
      %2824 = vmax.xlane.f32.xlu0 %v2823
      %v2825 = vpop.xlane.xlu0 %2824
      %v2826 = vsub.f32 %v2343, %v2780
      %v2827 = vsub.f32 %v2344, %v2783
      %v2828 = vsub.f32 %v2345, %v2786
      %v2829 = vsub.f32 %v2346, %v2789
      %v2830 = vsub.f32 %v2347, %v2792
      %v2831 = vsub.f32 %v2348, %v2795
      %v2832 = vsub.f32 %v2349, %v2798
      %v2833 = vsub.f32 %v2350, %v2801
      %v2834 = vsub.f32 %v2351, %v2804
      %v2835 = vsub.f32 %v2352, %v2807
      %v2836 = vsub.f32 %v2353, %v2810
      %v2837 = vsub.f32 %v2354, %v2813
      %v2838 = vsub.f32 %v2355, %v2816
      %v2839 = vsub.f32 %v2356, %v2819
      %v2840 = vsub.f32 %v2357, %v2822
      %v2841 = vsub.f32 %v2358, %v2825
      %v2842 = vmul.f32 %v2826, 1.442695
      %v2843 = vpow.pop %v2842
      %v2844 = vmul.f32 %v2827, 1.442695
      %v2845 = vpow.pop %v2844
      %v2846 = vmul.f32 %v2828, 1.442695
      %v2847 = vpow.pop %v2846
      %v2848 = vmul.f32 %v2829, 1.442695
      %v2849 = vpow.pop %v2848
      %v2850 = vmul.f32 %v2830, 1.442695
      %v2851 = vpow.pop %v2850
      %v2852 = vmul.f32 %v2831, 1.442695
      %v2853 = vpow.pop %v2852
      %v2854 = vmul.f32 %v2832, 1.442695
      %v2855 = vpow.pop %v2854
      %v2856 = vmul.f32 %v2833, 1.442695
      %v2857 = vpow.pop %v2856
      %v2858 = vmul.f32 %v2834, 1.442695
      %v2859 = vpow.pop %v2858
      %v2860 = vmul.f32 %v2835, 1.442695
      %v2861 = vpow.pop %v2860
      %v2862 = vmul.f32 %v2836, 1.442695
      %v2863 = vpow.pop %v2862
      %v2864 = vmul.f32 %v2837, 1.442695
      %v2865 = vpow.pop %v2864
      %v2866 = vmul.f32 %v2838, 1.442695
      %v2867 = vpow.pop %v2866
      %v2868 = vmul.f32 %v2839, 1.442695
      %v2869 = vpow.pop %v2868
      %v2870 = vmul.f32 %v2840, 1.442695
      %v2871 = vpow.pop %v2870
      %v2872 = vmul.f32 %v2841, 1.442695
      %v2873 = vpow.pop %v2872
      %2890 = vrot.lane.b32.xlu0 %v2843, 110
      %v2891 = vpop.permute.xlu0 %2890
      %2892 = vrot.lane.b32.xlu0 %v2845, 110
      %v2893 = vpop.permute.xlu0 %2892
      %2894 = vrot.lane.b32.xlu0 %v2847, 110
      %v2895 = vpop.permute.xlu0 %2894
      %2896 = vrot.lane.b32.xlu0 %v2849, 110
      %v2897 = vpop.permute.xlu0 %2896
      %2898 = vrot.lane.b32.xlu0 %v2851, 110
      %v2899 = vpop.permute.xlu0 %2898
      %2900 = vrot.lane.b32.xlu0 %v2853, 110
      %v2901 = vpop.permute.xlu0 %2900
      %2902 = vrot.lane.b32.xlu0 %v2855, 110
      %v2903 = vpop.permute.xlu0 %2902
      %2904 = vrot.lane.b32.xlu0 %v2857, 110
      %v2905 = vpop.permute.xlu0 %2904
      %2906 = vrot.lane.b32.xlu0 %v2859, 110
      %v2907 = vpop.permute.xlu0 %2906
      %2908 = vrot.lane.b32.xlu0 %v2861, 110
      %v2909 = vpop.permute.xlu0 %2908
      %2910 = vrot.lane.b32.xlu0 %v2863, 110
      %v2911 = vpop.permute.xlu0 %2910
      %2912 = vrot.lane.b32.xlu0 %v2865, 110
      %v2913 = vpop.permute.xlu0 %2912
      %2914 = vrot.lane.b32.xlu0 %v2867, 110
      %v2915 = vpop.permute.xlu0 %2914
      %2916 = vrot.lane.b32.xlu0 %v2869, 110
      %v2917 = vpop.permute.xlu0 %2916
      %2918 = vrot.lane.b32.xlu0 %v2871, 110
      %v2919 = vpop.permute.xlu0 %2918
      %2920 = vrot.lane.b32.xlu0 %v2873, 110
      %v2921 = vpop.permute.xlu0 %2920
      %v2938 = vsel %vm2359, %v2891, 0.0
      %2939 = vadd.xlane.f32.xlu0 %v2938
      %v2940 = vpop.xlane.xlu0 %2939
      %v2941 = vsel %vm2359, %v2893, 0.0
      %2942 = vadd.xlane.f32.xlu0 %v2941
      %v2943 = vpop.xlane.xlu0 %2942
      %v2944 = vsel %vm2359, %v2895, 0.0
      %2945 = vadd.xlane.f32.xlu0 %v2944
      %v2946 = vpop.xlane.xlu0 %2945
      %v2947 = vsel %vm2359, %v2897, 0.0
      %2948 = vadd.xlane.f32.xlu0 %v2947
      %v2949 = vpop.xlane.xlu0 %2948
      %v2950 = vsel %vm2359, %v2899, 0.0
      %2951 = vadd.xlane.f32.xlu0 %v2950
      %v2952 = vpop.xlane.xlu0 %2951
      %v2953 = vsel %vm2359, %v2901, 0.0
      %2954 = vadd.xlane.f32.xlu0 %v2953
      %v2955 = vpop.xlane.xlu0 %2954
      %v2956 = vsel %vm2359, %v2903, 0.0
      %2957 = vadd.xlane.f32.xlu0 %v2956
      %v2958 = vpop.xlane.xlu0 %2957
      %v2959 = vsel %vm2359, %v2905, 0.0
      %2960 = vadd.xlane.f32.xlu0 %v2959
      %v2961 = vpop.xlane.xlu0 %2960
      %v2962 = vsel %vm2359, %v2907, 0.0
      %2963 = vadd.xlane.f32.xlu0 %v2962
      %v2964 = vpop.xlane.xlu0 %2963
      %v2965 = vsel %vm2359, %v2909, 0.0
      %2966 = vadd.xlane.f32.xlu0 %v2965
      %v2967 = vpop.xlane.xlu0 %2966
      %v2968 = vsel %vm2359, %v2911, 0.0
      %2969 = vadd.xlane.f32.xlu0 %v2968
      %v2970 = vpop.xlane.xlu0 %2969
      %v2971 = vsel %vm2359, %v2913, 0.0
      %2972 = vadd.xlane.f32.xlu0 %v2971
      %v2973 = vpop.xlane.xlu0 %2972
      %v2974 = vsel %vm2359, %v2915, 0.0
      %2975 = vadd.xlane.f32.xlu0 %v2974
      %v2976 = vpop.xlane.xlu0 %2975
      %v2977 = vsel %vm2359, %v2917, 0.0
      %2978 = vadd.xlane.f32.xlu0 %v2977
      %v2979 = vpop.xlane.xlu0 %2978
      %v2980 = vsel %vm2359, %v2919, 0.0
      %2981 = vadd.xlane.f32.xlu0 %v2980
      %v2982 = vpop.xlane.xlu0 %2981
      %v2983 = vsel %vm2359, %v2921, 0.0
      %2984 = vadd.xlane.f32.xlu0 %v2983
      %v2985 = vpop.xlane.xlu0 %2984
      %v2986 = vrcp.pop %v2940
      %v2987 = vrcp.pop %v2943
      %v2988 = vrcp.pop %v2946
      %v2989 = vrcp.pop %v2949
      %v2990 = vrcp.pop %v2952
      %v2991 = vrcp.pop %v2955
      %v2992 = vrcp.pop %v2958
      %v2993 = vrcp.pop %v2961
      %v2994 = vrcp.pop %v2964
      %v2995 = vrcp.pop %v2967
      %v2996 = vrcp.pop %v2970
      %v2997 = vrcp.pop %v2973
      %v2998 = vrcp.pop %v2976
      %v2999 = vrcp.pop %v2979
      %v3000 = vrcp.pop %v2982
      %v3001 = vrcp.pop %v2985
      %v3002 = vmul.f32 %v2843, %v2986
      %v3003 = vmul.f32 %v2845, %v2987
      %v3004 = vmul.f32 %v2847, %v2988
      %v3005 = vmul.f32 %v2849, %v2989
      %v3006 = vmul.f32 %v2851, %v2990
      %v3007 = vmul.f32 %v2853, %v2991
      %v3008 = vmul.f32 %v2855, %v2992
      %v3009 = vmul.f32 %v2857, %v2993
      %v3010 = vmul.f32 %v2859, %v2994
      %v3011 = vmul.f32 %v2861, %v2995
      %v3012 = vmul.f32 %v2863, %v2996
      %v3013 = vmul.f32 %v2865, %v2997
      %v3014 = vmul.f32 %v2867, %v2998
      %v3015 = vmul.f32 %v2869, %v2999
      %v3016 = vmul.f32 %v2871, %v3000
      %v3017 = vmul.f32 %v2873, %v3001
      %vm3018 = vcmask 294104
      %v3019 = vsel %vm3018, %v2343, -inf
      %3020 = vmax.xlane.f32.xlu0 %v3019
      %v3021 = vpop.xlane.xlu0 %3020
      %v3022 = vsel %vm3018, %v2344, -inf
      %3023 = vmax.xlane.f32.xlu0 %v3022
      %v3024 = vpop.xlane.xlu0 %3023
      %v3025 = vsel %vm3018, %v2345, -inf
      %3026 = vmax.xlane.f32.xlu0 %v3025
      %v3027 = vpop.xlane.xlu0 %3026
      %v3028 = vsel %vm3018, %v2346, -inf
      %3029 = vmax.xlane.f32.xlu0 %v3028
      %v3030 = vpop.xlane.xlu0 %3029
      %v3031 = vsel %vm3018, %v2347, -inf
      %3032 = vmax.xlane.f32.xlu0 %v3031
      %v3033 = vpop.xlane.xlu0 %3032
      %v3034 = vsel %vm3018, %v2348, -inf
      %3035 = vmax.xlane.f32.xlu0 %v3034
      %v3036 = vpop.xlane.xlu0 %3035
      %v3037 = vsel %vm3018, %v2349, -inf
      %3038 = vmax.xlane.f32.xlu0 %v3037
      %v3039 = vpop.xlane.xlu0 %3038
      %v3040 = vsel %vm3018, %v2350, -inf
      %3041 = vmax.xlane.f32.xlu0 %v3040
      %v3042 = vpop.xlane.xlu0 %3041
      %v3043 = vsel %vm3018, %v2351, -inf
      %3044 = vmax.xlane.f32.xlu0 %v3043
      %v3045 = vpop.xlane.xlu0 %3044
      %v3046 = vsel %vm3018, %v2352, -inf
      %3047 = vmax.xlane.f32.xlu0 %v3046
      %v3048 = vpop.xlane.xlu0 %3047
      %v3049 = vsel %vm3018, %v2353, -inf
      %3050 = vmax.xlane.f32.xlu0 %v3049
      %v3051 = vpop.xlane.xlu0 %3050
      %v3052 = vsel %vm3018, %v2354, -inf
      %3053 = vmax.xlane.f32.xlu0 %v3052
      %v3054 = vpop.xlane.xlu0 %3053
      %v3055 = vsel %vm3018, %v2355, -inf
      %3056 = vmax.xlane.f32.xlu0 %v3055
      %v3057 = vpop.xlane.xlu0 %3056
      %v3058 = vsel %vm3018, %v2356, -inf
      %3059 = vmax.xlane.f32.xlu0 %v3058
      %v3060 = vpop.xlane.xlu0 %3059
      %v3061 = vsel %vm3018, %v2357, -inf
      %3062 = vmax.xlane.f32.xlu0 %v3061
      %v3063 = vpop.xlane.xlu0 %3062
      %v3064 = vsel %vm3018, %v2358, -inf
      %3065 = vmax.xlane.f32.xlu0 %v3064
      %v3066 = vpop.xlane.xlu0 %3065
      %v3067 = vsub.f32 %v2343, %v3021
      %v3068 = vsub.f32 %v2344, %v3024
      %v3069 = vsub.f32 %v2345, %v3027
      %v3070 = vsub.f32 %v2346, %v3030
      %v3071 = vsub.f32 %v2347, %v3033
      %v3072 = vsub.f32 %v2348, %v3036
      %v3073 = vsub.f32 %v2349, %v3039
      %v3074 = vsub.f32 %v2350, %v3042
      %v3075 = vsub.f32 %v2351, %v3045
      %v3076 = vsub.f32 %v2352, %v3048
      %v3077 = vsub.f32 %v2353, %v3051
      %v3078 = vsub.f32 %v2354, %v3054
      %v3079 = vsub.f32 %v2355, %v3057
      %v3080 = vsub.f32 %v2356, %v3060
      %v3081 = vsub.f32 %v2357, %v3063
      %v3082 = vsub.f32 %v2358, %v3066
      %v3083 = vmul.f32 %v3067, 1.442695
      %v3084 = vpow.pop %v3083
      %v3085 = vmul.f32 %v3068, 1.442695
      %v3086 = vpow.pop %v3085
      %v3087 = vmul.f32 %v3069, 1.442695
      %v3088 = vpow.pop %v3087
      %v3089 = vmul.f32 %v3070, 1.442695
      %v3090 = vpow.pop %v3089
      %v3091 = vmul.f32 %v3071, 1.442695
      %v3092 = vpow.pop %v3091
      %v3093 = vmul.f32 %v3072, 1.442695
      %v3094 = vpow.pop %v3093
      %v3095 = vmul.f32 %v3073, 1.442695
      %v3096 = vpow.pop %v3095
      %v3097 = vmul.f32 %v3074, 1.442695
      %v3098 = vpow.pop %v3097
      %v3099 = vmul.f32 %v3075, 1.442695
      %v3100 = vpow.pop %v3099
      %v3101 = vmul.f32 %v3076, 1.442695
      %v3102 = vpow.pop %v3101
      %v3103 = vmul.f32 %v3077, 1.442695
      %v3104 = vpow.pop %v3103
      %v3105 = vmul.f32 %v3078, 1.442695
      %v3106 = vpow.pop %v3105
      %v3107 = vmul.f32 %v3079, 1.442695
      %v3108 = vpow.pop %v3107
      %v3109 = vmul.f32 %v3080, 1.442695
      %v3110 = vpow.pop %v3109
      %v3111 = vmul.f32 %v3081, 1.442695
      %v3112 = vpow.pop %v3111
      %v3113 = vmul.f32 %v3082, 1.442695
      %v3114 = vpow.pop %v3113
      %3131 = vrot.lane.b32.xlu0 %v3084, 101
      %v3132 = vpop.permute.xlu0 %3131
      %3133 = vrot.lane.b32.xlu0 %v3086, 101
      %v3134 = vpop.permute.xlu0 %3133
      %3135 = vrot.lane.b32.xlu0 %v3088, 101
      %v3136 = vpop.permute.xlu0 %3135
      %3137 = vrot.lane.b32.xlu0 %v3090, 101
      %v3138 = vpop.permute.xlu0 %3137
      %3139 = vrot.lane.b32.xlu0 %v3092, 101
      %v3140 = vpop.permute.xlu0 %3139
      %3141 = vrot.lane.b32.xlu0 %v3094, 101
      %v3142 = vpop.permute.xlu0 %3141
      %3143 = vrot.lane.b32.xlu0 %v3096, 101
      %v3144 = vpop.permute.xlu0 %3143
      %3145 = vrot.lane.b32.xlu0 %v3098, 101
      %v3146 = vpop.permute.xlu0 %3145
      %3147 = vrot.lane.b32.xlu0 %v3100, 101
      %v3148 = vpop.permute.xlu0 %3147
      %3149 = vrot.lane.b32.xlu0 %v3102, 101
      %v3150 = vpop.permute.xlu0 %3149
      %3151 = vrot.lane.b32.xlu0 %v3104, 101
      %v3152 = vpop.permute.xlu0 %3151
      %3153 = vrot.lane.b32.xlu0 %v3106, 101
      %v3154 = vpop.permute.xlu0 %3153
      %3155 = vrot.lane.b32.xlu0 %v3108, 101
      %v3156 = vpop.permute.xlu0 %3155
      %3157 = vrot.lane.b32.xlu0 %v3110, 101
      %v3158 = vpop.permute.xlu0 %3157
      %3159 = vrot.lane.b32.xlu0 %v3112, 101
      %v3160 = vpop.permute.xlu0 %3159
      %3161 = vrot.lane.b32.xlu0 %v3114, 101
      %v3162 = vpop.permute.xlu0 %3161
      %v3179 = vsel %vm2359, %v3132, 0.0
      %3180 = vadd.xlane.f32.xlu0 %v3179
      %v3181 = vpop.xlane.xlu0 %3180
      %v3182 = vsel %vm2359, %v3134, 0.0
      %3183 = vadd.xlane.f32.xlu0 %v3182
      %v3184 = vpop.xlane.xlu0 %3183
      %v3185 = vsel %vm2359, %v3136, 0.0
      %3186 = vadd.xlane.f32.xlu0 %v3185
      %v3187 = vpop.xlane.xlu0 %3186
      %v3188 = vsel %vm2359, %v3138, 0.0
      %3189 = vadd.xlane.f32.xlu0 %v3188
      %v3190 = vpop.xlane.xlu0 %3189
      %v3191 = vsel %vm2359, %v3140, 0.0
      %3192 = vadd.xlane.f32.xlu0 %v3191
      %v3193 = vpop.xlane.xlu0 %3192
      %v3194 = vsel %vm2359, %v3142, 0.0
      %3195 = vadd.xlane.f32.xlu0 %v3194
      %v3196 = vpop.xlane.xlu0 %3195
      %v3197 = vsel %vm2359, %v3144, 0.0
      %3198 = vadd.xlane.f32.xlu0 %v3197
      %v3199 = vpop.xlane.xlu0 %3198
      %v3200 = vsel %vm2359, %v3146, 0.0
      %3201 = vadd.xlane.f32.xlu0 %v3200
      %v3202 = vpop.xlane.xlu0 %3201
      %v3203 = vsel %vm2359, %v3148, 0.0
      %3204 = vadd.xlane.f32.xlu0 %v3203
      %v3205 = vpop.xlane.xlu0 %3204
      %v3206 = vsel %vm2359, %v3150, 0.0
      %3207 = vadd.xlane.f32.xlu0 %v3206
      %v3208 = vpop.xlane.xlu0 %3207
      %v3209 = vsel %vm2359, %v3152, 0.0
      %3210 = vadd.xlane.f32.xlu0 %v3209
      %v3211 = vpop.xlane.xlu0 %3210
      %v3212 = vsel %vm2359, %v3154, 0.0
      %3213 = vadd.xlane.f32.xlu0 %v3212
      %v3214 = vpop.xlane.xlu0 %3213
      %v3215 = vsel %vm2359, %v3156, 0.0
      %3216 = vadd.xlane.f32.xlu0 %v3215
      %v3217 = vpop.xlane.xlu0 %3216
      %v3218 = vsel %vm2359, %v3158, 0.0
      %3219 = vadd.xlane.f32.xlu0 %v3218
      %v3220 = vpop.xlane.xlu0 %3219
      %v3221 = vsel %vm2359, %v3160, 0.0
      %3222 = vadd.xlane.f32.xlu0 %v3221
      %v3223 = vpop.xlane.xlu0 %3222
      %v3224 = vsel %vm2359, %v3162, 0.0
      %3225 = vadd.xlane.f32.xlu0 %v3224
      %v3226 = vpop.xlane.xlu0 %3225
      %v3227 = vrcp.pop %v3181
      %v3228 = vrcp.pop %v3184
      %v3229 = vrcp.pop %v3187
      %v3230 = vrcp.pop %v3190
      %v3231 = vrcp.pop %v3193
      %v3232 = vrcp.pop %v3196
      %v3233 = vrcp.pop %v3199
      %v3234 = vrcp.pop %v3202
      %v3235 = vrcp.pop %v3205
      %v3236 = vrcp.pop %v3208
      %v3237 = vrcp.pop %v3211
      %v3238 = vrcp.pop %v3214
      %v3239 = vrcp.pop %v3217
      %v3240 = vrcp.pop %v3220
      %v3241 = vrcp.pop %v3223
      %v3242 = vrcp.pop %v3226
      %v3243 = vmul.f32 %v3084, %v3227
      %v3244 = vmul.f32 %v3086, %v3228
      %v3245 = vmul.f32 %v3088, %v3229
      %v3246 = vmul.f32 %v3090, %v3230
      %v3247 = vmul.f32 %v3092, %v3231
      %v3248 = vmul.f32 %v3094, %v3232
      %v3249 = vmul.f32 %v3096, %v3233
      %v3250 = vmul.f32 %v3098, %v3234
      %v3251 = vmul.f32 %v3100, %v3235
      %v3252 = vmul.f32 %v3102, %v3236
      %v3253 = vmul.f32 %v3104, %v3237
      %v3254 = vmul.f32 %v3106, %v3238
      %v3255 = vmul.f32 %v3108, %v3239
      %v3256 = vmul.f32 %v3110, %v3240
      %v3257 = vmul.f32 %v3112, %v3241
      %v3258 = vmul.f32 %v3114, %v3242
      %s3259 = smul.addr %s299, 4
      %s3260 = scalar_lea.vmem %s285, %s3259
      %v3261 = vld [vmem:[%s3260] sm:$0xf]
      %v3262 = vld [vmem:[%s3260 + $0x4] sm:$0xf]
      %v3263 = vld [vmem:[%s3260 + $0xc] sm:$0xf]
      %v3264 = vld [vmem:[%s3260 + $0x10] sm:$0xf]
      %v3265 = vld [vmem:[%s3260 + $0x18] sm:$0xf]
      %v3266 = vld [vmem:[%s3260 + $0x1c] sm:$0xf]
      %v3267 = vld [vmem:[%s3260 + $0x24] sm:$0xf]
      %v3268 = vld [vmem:[%s3260 + $0x28] sm:$0xf]
      %v3269 = vld [vmem:[%s3260 + $0x30] sm:$0xf]
      %v3270 = vld [vmem:[%s3260 + $0x34] sm:$0xf]
      %v3271 = vld [vmem:[%s3260 + $0x3c] sm:$0xf]
      %v3272 = vld [vmem:[%s3260 + $0x40] sm:$0xf]
      %v3273 = vld [vmem:[%s3260 + $0x48] sm:$0xf]
      %v3274 = vld [vmem:[%s3260 + $0x4c] sm:$0xf]
      %v3275 = vld [vmem:[%s3260 + $0x54] sm:$0xf]
      %v3276 = vld [vmem:[%s3260 + $0x58] sm:$0xf]
      %v3277 = vunpack.c.l.bf16 %v3261
      %v3278 = vunpack.c.l.bf16 %v3262
      %v3279 = vunpack.c.l.bf16 %v3263
      %v3280 = vunpack.c.l.bf16 %v3264
      %v3281 = vunpack.c.l.bf16 %v3265
      %v3282 = vunpack.c.l.bf16 %v3266
      %v3283 = vunpack.c.l.bf16 %v3267
      %v3284 = vunpack.c.l.bf16 %v3268
      %v3285 = vunpack.c.l.bf16 %v3269
      %v3286 = vunpack.c.l.bf16 %v3270
      %v3287 = vunpack.c.l.bf16 %v3271
      %v3288 = vunpack.c.l.bf16 %v3272
      %v3289 = vunpack.c.l.bf16 %v3273
      %v3290 = vunpack.c.l.bf16 %v3274
      %v3291 = vunpack.c.l.bf16 %v3275
      %v3292 = vunpack.c.l.bf16 %v3276
      %3294 = vset.pattern.permute.xlu0 0
      %3295 = vperm.xlu0 %3294, %v2520
      %v3296 = vpop.permute.xlu0 %3295
      %3299 = vset.pattern.permute.xlu0 0
      %3300 = vperm.xlu0 %3299, %v2521
      %v3301 = vpop.permute.xlu0 %3300
      %3304 = vset.pattern.permute.xlu0 0
      %3305 = vperm.xlu0 %3304, %v2522
      %v3306 = vpop.permute.xlu0 %3305
      %3309 = vset.pattern.permute.xlu0 0
      %3310 = vperm.xlu0 %3309, %v2523
      %v3311 = vpop.permute.xlu0 %3310
      %3314 = vset.pattern.permute.xlu0 0
      %3315 = vperm.xlu0 %3314, %v2524
      %v3316 = vpop.permute.xlu0 %3315
      %3319 = vset.pattern.permute.xlu0 0
      %3320 = vperm.xlu0 %3319, %v2525
      %v3321 = vpop.permute.xlu0 %3320
      %3324 = vset.pattern.permute.xlu0 0
      %3325 = vperm.xlu0 %3324, %v2526
      %v3326 = vpop.permute.xlu0 %3325
      %3329 = vset.pattern.permute.xlu0 0
      %3330 = vperm.xlu0 %3329, %v2527
      %v3331 = vpop.permute.xlu0 %3330
      %3334 = vset.pattern.permute.xlu0 0
      %3335 = vperm.xlu0 %3334, %v2528
      %v3336 = vpop.permute.xlu0 %3335
      %3339 = vset.pattern.permute.xlu0 0
      %3340 = vperm.xlu0 %3339, %v2529
      %v3341 = vpop.permute.xlu0 %3340
      %3344 = vset.pattern.permute.xlu0 0
      %3345 = vperm.xlu0 %3344, %v2530
      %v3346 = vpop.permute.xlu0 %3345
      %3349 = vset.pattern.permute.xlu0 0
      %3350 = vperm.xlu0 %3349, %v2531
      %v3351 = vpop.permute.xlu0 %3350
      %3354 = vset.pattern.permute.xlu0 0
      %3355 = vperm.xlu0 %3354, %v2532
      %v3356 = vpop.permute.xlu0 %3355
      %3359 = vset.pattern.permute.xlu0 0
      %3360 = vperm.xlu0 %3359, %v2533
      %v3361 = vpop.permute.xlu0 %3360
      %3364 = vset.pattern.permute.xlu0 0
      %3365 = vperm.xlu0 %3364, %v2534
      %v3366 = vpop.permute.xlu0 %3365
      %3369 = vset.pattern.permute.xlu0 0
      %3370 = vperm.xlu0 %3369, %v2535
      %v3371 = vpop.permute.xlu0 %3370
      %v3373 = vmul.f32 %v3296, %v3277
      %v3374 = vmul.f32 %v3301, %v3278
      %v3375 = vmul.f32 %v3306, %v3279
      %v3376 = vmul.f32 %v3311, %v3280
      %v3377 = vmul.f32 %v3316, %v3281
      %v3378 = vmul.f32 %v3321, %v3282
      %v3379 = vmul.f32 %v3326, %v3283
      %v3380 = vmul.f32 %v3331, %v3284
      %v3381 = vmul.f32 %v3336, %v3285
      %v3382 = vmul.f32 %v3341, %v3286
      %v3383 = vmul.f32 %v3346, %v3287
      %v3384 = vmul.f32 %v3351, %v3288
      %v3385 = vmul.f32 %v3356, %v3289
      %v3386 = vmul.f32 %v3361, %v3290
      %v3387 = vmul.f32 %v3366, %v3291
      %v3388 = vmul.f32 %v3371, %v3292
      %v3389 = vadd.f32 %v3373, 0.0
      %v3390 = vadd.f32 %v3374, 0.0
      %v3391 = vadd.f32 %v3375, 0.0
      %v3392 = vadd.f32 %v3376, 0.0
      %v3393 = vadd.f32 %v3377, 0.0
      %v3394 = vadd.f32 %v3378, 0.0
      %v3395 = vadd.f32 %v3379, 0.0
      %v3396 = vadd.f32 %v3380, 0.0
      %v3397 = vadd.f32 %v3381, 0.0
      %v3398 = vadd.f32 %v3382, 0.0
      %v3399 = vadd.f32 %v3383, 0.0
      %v3400 = vadd.f32 %v3384, 0.0
      %v3401 = vadd.f32 %v3385, 0.0
      %v3402 = vadd.f32 %v3386, 0.0
      %v3403 = vadd.f32 %v3387, 0.0
      %v3404 = vadd.f32 %v3388, 0.0
      %3406 = vset.pattern.permute.xlu0 9
      %3407 = vperm.xlu0 %3406, %v2761
      %v3408 = vpop.permute.xlu0 %3407
      %3411 = vset.pattern.permute.xlu0 9
      %3412 = vperm.xlu0 %3411, %v2762
      %v3413 = vpop.permute.xlu0 %3412
      %3416 = vset.pattern.permute.xlu0 9
      %3417 = vperm.xlu0 %3416, %v2763
      %v3418 = vpop.permute.xlu0 %3417
      %3421 = vset.pattern.permute.xlu0 9
      %3422 = vperm.xlu0 %3421, %v2764
      %v3423 = vpop.permute.xlu0 %3422
      %3426 = vset.pattern.permute.xlu0 9
      %3427 = vperm.xlu0 %3426, %v2765
      %v3428 = vpop.permute.xlu0 %3427
      %3431 = vset.pattern.permute.xlu0 9
      %3432 = vperm.xlu0 %3431, %v2766
      %v3433 = vpop.permute.xlu0 %3432
      %3436 = vset.pattern.permute.xlu0 9
      %3437 = vperm.xlu0 %3436, %v2767
      %v3438 = vpop.permute.xlu0 %3437
      %3441 = vset.pattern.permute.xlu0 9
      %3442 = vperm.xlu0 %3441, %v2768
      %v3443 = vpop.permute.xlu0 %3442
      %3446 = vset.pattern.permute.xlu0 9
      %3447 = vperm.xlu0 %3446, %v2769
      %v3448 = vpop.permute.xlu0 %3447
      %3451 = vset.pattern.permute.xlu0 9
      %3452 = vperm.xlu0 %3451, %v2770
      %v3453 = vpop.permute.xlu0 %3452
      %3456 = vset.pattern.permute.xlu0 9
      %3457 = vperm.xlu0 %3456, %v2771
      %v3458 = vpop.permute.xlu0 %3457
      %3461 = vset.pattern.permute.xlu0 9
      %3462 = vperm.xlu0 %3461, %v2772
      %v3463 = vpop.permute.xlu0 %3462
      %3466 = vset.pattern.permute.xlu0 9
      %3467 = vperm.xlu0 %3466, %v2773
      %v3468 = vpop.permute.xlu0 %3467
      %3471 = vset.pattern.permute.xlu0 9
      %3472 = vperm.xlu0 %3471, %v2774
      %v3473 = vpop.permute.xlu0 %3472
      %3476 = vset.pattern.permute.xlu0 9
      %3477 = vperm.xlu0 %3476, %v2775
      %v3478 = vpop.permute.xlu0 %3477
      %3481 = vset.pattern.permute.xlu0 9
      %3482 = vperm.xlu0 %3481, %v2776
      %v3483 = vpop.permute.xlu0 %3482
      %v3485 = vmul.f32 %v3408, %v3277
      %v3486 = vmul.f32 %v3413, %v3278
      %v3487 = vmul.f32 %v3418, %v3279
      %v3488 = vmul.f32 %v3423, %v3280
      %v3489 = vmul.f32 %v3428, %v3281
      %v3490 = vmul.f32 %v3433, %v3282
      %v3491 = vmul.f32 %v3438, %v3283
      %v3492 = vmul.f32 %v3443, %v3284
      %v3493 = vmul.f32 %v3448, %v3285
      %v3494 = vmul.f32 %v3453, %v3286
      %v3495 = vmul.f32 %v3458, %v3287
      %v3496 = vmul.f32 %v3463, %v3288
      %v3497 = vmul.f32 %v3468, %v3289
      %v3498 = vmul.f32 %v3473, %v3290
      %v3499 = vmul.f32 %v3478, %v3291
      %v3500 = vmul.f32 %v3483, %v3292
      %v3501 = vadd.f32 %v3485, 0.0
      %v3502 = vadd.f32 %v3486, 0.0
      %v3503 = vadd.f32 %v3487, 0.0
      %v3504 = vadd.f32 %v3488, 0.0
      %v3505 = vadd.f32 %v3489, 0.0
      %v3506 = vadd.f32 %v3490, 0.0
      %v3507 = vadd.f32 %v3491, 0.0
      %v3508 = vadd.f32 %v3492, 0.0
      %v3509 = vadd.f32 %v3493, 0.0
      %v3510 = vadd.f32 %v3494, 0.0
      %v3511 = vadd.f32 %v3495, 0.0
      %v3512 = vadd.f32 %v3496, 0.0
      %v3513 = vadd.f32 %v3497, 0.0
      %v3514 = vadd.f32 %v3498, 0.0
      %v3515 = vadd.f32 %v3499, 0.0
      %v3516 = vadd.f32 %v3500, 0.0
      %3518 = vset.pattern.permute.xlu0 18
      %3519 = vperm.xlu0 %3518, %v3002
      %v3520 = vpop.permute.xlu0 %3519
      %3523 = vset.pattern.permute.xlu0 18
      %3524 = vperm.xlu0 %3523, %v3003
      %v3525 = vpop.permute.xlu0 %3524
      %3528 = vset.pattern.permute.xlu0 18
      %3529 = vperm.xlu0 %3528, %v3004
      %v3530 = vpop.permute.xlu0 %3529
      %3533 = vset.pattern.permute.xlu0 18
      %3534 = vperm.xlu0 %3533, %v3005
      %v3535 = vpop.permute.xlu0 %3534
      %3538 = vset.pattern.permute.xlu0 18
      %3539 = vperm.xlu0 %3538, %v3006
      %v3540 = vpop.permute.xlu0 %3539
      %3543 = vset.pattern.permute.xlu0 18
      %3544 = vperm.xlu0 %3543, %v3007
      %v3545 = vpop.permute.xlu0 %3544
      %3548 = vset.pattern.permute.xlu0 18
      %3549 = vperm.xlu0 %3548, %v3008
      %v3550 = vpop.permute.xlu0 %3549
      %3553 = vset.pattern.permute.xlu0 18
      %3554 = vperm.xlu0 %3553, %v3009
      %v3555 = vpop.permute.xlu0 %3554
      %3558 = vset.pattern.permute.xlu0 18
      %3559 = vperm.xlu0 %3558, %v3010
      %v3560 = vpop.permute.xlu0 %3559
      %3563 = vset.pattern.permute.xlu0 18
      %3564 = vperm.xlu0 %3563, %v3011
      %v3565 = vpop.permute.xlu0 %3564
      %3568 = vset.pattern.permute.xlu0 18
      %3569 = vperm.xlu0 %3568, %v3012
      %v3570 = vpop.permute.xlu0 %3569
      %3573 = vset.pattern.permute.xlu0 18
      %3574 = vperm.xlu0 %3573, %v3013
      %v3575 = vpop.permute.xlu0 %3574
      %3578 = vset.pattern.permute.xlu0 18
      %3579 = vperm.xlu0 %3578, %v3014
      %v3580 = vpop.permute.xlu0 %3579
      %3583 = vset.pattern.permute.xlu0 18
      %3584 = vperm.xlu0 %3583, %v3015
      %v3585 = vpop.permute.xlu0 %3584
      %3588 = vset.pattern.permute.xlu0 18
      %3589 = vperm.xlu0 %3588, %v3016
      %v3590 = vpop.permute.xlu0 %3589
      %3593 = vset.pattern.permute.xlu0 18
      %3594 = vperm.xlu0 %3593, %v3017
      %v3595 = vpop.permute.xlu0 %3594
      %v3597 = vmul.f32 %v3520, %v3277
      %v3598 = vmul.f32 %v3525, %v3278
      %v3599 = vmul.f32 %v3530, %v3279
      %v3600 = vmul.f32 %v3535, %v3280
      %v3601 = vmul.f32 %v3540, %v3281
      %v3602 = vmul.f32 %v3545, %v3282
      %v3603 = vmul.f32 %v3550, %v3283
      %v3604 = vmul.f32 %v3555, %v3284
      %v3605 = vmul.f32 %v3560, %v3285
      %v3606 = vmul.f32 %v3565, %v3286
      %v3607 = vmul.f32 %v3570, %v3287
      %v3608 = vmul.f32 %v3575, %v3288
      %v3609 = vmul.f32 %v3580, %v3289
      %v3610 = vmul.f32 %v3585, %v3290
      %v3611 = vmul.f32 %v3590, %v3291
      %v3612 = vmul.f32 %v3595, %v3292
      %v3613 = vadd.f32 %v3597, 0.0
      %v3614 = vadd.f32 %v3598, 0.0
      %v3615 = vadd.f32 %v3599, 0.0
      %v3616 = vadd.f32 %v3600, 0.0
      %v3617 = vadd.f32 %v3601, 0.0
      %v3618 = vadd.f32 %v3602, 0.0
      %v3619 = vadd.f32 %v3603, 0.0
      %v3620 = vadd.f32 %v3604, 0.0
      %v3621 = vadd.f32 %v3605, 0.0
      %v3622 = vadd.f32 %v3606, 0.0
      %v3623 = vadd.f32 %v3607, 0.0
      %v3624 = vadd.f32 %v3608, 0.0
      %v3625 = vadd.f32 %v3609, 0.0
      %v3626 = vadd.f32 %v3610, 0.0
      %v3627 = vadd.f32 %v3611, 0.0
      %v3628 = vadd.f32 %v3612, 0.0
      %3630 = vset.pattern.permute.xlu0 27
      %3631 = vperm.xlu0 %3630, %v3243
      %v3632 = vpop.permute.xlu0 %3631
      %3635 = vset.pattern.permute.xlu0 27
      %3636 = vperm.xlu0 %3635, %v3244
      %v3637 = vpop.permute.xlu0 %3636
      %3640 = vset.pattern.permute.xlu0 27
      %3641 = vperm.xlu0 %3640, %v3245
      %v3642 = vpop.permute.xlu0 %3641
      %3645 = vset.pattern.permute.xlu0 27
      %3646 = vperm.xlu0 %3645, %v3246
      %v3647 = vpop.permute.xlu0 %3646
      %3650 = vset.pattern.permute.xlu0 27
      %3651 = vperm.xlu0 %3650, %v3247
      %v3652 = vpop.permute.xlu0 %3651
      %3655 = vset.pattern.permute.xlu0 27
      %3656 = vperm.xlu0 %3655, %v3248
      %v3657 = vpop.permute.xlu0 %3656
      %3660 = vset.pattern.permute.xlu0 27
      %3661 = vperm.xlu0 %3660, %v3249
      %v3662 = vpop.permute.xlu0 %3661
      %3665 = vset.pattern.permute.xlu0 27
      %3666 = vperm.xlu0 %3665, %v3250
      %v3667 = vpop.permute.xlu0 %3666
      %3670 = vset.pattern.permute.xlu0 27
      %3671 = vperm.xlu0 %3670, %v3251
      %v3672 = vpop.permute.xlu0 %3671
      %3675 = vset.pattern.permute.xlu0 27
      %3676 = vperm.xlu0 %3675, %v3252
      %v3677 = vpop.permute.xlu0 %3676
      %3680 = vset.pattern.permute.xlu0 27
      %3681 = vperm.xlu0 %3680, %v3253
      %v3682 = vpop.permute.xlu0 %3681
      %3685 = vset.pattern.permute.xlu0 27
      %3686 = vperm.xlu0 %3685, %v3254
      %v3687 = vpop.permute.xlu0 %3686
      %3690 = vset.pattern.permute.xlu0 27
      %3691 = vperm.xlu0 %3690, %v3255
      %v3692 = vpop.permute.xlu0 %3691
      %3695 = vset.pattern.permute.xlu0 27
      %3696 = vperm.xlu0 %3695, %v3256
      %v3697 = vpop.permute.xlu0 %3696
      %3700 = vset.pattern.permute.xlu0 27
      %3701 = vperm.xlu0 %3700, %v3257
      %v3702 = vpop.permute.xlu0 %3701
      %3705 = vset.pattern.permute.xlu0 27
      %3706 = vperm.xlu0 %3705, %v3258
      %v3707 = vpop.permute.xlu0 %3706
      %v3709 = vmul.f32 %v3632, %v3277
      %v3710 = vmul.f32 %v3637, %v3278
      %v3711 = vmul.f32 %v3642, %v3279
      %v3712 = vmul.f32 %v3647, %v3280
      %v3713 = vmul.f32 %v3652, %v3281
      %v3714 = vmul.f32 %v3657, %v3282
      %v3715 = vmul.f32 %v3662, %v3283
      %v3716 = vmul.f32 %v3667, %v3284
      %v3717 = vmul.f32 %v3672, %v3285
      %v3718 = vmul.f32 %v3677, %v3286
      %v3719 = vmul.f32 %v3682, %v3287
      %v3720 = vmul.f32 %v3687, %v3288
      %v3721 = vmul.f32 %v3692, %v3289
      %v3722 = vmul.f32 %v3697, %v3290
      %v3723 = vmul.f32 %v3702, %v3291
      %v3724 = vmul.f32 %v3707, %v3292
      %v3725 = vadd.f32 %v3709, 0.0
      %v3726 = vadd.f32 %v3710, 0.0
      %v3727 = vadd.f32 %v3711, 0.0
      %v3728 = vadd.f32 %v3712, 0.0
      %v3729 = vadd.f32 %v3713, 0.0
      %v3730 = vadd.f32 %v3714, 0.0
      %v3731 = vadd.f32 %v3715, 0.0
      %v3732 = vadd.f32 %v3716, 0.0
      %v3733 = vadd.f32 %v3717, 0.0
      %v3734 = vadd.f32 %v3718, 0.0
      %v3735 = vadd.f32 %v3719, 0.0
      %v3736 = vadd.f32 %v3720, 0.0
      %v3737 = vadd.f32 %v3721, 0.0
      %v3738 = vadd.f32 %v3722, 0.0
      %v3739 = vadd.f32 %v3723, 0.0
      %v3740 = vadd.f32 %v3724, 0.0
      %v3741 = vld [vmem:[%s3260] sm:$0xf]
      %v3742 = vld [vmem:[%s3260 + $0x4] sm:$0xf]
      %v3743 = vld [vmem:[%s3260 + $0x8] sm:$0x1]
      %v3744 = vld [vmem:[%s3260 + $0xc] sm:$0xf]
      %v3745 = vld [vmem:[%s3260 + $0x10] sm:$0xf]
      %v3746 = vld [vmem:[%s3260 + $0x14] sm:$0x1]
      %v3747 = vld [vmem:[%s3260 + $0x18] sm:$0xf]
      %v3748 = vld [vmem:[%s3260 + $0x1c] sm:$0xf]
      %v3749 = vld [vmem:[%s3260 + $0x20] sm:$0x1]
      %v3750 = vld [vmem:[%s3260 + $0x24] sm:$0xf]
      %v3751 = vld [vmem:[%s3260 + $0x28] sm:$0xf]
      %v3752 = vld [vmem:[%s3260 + $0x2c] sm:$0x1]
      %v3753 = vld [vmem:[%s3260 + $0x30] sm:$0xf]
      %v3754 = vld [vmem:[%s3260 + $0x34] sm:$0xf]
      %v3755 = vld [vmem:[%s3260 + $0x38] sm:$0x1]
      %v3756 = vld [vmem:[%s3260 + $0x3c] sm:$0xf]
      %v3757 = vld [vmem:[%s3260 + $0x40] sm:$0xf]
      %v3758 = vld [vmem:[%s3260 + $0x44] sm:$0x1]
      %v3759 = vld [vmem:[%s3260 + $0x48] sm:$0xf]
      %v3760 = vld [vmem:[%s3260 + $0x4c] sm:$0xf]
      %v3761 = vld [vmem:[%s3260 + $0x50] sm:$0x1]
      %v3762 = vld [vmem:[%s3260 + $0x54] sm:$0xf]
      %v3763 = vld [vmem:[%s3260 + $0x58] sm:$0xf]
      %v3764 = vld [vmem:[%s3260 + $0x5c] sm:$0x1]
      %v3766 = vshrl.u32 %v3741, 16
      %v3768 = vrot.slane %v3766, 4
      %v3769 = vshll.u32 %v3741, 16
      %v3771 = vrot.slane %v3769, 5
      %v3772 = vor.u32 %v3768, %v3771
      %v3773 = vrot.slane %v3772, 4
      %v3775 = vshll.u32 %v3742, 16
      %v3777 = vrot.slane %v3775, 5
      %v3778 = vsel %vm329, %v3773, %v3777
      %v3779 = vshrl.u32 %v3742, 16
      %v3781 = vrot.slane %v3779, 4
      %v3782 = vor.u32 %v3781, %v3777
      %v3783 = vrot.slane %v3782, 4
      %v3785 = vshll.u32 %v3743, 16
      %v3787 = vrot.slane %v3785, 5
      %v3788 = vsel %vm329, %v3783, %v3787
      %v3790 = vshrl.u32 %v3744, 16
      %v3792 = vrot.slane %v3790, 4
      %v3793 = vshll.u32 %v3744, 16
      %v3795 = vrot.slane %v3793, 5
      %v3796 = vor.u32 %v3792, %v3795
      %v3797 = vrot.slane %v3796, 4
      %v3799 = vshll.u32 %v3745, 16
      %v3801 = vrot.slane %v3799, 5
      %v3802 = vsel %vm329, %v3797, %v3801
      %v3803 = vshrl.u32 %v3745, 16
      %v3805 = vrot.slane %v3803, 4
      %v3806 = vor.u32 %v3805, %v3801
      %v3807 = vrot.slane %v3806, 4
      %v3809 = vshll.u32 %v3746, 16
      %v3811 = vrot.slane %v3809, 5
      %v3812 = vsel %vm329, %v3807, %v3811
      %v3814 = vshrl.u32 %v3747, 16
      %v3816 = vrot.slane %v3814, 4
      %v3817 = vshll.u32 %v3747, 16
      %v3819 = vrot.slane %v3817, 5
      %v3820 = vor.u32 %v3816, %v3819
      %v3821 = vrot.slane %v3820, 4
      %v3823 = vshll.u32 %v3748, 16
      %v3825 = vrot.slane %v3823, 5
      %v3826 = vsel %vm329, %v3821, %v3825
      %v3827 = vshrl.u32 %v3748, 16
      %v3829 = vrot.slane %v3827, 4
      %v3830 = vor.u32 %v3829, %v3825
      %v3831 = vrot.slane %v3830, 4
      %v3833 = vshll.u32 %v3749, 16
      %v3835 = vrot.slane %v3833, 5
      %v3836 = vsel %vm329, %v3831, %v3835
      %v3838 = vshrl.u32 %v3750, 16
      %v3840 = vrot.slane %v3838, 4
      %v3841 = vshll.u32 %v3750, 16
      %v3843 = vrot.slane %v3841, 5
      %v3844 = vor.u32 %v3840, %v3843
      %v3845 = vrot.slane %v3844, 4
      %v3847 = vshll.u32 %v3751, 16
      %v3849 = vrot.slane %v3847, 5
      %v3850 = vsel %vm329, %v3845, %v3849
      %v3851 = vshrl.u32 %v3751, 16
      %v3853 = vrot.slane %v3851, 4
      %v3854 = vor.u32 %v3853, %v3849
      %v3855 = vrot.slane %v3854, 4
      %v3857 = vshll.u32 %v3752, 16
      %v3859 = vrot.slane %v3857, 5
      %v3860 = vsel %vm329, %v3855, %v3859
      %v3862 = vshrl.u32 %v3753, 16
      %v3864 = vrot.slane %v3862, 4
      %v3865 = vshll.u32 %v3753, 16
      %v3867 = vrot.slane %v3865, 5
      %v3868 = vor.u32 %v3864, %v3867
      %v3869 = vrot.slane %v3868, 4
      %v3871 = vshll.u32 %v3754, 16
      %v3873 = vrot.slane %v3871, 5
      %v3874 = vsel %vm329, %v3869, %v3873
      %v3875 = vshrl.u32 %v3754, 16
      %v3877 = vrot.slane %v3875, 4
      %v3878 = vor.u32 %v3877, %v3873
      %v3879 = vrot.slane %v3878, 4
      %v3881 = vshll.u32 %v3755, 16
      %v3883 = vrot.slane %v3881, 5
      %v3884 = vsel %vm329, %v3879, %v3883
      %v3886 = vshrl.u32 %v3756, 16
      %v3888 = vrot.slane %v3886, 4
      %v3889 = vshll.u32 %v3756, 16
      %v3891 = vrot.slane %v3889, 5
      %v3892 = vor.u32 %v3888, %v3891
      %v3893 = vrot.slane %v3892, 4
      %v3895 = vshll.u32 %v3757, 16
      %v3897 = vrot.slane %v3895, 5
      %v3898 = vsel %vm329, %v3893, %v3897
      %v3899 = vshrl.u32 %v3757, 16
      %v3901 = vrot.slane %v3899, 4
      %v3902 = vor.u32 %v3901, %v3897
      %v3903 = vrot.slane %v3902, 4
      %v3905 = vshll.u32 %v3758, 16
      %v3907 = vrot.slane %v3905, 5
      %v3908 = vsel %vm329, %v3903, %v3907
      %v3910 = vshrl.u32 %v3759, 16
      %v3912 = vrot.slane %v3910, 4
      %v3913 = vshll.u32 %v3759, 16
      %v3915 = vrot.slane %v3913, 5
      %v3916 = vor.u32 %v3912, %v3915
      %v3917 = vrot.slane %v3916, 4
      %v3919 = vshll.u32 %v3760, 16
      %v3921 = vrot.slane %v3919, 5
      %v3922 = vsel %vm329, %v3917, %v3921
      %v3923 = vshrl.u32 %v3760, 16
      %v3925 = vrot.slane %v3923, 4
      %v3926 = vor.u32 %v3925, %v3921
      %v3927 = vrot.slane %v3926, 4
      %v3929 = vshll.u32 %v3761, 16
      %v3931 = vrot.slane %v3929, 5
      %v3932 = vsel %vm329, %v3927, %v3931
      %v3934 = vshrl.u32 %v3762, 16
      %v3936 = vrot.slane %v3934, 4
      %v3937 = vshll.u32 %v3762, 16
      %v3939 = vrot.slane %v3937, 5
      %v3940 = vor.u32 %v3936, %v3939
      %v3941 = vrot.slane %v3940, 4
      %v3943 = vshll.u32 %v3763, 16
      %v3945 = vrot.slane %v3943, 5
      %v3946 = vsel %vm329, %v3941, %v3945
      %v3947 = vshrl.u32 %v3763, 16
      %v3949 = vrot.slane %v3947, 4
      %v3950 = vor.u32 %v3949, %v3945
      %v3951 = vrot.slane %v3950, 4
      %v3953 = vshll.u32 %v3764, 16
      %v3955 = vrot.slane %v3953, 5
      %v3956 = vsel %vm329, %v3951, %v3955
      %v3973 = vunpack.c.l.bf16 %v3778
      %v3974 = vunpack.c.l.bf16 %v3788
      %v3975 = vunpack.c.l.bf16 %v3802
      %v3976 = vunpack.c.l.bf16 %v3812
      %v3977 = vunpack.c.l.bf16 %v3826
      %v3978 = vunpack.c.l.bf16 %v3836
      %v3979 = vunpack.c.l.bf16 %v3850
      %v3980 = vunpack.c.l.bf16 %v3860
      %v3981 = vunpack.c.l.bf16 %v3874
      %v3982 = vunpack.c.l.bf16 %v3884
      %v3983 = vunpack.c.l.bf16 %v3898
      %v3984 = vunpack.c.l.bf16 %v3908
      %v3985 = vunpack.c.l.bf16 %v3922
      %v3986 = vunpack.c.l.bf16 %v3932
      %v3987 = vunpack.c.l.bf16 %v3946
      %v3988 = vunpack.c.l.bf16 %v3956
      %3989 = vset.pattern.permute.xlu0 1
      %3990 = vperm.xlu0 %3989, %v2520
      %v3991 = vpop.permute.xlu0 %3990
      %3993 = vset.pattern.permute.xlu0 1
      %3994 = vperm.xlu0 %3993, %v2521
      %v3995 = vpop.permute.xlu0 %3994
      %3997 = vset.pattern.permute.xlu0 1
      %3998 = vperm.xlu0 %3997, %v2522
      %v3999 = vpop.permute.xlu0 %3998
      %4001 = vset.pattern.permute.xlu0 1
      %4002 = vperm.xlu0 %4001, %v2523
      %v4003 = vpop.permute.xlu0 %4002
      %4005 = vset.pattern.permute.xlu0 1
      %4006 = vperm.xlu0 %4005, %v2524
      %v4007 = vpop.permute.xlu0 %4006
      %4009 = vset.pattern.permute.xlu0 1
      %4010 = vperm.xlu0 %4009, %v2525
      %v4011 = vpop.permute.xlu0 %4010
      %4013 = vset.pattern.permute.xlu0 1
      %4014 = vperm.xlu0 %4013, %v2526
      %v4015 = vpop.permute.xlu0 %4014
      %4017 = vset.pattern.permute.xlu0 1
      %4018 = vperm.xlu0 %4017, %v2527
      %v4019 = vpop.permute.xlu0 %4018
      %4021 = vset.pattern.permute.xlu0 1
      %4022 = vperm.xlu0 %4021, %v2528
      %v4023 = vpop.permute.xlu0 %4022
      %4025 = vset.pattern.permute.xlu0 1
      %4026 = vperm.xlu0 %4025, %v2529
      %v4027 = vpop.permute.xlu0 %4026
      %4029 = vset.pattern.permute.xlu0 1
      %4030 = vperm.xlu0 %4029, %v2530
      %v4031 = vpop.permute.xlu0 %4030
      %4033 = vset.pattern.permute.xlu0 1
      %4034 = vperm.xlu0 %4033, %v2531
      %v4035 = vpop.permute.xlu0 %4034
      %4037 = vset.pattern.permute.xlu0 1
      %4038 = vperm.xlu0 %4037, %v2532
      %v4039 = vpop.permute.xlu0 %4038
      %4041 = vset.pattern.permute.xlu0 1
      %4042 = vperm.xlu0 %4041, %v2533
      %v4043 = vpop.permute.xlu0 %4042
      %4045 = vset.pattern.permute.xlu0 1
      %4046 = vperm.xlu0 %4045, %v2534
      %v4047 = vpop.permute.xlu0 %4046
      %4049 = vset.pattern.permute.xlu0 1
      %4050 = vperm.xlu0 %4049, %v2535
      %v4051 = vpop.permute.xlu0 %4050
      %v4053 = vmul.f32 %v3991, %v3973
      %v4054 = vmul.f32 %v3995, %v3974
      %v4055 = vmul.f32 %v3999, %v3975
      %v4056 = vmul.f32 %v4003, %v3976
      %v4057 = vmul.f32 %v4007, %v3977
      %v4058 = vmul.f32 %v4011, %v3978
      %v4059 = vmul.f32 %v4015, %v3979
      %v4060 = vmul.f32 %v4019, %v3980
      %v4061 = vmul.f32 %v4023, %v3981
      %v4062 = vmul.f32 %v4027, %v3982
      %v4063 = vmul.f32 %v4031, %v3983
      %v4064 = vmul.f32 %v4035, %v3984
      %v4065 = vmul.f32 %v4039, %v3985
      %v4066 = vmul.f32 %v4043, %v3986
      %v4067 = vmul.f32 %v4047, %v3987
      %v4068 = vmul.f32 %v4051, %v3988
      %v4069 = vadd.f32 %v3389, %v4053
      %v4070 = vadd.f32 %v3390, %v4054
      %v4071 = vadd.f32 %v3391, %v4055
      %v4072 = vadd.f32 %v3392, %v4056
      %v4073 = vadd.f32 %v3393, %v4057
      %v4074 = vadd.f32 %v3394, %v4058
      %v4075 = vadd.f32 %v3395, %v4059
      %v4076 = vadd.f32 %v3396, %v4060
      %v4077 = vadd.f32 %v3397, %v4061
      %v4078 = vadd.f32 %v3398, %v4062
      %v4079 = vadd.f32 %v3399, %v4063
      %v4080 = vadd.f32 %v3400, %v4064
      %v4081 = vadd.f32 %v3401, %v4065
      %v4082 = vadd.f32 %v3402, %v4066
      %v4083 = vadd.f32 %v3403, %v4067
      %v4084 = vadd.f32 %v3404, %v4068
      %4085 = vset.pattern.permute.xlu0 10
      %4086 = vperm.xlu0 %4085, %v2761
      %v4087 = vpop.permute.xlu0 %4086
      %4089 = vset.pattern.permute.xlu0 10
      %4090 = vperm.xlu0 %4089, %v2762
      %v4091 = vpop.permute.xlu0 %4090
      %4093 = vset.pattern.permute.xlu0 10
      %4094 = vperm.xlu0 %4093, %v2763
      %v4095 = vpop.permute.xlu0 %4094
      %4097 = vset.pattern.permute.xlu0 10
      %4098 = vperm.xlu0 %4097, %v2764
      %v4099 = vpop.permute.xlu0 %4098
      %4101 = vset.pattern.permute.xlu0 10
      %4102 = vperm.xlu0 %4101, %v2765
      %v4103 = vpop.permute.xlu0 %4102
      %4105 = vset.pattern.permute.xlu0 10
      %4106 = vperm.xlu0 %4105, %v2766
      %v4107 = vpop.permute.xlu0 %4106
      %4109 = vset.pattern.permute.xlu0 10
      %4110 = vperm.xlu0 %4109, %v2767
      %v4111 = vpop.permute.xlu0 %4110
      %4113 = vset.pattern.permute.xlu0 10
      %4114 = vperm.xlu0 %4113, %v2768
      %v4115 = vpop.permute.xlu0 %4114
      %4117 = vset.pattern.permute.xlu0 10
      %4118 = vperm.xlu0 %4117, %v2769
      %v4119 = vpop.permute.xlu0 %4118
      %4121 = vset.pattern.permute.xlu0 10
      %4122 = vperm.xlu0 %4121, %v2770
      %v4123 = vpop.permute.xlu0 %4122
      %4125 = vset.pattern.permute.xlu0 10
      %4126 = vperm.xlu0 %4125, %v2771
      %v4127 = vpop.permute.xlu0 %4126
      %4129 = vset.pattern.permute.xlu0 10
      %4130 = vperm.xlu0 %4129, %v2772
      %v4131 = vpop.permute.xlu0 %4130
      %4133 = vset.pattern.permute.xlu0 10
      %4134 = vperm.xlu0 %4133, %v2773
      %v4135 = vpop.permute.xlu0 %4134
      %4137 = vset.pattern.permute.xlu0 10
      %4138 = vperm.xlu0 %4137, %v2774
      %v4139 = vpop.permute.xlu0 %4138
      %4141 = vset.pattern.permute.xlu0 10
      %4142 = vperm.xlu0 %4141, %v2775
      %v4143 = vpop.permute.xlu0 %4142
      %4145 = vset.pattern.permute.xlu0 10
      %4146 = vperm.xlu0 %4145, %v2776
      %v4147 = vpop.permute.xlu0 %4146
      %v4149 = vmul.f32 %v4087, %v3973
      %v4150 = vmul.f32 %v4091, %v3974
      %v4151 = vmul.f32 %v4095, %v3975
      %v4152 = vmul.f32 %v4099, %v3976
      %v4153 = vmul.f32 %v4103, %v3977
      %v4154 = vmul.f32 %v4107, %v3978
      %v4155 = vmul.f32 %v4111, %v3979
      %v4156 = vmul.f32 %v4115, %v3980
      %v4157 = vmul.f32 %v4119, %v3981
      %v4158 = vmul.f32 %v4123, %v3982
      %v4159 = vmul.f32 %v4127, %v3983
      %v4160 = vmul.f32 %v4131, %v3984
      %v4161 = vmul.f32 %v4135, %v3985
      %v4162 = vmul.f32 %v4139, %v3986
      %v4163 = vmul.f32 %v4143, %v3987
      %v4164 = vmul.f32 %v4147, %v3988
      %v4165 = vadd.f32 %v3501, %v4149
      %v4166 = vadd.f32 %v3502, %v4150
      %v4167 = vadd.f32 %v3503, %v4151
      %v4168 = vadd.f32 %v3504, %v4152
      %v4169 = vadd.f32 %v3505, %v4153
      %v4170 = vadd.f32 %v3506, %v4154
      %v4171 = vadd.f32 %v3507, %v4155
      %v4172 = vadd.f32 %v3508, %v4156
      %v4173 = vadd.f32 %v3509, %v4157
      %v4174 = vadd.f32 %v3510, %v4158
      %v4175 = vadd.f32 %v3511, %v4159
      %v4176 = vadd.f32 %v3512, %v4160
      %v4177 = vadd.f32 %v3513, %v4161
      %v4178 = vadd.f32 %v3514, %v4162
      %v4179 = vadd.f32 %v3515, %v4163
      %v4180 = vadd.f32 %v3516, %v4164
      %4181 = vset.pattern.permute.xlu0 19
      %4182 = vperm.xlu0 %4181, %v3002
      %v4183 = vpop.permute.xlu0 %4182
      %4185 = vset.pattern.permute.xlu0 19
      %4186 = vperm.xlu0 %4185, %v3003
      %v4187 = vpop.permute.xlu0 %4186
      %4189 = vset.pattern.permute.xlu0 19
      %4190 = vperm.xlu0 %4189, %v3004
      %v4191 = vpop.permute.xlu0 %4190
      %4193 = vset.pattern.permute.xlu0 19
      %4194 = vperm.xlu0 %4193, %v3005
      %v4195 = vpop.permute.xlu0 %4194
      %4197 = vset.pattern.permute.xlu0 19
      %4198 = vperm.xlu0 %4197, %v3006
      %v4199 = vpop.permute.xlu0 %4198
      %4201 = vset.pattern.permute.xlu0 19
      %4202 = vperm.xlu0 %4201, %v3007
      %v4203 = vpop.permute.xlu0 %4202
      %4205 = vset.pattern.permute.xlu0 19
      %4206 = vperm.xlu0 %4205, %v3008
      %v4207 = vpop.permute.xlu0 %4206
      %4209 = vset.pattern.permute.xlu0 19
      %4210 = vperm.xlu0 %4209, %v3009
      %v4211 = vpop.permute.xlu0 %4210
      %4213 = vset.pattern.permute.xlu0 19
      %4214 = vperm.xlu0 %4213, %v3010
      %v4215 = vpop.permute.xlu0 %4214
      %4217 = vset.pattern.permute.xlu0 19
      %4218 = vperm.xlu0 %4217, %v3011
      %v4219 = vpop.permute.xlu0 %4218
      %4221 = vset.pattern.permute.xlu0 19
      %4222 = vperm.xlu0 %4221, %v3012
      %v4223 = vpop.permute.xlu0 %4222
      %4225 = vset.pattern.permute.xlu0 19
      %4226 = vperm.xlu0 %4225, %v3013
      %v4227 = vpop.permute.xlu0 %4226
      %4229 = vset.pattern.permute.xlu0 19
      %4230 = vperm.xlu0 %4229, %v3014
      %v4231 = vpop.permute.xlu0 %4230
      %4233 = vset.pattern.permute.xlu0 19
      %4234 = vperm.xlu0 %4233, %v3015
      %v4235 = vpop.permute.xlu0 %4234
      %4237 = vset.pattern.permute.xlu0 19
      %4238 = vperm.xlu0 %4237, %v3016
      %v4239 = vpop.permute.xlu0 %4238
      %4241 = vset.pattern.permute.xlu0 19
      %4242 = vperm.xlu0 %4241, %v3017
      %v4243 = vpop.permute.xlu0 %4242
      %v4245 = vmul.f32 %v4183, %v3973
      %v4246 = vmul.f32 %v4187, %v3974
      %v4247 = vmul.f32 %v4191, %v3975
      %v4248 = vmul.f32 %v4195, %v3976
      %v4249 = vmul.f32 %v4199, %v3977
      %v4250 = vmul.f32 %v4203, %v3978
      %v4251 = vmul.f32 %v4207, %v3979
      %v4252 = vmul.f32 %v4211, %v3980
      %v4253 = vmul.f32 %v4215, %v3981
      %v4254 = vmul.f32 %v4219, %v3982
      %v4255 = vmul.f32 %v4223, %v3983
      %v4256 = vmul.f32 %v4227, %v3984
      %v4257 = vmul.f32 %v4231, %v3985
      %v4258 = vmul.f32 %v4235, %v3986
      %v4259 = vmul.f32 %v4239, %v3987
      %v4260 = vmul.f32 %v4243, %v3988
      %v4261 = vadd.f32 %v3613, %v4245
      %v4262 = vadd.f32 %v3614, %v4246
      %v4263 = vadd.f32 %v3615, %v4247
      %v4264 = vadd.f32 %v3616, %v4248
      %v4265 = vadd.f32 %v3617, %v4249
      %v4266 = vadd.f32 %v3618, %v4250
      %v4267 = vadd.f32 %v3619, %v4251
      %v4268 = vadd.f32 %v3620, %v4252
      %v4269 = vadd.f32 %v3621, %v4253
      %v4270 = vadd.f32 %v3622, %v4254
      %v4271 = vadd.f32 %v3623, %v4255
      %v4272 = vadd.f32 %v3624, %v4256
      %v4273 = vadd.f32 %v3625, %v4257
      %v4274 = vadd.f32 %v3626, %v4258
      %v4275 = vadd.f32 %v3627, %v4259
      %v4276 = vadd.f32 %v3628, %v4260
      %4277 = vset.pattern.permute.xlu0 28
      %4278 = vperm.xlu0 %4277, %v3243
      %v4279 = vpop.permute.xlu0 %4278
      %4281 = vset.pattern.permute.xlu0 28
      %4282 = vperm.xlu0 %4281, %v3244
      %v4283 = vpop.permute.xlu0 %4282
      %4285 = vset.pattern.permute.xlu0 28
      %4286 = vperm.xlu0 %4285, %v3245
      %v4287 = vpop.permute.xlu0 %4286
      %4289 = vset.pattern.permute.xlu0 28
      %4290 = vperm.xlu0 %4289, %v3246
      %v4291 = vpop.permute.xlu0 %4290
      %4293 = vset.pattern.permute.xlu0 28
      %4294 = vperm.xlu0 %4293, %v3247
      %v4295 = vpop.permute.xlu0 %4294
      %4297 = vset.pattern.permute.xlu0 28
      %4298 = vperm.xlu0 %4297, %v3248
      %v4299 = vpop.permute.xlu0 %4298
      %4301 = vset.pattern.permute.xlu0 28
      %4302 = vperm.xlu0 %4301, %v3249
      %v4303 = vpop.permute.xlu0 %4302
      %4305 = vset.pattern.permute.xlu0 28
      %4306 = vperm.xlu0 %4305, %v3250
      %v4307 = vpop.permute.xlu0 %4306
      %4309 = vset.pattern.permute.xlu0 28
      %4310 = vperm.xlu0 %4309, %v3251
      %v4311 = vpop.permute.xlu0 %4310
      %4313 = vset.pattern.permute.xlu0 28
      %4314 = vperm.xlu0 %4313, %v3252
      %v4315 = vpop.permute.xlu0 %4314
      %4317 = vset.pattern.permute.xlu0 28
      %4318 = vperm.xlu0 %4317, %v3253
      %v4319 = vpop.permute.xlu0 %4318
      %4321 = vset.pattern.permute.xlu0 28
      %4322 = vperm.xlu0 %4321, %v3254
      %v4323 = vpop.permute.xlu0 %4322
      %4325 = vset.pattern.permute.xlu0 28
      %4326 = vperm.xlu0 %4325, %v3255
      %v4327 = vpop.permute.xlu0 %4326
      %4329 = vset.pattern.permute.xlu0 28
      %4330 = vperm.xlu0 %4329, %v3256
      %v4331 = vpop.permute.xlu0 %4330
      %4333 = vset.pattern.permute.xlu0 28
      %4334 = vperm.xlu0 %4333, %v3257
      %v4335 = vpop.permute.xlu0 %4334
      %4337 = vset.pattern.permute.xlu0 28
      %4338 = vperm.xlu0 %4337, %v3258
      %v4339 = vpop.permute.xlu0 %4338
      %v4341 = vmul.f32 %v4279, %v3973
      %v4342 = vmul.f32 %v4283, %v3974
      %v4343 = vmul.f32 %v4287, %v3975
      %v4344 = vmul.f32 %v4291, %v3976
      %v4345 = vmul.f32 %v4295, %v3977
      %v4346 = vmul.f32 %v4299, %v3978
      %v4347 = vmul.f32 %v4303, %v3979
      %v4348 = vmul.f32 %v4307, %v3980
      %v4349 = vmul.f32 %v4311, %v3981
      %v4350 = vmul.f32 %v4315, %v3982
      %v4351 = vmul.f32 %v4319, %v3983
      %v4352 = vmul.f32 %v4323, %v3984
      %v4353 = vmul.f32 %v4327, %v3985
      %v4354 = vmul.f32 %v4331, %v3986
      %v4355 = vmul.f32 %v4335, %v3987
      %v4356 = vmul.f32 %v4339, %v3988
      %v4357 = vadd.f32 %v3725, %v4341
      %v4358 = vadd.f32 %v3726, %v4342
      %v4359 = vadd.f32 %v3727, %v4343
      %v4360 = vadd.f32 %v3728, %v4344
      %v4361 = vadd.f32 %v3729, %v4345
      %v4362 = vadd.f32 %v3730, %v4346
      %v4363 = vadd.f32 %v3731, %v4347
      %v4364 = vadd.f32 %v3732, %v4348
      %v4365 = vadd.f32 %v3733, %v4349
      %v4366 = vadd.f32 %v3734, %v4350
      %v4367 = vadd.f32 %v3735, %v4351
      %v4368 = vadd.f32 %v3736, %v4352
      %v4369 = vadd.f32 %v3737, %v4353
      %v4370 = vadd.f32 %v3738, %v4354
      %v4371 = vadd.f32 %v3739, %v4355
      %v4372 = vadd.f32 %v3740, %v4356
      %v4373 = vld [vmem:[%s3260] sm:$0xe]
      %v4374 = vld [vmem:[%s3260 + $0xc] sm:$0xe]
      %v4375 = vld [vmem:[%s3260 + $0x18] sm:$0xe]
      %v4376 = vld [vmem:[%s3260 + $0x24] sm:$0xe]
      %v4377 = vld [vmem:[%s3260 + $0x30] sm:$0xe]
      %v4378 = vld [vmem:[%s3260 + $0x3c] sm:$0xe]
      %v4379 = vld [vmem:[%s3260 + $0x48] sm:$0xe]
      %v4380 = vld [vmem:[%s3260 + $0x54] sm:$0xe]
      %v4405 = vrot.slane %v4373, 5
      %v4406 = vrot.slane %v4405, 4
      %v4407 = vrot.slane %v3742, 5
      %v4408 = vsel %vm771, %v4406, %v4407
      %v4409 = vrot.slane %v4407, 4
      %v4410 = vrot.slane %v3743, 5
      %v4411 = vsel %vm771, %v4409, %v4410
      %v4412 = vrot.slane %v4374, 5
      %v4413 = vrot.slane %v4412, 4
      %v4414 = vrot.slane %v3745, 5
      %v4415 = vsel %vm771, %v4413, %v4414
      %v4416 = vrot.slane %v4414, 4
      %v4417 = vrot.slane %v3746, 5
      %v4418 = vsel %vm771, %v4416, %v4417
      %v4419 = vrot.slane %v4375, 5
      %v4420 = vrot.slane %v4419, 4
      %v4421 = vrot.slane %v3748, 5
      %v4422 = vsel %vm771, %v4420, %v4421
      %v4423 = vrot.slane %v4421, 4
      %v4424 = vrot.slane %v3749, 5
      %v4425 = vsel %vm771, %v4423, %v4424
      %v4426 = vrot.slane %v4376, 5
      %v4427 = vrot.slane %v4426, 4
      %v4428 = vrot.slane %v3751, 5
      %v4429 = vsel %vm771, %v4427, %v4428
      %v4430 = vrot.slane %v4428, 4
      %v4431 = vrot.slane %v3752, 5
      %v4432 = vsel %vm771, %v4430, %v4431
      %v4433 = vrot.slane %v4377, 5
      %v4434 = vrot.slane %v4433, 4
      %v4435 = vrot.slane %v3754, 5
      %v4436 = vsel %vm771, %v4434, %v4435
      %v4437 = vrot.slane %v4435, 4
      %v4438 = vrot.slane %v3755, 5
      %v4439 = vsel %vm771, %v4437, %v4438
      %v4440 = vrot.slane %v4378, 5
      %v4441 = vrot.slane %v4440, 4
      %v4442 = vrot.slane %v3757, 5
      %v4443 = vsel %vm771, %v4441, %v4442
      %v4444 = vrot.slane %v4442, 4
      %v4445 = vrot.slane %v3758, 5
      %v4446 = vsel %vm771, %v4444, %v4445
      %v4447 = vrot.slane %v4379, 5
      %v4448 = vrot.slane %v4447, 4
      %v4449 = vrot.slane %v3760, 5
      %v4450 = vsel %vm771, %v4448, %v4449
      %v4451 = vrot.slane %v4449, 4
      %v4452 = vrot.slane %v3761, 5
      %v4453 = vsel %vm771, %v4451, %v4452
      %v4454 = vrot.slane %v4380, 5
      %v4455 = vrot.slane %v4454, 4
      %v4456 = vrot.slane %v3763, 5
      %v4457 = vsel %vm771, %v4455, %v4456
      %v4458 = vrot.slane %v4456, 4
      %v4459 = vrot.slane %v3764, 5
      %v4460 = vsel %vm771, %v4458, %v4459
      %v4477 = vunpack.c.l.bf16 %v4408
      %v4478 = vunpack.c.l.bf16 %v4411
      %v4479 = vunpack.c.l.bf16 %v4415
      %v4480 = vunpack.c.l.bf16 %v4418
      %v4481 = vunpack.c.l.bf16 %v4422
      %v4482 = vunpack.c.l.bf16 %v4425
      %v4483 = vunpack.c.l.bf16 %v4429
      %v4484 = vunpack.c.l.bf16 %v4432
      %v4485 = vunpack.c.l.bf16 %v4436
      %v4486 = vunpack.c.l.bf16 %v4439
      %v4487 = vunpack.c.l.bf16 %v4443
      %v4488 = vunpack.c.l.bf16 %v4446
      %v4489 = vunpack.c.l.bf16 %v4450
      %v4490 = vunpack.c.l.bf16 %v4453
      %v4491 = vunpack.c.l.bf16 %v4457
      %v4492 = vunpack.c.l.bf16 %v4460
      %4493 = vset.pattern.permute.xlu0 2
      %4494 = vperm.xlu0 %4493, %v2520
      %v4495 = vpop.permute.xlu0 %4494
      %4497 = vset.pattern.permute.xlu0 2
      %4498 = vperm.xlu0 %4497, %v2521
      %v4499 = vpop.permute.xlu0 %4498
      %4501 = vset.pattern.permute.xlu0 2
      %4502 = vperm.xlu0 %4501, %v2522
      %v4503 = vpop.permute.xlu0 %4502
      %4505 = vset.pattern.permute.xlu0 2
      %4506 = vperm.xlu0 %4505, %v2523
      %v4507 = vpop.permute.xlu0 %4506
      %4509 = vset.pattern.permute.xlu0 2
      %4510 = vperm.xlu0 %4509, %v2524
      %v4511 = vpop.permute.xlu0 %4510
      %4513 = vset.pattern.permute.xlu0 2
      %4514 = vperm.xlu0 %4513, %v2525
      %v4515 = vpop.permute.xlu0 %4514
      %4517 = vset.pattern.permute.xlu0 2
      %4518 = vperm.xlu0 %4517, %v2526
      %v4519 = vpop.permute.xlu0 %4518
      %4521 = vset.pattern.permute.xlu0 2
      %4522 = vperm.xlu0 %4521, %v2527
      %v4523 = vpop.permute.xlu0 %4522
      %4525 = vset.pattern.permute.xlu0 2
      %4526 = vperm.xlu0 %4525, %v2528
      %v4527 = vpop.permute.xlu0 %4526
      %4529 = vset.pattern.permute.xlu0 2
      %4530 = vperm.xlu0 %4529, %v2529
      %v4531 = vpop.permute.xlu0 %4530
      %4533 = vset.pattern.permute.xlu0 2
      %4534 = vperm.xlu0 %4533, %v2530
      %v4535 = vpop.permute.xlu0 %4534
      %4537 = vset.pattern.permute.xlu0 2
      %4538 = vperm.xlu0 %4537, %v2531
      %v4539 = vpop.permute.xlu0 %4538
      %4541 = vset.pattern.permute.xlu0 2
      %4542 = vperm.xlu0 %4541, %v2532
      %v4543 = vpop.permute.xlu0 %4542
      %4545 = vset.pattern.permute.xlu0 2
      %4546 = vperm.xlu0 %4545, %v2533
      %v4547 = vpop.permute.xlu0 %4546
      %4549 = vset.pattern.permute.xlu0 2
      %4550 = vperm.xlu0 %4549, %v2534
      %v4551 = vpop.permute.xlu0 %4550
      %4553 = vset.pattern.permute.xlu0 2
      %4554 = vperm.xlu0 %4553, %v2535
      %v4555 = vpop.permute.xlu0 %4554
      %v4557 = vmul.f32 %v4495, %v4477
      %v4558 = vmul.f32 %v4499, %v4478
      %v4559 = vmul.f32 %v4503, %v4479
      %v4560 = vmul.f32 %v4507, %v4480
      %v4561 = vmul.f32 %v4511, %v4481
      %v4562 = vmul.f32 %v4515, %v4482
      %v4563 = vmul.f32 %v4519, %v4483
      %v4564 = vmul.f32 %v4523, %v4484
      %v4565 = vmul.f32 %v4527, %v4485
      %v4566 = vmul.f32 %v4531, %v4486
      %v4567 = vmul.f32 %v4535, %v4487
      %v4568 = vmul.f32 %v4539, %v4488
      %v4569 = vmul.f32 %v4543, %v4489
      %v4570 = vmul.f32 %v4547, %v4490
      %v4571 = vmul.f32 %v4551, %v4491
      %v4572 = vmul.f32 %v4555, %v4492
      %v4573 = vadd.f32 %v4069, %v4557
      %v4574 = vadd.f32 %v4070, %v4558
      %v4575 = vadd.f32 %v4071, %v4559
      %v4576 = vadd.f32 %v4072, %v4560
      %v4577 = vadd.f32 %v4073, %v4561
      %v4578 = vadd.f32 %v4074, %v4562
      %v4579 = vadd.f32 %v4075, %v4563
      %v4580 = vadd.f32 %v4076, %v4564
      %v4581 = vadd.f32 %v4077, %v4565
      %v4582 = vadd.f32 %v4078, %v4566
      %v4583 = vadd.f32 %v4079, %v4567
      %v4584 = vadd.f32 %v4080, %v4568
      %v4585 = vadd.f32 %v4081, %v4569
      %v4586 = vadd.f32 %v4082, %v4570
      %v4587 = vadd.f32 %v4083, %v4571
      %v4588 = vadd.f32 %v4084, %v4572
      %4589 = vset.pattern.permute.xlu0 11
      %4590 = vperm.xlu0 %4589, %v2761
      %v4591 = vpop.permute.xlu0 %4590
      %4593 = vset.pattern.permute.xlu0 11
      %4594 = vperm.xlu0 %4593, %v2762
      %v4595 = vpop.permute.xlu0 %4594
      %4597 = vset.pattern.permute.xlu0 11
      %4598 = vperm.xlu0 %4597, %v2763
      %v4599 = vpop.permute.xlu0 %4598
      %4601 = vset.pattern.permute.xlu0 11
      %4602 = vperm.xlu0 %4601, %v2764
      %v4603 = vpop.permute.xlu0 %4602
      %4605 = vset.pattern.permute.xlu0 11
      %4606 = vperm.xlu0 %4605, %v2765
      %v4607 = vpop.permute.xlu0 %4606
      %4609 = vset.pattern.permute.xlu0 11
      %4610 = vperm.xlu0 %4609, %v2766
      %v4611 = vpop.permute.xlu0 %4610
      %4613 = vset.pattern.permute.xlu0 11
      %4614 = vperm.xlu0 %4613, %v2767
      %v4615 = vpop.permute.xlu0 %4614
      %4617 = vset.pattern.permute.xlu0 11
      %4618 = vperm.xlu0 %4617, %v2768
      %v4619 = vpop.permute.xlu0 %4618
      %4621 = vset.pattern.permute.xlu0 11
      %4622 = vperm.xlu0 %4621, %v2769
      %v4623 = vpop.permute.xlu0 %4622
      %4625 = vset.pattern.permute.xlu0 11
      %4626 = vperm.xlu0 %4625, %v2770
      %v4627 = vpop.permute.xlu0 %4626
      %4629 = vset.pattern.permute.xlu0 11
      %4630 = vperm.xlu0 %4629, %v2771
      %v4631 = vpop.permute.xlu0 %4630
      %4633 = vset.pattern.permute.xlu0 11
      %4634 = vperm.xlu0 %4633, %v2772
      %v4635 = vpop.permute.xlu0 %4634
      %4637 = vset.pattern.permute.xlu0 11
      %4638 = vperm.xlu0 %4637, %v2773
      %v4639 = vpop.permute.xlu0 %4638
      %4641 = vset.pattern.permute.xlu0 11
      %4642 = vperm.xlu0 %4641, %v2774
      %v4643 = vpop.permute.xlu0 %4642
      %4645 = vset.pattern.permute.xlu0 11
      %4646 = vperm.xlu0 %4645, %v2775
      %v4647 = vpop.permute.xlu0 %4646
      %4649 = vset.pattern.permute.xlu0 11
      %4650 = vperm.xlu0 %4649, %v2776
      %v4651 = vpop.permute.xlu0 %4650
      %v4653 = vmul.f32 %v4591, %v4477
      %v4654 = vmul.f32 %v4595, %v4478
      %v4655 = vmul.f32 %v4599, %v4479
      %v4656 = vmul.f32 %v4603, %v4480
      %v4657 = vmul.f32 %v4607, %v4481
      %v4658 = vmul.f32 %v4611, %v4482
      %v4659 = vmul.f32 %v4615, %v4483
      %v4660 = vmul.f32 %v4619, %v4484
      %v4661 = vmul.f32 %v4623, %v4485
      %v4662 = vmul.f32 %v4627, %v4486
      %v4663 = vmul.f32 %v4631, %v4487
      %v4664 = vmul.f32 %v4635, %v4488
      %v4665 = vmul.f32 %v4639, %v4489
      %v4666 = vmul.f32 %v4643, %v4490
      %v4667 = vmul.f32 %v4647, %v4491
      %v4668 = vmul.f32 %v4651, %v4492
      %v4669 = vadd.f32 %v4165, %v4653
      %v4670 = vadd.f32 %v4166, %v4654
      %v4671 = vadd.f32 %v4167, %v4655
      %v4672 = vadd.f32 %v4168, %v4656
      %v4673 = vadd.f32 %v4169, %v4657
      %v4674 = vadd.f32 %v4170, %v4658
      %v4675 = vadd.f32 %v4171, %v4659
      %v4676 = vadd.f32 %v4172, %v4660
      %v4677 = vadd.f32 %v4173, %v4661
      %v4678 = vadd.f32 %v4174, %v4662
      %v4679 = vadd.f32 %v4175, %v4663
      %v4680 = vadd.f32 %v4176, %v4664
      %v4681 = vadd.f32 %v4177, %v4665
      %v4682 = vadd.f32 %v4178, %v4666
      %v4683 = vadd.f32 %v4179, %v4667
      %v4684 = vadd.f32 %v4180, %v4668
      %4685 = vset.pattern.permute.xlu0 20
      %4686 = vperm.xlu0 %4685, %v3002
      %v4687 = vpop.permute.xlu0 %4686
      %4689 = vset.pattern.permute.xlu0 20
      %4690 = vperm.xlu0 %4689, %v3003
      %v4691 = vpop.permute.xlu0 %4690
      %4693 = vset.pattern.permute.xlu0 20
      %4694 = vperm.xlu0 %4693, %v3004
      %v4695 = vpop.permute.xlu0 %4694
      %4697 = vset.pattern.permute.xlu0 20
      %4698 = vperm.xlu0 %4697, %v3005
      %v4699 = vpop.permute.xlu0 %4698
      %4701 = vset.pattern.permute.xlu0 20
      %4702 = vperm.xlu0 %4701, %v3006
      %v4703 = vpop.permute.xlu0 %4702
      %4705 = vset.pattern.permute.xlu0 20
      %4706 = vperm.xlu0 %4705, %v3007
      %v4707 = vpop.permute.xlu0 %4706
      %4709 = vset.pattern.permute.xlu0 20
      %4710 = vperm.xlu0 %4709, %v3008
      %v4711 = vpop.permute.xlu0 %4710
      %4713 = vset.pattern.permute.xlu0 20
      %4714 = vperm.xlu0 %4713, %v3009
      %v4715 = vpop.permute.xlu0 %4714
      %4717 = vset.pattern.permute.xlu0 20
      %4718 = vperm.xlu0 %4717, %v3010
      %v4719 = vpop.permute.xlu0 %4718
      %4721 = vset.pattern.permute.xlu0 20
      %4722 = vperm.xlu0 %4721, %v3011
      %v4723 = vpop.permute.xlu0 %4722
      %4725 = vset.pattern.permute.xlu0 20
      %4726 = vperm.xlu0 %4725, %v3012
      %v4727 = vpop.permute.xlu0 %4726
      %4729 = vset.pattern.permute.xlu0 20
      %4730 = vperm.xlu0 %4729, %v3013
      %v4731 = vpop.permute.xlu0 %4730
      %4733 = vset.pattern.permute.xlu0 20
      %4734 = vperm.xlu0 %4733, %v3014
      %v4735 = vpop.permute.xlu0 %4734
      %4737 = vset.pattern.permute.xlu0 20
      %4738 = vperm.xlu0 %4737, %v3015
      %v4739 = vpop.permute.xlu0 %4738
      %4741 = vset.pattern.permute.xlu0 20
      %4742 = vperm.xlu0 %4741, %v3016
      %v4743 = vpop.permute.xlu0 %4742
      %4745 = vset.pattern.permute.xlu0 20
      %4746 = vperm.xlu0 %4745, %v3017
      %v4747 = vpop.permute.xlu0 %4746
      %v4749 = vmul.f32 %v4687, %v4477
      %v4750 = vmul.f32 %v4691, %v4478
      %v4751 = vmul.f32 %v4695, %v4479
      %v4752 = vmul.f32 %v4699, %v4480
      %v4753 = vmul.f32 %v4703, %v4481
      %v4754 = vmul.f32 %v4707, %v4482
      %v4755 = vmul.f32 %v4711, %v4483
      %v4756 = vmul.f32 %v4715, %v4484
      %v4757 = vmul.f32 %v4719, %v4485
      %v4758 = vmul.f32 %v4723, %v4486
      %v4759 = vmul.f32 %v4727, %v4487
      %v4760 = vmul.f32 %v4731, %v4488
      %v4761 = vmul.f32 %v4735, %v4489
      %v4762 = vmul.f32 %v4739, %v4490
      %v4763 = vmul.f32 %v4743, %v4491
      %v4764 = vmul.f32 %v4747, %v4492
      %v4765 = vadd.f32 %v4261, %v4749
      %v4766 = vadd.f32 %v4262, %v4750
      %v4767 = vadd.f32 %v4263, %v4751
      %v4768 = vadd.f32 %v4264, %v4752
      %v4769 = vadd.f32 %v4265, %v4753
      %v4770 = vadd.f32 %v4266, %v4754
      %v4771 = vadd.f32 %v4267, %v4755
      %v4772 = vadd.f32 %v4268, %v4756
      %v4773 = vadd.f32 %v4269, %v4757
      %v4774 = vadd.f32 %v4270, %v4758
      %v4775 = vadd.f32 %v4271, %v4759
      %v4776 = vadd.f32 %v4272, %v4760
      %v4777 = vadd.f32 %v4273, %v4761
      %v4778 = vadd.f32 %v4274, %v4762
      %v4779 = vadd.f32 %v4275, %v4763
      %v4780 = vadd.f32 %v4276, %v4764
      %4781 = vset.pattern.permute.xlu0 29
      %4782 = vperm.xlu0 %4781, %v3243
      %v4783 = vpop.permute.xlu0 %4782
      %4785 = vset.pattern.permute.xlu0 29
      %4786 = vperm.xlu0 %4785, %v3244
      %v4787 = vpop.permute.xlu0 %4786
      %4789 = vset.pattern.permute.xlu0 29
      %4790 = vperm.xlu0 %4789, %v3245
      %v4791 = vpop.permute.xlu0 %4790
      %4793 = vset.pattern.permute.xlu0 29
      %4794 = vperm.xlu0 %4793, %v3246
      %v4795 = vpop.permute.xlu0 %4794
      %4797 = vset.pattern.permute.xlu0 29
      %4798 = vperm.xlu0 %4797, %v3247
      %v4799 = vpop.permute.xlu0 %4798
      %4801 = vset.pattern.permute.xlu0 29
      %4802 = vperm.xlu0 %4801, %v3248
      %v4803 = vpop.permute.xlu0 %4802
      %4805 = vset.pattern.permute.xlu0 29
      %4806 = vperm.xlu0 %4805, %v3249
      %v4807 = vpop.permute.xlu0 %4806
      %4809 = vset.pattern.permute.xlu0 29
      %4810 = vperm.xlu0 %4809, %v3250
      %v4811 = vpop.permute.xlu0 %4810
      %4813 = vset.pattern.permute.xlu0 29
      %4814 = vperm.xlu0 %4813, %v3251
      %v4815 = vpop.permute.xlu0 %4814
      %4817 = vset.pattern.permute.xlu0 29
      %4818 = vperm.xlu0 %4817, %v3252
      %v4819 = vpop.permute.xlu0 %4818
      %4821 = vset.pattern.permute.xlu0 29
      %4822 = vperm.xlu0 %4821, %v3253
      %v4823 = vpop.permute.xlu0 %4822
      %4825 = vset.pattern.permute.xlu0 29
      %4826 = vperm.xlu0 %4825, %v3254
      %v4827 = vpop.permute.xlu0 %4826
      %4829 = vset.pattern.permute.xlu0 29
      %4830 = vperm.xlu0 %4829, %v3255
      %v4831 = vpop.permute.xlu0 %4830
      %4833 = vset.pattern.permute.xlu0 29
      %4834 = vperm.xlu0 %4833, %v3256
      %v4835 = vpop.permute.xlu0 %4834
      %4837 = vset.pattern.permute.xlu0 29
      %4838 = vperm.xlu0 %4837, %v3257
      %v4839 = vpop.permute.xlu0 %4838
      %4841 = vset.pattern.permute.xlu0 29
      %4842 = vperm.xlu0 %4841, %v3258
      %v4843 = vpop.permute.xlu0 %4842
      %v4845 = vmul.f32 %v4783, %v4477
      %v4846 = vmul.f32 %v4787, %v4478
      %v4847 = vmul.f32 %v4791, %v4479
      %v4848 = vmul.f32 %v4795, %v4480
      %v4849 = vmul.f32 %v4799, %v4481
      %v4850 = vmul.f32 %v4803, %v4482
      %v4851 = vmul.f32 %v4807, %v4483
      %v4852 = vmul.f32 %v4811, %v4484
      %v4853 = vmul.f32 %v4815, %v4485
      %v4854 = vmul.f32 %v4819, %v4486
      %v4855 = vmul.f32 %v4823, %v4487
      %v4856 = vmul.f32 %v4827, %v4488
      %v4857 = vmul.f32 %v4831, %v4489
      %v4858 = vmul.f32 %v4835, %v4490
      %v4859 = vmul.f32 %v4839, %v4491
      %v4860 = vmul.f32 %v4843, %v4492
      %v4861 = vadd.f32 %v4357, %v4845
      %v4862 = vadd.f32 %v4358, %v4846
      %v4863 = vadd.f32 %v4359, %v4847
      %v4864 = vadd.f32 %v4360, %v4848
      %v4865 = vadd.f32 %v4361, %v4849
      %v4866 = vadd.f32 %v4362, %v4850
      %v4867 = vadd.f32 %v4363, %v4851
      %v4868 = vadd.f32 %v4364, %v4852
      %v4869 = vadd.f32 %v4365, %v4853
      %v4870 = vadd.f32 %v4366, %v4854
      %v4871 = vadd.f32 %v4367, %v4855
      %v4872 = vadd.f32 %v4368, %v4856
      %v4873 = vadd.f32 %v4369, %v4857
      %v4874 = vadd.f32 %v4370, %v4858
      %v4875 = vadd.f32 %v4371, %v4859
      %v4876 = vadd.f32 %v4372, %v4860
      %s4877 = smul.addr %s946, 4
      %s4878 = scalar_lea.vmem %s285, %s4877
      %v4879 = vld [vmem:[%s4878] sm:$0xf]
      %v4880 = vld [vmem:[%s4878 + $0x4] sm:$0xf]
      %v4881 = vld [vmem:[%s4878 + $0xc] sm:$0xf]
      %v4882 = vld [vmem:[%s4878 + $0x10] sm:$0xf]
      %v4883 = vld [vmem:[%s4878 + $0x18] sm:$0xf]
      %v4884 = vld [vmem:[%s4878 + $0x1c] sm:$0xf]
      %v4885 = vld [vmem:[%s4878 + $0x24] sm:$0xf]
      %v4886 = vld [vmem:[%s4878 + $0x28] sm:$0xf]
      %v4887 = vld [vmem:[%s4878 + $0x30] sm:$0xf]
      %v4888 = vld [vmem:[%s4878 + $0x34] sm:$0xf]
      %v4889 = vld [vmem:[%s4878 + $0x3c] sm:$0xf]
      %v4890 = vld [vmem:[%s4878 + $0x40] sm:$0xf]
      %v4891 = vld [vmem:[%s4878 + $0x48] sm:$0xf]
      %v4892 = vld [vmem:[%s4878 + $0x4c] sm:$0xf]
      %v4893 = vld [vmem:[%s4878 + $0x54] sm:$0xf]
      %v4894 = vld [vmem:[%s4878 + $0x58] sm:$0xf]
      %v4895 = vunpack.c.l.bf16 %v4879
      %v4896 = vunpack.c.l.bf16 %v4880
      %v4897 = vunpack.c.l.bf16 %v4881
      %v4898 = vunpack.c.l.bf16 %v4882
      %v4899 = vunpack.c.l.bf16 %v4883
      %v4900 = vunpack.c.l.bf16 %v4884
      %v4901 = vunpack.c.l.bf16 %v4885
      %v4902 = vunpack.c.l.bf16 %v4886
      %v4903 = vunpack.c.l.bf16 %v4887
      %v4904 = vunpack.c.l.bf16 %v4888
      %v4905 = vunpack.c.l.bf16 %v4889
      %v4906 = vunpack.c.l.bf16 %v4890
      %v4907 = vunpack.c.l.bf16 %v4891
      %v4908 = vunpack.c.l.bf16 %v4892
      %v4909 = vunpack.c.l.bf16 %v4893
      %v4910 = vunpack.c.l.bf16 %v4894
      %4911 = vset.pattern.permute.xlu0 3
      %4912 = vperm.xlu0 %4911, %v2520
      %v4913 = vpop.permute.xlu0 %4912
      %4915 = vset.pattern.permute.xlu0 3
      %4916 = vperm.xlu0 %4915, %v2521
      %v4917 = vpop.permute.xlu0 %4916
      %4919 = vset.pattern.permute.xlu0 3
      %4920 = vperm.xlu0 %4919, %v2522
      %v4921 = vpop.permute.xlu0 %4920
      %4923 = vset.pattern.permute.xlu0 3
      %4924 = vperm.xlu0 %4923, %v2523
      %v4925 = vpop.permute.xlu0 %4924
      %4927 = vset.pattern.permute.xlu0 3
      %4928 = vperm.xlu0 %4927, %v2524
      %v4929 = vpop.permute.xlu0 %4928
      %4931 = vset.pattern.permute.xlu0 3
      %4932 = vperm.xlu0 %4931, %v2525
      %v4933 = vpop.permute.xlu0 %4932
      %4935 = vset.pattern.permute.xlu0 3
      %4936 = vperm.xlu0 %4935, %v2526
      %v4937 = vpop.permute.xlu0 %4936
      %4939 = vset.pattern.permute.xlu0 3
      %4940 = vperm.xlu0 %4939, %v2527
      %v4941 = vpop.permute.xlu0 %4940
      %4943 = vset.pattern.permute.xlu0 3
      %4944 = vperm.xlu0 %4943, %v2528
      %v4945 = vpop.permute.xlu0 %4944
      %4947 = vset.pattern.permute.xlu0 3
      %4948 = vperm.xlu0 %4947, %v2529
      %v4949 = vpop.permute.xlu0 %4948
      %4951 = vset.pattern.permute.xlu0 3
      %4952 = vperm.xlu0 %4951, %v2530
      %v4953 = vpop.permute.xlu0 %4952
      %4955 = vset.pattern.permute.xlu0 3
      %4956 = vperm.xlu0 %4955, %v2531
      %v4957 = vpop.permute.xlu0 %4956
      %4959 = vset.pattern.permute.xlu0 3
      %4960 = vperm.xlu0 %4959, %v2532
      %v4961 = vpop.permute.xlu0 %4960
      %4963 = vset.pattern.permute.xlu0 3
      %4964 = vperm.xlu0 %4963, %v2533
      %v4965 = vpop.permute.xlu0 %4964
      %4967 = vset.pattern.permute.xlu0 3
      %4968 = vperm.xlu0 %4967, %v2534
      %v4969 = vpop.permute.xlu0 %4968
      %4971 = vset.pattern.permute.xlu0 3
      %4972 = vperm.xlu0 %4971, %v2535
      %v4973 = vpop.permute.xlu0 %4972
      %v4975 = vmul.f32 %v4913, %v4895
      %v4976 = vmul.f32 %v4917, %v4896
      %v4977 = vmul.f32 %v4921, %v4897
      %v4978 = vmul.f32 %v4925, %v4898
      %v4979 = vmul.f32 %v4929, %v4899
      %v4980 = vmul.f32 %v4933, %v4900
      %v4981 = vmul.f32 %v4937, %v4901
      %v4982 = vmul.f32 %v4941, %v4902
      %v4983 = vmul.f32 %v4945, %v4903
      %v4984 = vmul.f32 %v4949, %v4904
      %v4985 = vmul.f32 %v4953, %v4905
      %v4986 = vmul.f32 %v4957, %v4906
      %v4987 = vmul.f32 %v4961, %v4907
      %v4988 = vmul.f32 %v4965, %v4908
      %v4989 = vmul.f32 %v4969, %v4909
      %v4990 = vmul.f32 %v4973, %v4910
      %v4991 = vadd.f32 %v4573, %v4975
      %v4992 = vadd.f32 %v4574, %v4976
      %v4993 = vadd.f32 %v4575, %v4977
      %v4994 = vadd.f32 %v4576, %v4978
      %v4995 = vadd.f32 %v4577, %v4979
      %v4996 = vadd.f32 %v4578, %v4980
      %v4997 = vadd.f32 %v4579, %v4981
      %v4998 = vadd.f32 %v4580, %v4982
      %v4999 = vadd.f32 %v4581, %v4983
      %v5000 = vadd.f32 %v4582, %v4984
      %v5001 = vadd.f32 %v4583, %v4985
      %v5002 = vadd.f32 %v4584, %v4986
      %v5003 = vadd.f32 %v4585, %v4987
      %v5004 = vadd.f32 %v4586, %v4988
      %v5005 = vadd.f32 %v4587, %v4989
      %v5006 = vadd.f32 %v4588, %v4990
      %5007 = vset.pattern.permute.xlu0 12
      %5008 = vperm.xlu0 %5007, %v2761
      %v5009 = vpop.permute.xlu0 %5008
      %5011 = vset.pattern.permute.xlu0 12
      %5012 = vperm.xlu0 %5011, %v2762
      %v5013 = vpop.permute.xlu0 %5012
      %5015 = vset.pattern.permute.xlu0 12
      %5016 = vperm.xlu0 %5015, %v2763
      %v5017 = vpop.permute.xlu0 %5016
      %5019 = vset.pattern.permute.xlu0 12
      %5020 = vperm.xlu0 %5019, %v2764
      %v5021 = vpop.permute.xlu0 %5020
      %5023 = vset.pattern.permute.xlu0 12
      %5024 = vperm.xlu0 %5023, %v2765
      %v5025 = vpop.permute.xlu0 %5024
      %5027 = vset.pattern.permute.xlu0 12
      %5028 = vperm.xlu0 %5027, %v2766
      %v5029 = vpop.permute.xlu0 %5028
      %5031 = vset.pattern.permute.xlu0 12
      %5032 = vperm.xlu0 %5031, %v2767
      %v5033 = vpop.permute.xlu0 %5032
      %5035 = vset.pattern.permute.xlu0 12
      %5036 = vperm.xlu0 %5035, %v2768
      %v5037 = vpop.permute.xlu0 %5036
      %5039 = vset.pattern.permute.xlu0 12
      %5040 = vperm.xlu0 %5039, %v2769
      %v5041 = vpop.permute.xlu0 %5040
      %5043 = vset.pattern.permute.xlu0 12
      %5044 = vperm.xlu0 %5043, %v2770
      %v5045 = vpop.permute.xlu0 %5044
      %5047 = vset.pattern.permute.xlu0 12
      %5048 = vperm.xlu0 %5047, %v2771
      %v5049 = vpop.permute.xlu0 %5048
      %5051 = vset.pattern.permute.xlu0 12
      %5052 = vperm.xlu0 %5051, %v2772
      %v5053 = vpop.permute.xlu0 %5052
      %5055 = vset.pattern.permute.xlu0 12
      %5056 = vperm.xlu0 %5055, %v2773
      %v5057 = vpop.permute.xlu0 %5056
      %5059 = vset.pattern.permute.xlu0 12
      %5060 = vperm.xlu0 %5059, %v2774
      %v5061 = vpop.permute.xlu0 %5060
      %5063 = vset.pattern.permute.xlu0 12
      %5064 = vperm.xlu0 %5063, %v2775
      %v5065 = vpop.permute.xlu0 %5064
      %5067 = vset.pattern.permute.xlu0 12
      %5068 = vperm.xlu0 %5067, %v2776
      %v5069 = vpop.permute.xlu0 %5068
      %v5071 = vmul.f32 %v5009, %v4895
      %v5072 = vmul.f32 %v5013, %v4896
      %v5073 = vmul.f32 %v5017, %v4897
      %v5074 = vmul.f32 %v5021, %v4898
      %v5075 = vmul.f32 %v5025, %v4899
      %v5076 = vmul.f32 %v5029, %v4900
      %v5077 = vmul.f32 %v5033, %v4901
      %v5078 = vmul.f32 %v5037, %v4902
      %v5079 = vmul.f32 %v5041, %v4903
      %v5080 = vmul.f32 %v5045, %v4904
      %v5081 = vmul.f32 %v5049, %v4905
      %v5082 = vmul.f32 %v5053, %v4906
      %v5083 = vmul.f32 %v5057, %v4907
      %v5084 = vmul.f32 %v5061, %v4908
      %v5085 = vmul.f32 %v5065, %v4909
      %v5086 = vmul.f32 %v5069, %v4910
      %v5087 = vadd.f32 %v4669, %v5071
      %v5088 = vadd.f32 %v4670, %v5072
      %v5089 = vadd.f32 %v4671, %v5073
      %v5090 = vadd.f32 %v4672, %v5074
      %v5091 = vadd.f32 %v4673, %v5075
      %v5092 = vadd.f32 %v4674, %v5076
      %v5093 = vadd.f32 %v4675, %v5077
      %v5094 = vadd.f32 %v4676, %v5078
      %v5095 = vadd.f32 %v4677, %v5079
      %v5096 = vadd.f32 %v4678, %v5080
      %v5097 = vadd.f32 %v4679, %v5081
      %v5098 = vadd.f32 %v4680, %v5082
      %v5099 = vadd.f32 %v4681, %v5083
      %v5100 = vadd.f32 %v4682, %v5084
      %v5101 = vadd.f32 %v4683, %v5085
      %v5102 = vadd.f32 %v4684, %v5086
      %5103 = vset.pattern.permute.xlu0 21
      %5104 = vperm.xlu0 %5103, %v3002
      %v5105 = vpop.permute.xlu0 %5104
      %5107 = vset.pattern.permute.xlu0 21
      %5108 = vperm.xlu0 %5107, %v3003
      %v5109 = vpop.permute.xlu0 %5108
      %5111 = vset.pattern.permute.xlu0 21
      %5112 = vperm.xlu0 %5111, %v3004
      %v5113 = vpop.permute.xlu0 %5112
      %5115 = vset.pattern.permute.xlu0 21
      %5116 = vperm.xlu0 %5115, %v3005
      %v5117 = vpop.permute.xlu0 %5116
      %5119 = vset.pattern.permute.xlu0 21
      %5120 = vperm.xlu0 %5119, %v3006
      %v5121 = vpop.permute.xlu0 %5120
      %5123 = vset.pattern.permute.xlu0 21
      %5124 = vperm.xlu0 %5123, %v3007
      %v5125 = vpop.permute.xlu0 %5124
      %5127 = vset.pattern.permute.xlu0 21
      %5128 = vperm.xlu0 %5127, %v3008
      %v5129 = vpop.permute.xlu0 %5128
      %5131 = vset.pattern.permute.xlu0 21
      %5132 = vperm.xlu0 %5131, %v3009
      %v5133 = vpop.permute.xlu0 %5132
      %5135 = vset.pattern.permute.xlu0 21
      %5136 = vperm.xlu0 %5135, %v3010
      %v5137 = vpop.permute.xlu0 %5136
      %5139 = vset.pattern.permute.xlu0 21
      %5140 = vperm.xlu0 %5139, %v3011
      %v5141 = vpop.permute.xlu0 %5140
      %5143 = vset.pattern.permute.xlu0 21
      %5144 = vperm.xlu0 %5143, %v3012
      %v5145 = vpop.permute.xlu0 %5144
      %5147 = vset.pattern.permute.xlu0 21
      %5148 = vperm.xlu0 %5147, %v3013
      %v5149 = vpop.permute.xlu0 %5148
      %5151 = vset.pattern.permute.xlu0 21
      %5152 = vperm.xlu0 %5151, %v3014
      %v5153 = vpop.permute.xlu0 %5152
      %5155 = vset.pattern.permute.xlu0 21
      %5156 = vperm.xlu0 %5155, %v3015
      %v5157 = vpop.permute.xlu0 %5156
      %5159 = vset.pattern.permute.xlu0 21
      %5160 = vperm.xlu0 %5159, %v3016
      %v5161 = vpop.permute.xlu0 %5160
      %5163 = vset.pattern.permute.xlu0 21
      %5164 = vperm.xlu0 %5163, %v3017
      %v5165 = vpop.permute.xlu0 %5164
      %v5167 = vmul.f32 %v5105, %v4895
      %v5168 = vmul.f32 %v5109, %v4896
      %v5169 = vmul.f32 %v5113, %v4897
      %v5170 = vmul.f32 %v5117, %v4898
      %v5171 = vmul.f32 %v5121, %v4899
      %v5172 = vmul.f32 %v5125, %v4900
      %v5173 = vmul.f32 %v5129, %v4901
      %v5174 = vmul.f32 %v5133, %v4902
      %v5175 = vmul.f32 %v5137, %v4903
      %v5176 = vmul.f32 %v5141, %v4904
      %v5177 = vmul.f32 %v5145, %v4905
      %v5178 = vmul.f32 %v5149, %v4906
      %v5179 = vmul.f32 %v5153, %v4907
      %v5180 = vmul.f32 %v5157, %v4908
      %v5181 = vmul.f32 %v5161, %v4909
      %v5182 = vmul.f32 %v5165, %v4910
      %v5183 = vadd.f32 %v4765, %v5167
      %v5184 = vadd.f32 %v4766, %v5168
      %v5185 = vadd.f32 %v4767, %v5169
      %v5186 = vadd.f32 %v4768, %v5170
      %v5187 = vadd.f32 %v4769, %v5171
      %v5188 = vadd.f32 %v4770, %v5172
      %v5189 = vadd.f32 %v4771, %v5173
      %v5190 = vadd.f32 %v4772, %v5174
      %v5191 = vadd.f32 %v4773, %v5175
      %v5192 = vadd.f32 %v4774, %v5176
      %v5193 = vadd.f32 %v4775, %v5177
      %v5194 = vadd.f32 %v4776, %v5178
      %v5195 = vadd.f32 %v4777, %v5179
      %v5196 = vadd.f32 %v4778, %v5180
      %v5197 = vadd.f32 %v4779, %v5181
      %v5198 = vadd.f32 %v4780, %v5182
      %5199 = vset.pattern.permute.xlu0 30
      %5200 = vperm.xlu0 %5199, %v3243
      %v5201 = vpop.permute.xlu0 %5200
      %5203 = vset.pattern.permute.xlu0 30
      %5204 = vperm.xlu0 %5203, %v3244
      %v5205 = vpop.permute.xlu0 %5204
      %5207 = vset.pattern.permute.xlu0 30
      %5208 = vperm.xlu0 %5207, %v3245
      %v5209 = vpop.permute.xlu0 %5208
      %5211 = vset.pattern.permute.xlu0 30
      %5212 = vperm.xlu0 %5211, %v3246
      %v5213 = vpop.permute.xlu0 %5212
      %5215 = vset.pattern.permute.xlu0 30
      %5216 = vperm.xlu0 %5215, %v3247
      %v5217 = vpop.permute.xlu0 %5216
      %5219 = vset.pattern.permute.xlu0 30
      %5220 = vperm.xlu0 %5219, %v3248
      %v5221 = vpop.permute.xlu0 %5220
      %5223 = vset.pattern.permute.xlu0 30
      %5224 = vperm.xlu0 %5223, %v3249
      %v5225 = vpop.permute.xlu0 %5224
      %5227 = vset.pattern.permute.xlu0 30
      %5228 = vperm.xlu0 %5227, %v3250
      %v5229 = vpop.permute.xlu0 %5228
      %5231 = vset.pattern.permute.xlu0 30
      %5232 = vperm.xlu0 %5231, %v3251
      %v5233 = vpop.permute.xlu0 %5232
      %5235 = vset.pattern.permute.xlu0 30
      %5236 = vperm.xlu0 %5235, %v3252
      %v5237 = vpop.permute.xlu0 %5236
      %5239 = vset.pattern.permute.xlu0 30
      %5240 = vperm.xlu0 %5239, %v3253
      %v5241 = vpop.permute.xlu0 %5240
      %5243 = vset.pattern.permute.xlu0 30
      %5244 = vperm.xlu0 %5243, %v3254
      %v5245 = vpop.permute.xlu0 %5244
      %5247 = vset.pattern.permute.xlu0 30
      %5248 = vperm.xlu0 %5247, %v3255
      %v5249 = vpop.permute.xlu0 %5248
      %5251 = vset.pattern.permute.xlu0 30
      %5252 = vperm.xlu0 %5251, %v3256
      %v5253 = vpop.permute.xlu0 %5252
      %5255 = vset.pattern.permute.xlu0 30
      %5256 = vperm.xlu0 %5255, %v3257
      %v5257 = vpop.permute.xlu0 %5256
      %5259 = vset.pattern.permute.xlu0 30
      %5260 = vperm.xlu0 %5259, %v3258
      %v5261 = vpop.permute.xlu0 %5260
      %v5263 = vmul.f32 %v5201, %v4895
      %v5264 = vmul.f32 %v5205, %v4896
      %v5265 = vmul.f32 %v5209, %v4897
      %v5266 = vmul.f32 %v5213, %v4898
      %v5267 = vmul.f32 %v5217, %v4899
      %v5268 = vmul.f32 %v5221, %v4900
      %v5269 = vmul.f32 %v5225, %v4901
      %v5270 = vmul.f32 %v5229, %v4902
      %v5271 = vmul.f32 %v5233, %v4903
      %v5272 = vmul.f32 %v5237, %v4904
      %v5273 = vmul.f32 %v5241, %v4905
      %v5274 = vmul.f32 %v5245, %v4906
      %v5275 = vmul.f32 %v5249, %v4907
      %v5276 = vmul.f32 %v5253, %v4908
      %v5277 = vmul.f32 %v5257, %v4909
      %v5278 = vmul.f32 %v5261, %v4910
      %v5279 = vadd.f32 %v4861, %v5263
      %v5280 = vadd.f32 %v4862, %v5264
      %v5281 = vadd.f32 %v4863, %v5265
      %v5282 = vadd.f32 %v4864, %v5266
      %v5283 = vadd.f32 %v4865, %v5267
      %v5284 = vadd.f32 %v4866, %v5268
      %v5285 = vadd.f32 %v4867, %v5269
      %v5286 = vadd.f32 %v4868, %v5270
      %v5287 = vadd.f32 %v4869, %v5271
      %v5288 = vadd.f32 %v4870, %v5272
      %v5289 = vadd.f32 %v4871, %v5273
      %v5290 = vadd.f32 %v4872, %v5274
      %v5291 = vadd.f32 %v4873, %v5275
      %v5292 = vadd.f32 %v4874, %v5276
      %v5293 = vadd.f32 %v4875, %v5277
      %v5294 = vadd.f32 %v4876, %v5278
      %v5295 = vld [vmem:[%s4878] sm:$0xf]
      %v5296 = vld [vmem:[%s4878 + $0x4] sm:$0xf]
      %v5297 = vld [vmem:[%s4878 + $0x8] sm:$0x1]
      %v5298 = vld [vmem:[%s4878 + $0xc] sm:$0xf]
      %v5299 = vld [vmem:[%s4878 + $0x10] sm:$0xf]
      %v5300 = vld [vmem:[%s4878 + $0x14] sm:$0x1]
      %v5301 = vld [vmem:[%s4878 + $0x18] sm:$0xf]
      %v5302 = vld [vmem:[%s4878 + $0x1c] sm:$0xf]
      %v5303 = vld [vmem:[%s4878 + $0x20] sm:$0x1]
      %v5304 = vld [vmem:[%s4878 + $0x24] sm:$0xf]
      %v5305 = vld [vmem:[%s4878 + $0x28] sm:$0xf]
      %v5306 = vld [vmem:[%s4878 + $0x2c] sm:$0x1]
      %v5307 = vld [vmem:[%s4878 + $0x30] sm:$0xf]
      %v5308 = vld [vmem:[%s4878 + $0x34] sm:$0xf]
      %v5309 = vld [vmem:[%s4878 + $0x38] sm:$0x1]
      %v5310 = vld [vmem:[%s4878 + $0x3c] sm:$0xf]
      %v5311 = vld [vmem:[%s4878 + $0x40] sm:$0xf]
      %v5312 = vld [vmem:[%s4878 + $0x44] sm:$0x1]
      %v5313 = vld [vmem:[%s4878 + $0x48] sm:$0xf]
      %v5314 = vld [vmem:[%s4878 + $0x4c] sm:$0xf]
      %v5315 = vld [vmem:[%s4878 + $0x50] sm:$0x1]
      %v5316 = vld [vmem:[%s4878 + $0x54] sm:$0xf]
      %v5317 = vld [vmem:[%s4878 + $0x58] sm:$0xf]
      %v5318 = vld [vmem:[%s4878 + $0x5c] sm:$0x1]
      %v5320 = vshrl.u32 %v5295, 16
      %v5322 = vrot.slane %v5320, 4
      %v5323 = vshll.u32 %v5295, 16
      %v5325 = vrot.slane %v5323, 5
      %v5326 = vor.u32 %v5322, %v5325
      %v5327 = vrot.slane %v5326, 4
      %v5329 = vshll.u32 %v5296, 16
      %v5331 = vrot.slane %v5329, 5
      %v5332 = vsel %vm329, %v5327, %v5331
      %v5333 = vshrl.u32 %v5296, 16
      %v5335 = vrot.slane %v5333, 4
      %v5336 = vor.u32 %v5335, %v5331
      %v5337 = vrot.slane %v5336, 4
      %v5339 = vshll.u32 %v5297, 16
      %v5341 = vrot.slane %v5339, 5
      %v5342 = vsel %vm329, %v5337, %v5341
      %v5344 = vshrl.u32 %v5298, 16
      %v5346 = vrot.slane %v5344, 4
      %v5347 = vshll.u32 %v5298, 16
      %v5349 = vrot.slane %v5347, 5
      %v5350 = vor.u32 %v5346, %v5349
      %v5351 = vrot.slane %v5350, 4
      %v5353 = vshll.u32 %v5299, 16
      %v5355 = vrot.slane %v5353, 5
      %v5356 = vsel %vm329, %v5351, %v5355
      %v5357 = vshrl.u32 %v5299, 16
      %v5359 = vrot.slane %v5357, 4
      %v5360 = vor.u32 %v5359, %v5355
      %v5361 = vrot.slane %v5360, 4
      %v5363 = vshll.u32 %v5300, 16
      %v5365 = vrot.slane %v5363, 5
      %v5366 = vsel %vm329, %v5361, %v5365
      %v5368 = vshrl.u32 %v5301, 16
      %v5370 = vrot.slane %v5368, 4
      %v5371 = vshll.u32 %v5301, 16
      %v5373 = vrot.slane %v5371, 5
      %v5374 = vor.u32 %v5370, %v5373
      %v5375 = vrot.slane %v5374, 4
      %v5377 = vshll.u32 %v5302, 16
      %v5379 = vrot.slane %v5377, 5
      %v5380 = vsel %vm329, %v5375, %v5379
      %v5381 = vshrl.u32 %v5302, 16
      %v5383 = vrot.slane %v5381, 4
      %v5384 = vor.u32 %v5383, %v5379
      %v5385 = vrot.slane %v5384, 4
      %v5387 = vshll.u32 %v5303, 16
      %v5389 = vrot.slane %v5387, 5
      %v5390 = vsel %vm329, %v5385, %v5389
      %v5392 = vshrl.u32 %v5304, 16
      %v5394 = vrot.slane %v5392, 4
      %v5395 = vshll.u32 %v5304, 16
      %v5397 = vrot.slane %v5395, 5
      %v5398 = vor.u32 %v5394, %v5397
      %v5399 = vrot.slane %v5398, 4
      %v5401 = vshll.u32 %v5305, 16
      %v5403 = vrot.slane %v5401, 5
      %v5404 = vsel %vm329, %v5399, %v5403
      %v5405 = vshrl.u32 %v5305, 16
      %v5407 = vrot.slane %v5405, 4
      %v5408 = vor.u32 %v5407, %v5403
      %v5409 = vrot.slane %v5408, 4
      %v5411 = vshll.u32 %v5306, 16
      %v5413 = vrot.slane %v5411, 5
      %v5414 = vsel %vm329, %v5409, %v5413
      %v5416 = vshrl.u32 %v5307, 16
      %v5418 = vrot.slane %v5416, 4
      %v5419 = vshll.u32 %v5307, 16
      %v5421 = vrot.slane %v5419, 5
      %v5422 = vor.u32 %v5418, %v5421
      %v5423 = vrot.slane %v5422, 4
      %v5425 = vshll.u32 %v5308, 16
      %v5427 = vrot.slane %v5425, 5
      %v5428 = vsel %vm329, %v5423, %v5427
      %v5429 = vshrl.u32 %v5308, 16
      %v5431 = vrot.slane %v5429, 4
      %v5432 = vor.u32 %v5431, %v5427
      %v5433 = vrot.slane %v5432, 4
      %v5435 = vshll.u32 %v5309, 16
      %v5437 = vrot.slane %v5435, 5
      %v5438 = vsel %vm329, %v5433, %v5437
      %v5440 = vshrl.u32 %v5310, 16
      %v5442 = vrot.slane %v5440, 4
      %v5443 = vshll.u32 %v5310, 16
      %v5445 = vrot.slane %v5443, 5
      %v5446 = vor.u32 %v5442, %v5445
      %v5447 = vrot.slane %v5446, 4
      %v5449 = vshll.u32 %v5311, 16
      %v5451 = vrot.slane %v5449, 5
      %v5452 = vsel %vm329, %v5447, %v5451
      %v5453 = vshrl.u32 %v5311, 16
      %v5455 = vrot.slane %v5453, 4
      %v5456 = vor.u32 %v5455, %v5451
      %v5457 = vrot.slane %v5456, 4
      %v5459 = vshll.u32 %v5312, 16
      %v5461 = vrot.slane %v5459, 5
      %v5462 = vsel %vm329, %v5457, %v5461
      %v5464 = vshrl.u32 %v5313, 16
      %v5466 = vrot.slane %v5464, 4
      %v5467 = vshll.u32 %v5313, 16
      %v5469 = vrot.slane %v5467, 5
      %v5470 = vor.u32 %v5466, %v5469
      %v5471 = vrot.slane %v5470, 4
      %v5473 = vshll.u32 %v5314, 16
      %v5475 = vrot.slane %v5473, 5
      %v5476 = vsel %vm329, %v5471, %v5475
      %v5477 = vshrl.u32 %v5314, 16
      %v5479 = vrot.slane %v5477, 4
      %v5480 = vor.u32 %v5479, %v5475
      %v5481 = vrot.slane %v5480, 4
      %v5483 = vshll.u32 %v5315, 16
      %v5485 = vrot.slane %v5483, 5
      %v5486 = vsel %vm329, %v5481, %v5485
      %v5488 = vshrl.u32 %v5316, 16
      %v5490 = vrot.slane %v5488, 4
      %v5491 = vshll.u32 %v5316, 16
      %v5493 = vrot.slane %v5491, 5
      %v5494 = vor.u32 %v5490, %v5493
      %v5495 = vrot.slane %v5494, 4
      %v5497 = vshll.u32 %v5317, 16
      %v5499 = vrot.slane %v5497, 5
      %v5500 = vsel %vm329, %v5495, %v5499
      %v5501 = vshrl.u32 %v5317, 16
      %v5503 = vrot.slane %v5501, 4
      %v5504 = vor.u32 %v5503, %v5499
      %v5505 = vrot.slane %v5504, 4
      %v5507 = vshll.u32 %v5318, 16
      %v5509 = vrot.slane %v5507, 5
      %v5510 = vsel %vm329, %v5505, %v5509
      %v5527 = vunpack.c.l.bf16 %v5332
      %v5528 = vunpack.c.l.bf16 %v5342
      %v5529 = vunpack.c.l.bf16 %v5356
      %v5530 = vunpack.c.l.bf16 %v5366
      %v5531 = vunpack.c.l.bf16 %v5380
      %v5532 = vunpack.c.l.bf16 %v5390
      %v5533 = vunpack.c.l.bf16 %v5404
      %v5534 = vunpack.c.l.bf16 %v5414
      %v5535 = vunpack.c.l.bf16 %v5428
      %v5536 = vunpack.c.l.bf16 %v5438
      %v5537 = vunpack.c.l.bf16 %v5452
      %v5538 = vunpack.c.l.bf16 %v5462
      %v5539 = vunpack.c.l.bf16 %v5476
      %v5540 = vunpack.c.l.bf16 %v5486
      %v5541 = vunpack.c.l.bf16 %v5500
      %v5542 = vunpack.c.l.bf16 %v5510
      %5543 = vset.pattern.permute.xlu0 4
      %5544 = vperm.xlu0 %5543, %v2520
      %v5545 = vpop.permute.xlu0 %5544
      %5547 = vset.pattern.permute.xlu0 4
      %5548 = vperm.xlu0 %5547, %v2521
      %v5549 = vpop.permute.xlu0 %5548
      %5551 = vset.pattern.permute.xlu0 4
      %5552 = vperm.xlu0 %5551, %v2522
      %v5553 = vpop.permute.xlu0 %5552
      %5555 = vset.pattern.permute.xlu0 4
      %5556 = vperm.xlu0 %5555, %v2523
      %v5557 = vpop.permute.xlu0 %5556
      %5559 = vset.pattern.permute.xlu0 4
      %5560 = vperm.xlu0 %5559, %v2524
      %v5561 = vpop.permute.xlu0 %5560
      %5563 = vset.pattern.permute.xlu0 4
      %5564 = vperm.xlu0 %5563, %v2525
      %v5565 = vpop.permute.xlu0 %5564
      %5567 = vset.pattern.permute.xlu0 4
      %5568 = vperm.xlu0 %5567, %v2526
      %v5569 = vpop.permute.xlu0 %5568
      %5571 = vset.pattern.permute.xlu0 4
      %5572 = vperm.xlu0 %5571, %v2527
      %v5573 = vpop.permute.xlu0 %5572
      %5575 = vset.pattern.permute.xlu0 4
      %5576 = vperm.xlu0 %5575, %v2528
      %v5577 = vpop.permute.xlu0 %5576
      %5579 = vset.pattern.permute.xlu0 4
      %5580 = vperm.xlu0 %5579, %v2529
      %v5581 = vpop.permute.xlu0 %5580
      %5583 = vset.pattern.permute.xlu0 4
      %5584 = vperm.xlu0 %5583, %v2530
      %v5585 = vpop.permute.xlu0 %5584
      %5587 = vset.pattern.permute.xlu0 4
      %5588 = vperm.xlu0 %5587, %v2531
      %v5589 = vpop.permute.xlu0 %5588
      %5591 = vset.pattern.permute.xlu0 4
      %5592 = vperm.xlu0 %5591, %v2532
      %v5593 = vpop.permute.xlu0 %5592
      %5595 = vset.pattern.permute.xlu0 4
      %5596 = vperm.xlu0 %5595, %v2533
      %v5597 = vpop.permute.xlu0 %5596
      %5599 = vset.pattern.permute.xlu0 4
      %5600 = vperm.xlu0 %5599, %v2534
      %v5601 = vpop.permute.xlu0 %5600
      %5603 = vset.pattern.permute.xlu0 4
      %5604 = vperm.xlu0 %5603, %v2535
      %v5605 = vpop.permute.xlu0 %5604
      %v5607 = vmul.f32 %v5545, %v5527
      %v5608 = vmul.f32 %v5549, %v5528
      %v5609 = vmul.f32 %v5553, %v5529
      %v5610 = vmul.f32 %v5557, %v5530
      %v5611 = vmul.f32 %v5561, %v5531
      %v5612 = vmul.f32 %v5565, %v5532
      %v5613 = vmul.f32 %v5569, %v5533
      %v5614 = vmul.f32 %v5573, %v5534
      %v5615 = vmul.f32 %v5577, %v5535
      %v5616 = vmul.f32 %v5581, %v5536
      %v5617 = vmul.f32 %v5585, %v5537
      %v5618 = vmul.f32 %v5589, %v5538
      %v5619 = vmul.f32 %v5593, %v5539
      %v5620 = vmul.f32 %v5597, %v5540
      %v5621 = vmul.f32 %v5601, %v5541
      %v5622 = vmul.f32 %v5605, %v5542
      %v5623 = vadd.f32 %v4991, %v5607
      %v5624 = vadd.f32 %v4992, %v5608
      %v5625 = vadd.f32 %v4993, %v5609
      %v5626 = vadd.f32 %v4994, %v5610
      %v5627 = vadd.f32 %v4995, %v5611
      %v5628 = vadd.f32 %v4996, %v5612
      %v5629 = vadd.f32 %v4997, %v5613
      %v5630 = vadd.f32 %v4998, %v5614
      %v5631 = vadd.f32 %v4999, %v5615
      %v5632 = vadd.f32 %v5000, %v5616
      %v5633 = vadd.f32 %v5001, %v5617
      %v5634 = vadd.f32 %v5002, %v5618
      %v5635 = vadd.f32 %v5003, %v5619
      %v5636 = vadd.f32 %v5004, %v5620
      %v5637 = vadd.f32 %v5005, %v5621
      %v5638 = vadd.f32 %v5006, %v5622
      %5639 = vset.pattern.permute.xlu0 13
      %5640 = vperm.xlu0 %5639, %v2761
      %v5641 = vpop.permute.xlu0 %5640
      %5643 = vset.pattern.permute.xlu0 13
      %5644 = vperm.xlu0 %5643, %v2762
      %v5645 = vpop.permute.xlu0 %5644
      %5647 = vset.pattern.permute.xlu0 13
      %5648 = vperm.xlu0 %5647, %v2763
      %v5649 = vpop.permute.xlu0 %5648
      %5651 = vset.pattern.permute.xlu0 13
      %5652 = vperm.xlu0 %5651, %v2764
      %v5653 = vpop.permute.xlu0 %5652
      %5655 = vset.pattern.permute.xlu0 13
      %5656 = vperm.xlu0 %5655, %v2765
      %v5657 = vpop.permute.xlu0 %5656
      %5659 = vset.pattern.permute.xlu0 13
      %5660 = vperm.xlu0 %5659, %v2766
      %v5661 = vpop.permute.xlu0 %5660
      %5663 = vset.pattern.permute.xlu0 13
      %5664 = vperm.xlu0 %5663, %v2767
      %v5665 = vpop.permute.xlu0 %5664
      %5667 = vset.pattern.permute.xlu0 13
      %5668 = vperm.xlu0 %5667, %v2768
      %v5669 = vpop.permute.xlu0 %5668
      %5671 = vset.pattern.permute.xlu0 13
      %5672 = vperm.xlu0 %5671, %v2769
      %v5673 = vpop.permute.xlu0 %5672
      %5675 = vset.pattern.permute.xlu0 13
      %5676 = vperm.xlu0 %5675, %v2770
      %v5677 = vpop.permute.xlu0 %5676
      %5679 = vset.pattern.permute.xlu0 13
      %5680 = vperm.xlu0 %5679, %v2771
      %v5681 = vpop.permute.xlu0 %5680
      %5683 = vset.pattern.permute.xlu0 13
      %5684 = vperm.xlu0 %5683, %v2772
      %v5685 = vpop.permute.xlu0 %5684
      %5687 = vset.pattern.permute.xlu0 13
      %5688 = vperm.xlu0 %5687, %v2773
      %v5689 = vpop.permute.xlu0 %5688
      %5691 = vset.pattern.permute.xlu0 13
      %5692 = vperm.xlu0 %5691, %v2774
      %v5693 = vpop.permute.xlu0 %5692
      %5695 = vset.pattern.permute.xlu0 13
      %5696 = vperm.xlu0 %5695, %v2775
      %v5697 = vpop.permute.xlu0 %5696
      %5699 = vset.pattern.permute.xlu0 13
      %5700 = vperm.xlu0 %5699, %v2776
      %v5701 = vpop.permute.xlu0 %5700
      %v5703 = vmul.f32 %v5641, %v5527
      %v5704 = vmul.f32 %v5645, %v5528
      %v5705 = vmul.f32 %v5649, %v5529
      %v5706 = vmul.f32 %v5653, %v5530
      %v5707 = vmul.f32 %v5657, %v5531
      %v5708 = vmul.f32 %v5661, %v5532
      %v5709 = vmul.f32 %v5665, %v5533
      %v5710 = vmul.f32 %v5669, %v5534
      %v5711 = vmul.f32 %v5673, %v5535
      %v5712 = vmul.f32 %v5677, %v5536
      %v5713 = vmul.f32 %v5681, %v5537
      %v5714 = vmul.f32 %v5685, %v5538
      %v5715 = vmul.f32 %v5689, %v5539
      %v5716 = vmul.f32 %v5693, %v5540
      %v5717 = vmul.f32 %v5697, %v5541
      %v5718 = vmul.f32 %v5701, %v5542
      %v5719 = vadd.f32 %v5087, %v5703
      %v5720 = vadd.f32 %v5088, %v5704
      %v5721 = vadd.f32 %v5089, %v5705
      %v5722 = vadd.f32 %v5090, %v5706
      %v5723 = vadd.f32 %v5091, %v5707
      %v5724 = vadd.f32 %v5092, %v5708
      %v5725 = vadd.f32 %v5093, %v5709
      %v5726 = vadd.f32 %v5094, %v5710
      %v5727 = vadd.f32 %v5095, %v5711
      %v5728 = vadd.f32 %v5096, %v5712
      %v5729 = vadd.f32 %v5097, %v5713
      %v5730 = vadd.f32 %v5098, %v5714
      %v5731 = vadd.f32 %v5099, %v5715
      %v5732 = vadd.f32 %v5100, %v5716
      %v5733 = vadd.f32 %v5101, %v5717
      %v5734 = vadd.f32 %v5102, %v5718
      %5735 = vset.pattern.permute.xlu0 22
      %5736 = vperm.xlu0 %5735, %v3002
      %v5737 = vpop.permute.xlu0 %5736
      %5739 = vset.pattern.permute.xlu0 22
      %5740 = vperm.xlu0 %5739, %v3003
      %v5741 = vpop.permute.xlu0 %5740
      %5743 = vset.pattern.permute.xlu0 22
      %5744 = vperm.xlu0 %5743, %v3004
      %v5745 = vpop.permute.xlu0 %5744
      %5747 = vset.pattern.permute.xlu0 22
      %5748 = vperm.xlu0 %5747, %v3005
      %v5749 = vpop.permute.xlu0 %5748
      %5751 = vset.pattern.permute.xlu0 22
      %5752 = vperm.xlu0 %5751, %v3006
      %v5753 = vpop.permute.xlu0 %5752
      %5755 = vset.pattern.permute.xlu0 22
      %5756 = vperm.xlu0 %5755, %v3007
      %v5757 = vpop.permute.xlu0 %5756
      %5759 = vset.pattern.permute.xlu0 22
      %5760 = vperm.xlu0 %5759, %v3008
      %v5761 = vpop.permute.xlu0 %5760
      %5763 = vset.pattern.permute.xlu0 22
      %5764 = vperm.xlu0 %5763, %v3009
      %v5765 = vpop.permute.xlu0 %5764
      %5767 = vset.pattern.permute.xlu0 22
      %5768 = vperm.xlu0 %5767, %v3010
      %v5769 = vpop.permute.xlu0 %5768
      %5771 = vset.pattern.permute.xlu0 22
      %5772 = vperm.xlu0 %5771, %v3011
      %v5773 = vpop.permute.xlu0 %5772
      %5775 = vset.pattern.permute.xlu0 22
      %5776 = vperm.xlu0 %5775, %v3012
      %v5777 = vpop.permute.xlu0 %5776
      %5779 = vset.pattern.permute.xlu0 22
      %5780 = vperm.xlu0 %5779, %v3013
      %v5781 = vpop.permute.xlu0 %5780
      %5783 = vset.pattern.permute.xlu0 22
      %5784 = vperm.xlu0 %5783, %v3014
      %v5785 = vpop.permute.xlu0 %5784
      %5787 = vset.pattern.permute.xlu0 22
      %5788 = vperm.xlu0 %5787, %v3015
      %v5789 = vpop.permute.xlu0 %5788
      %5791 = vset.pattern.permute.xlu0 22
      %5792 = vperm.xlu0 %5791, %v3016
      %v5793 = vpop.permute.xlu0 %5792
      %5795 = vset.pattern.permute.xlu0 22
      %5796 = vperm.xlu0 %5795, %v3017
      %v5797 = vpop.permute.xlu0 %5796
      %v5799 = vmul.f32 %v5737, %v5527
      %v5800 = vmul.f32 %v5741, %v5528
      %v5801 = vmul.f32 %v5745, %v5529
      %v5802 = vmul.f32 %v5749, %v5530
      %v5803 = vmul.f32 %v5753, %v5531
      %v5804 = vmul.f32 %v5757, %v5532
      %v5805 = vmul.f32 %v5761, %v5533
      %v5806 = vmul.f32 %v5765, %v5534
      %v5807 = vmul.f32 %v5769, %v5535
      %v5808 = vmul.f32 %v5773, %v5536
      %v5809 = vmul.f32 %v5777, %v5537
      %v5810 = vmul.f32 %v5781, %v5538
      %v5811 = vmul.f32 %v5785, %v5539
      %v5812 = vmul.f32 %v5789, %v5540
      %v5813 = vmul.f32 %v5793, %v5541
      %v5814 = vmul.f32 %v5797, %v5542
      %v5815 = vadd.f32 %v5183, %v5799
      %v5816 = vadd.f32 %v5184, %v5800
      %v5817 = vadd.f32 %v5185, %v5801
      %v5818 = vadd.f32 %v5186, %v5802
      %v5819 = vadd.f32 %v5187, %v5803
      %v5820 = vadd.f32 %v5188, %v5804
      %v5821 = vadd.f32 %v5189, %v5805
      %v5822 = vadd.f32 %v5190, %v5806
      %v5823 = vadd.f32 %v5191, %v5807
      %v5824 = vadd.f32 %v5192, %v5808
      %v5825 = vadd.f32 %v5193, %v5809
      %v5826 = vadd.f32 %v5194, %v5810
      %v5827 = vadd.f32 %v5195, %v5811
      %v5828 = vadd.f32 %v5196, %v5812
      %v5829 = vadd.f32 %v5197, %v5813
      %v5830 = vadd.f32 %v5198, %v5814
      %5831 = vset.pattern.permute.xlu0 31
      %5832 = vperm.xlu0 %5831, %v3243
      %v5833 = vpop.permute.xlu0 %5832
      %5835 = vset.pattern.permute.xlu0 31
      %5836 = vperm.xlu0 %5835, %v3244
      %v5837 = vpop.permute.xlu0 %5836
      %5839 = vset.pattern.permute.xlu0 31
      %5840 = vperm.xlu0 %5839, %v3245
      %v5841 = vpop.permute.xlu0 %5840
      %5843 = vset.pattern.permute.xlu0 31
      %5844 = vperm.xlu0 %5843, %v3246
      %v5845 = vpop.permute.xlu0 %5844
      %5847 = vset.pattern.permute.xlu0 31
      %5848 = vperm.xlu0 %5847, %v3247
      %v5849 = vpop.permute.xlu0 %5848
      %5851 = vset.pattern.permute.xlu0 31
      %5852 = vperm.xlu0 %5851, %v3248
      %v5853 = vpop.permute.xlu0 %5852
      %5855 = vset.pattern.permute.xlu0 31
      %5856 = vperm.xlu0 %5855, %v3249
      %v5857 = vpop.permute.xlu0 %5856
      %5859 = vset.pattern.permute.xlu0 31
      %5860 = vperm.xlu0 %5859, %v3250
      %v5861 = vpop.permute.xlu0 %5860
      %5863 = vset.pattern.permute.xlu0 31
      %5864 = vperm.xlu0 %5863, %v3251
      %v5865 = vpop.permute.xlu0 %5864
      %5867 = vset.pattern.permute.xlu0 31
      %5868 = vperm.xlu0 %5867, %v3252
      %v5869 = vpop.permute.xlu0 %5868
      %5871 = vset.pattern.permute.xlu0 31
      %5872 = vperm.xlu0 %5871, %v3253
      %v5873 = vpop.permute.xlu0 %5872
      %5875 = vset.pattern.permute.xlu0 31
      %5876 = vperm.xlu0 %5875, %v3254
      %v5877 = vpop.permute.xlu0 %5876
      %5879 = vset.pattern.permute.xlu0 31
      %5880 = vperm.xlu0 %5879, %v3255
      %v5881 = vpop.permute.xlu0 %5880
      %5883 = vset.pattern.permute.xlu0 31
      %5884 = vperm.xlu0 %5883, %v3256
      %v5885 = vpop.permute.xlu0 %5884
      %5887 = vset.pattern.permute.xlu0 31
      %5888 = vperm.xlu0 %5887, %v3257
      %v5889 = vpop.permute.xlu0 %5888
      %5891 = vset.pattern.permute.xlu0 31
      %5892 = vperm.xlu0 %5891, %v3258
      %v5893 = vpop.permute.xlu0 %5892
      %v5895 = vmul.f32 %v5833, %v5527
      %v5896 = vmul.f32 %v5837, %v5528
      %v5897 = vmul.f32 %v5841, %v5529
      %v5898 = vmul.f32 %v5845, %v5530
      %v5899 = vmul.f32 %v5849, %v5531
      %v5900 = vmul.f32 %v5853, %v5532
      %v5901 = vmul.f32 %v5857, %v5533
      %v5902 = vmul.f32 %v5861, %v5534
      %v5903 = vmul.f32 %v5865, %v5535
      %v5904 = vmul.f32 %v5869, %v5536
      %v5905 = vmul.f32 %v5873, %v5537
      %v5906 = vmul.f32 %v5877, %v5538
      %v5907 = vmul.f32 %v5881, %v5539
      %v5908 = vmul.f32 %v5885, %v5540
      %v5909 = vmul.f32 %v5889, %v5541
      %v5910 = vmul.f32 %v5893, %v5542
      %v5911 = vadd.f32 %v5279, %v5895
      %v5912 = vadd.f32 %v5280, %v5896
      %v5913 = vadd.f32 %v5281, %v5897
      %v5914 = vadd.f32 %v5282, %v5898
      %v5915 = vadd.f32 %v5283, %v5899
      %v5916 = vadd.f32 %v5284, %v5900
      %v5917 = vadd.f32 %v5285, %v5901
      %v5918 = vadd.f32 %v5286, %v5902
      %v5919 = vadd.f32 %v5287, %v5903
      %v5920 = vadd.f32 %v5288, %v5904
      %v5921 = vadd.f32 %v5289, %v5905
      %v5922 = vadd.f32 %v5290, %v5906
      %v5923 = vadd.f32 %v5291, %v5907
      %v5924 = vadd.f32 %v5292, %v5908
      %v5925 = vadd.f32 %v5293, %v5909
      %v5926 = vadd.f32 %v5294, %v5910
      %v5927 = vld [vmem:[%s4878] sm:$0xe]
      %v5928 = vld [vmem:[%s4878 + $0xc] sm:$0xe]
      %v5929 = vld [vmem:[%s4878 + $0x18] sm:$0xe]
      %v5930 = vld [vmem:[%s4878 + $0x24] sm:$0xe]
      %v5931 = vld [vmem:[%s4878 + $0x30] sm:$0xe]
      %v5932 = vld [vmem:[%s4878 + $0x3c] sm:$0xe]
      %v5933 = vld [vmem:[%s4878 + $0x48] sm:$0xe]
      %v5934 = vld [vmem:[%s4878 + $0x54] sm:$0xe]
      %v5959 = vrot.slane %v5927, 5
      %v5960 = vrot.slane %v5959, 4
      %v5961 = vrot.slane %v5296, 5
      %v5962 = vsel %vm771, %v5960, %v5961
      %v5963 = vrot.slane %v5961, 4
      %v5964 = vrot.slane %v5297, 5
      %v5965 = vsel %vm771, %v5963, %v5964
      %v5966 = vrot.slane %v5928, 5
      %v5967 = vrot.slane %v5966, 4
      %v5968 = vrot.slane %v5299, 5
      %v5969 = vsel %vm771, %v5967, %v5968
      %v5970 = vrot.slane %v5968, 4
      %v5971 = vrot.slane %v5300, 5
      %v5972 = vsel %vm771, %v5970, %v5971
      %v5973 = vrot.slane %v5929, 5
      %v5974 = vrot.slane %v5973, 4
      %v5975 = vrot.slane %v5302, 5
      %v5976 = vsel %vm771, %v5974, %v5975
      %v5977 = vrot.slane %v5975, 4
      %v5978 = vrot.slane %v5303, 5
      %v5979 = vsel %vm771, %v5977, %v5978
      %v5980 = vrot.slane %v5930, 5
      %v5981 = vrot.slane %v5980, 4
      %v5982 = vrot.slane %v5305, 5
      %v5983 = vsel %vm771, %v5981, %v5982
      %v5984 = vrot.slane %v5982, 4
      %v5985 = vrot.slane %v5306, 5
      %v5986 = vsel %vm771, %v5984, %v5985
      %v5987 = vrot.slane %v5931, 5
      %v5988 = vrot.slane %v5987, 4
      %v5989 = vrot.slane %v5308, 5
      %v5990 = vsel %vm771, %v5988, %v5989
      %v5991 = vrot.slane %v5989, 4
      %v5992 = vrot.slane %v5309, 5
      %v5993 = vsel %vm771, %v5991, %v5992
      %v5994 = vrot.slane %v5932, 5
      %v5995 = vrot.slane %v5994, 4
      %v5996 = vrot.slane %v5311, 5
      %v5997 = vsel %vm771, %v5995, %v5996
      %v5998 = vrot.slane %v5996, 4
      %v5999 = vrot.slane %v5312, 5
      %v6000 = vsel %vm771, %v5998, %v5999
      %v6001 = vrot.slane %v5933, 5
      %v6002 = vrot.slane %v6001, 4
      %v6003 = vrot.slane %v5314, 5
      %v6004 = vsel %vm771, %v6002, %v6003
      %v6005 = vrot.slane %v6003, 4
      %v6006 = vrot.slane %v5315, 5
      %v6007 = vsel %vm771, %v6005, %v6006
      %v6008 = vrot.slane %v5934, 5
      %v6009 = vrot.slane %v6008, 4
      %v6010 = vrot.slane %v5317, 5
      %v6011 = vsel %vm771, %v6009, %v6010
      %v6012 = vrot.slane %v6010, 4
      %v6013 = vrot.slane %v5318, 5
      %v6014 = vsel %vm771, %v6012, %v6013
      %v6031 = vunpack.c.l.bf16 %v5962
      %v6032 = vunpack.c.l.bf16 %v5965
      %v6033 = vunpack.c.l.bf16 %v5969
      %v6034 = vunpack.c.l.bf16 %v5972
      %v6035 = vunpack.c.l.bf16 %v5976
      %v6036 = vunpack.c.l.bf16 %v5979
      %v6037 = vunpack.c.l.bf16 %v5983
      %v6038 = vunpack.c.l.bf16 %v5986
      %v6039 = vunpack.c.l.bf16 %v5990
      %v6040 = vunpack.c.l.bf16 %v5993
      %v6041 = vunpack.c.l.bf16 %v5997
      %v6042 = vunpack.c.l.bf16 %v6000
      %v6043 = vunpack.c.l.bf16 %v6004
      %v6044 = vunpack.c.l.bf16 %v6007
      %v6045 = vunpack.c.l.bf16 %v6011
      %v6046 = vunpack.c.l.bf16 %v6014
      %6047 = vset.pattern.permute.xlu0 5
      %6048 = vperm.xlu0 %6047, %v2520
      %v6049 = vpop.permute.xlu0 %6048
      %6051 = vset.pattern.permute.xlu0 5
      %6052 = vperm.xlu0 %6051, %v2521
      %v6053 = vpop.permute.xlu0 %6052
      %6055 = vset.pattern.permute.xlu0 5
      %6056 = vperm.xlu0 %6055, %v2522
      %v6057 = vpop.permute.xlu0 %6056
      %6059 = vset.pattern.permute.xlu0 5
      %6060 = vperm.xlu0 %6059, %v2523
      %v6061 = vpop.permute.xlu0 %6060
      %6063 = vset.pattern.permute.xlu0 5
      %6064 = vperm.xlu0 %6063, %v2524
      %v6065 = vpop.permute.xlu0 %6064
      %6067 = vset.pattern.permute.xlu0 5
      %6068 = vperm.xlu0 %6067, %v2525
      %v6069 = vpop.permute.xlu0 %6068
      %6071 = vset.pattern.permute.xlu0 5
      %6072 = vperm.xlu0 %6071, %v2526
      %v6073 = vpop.permute.xlu0 %6072
      %6075 = vset.pattern.permute.xlu0 5
      %6076 = vperm.xlu0 %6075, %v2527
      %v6077 = vpop.permute.xlu0 %6076
      %6079 = vset.pattern.permute.xlu0 5
      %6080 = vperm.xlu0 %6079, %v2528
      %v6081 = vpop.permute.xlu0 %6080
      %6083 = vset.pattern.permute.xlu0 5
      %6084 = vperm.xlu0 %6083, %v2529
      %v6085 = vpop.permute.xlu0 %6084
      %6087 = vset.pattern.permute.xlu0 5
      %6088 = vperm.xlu0 %6087, %v2530
      %v6089 = vpop.permute.xlu0 %6088
      %6091 = vset.pattern.permute.xlu0 5
      %6092 = vperm.xlu0 %6091, %v2531
      %v6093 = vpop.permute.xlu0 %6092
      %6095 = vset.pattern.permute.xlu0 5
      %6096 = vperm.xlu0 %6095, %v2532
      %v6097 = vpop.permute.xlu0 %6096
      %6099 = vset.pattern.permute.xlu0 5
      %6100 = vperm.xlu0 %6099, %v2533
      %v6101 = vpop.permute.xlu0 %6100
      %6103 = vset.pattern.permute.xlu0 5
      %6104 = vperm.xlu0 %6103, %v2534
      %v6105 = vpop.permute.xlu0 %6104
      %6107 = vset.pattern.permute.xlu0 5
      %6108 = vperm.xlu0 %6107, %v2535
      %v6109 = vpop.permute.xlu0 %6108
      %v6111 = vmul.f32 %v6049, %v6031
      %v6112 = vmul.f32 %v6053, %v6032
      %v6113 = vmul.f32 %v6057, %v6033
      %v6114 = vmul.f32 %v6061, %v6034
      %v6115 = vmul.f32 %v6065, %v6035
      %v6116 = vmul.f32 %v6069, %v6036
      %v6117 = vmul.f32 %v6073, %v6037
      %v6118 = vmul.f32 %v6077, %v6038
      %v6119 = vmul.f32 %v6081, %v6039
      %v6120 = vmul.f32 %v6085, %v6040
      %v6121 = vmul.f32 %v6089, %v6041
      %v6122 = vmul.f32 %v6093, %v6042
      %v6123 = vmul.f32 %v6097, %v6043
      %v6124 = vmul.f32 %v6101, %v6044
      %v6125 = vmul.f32 %v6105, %v6045
      %v6126 = vmul.f32 %v6109, %v6046
      %v6127 = vadd.f32 %v5623, %v6111
      %v6128 = vadd.f32 %v5624, %v6112
      %v6129 = vadd.f32 %v5625, %v6113
      %v6130 = vadd.f32 %v5626, %v6114
      %v6131 = vadd.f32 %v5627, %v6115
      %v6132 = vadd.f32 %v5628, %v6116
      %v6133 = vadd.f32 %v5629, %v6117
      %v6134 = vadd.f32 %v5630, %v6118
      %v6135 = vadd.f32 %v5631, %v6119
      %v6136 = vadd.f32 %v5632, %v6120
      %v6137 = vadd.f32 %v5633, %v6121
      %v6138 = vadd.f32 %v5634, %v6122
      %v6139 = vadd.f32 %v5635, %v6123
      %v6140 = vadd.f32 %v5636, %v6124
      %v6141 = vadd.f32 %v5637, %v6125
      %v6142 = vadd.f32 %v5638, %v6126
      %6143 = vset.pattern.permute.xlu0 14
      %6144 = vperm.xlu0 %6143, %v2761
      %v6145 = vpop.permute.xlu0 %6144
      %6147 = vset.pattern.permute.xlu0 14
      %6148 = vperm.xlu0 %6147, %v2762
      %v6149 = vpop.permute.xlu0 %6148
      %6151 = vset.pattern.permute.xlu0 14
      %6152 = vperm.xlu0 %6151, %v2763
      %v6153 = vpop.permute.xlu0 %6152
      %6155 = vset.pattern.permute.xlu0 14
      %6156 = vperm.xlu0 %6155, %v2764
      %v6157 = vpop.permute.xlu0 %6156
      %6159 = vset.pattern.permute.xlu0 14
      %6160 = vperm.xlu0 %6159, %v2765
      %v6161 = vpop.permute.xlu0 %6160
      %6163 = vset.pattern.permute.xlu0 14
      %6164 = vperm.xlu0 %6163, %v2766
      %v6165 = vpop.permute.xlu0 %6164
      %6167 = vset.pattern.permute.xlu0 14
      %6168 = vperm.xlu0 %6167, %v2767
      %v6169 = vpop.permute.xlu0 %6168
      %6171 = vset.pattern.permute.xlu0 14
      %6172 = vperm.xlu0 %6171, %v2768
      %v6173 = vpop.permute.xlu0 %6172
      %6175 = vset.pattern.permute.xlu0 14
      %6176 = vperm.xlu0 %6175, %v2769
      %v6177 = vpop.permute.xlu0 %6176
      %6179 = vset.pattern.permute.xlu0 14
      %6180 = vperm.xlu0 %6179, %v2770
      %v6181 = vpop.permute.xlu0 %6180
      %6183 = vset.pattern.permute.xlu0 14
      %6184 = vperm.xlu0 %6183, %v2771
      %v6185 = vpop.permute.xlu0 %6184
      %6187 = vset.pattern.permute.xlu0 14
      %6188 = vperm.xlu0 %6187, %v2772
      %v6189 = vpop.permute.xlu0 %6188
      %6191 = vset.pattern.permute.xlu0 14
      %6192 = vperm.xlu0 %6191, %v2773
      %v6193 = vpop.permute.xlu0 %6192
      %6195 = vset.pattern.permute.xlu0 14
      %6196 = vperm.xlu0 %6195, %v2774
      %v6197 = vpop.permute.xlu0 %6196
      %6199 = vset.pattern.permute.xlu0 14
      %6200 = vperm.xlu0 %6199, %v2775
      %v6201 = vpop.permute.xlu0 %6200
      %6203 = vset.pattern.permute.xlu0 14
      %6204 = vperm.xlu0 %6203, %v2776
      %v6205 = vpop.permute.xlu0 %6204
      %v6207 = vmul.f32 %v6145, %v6031
      %v6208 = vmul.f32 %v6149, %v6032
      %v6209 = vmul.f32 %v6153, %v6033
      %v6210 = vmul.f32 %v6157, %v6034
      %v6211 = vmul.f32 %v6161, %v6035
      %v6212 = vmul.f32 %v6165, %v6036
      %v6213 = vmul.f32 %v6169, %v6037
      %v6214 = vmul.f32 %v6173, %v6038
      %v6215 = vmul.f32 %v6177, %v6039
      %v6216 = vmul.f32 %v6181, %v6040
      %v6217 = vmul.f32 %v6185, %v6041
      %v6218 = vmul.f32 %v6189, %v6042
      %v6219 = vmul.f32 %v6193, %v6043
      %v6220 = vmul.f32 %v6197, %v6044
      %v6221 = vmul.f32 %v6201, %v6045
      %v6222 = vmul.f32 %v6205, %v6046
      %v6223 = vadd.f32 %v5719, %v6207
      %v6224 = vadd.f32 %v5720, %v6208
      %v6225 = vadd.f32 %v5721, %v6209
      %v6226 = vadd.f32 %v5722, %v6210
      %v6227 = vadd.f32 %v5723, %v6211
      %v6228 = vadd.f32 %v5724, %v6212
      %v6229 = vadd.f32 %v5725, %v6213
      %v6230 = vadd.f32 %v5726, %v6214
      %v6231 = vadd.f32 %v5727, %v6215
      %v6232 = vadd.f32 %v5728, %v6216
      %v6233 = vadd.f32 %v5729, %v6217
      %v6234 = vadd.f32 %v5730, %v6218
      %v6235 = vadd.f32 %v5731, %v6219
      %v6236 = vadd.f32 %v5732, %v6220
      %v6237 = vadd.f32 %v5733, %v6221
      %v6238 = vadd.f32 %v5734, %v6222
      %6239 = vset.pattern.permute.xlu0 23
      %6240 = vperm.xlu0 %6239, %v3002
      %v6241 = vpop.permute.xlu0 %6240
      %6243 = vset.pattern.permute.xlu0 23
      %6244 = vperm.xlu0 %6243, %v3003
      %v6245 = vpop.permute.xlu0 %6244
      %6247 = vset.pattern.permute.xlu0 23
      %6248 = vperm.xlu0 %6247, %v3004
      %v6249 = vpop.permute.xlu0 %6248
      %6251 = vset.pattern.permute.xlu0 23
      %6252 = vperm.xlu0 %6251, %v3005
      %v6253 = vpop.permute.xlu0 %6252
      %6255 = vset.pattern.permute.xlu0 23
      %6256 = vperm.xlu0 %6255, %v3006
      %v6257 = vpop.permute.xlu0 %6256
      %6259 = vset.pattern.permute.xlu0 23
      %6260 = vperm.xlu0 %6259, %v3007
      %v6261 = vpop.permute.xlu0 %6260
      %6263 = vset.pattern.permute.xlu0 23
      %6264 = vperm.xlu0 %6263, %v3008
      %v6265 = vpop.permute.xlu0 %6264
      %6267 = vset.pattern.permute.xlu0 23
      %6268 = vperm.xlu0 %6267, %v3009
      %v6269 = vpop.permute.xlu0 %6268
      %6271 = vset.pattern.permute.xlu0 23
      %6272 = vperm.xlu0 %6271, %v3010
      %v6273 = vpop.permute.xlu0 %6272
      %6275 = vset.pattern.permute.xlu0 23
      %6276 = vperm.xlu0 %6275, %v3011
      %v6277 = vpop.permute.xlu0 %6276
      %6279 = vset.pattern.permute.xlu0 23
      %6280 = vperm.xlu0 %6279, %v3012
      %v6281 = vpop.permute.xlu0 %6280
      %6283 = vset.pattern.permute.xlu0 23
      %6284 = vperm.xlu0 %6283, %v3013
      %v6285 = vpop.permute.xlu0 %6284
      %6287 = vset.pattern.permute.xlu0 23
      %6288 = vperm.xlu0 %6287, %v3014
      %v6289 = vpop.permute.xlu0 %6288
      %6291 = vset.pattern.permute.xlu0 23
      %6292 = vperm.xlu0 %6291, %v3015
      %v6293 = vpop.permute.xlu0 %6292
      %6295 = vset.pattern.permute.xlu0 23
      %6296 = vperm.xlu0 %6295, %v3016
      %v6297 = vpop.permute.xlu0 %6296
      %6299 = vset.pattern.permute.xlu0 23
      %6300 = vperm.xlu0 %6299, %v3017
      %v6301 = vpop.permute.xlu0 %6300
      %v6303 = vmul.f32 %v6241, %v6031
      %v6304 = vmul.f32 %v6245, %v6032
      %v6305 = vmul.f32 %v6249, %v6033
      %v6306 = vmul.f32 %v6253, %v6034
      %v6307 = vmul.f32 %v6257, %v6035
      %v6308 = vmul.f32 %v6261, %v6036
      %v6309 = vmul.f32 %v6265, %v6037
      %v6310 = vmul.f32 %v6269, %v6038
      %v6311 = vmul.f32 %v6273, %v6039
      %v6312 = vmul.f32 %v6277, %v6040
      %v6313 = vmul.f32 %v6281, %v6041
      %v6314 = vmul.f32 %v6285, %v6042
      %v6315 = vmul.f32 %v6289, %v6043
      %v6316 = vmul.f32 %v6293, %v6044
      %v6317 = vmul.f32 %v6297, %v6045
      %v6318 = vmul.f32 %v6301, %v6046
      %v6319 = vadd.f32 %v5815, %v6303
      %v6320 = vadd.f32 %v5816, %v6304
      %v6321 = vadd.f32 %v5817, %v6305
      %v6322 = vadd.f32 %v5818, %v6306
      %v6323 = vadd.f32 %v5819, %v6307
      %v6324 = vadd.f32 %v5820, %v6308
      %v6325 = vadd.f32 %v5821, %v6309
      %v6326 = vadd.f32 %v5822, %v6310
      %v6327 = vadd.f32 %v5823, %v6311
      %v6328 = vadd.f32 %v5824, %v6312
      %v6329 = vadd.f32 %v5825, %v6313
      %v6330 = vadd.f32 %v5826, %v6314
      %v6331 = vadd.f32 %v5827, %v6315
      %v6332 = vadd.f32 %v5828, %v6316
      %v6333 = vadd.f32 %v5829, %v6317
      %v6334 = vadd.f32 %v5830, %v6318
      %6335 = vset.pattern.permute.xlu0 32
      %6336 = vperm.xlu0 %6335, %v3243
      %v6337 = vpop.permute.xlu0 %6336
      %6339 = vset.pattern.permute.xlu0 32
      %6340 = vperm.xlu0 %6339, %v3244
      %v6341 = vpop.permute.xlu0 %6340
      %6343 = vset.pattern.permute.xlu0 32
      %6344 = vperm.xlu0 %6343, %v3245
      %v6345 = vpop.permute.xlu0 %6344
      %6347 = vset.pattern.permute.xlu0 32
      %6348 = vperm.xlu0 %6347, %v3246
      %v6349 = vpop.permute.xlu0 %6348
      %6351 = vset.pattern.permute.xlu0 32
      %6352 = vperm.xlu0 %6351, %v3247
      %v6353 = vpop.permute.xlu0 %6352
      %6355 = vset.pattern.permute.xlu0 32
      %6356 = vperm.xlu0 %6355, %v3248
      %v6357 = vpop.permute.xlu0 %6356
      %6359 = vset.pattern.permute.xlu0 32
      %6360 = vperm.xlu0 %6359, %v3249
      %v6361 = vpop.permute.xlu0 %6360
      %6363 = vset.pattern.permute.xlu0 32
      %6364 = vperm.xlu0 %6363, %v3250
      %v6365 = vpop.permute.xlu0 %6364
      %6367 = vset.pattern.permute.xlu0 32
      %6368 = vperm.xlu0 %6367, %v3251
      %v6369 = vpop.permute.xlu0 %6368
      %6371 = vset.pattern.permute.xlu0 32
      %6372 = vperm.xlu0 %6371, %v3252
      %v6373 = vpop.permute.xlu0 %6372
      %6375 = vset.pattern.permute.xlu0 32
      %6376 = vperm.xlu0 %6375, %v3253
      %v6377 = vpop.permute.xlu0 %6376
      %6379 = vset.pattern.permute.xlu0 32
      %6380 = vperm.xlu0 %6379, %v3254
      %v6381 = vpop.permute.xlu0 %6380
      %6383 = vset.pattern.permute.xlu0 32
      %6384 = vperm.xlu0 %6383, %v3255
      %v6385 = vpop.permute.xlu0 %6384
      %6387 = vset.pattern.permute.xlu0 32
      %6388 = vperm.xlu0 %6387, %v3256
      %v6389 = vpop.permute.xlu0 %6388
      %6391 = vset.pattern.permute.xlu0 32
      %6392 = vperm.xlu0 %6391, %v3257
      %v6393 = vpop.permute.xlu0 %6392
      %6395 = vset.pattern.permute.xlu0 32
      %6396 = vperm.xlu0 %6395, %v3258
      %v6397 = vpop.permute.xlu0 %6396
      %v6399 = vmul.f32 %v6337, %v6031
      %v6400 = vmul.f32 %v6341, %v6032
      %v6401 = vmul.f32 %v6345, %v6033
      %v6402 = vmul.f32 %v6349, %v6034
      %v6403 = vmul.f32 %v6353, %v6035
      %v6404 = vmul.f32 %v6357, %v6036
      %v6405 = vmul.f32 %v6361, %v6037
      %v6406 = vmul.f32 %v6365, %v6038
      %v6407 = vmul.f32 %v6369, %v6039
      %v6408 = vmul.f32 %v6373, %v6040
      %v6409 = vmul.f32 %v6377, %v6041
      %v6410 = vmul.f32 %v6381, %v6042
      %v6411 = vmul.f32 %v6385, %v6043
      %v6412 = vmul.f32 %v6389, %v6044
      %v6413 = vmul.f32 %v6393, %v6045
      %v6414 = vmul.f32 %v6397, %v6046
      %v6415 = vadd.f32 %v5911, %v6399
      %v6416 = vadd.f32 %v5912, %v6400
      %v6417 = vadd.f32 %v5913, %v6401
      %v6418 = vadd.f32 %v5914, %v6402
      %v6419 = vadd.f32 %v5915, %v6403
      %v6420 = vadd.f32 %v5916, %v6404
      %v6421 = vadd.f32 %v5917, %v6405
      %v6422 = vadd.f32 %v5918, %v6406
      %v6423 = vadd.f32 %v5919, %v6407
      %v6424 = vadd.f32 %v5920, %v6408
      %v6425 = vadd.f32 %v5921, %v6409
      %v6426 = vadd.f32 %v5922, %v6410
      %v6427 = vadd.f32 %v5923, %v6411
      %v6428 = vadd.f32 %v5924, %v6412
      %v6429 = vadd.f32 %v5925, %v6413
      %v6430 = vadd.f32 %v5926, %v6414
      %s6431 = smul.addr %s1645, 4
      %s6432 = scalar_lea.vmem %s285, %s6431
      %v6433 = vld [vmem:[%s6432] sm:$0xf]
      %v6434 = vld [vmem:[%s6432 + $0x4] sm:$0xf]
      %v6435 = vld [vmem:[%s6432 + $0xc] sm:$0xf]
      %v6436 = vld [vmem:[%s6432 + $0x10] sm:$0xf]
      %v6437 = vld [vmem:[%s6432 + $0x18] sm:$0xf]
      %v6438 = vld [vmem:[%s6432 + $0x1c] sm:$0xf]
      %v6439 = vld [vmem:[%s6432 + $0x24] sm:$0xf]
      %v6440 = vld [vmem:[%s6432 + $0x28] sm:$0xf]
      %v6441 = vld [vmem:[%s6432 + $0x30] sm:$0xf]
      %v6442 = vld [vmem:[%s6432 + $0x34] sm:$0xf]
      %v6443 = vld [vmem:[%s6432 + $0x3c] sm:$0xf]
      %v6444 = vld [vmem:[%s6432 + $0x40] sm:$0xf]
      %v6445 = vld [vmem:[%s6432 + $0x48] sm:$0xf]
      %v6446 = vld [vmem:[%s6432 + $0x4c] sm:$0xf]
      %v6447 = vld [vmem:[%s6432 + $0x54] sm:$0xf]
      %v6448 = vld [vmem:[%s6432 + $0x58] sm:$0xf]
      %v6449 = vunpack.c.l.bf16 %v6433
      %v6450 = vunpack.c.l.bf16 %v6434
      %v6451 = vunpack.c.l.bf16 %v6435
      %v6452 = vunpack.c.l.bf16 %v6436
      %v6453 = vunpack.c.l.bf16 %v6437
      %v6454 = vunpack.c.l.bf16 %v6438
      %v6455 = vunpack.c.l.bf16 %v6439
      %v6456 = vunpack.c.l.bf16 %v6440
      %v6457 = vunpack.c.l.bf16 %v6441
      %v6458 = vunpack.c.l.bf16 %v6442
      %v6459 = vunpack.c.l.bf16 %v6443
      %v6460 = vunpack.c.l.bf16 %v6444
      %v6461 = vunpack.c.l.bf16 %v6445
      %v6462 = vunpack.c.l.bf16 %v6446
      %v6463 = vunpack.c.l.bf16 %v6447
      %v6464 = vunpack.c.l.bf16 %v6448
      %6465 = vset.pattern.permute.xlu0 6
      %6466 = vperm.xlu0 %6465, %v2520
      %v6467 = vpop.permute.xlu0 %6466
      %6469 = vset.pattern.permute.xlu0 6
      %6470 = vperm.xlu0 %6469, %v2521
      %v6471 = vpop.permute.xlu0 %6470
      %6473 = vset.pattern.permute.xlu0 6
      %6474 = vperm.xlu0 %6473, %v2522
      %v6475 = vpop.permute.xlu0 %6474
      %6477 = vset.pattern.permute.xlu0 6
      %6478 = vperm.xlu0 %6477, %v2523
      %v6479 = vpop.permute.xlu0 %6478
      %6481 = vset.pattern.permute.xlu0 6
      %6482 = vperm.xlu0 %6481, %v2524
      %v6483 = vpop.permute.xlu0 %6482
      %6485 = vset.pattern.permute.xlu0 6
      %6486 = vperm.xlu0 %6485, %v2525
      %v6487 = vpop.permute.xlu0 %6486
      %6489 = vset.pattern.permute.xlu0 6
      %6490 = vperm.xlu0 %6489, %v2526
      %v6491 = vpop.permute.xlu0 %6490
      %6493 = vset.pattern.permute.xlu0 6
      %6494 = vperm.xlu0 %6493, %v2527
      %v6495 = vpop.permute.xlu0 %6494
      %6497 = vset.pattern.permute.xlu0 6
      %6498 = vperm.xlu0 %6497, %v2528
      %v6499 = vpop.permute.xlu0 %6498
      %6501 = vset.pattern.permute.xlu0 6
      %6502 = vperm.xlu0 %6501, %v2529
      %v6503 = vpop.permute.xlu0 %6502
      %6505 = vset.pattern.permute.xlu0 6
      %6506 = vperm.xlu0 %6505, %v2530
      %v6507 = vpop.permute.xlu0 %6506
      %6509 = vset.pattern.permute.xlu0 6
      %6510 = vperm.xlu0 %6509, %v2531
      %v6511 = vpop.permute.xlu0 %6510
      %6513 = vset.pattern.permute.xlu0 6
      %6514 = vperm.xlu0 %6513, %v2532
      %v6515 = vpop.permute.xlu0 %6514
      %6517 = vset.pattern.permute.xlu0 6
      %6518 = vperm.xlu0 %6517, %v2533
      %v6519 = vpop.permute.xlu0 %6518
      %6521 = vset.pattern.permute.xlu0 6
      %6522 = vperm.xlu0 %6521, %v2534
      %v6523 = vpop.permute.xlu0 %6522
      %6525 = vset.pattern.permute.xlu0 6
      %6526 = vperm.xlu0 %6525, %v2535
      %v6527 = vpop.permute.xlu0 %6526
      %v6529 = vmul.f32 %v6467, %v6449
      %v6530 = vmul.f32 %v6471, %v6450
      %v6531 = vmul.f32 %v6475, %v6451
      %v6532 = vmul.f32 %v6479, %v6452
      %v6533 = vmul.f32 %v6483, %v6453
      %v6534 = vmul.f32 %v6487, %v6454
      %v6535 = vmul.f32 %v6491, %v6455
      %v6536 = vmul.f32 %v6495, %v6456
      %v6537 = vmul.f32 %v6499, %v6457
      %v6538 = vmul.f32 %v6503, %v6458
      %v6539 = vmul.f32 %v6507, %v6459
      %v6540 = vmul.f32 %v6511, %v6460
      %v6541 = vmul.f32 %v6515, %v6461
      %v6542 = vmul.f32 %v6519, %v6462
      %v6543 = vmul.f32 %v6523, %v6463
      %v6544 = vmul.f32 %v6527, %v6464
      %v6545 = vadd.f32 %v6127, %v6529
      %v6546 = vadd.f32 %v6128, %v6530
      %v6547 = vadd.f32 %v6129, %v6531
      %v6548 = vadd.f32 %v6130, %v6532
      %v6549 = vadd.f32 %v6131, %v6533
      %v6550 = vadd.f32 %v6132, %v6534
      %v6551 = vadd.f32 %v6133, %v6535
      %v6552 = vadd.f32 %v6134, %v6536
      %v6553 = vadd.f32 %v6135, %v6537
      %v6554 = vadd.f32 %v6136, %v6538
      %v6555 = vadd.f32 %v6137, %v6539
      %v6556 = vadd.f32 %v6138, %v6540
      %v6557 = vadd.f32 %v6139, %v6541
      %v6558 = vadd.f32 %v6140, %v6542
      %v6559 = vadd.f32 %v6141, %v6543
      %v6560 = vadd.f32 %v6142, %v6544
      %6561 = vset.pattern.permute.xlu0 15
      %6562 = vperm.xlu0 %6561, %v2761
      %v6563 = vpop.permute.xlu0 %6562
      %6565 = vset.pattern.permute.xlu0 15
      %6566 = vperm.xlu0 %6565, %v2762
      %v6567 = vpop.permute.xlu0 %6566
      %6569 = vset.pattern.permute.xlu0 15
      %6570 = vperm.xlu0 %6569, %v2763
      %v6571 = vpop.permute.xlu0 %6570
      %6573 = vset.pattern.permute.xlu0 15
      %6574 = vperm.xlu0 %6573, %v2764
      %v6575 = vpop.permute.xlu0 %6574
      %6577 = vset.pattern.permute.xlu0 15
      %6578 = vperm.xlu0 %6577, %v2765
      %v6579 = vpop.permute.xlu0 %6578
      %6581 = vset.pattern.permute.xlu0 15
      %6582 = vperm.xlu0 %6581, %v2766
      %v6583 = vpop.permute.xlu0 %6582
      %6585 = vset.pattern.permute.xlu0 15
      %6586 = vperm.xlu0 %6585, %v2767
      %v6587 = vpop.permute.xlu0 %6586
      %6589 = vset.pattern.permute.xlu0 15
      %6590 = vperm.xlu0 %6589, %v2768
      %v6591 = vpop.permute.xlu0 %6590
      %6593 = vset.pattern.permute.xlu0 15
      %6594 = vperm.xlu0 %6593, %v2769
      %v6595 = vpop.permute.xlu0 %6594
      %6597 = vset.pattern.permute.xlu0 15
      %6598 = vperm.xlu0 %6597, %v2770
      %v6599 = vpop.permute.xlu0 %6598
      %6601 = vset.pattern.permute.xlu0 15
      %6602 = vperm.xlu0 %6601, %v2771
      %v6603 = vpop.permute.xlu0 %6602
      %6605 = vset.pattern.permute.xlu0 15
      %6606 = vperm.xlu0 %6605, %v2772
      %v6607 = vpop.permute.xlu0 %6606
      %6609 = vset.pattern.permute.xlu0 15
      %6610 = vperm.xlu0 %6609, %v2773
      %v6611 = vpop.permute.xlu0 %6610
      %6613 = vset.pattern.permute.xlu0 15
      %6614 = vperm.xlu0 %6613, %v2774
      %v6615 = vpop.permute.xlu0 %6614
      %6617 = vset.pattern.permute.xlu0 15
      %6618 = vperm.xlu0 %6617, %v2775
      %v6619 = vpop.permute.xlu0 %6618
      %6621 = vset.pattern.permute.xlu0 15
      %6622 = vperm.xlu0 %6621, %v2776
      %v6623 = vpop.permute.xlu0 %6622
      %v6625 = vmul.f32 %v6563, %v6449
      %v6626 = vmul.f32 %v6567, %v6450
      %v6627 = vmul.f32 %v6571, %v6451
      %v6628 = vmul.f32 %v6575, %v6452
      %v6629 = vmul.f32 %v6579, %v6453
      %v6630 = vmul.f32 %v6583, %v6454
      %v6631 = vmul.f32 %v6587, %v6455
      %v6632 = vmul.f32 %v6591, %v6456
      %v6633 = vmul.f32 %v6595, %v6457
      %v6634 = vmul.f32 %v6599, %v6458
      %v6635 = vmul.f32 %v6603, %v6459
      %v6636 = vmul.f32 %v6607, %v6460
      %v6637 = vmul.f32 %v6611, %v6461
      %v6638 = vmul.f32 %v6615, %v6462
      %v6639 = vmul.f32 %v6619, %v6463
      %v6640 = vmul.f32 %v6623, %v6464
      %v6641 = vadd.f32 %v6223, %v6625
      %v6642 = vadd.f32 %v6224, %v6626
      %v6643 = vadd.f32 %v6225, %v6627
      %v6644 = vadd.f32 %v6226, %v6628
      %v6645 = vadd.f32 %v6227, %v6629
      %v6646 = vadd.f32 %v6228, %v6630
      %v6647 = vadd.f32 %v6229, %v6631
      %v6648 = vadd.f32 %v6230, %v6632
      %v6649 = vadd.f32 %v6231, %v6633
      %v6650 = vadd.f32 %v6232, %v6634
      %v6651 = vadd.f32 %v6233, %v6635
      %v6652 = vadd.f32 %v6234, %v6636
      %v6653 = vadd.f32 %v6235, %v6637
      %v6654 = vadd.f32 %v6236, %v6638
      %v6655 = vadd.f32 %v6237, %v6639
      %v6656 = vadd.f32 %v6238, %v6640
      %6657 = vset.pattern.permute.xlu0 24
      %6658 = vperm.xlu0 %6657, %v3002
      %v6659 = vpop.permute.xlu0 %6658
      %6661 = vset.pattern.permute.xlu0 24
      %6662 = vperm.xlu0 %6661, %v3003
      %v6663 = vpop.permute.xlu0 %6662
      %6665 = vset.pattern.permute.xlu0 24
      %6666 = vperm.xlu0 %6665, %v3004
      %v6667 = vpop.permute.xlu0 %6666
      %6669 = vset.pattern.permute.xlu0 24
      %6670 = vperm.xlu0 %6669, %v3005
      %v6671 = vpop.permute.xlu0 %6670
      %6673 = vset.pattern.permute.xlu0 24
      %6674 = vperm.xlu0 %6673, %v3006
      %v6675 = vpop.permute.xlu0 %6674
      %6677 = vset.pattern.permute.xlu0 24
      %6678 = vperm.xlu0 %6677, %v3007
      %v6679 = vpop.permute.xlu0 %6678
      %6681 = vset.pattern.permute.xlu0 24
      %6682 = vperm.xlu0 %6681, %v3008
      %v6683 = vpop.permute.xlu0 %6682
      %6685 = vset.pattern.permute.xlu0 24
      %6686 = vperm.xlu0 %6685, %v3009
      %v6687 = vpop.permute.xlu0 %6686
      %6689 = vset.pattern.permute.xlu0 24
      %6690 = vperm.xlu0 %6689, %v3010
      %v6691 = vpop.permute.xlu0 %6690
      %6693 = vset.pattern.permute.xlu0 24
      %6694 = vperm.xlu0 %6693, %v3011
      %v6695 = vpop.permute.xlu0 %6694
      %6697 = vset.pattern.permute.xlu0 24
      %6698 = vperm.xlu0 %6697, %v3012
      %v6699 = vpop.permute.xlu0 %6698
      %6701 = vset.pattern.permute.xlu0 24
      %6702 = vperm.xlu0 %6701, %v3013
      %v6703 = vpop.permute.xlu0 %6702
      %6705 = vset.pattern.permute.xlu0 24
      %6706 = vperm.xlu0 %6705, %v3014
      %v6707 = vpop.permute.xlu0 %6706
      %6709 = vset.pattern.permute.xlu0 24
      %6710 = vperm.xlu0 %6709, %v3015
      %v6711 = vpop.permute.xlu0 %6710
      %6713 = vset.pattern.permute.xlu0 24
      %6714 = vperm.xlu0 %6713, %v3016
      %v6715 = vpop.permute.xlu0 %6714
      %6717 = vset.pattern.permute.xlu0 24
      %6718 = vperm.xlu0 %6717, %v3017
      %v6719 = vpop.permute.xlu0 %6718
      %v6721 = vmul.f32 %v6659, %v6449
      %v6722 = vmul.f32 %v6663, %v6450
      %v6723 = vmul.f32 %v6667, %v6451
      %v6724 = vmul.f32 %v6671, %v6452
      %v6725 = vmul.f32 %v6675, %v6453
      %v6726 = vmul.f32 %v6679, %v6454
      %v6727 = vmul.f32 %v6683, %v6455
      %v6728 = vmul.f32 %v6687, %v6456
      %v6729 = vmul.f32 %v6691, %v6457
      %v6730 = vmul.f32 %v6695, %v6458
      %v6731 = vmul.f32 %v6699, %v6459
      %v6732 = vmul.f32 %v6703, %v6460
      %v6733 = vmul.f32 %v6707, %v6461
      %v6734 = vmul.f32 %v6711, %v6462
      %v6735 = vmul.f32 %v6715, %v6463
      %v6736 = vmul.f32 %v6719, %v6464
      %v6737 = vadd.f32 %v6319, %v6721
      %v6738 = vadd.f32 %v6320, %v6722
      %v6739 = vadd.f32 %v6321, %v6723
      %v6740 = vadd.f32 %v6322, %v6724
      %v6741 = vadd.f32 %v6323, %v6725
      %v6742 = vadd.f32 %v6324, %v6726
      %v6743 = vadd.f32 %v6325, %v6727
      %v6744 = vadd.f32 %v6326, %v6728
      %v6745 = vadd.f32 %v6327, %v6729
      %v6746 = vadd.f32 %v6328, %v6730
      %v6747 = vadd.f32 %v6329, %v6731
      %v6748 = vadd.f32 %v6330, %v6732
      %v6749 = vadd.f32 %v6331, %v6733
      %v6750 = vadd.f32 %v6332, %v6734
      %v6751 = vadd.f32 %v6333, %v6735
      %v6752 = vadd.f32 %v6334, %v6736
      %6753 = vset.pattern.permute.xlu0 33
      %6754 = vperm.xlu0 %6753, %v3243
      %v6755 = vpop.permute.xlu0 %6754
      %6757 = vset.pattern.permute.xlu0 33
      %6758 = vperm.xlu0 %6757, %v3244
      %v6759 = vpop.permute.xlu0 %6758
      %6761 = vset.pattern.permute.xlu0 33
      %6762 = vperm.xlu0 %6761, %v3245
      %v6763 = vpop.permute.xlu0 %6762
      %6765 = vset.pattern.permute.xlu0 33
      %6766 = vperm.xlu0 %6765, %v3246
      %v6767 = vpop.permute.xlu0 %6766
      %6769 = vset.pattern.permute.xlu0 33
      %6770 = vperm.xlu0 %6769, %v3247
      %v6771 = vpop.permute.xlu0 %6770
      %6773 = vset.pattern.permute.xlu0 33
      %6774 = vperm.xlu0 %6773, %v3248
      %v6775 = vpop.permute.xlu0 %6774
      %6777 = vset.pattern.permute.xlu0 33
      %6778 = vperm.xlu0 %6777, %v3249
      %v6779 = vpop.permute.xlu0 %6778
      %6781 = vset.pattern.permute.xlu0 33
      %6782 = vperm.xlu0 %6781, %v3250
      %v6783 = vpop.permute.xlu0 %6782
      %6785 = vset.pattern.permute.xlu0 33
      %6786 = vperm.xlu0 %6785, %v3251
      %v6787 = vpop.permute.xlu0 %6786
      %6789 = vset.pattern.permute.xlu0 33
      %6790 = vperm.xlu0 %6789, %v3252
      %v6791 = vpop.permute.xlu0 %6790
      %6793 = vset.pattern.permute.xlu0 33
      %6794 = vperm.xlu0 %6793, %v3253
      %v6795 = vpop.permute.xlu0 %6794
      %6797 = vset.pattern.permute.xlu0 33
      %6798 = vperm.xlu0 %6797, %v3254
      %v6799 = vpop.permute.xlu0 %6798
      %6801 = vset.pattern.permute.xlu0 33
      %6802 = vperm.xlu0 %6801, %v3255
      %v6803 = vpop.permute.xlu0 %6802
      %6805 = vset.pattern.permute.xlu0 33
      %6806 = vperm.xlu0 %6805, %v3256
      %v6807 = vpop.permute.xlu0 %6806
      %6809 = vset.pattern.permute.xlu0 33
      %6810 = vperm.xlu0 %6809, %v3257
      %v6811 = vpop.permute.xlu0 %6810
      %6813 = vset.pattern.permute.xlu0 33
      %6814 = vperm.xlu0 %6813, %v3258
      %v6815 = vpop.permute.xlu0 %6814
      %v6817 = vmul.f32 %v6755, %v6449
      %v6818 = vmul.f32 %v6759, %v6450
      %v6819 = vmul.f32 %v6763, %v6451
      %v6820 = vmul.f32 %v6767, %v6452
      %v6821 = vmul.f32 %v6771, %v6453
      %v6822 = vmul.f32 %v6775, %v6454
      %v6823 = vmul.f32 %v6779, %v6455
      %v6824 = vmul.f32 %v6783, %v6456
      %v6825 = vmul.f32 %v6787, %v6457
      %v6826 = vmul.f32 %v6791, %v6458
      %v6827 = vmul.f32 %v6795, %v6459
      %v6828 = vmul.f32 %v6799, %v6460
      %v6829 = vmul.f32 %v6803, %v6461
      %v6830 = vmul.f32 %v6807, %v6462
      %v6831 = vmul.f32 %v6811, %v6463
      %v6832 = vmul.f32 %v6815, %v6464
      %v6833 = vadd.f32 %v6415, %v6817
      %v6834 = vadd.f32 %v6416, %v6818
      %v6835 = vadd.f32 %v6417, %v6819
      %v6836 = vadd.f32 %v6418, %v6820
      %v6837 = vadd.f32 %v6419, %v6821
      %v6838 = vadd.f32 %v6420, %v6822
      %v6839 = vadd.f32 %v6421, %v6823
      %v6840 = vadd.f32 %v6422, %v6824
      %v6841 = vadd.f32 %v6423, %v6825
      %v6842 = vadd.f32 %v6424, %v6826
      %v6843 = vadd.f32 %v6425, %v6827
      %v6844 = vadd.f32 %v6426, %v6828
      %v6845 = vadd.f32 %v6427, %v6829
      %v6846 = vadd.f32 %v6428, %v6830
      %v6847 = vadd.f32 %v6429, %v6831
      %v6848 = vadd.f32 %v6430, %v6832
      %v6849 = vld [vmem:[%s6432] sm:$0xf]
      %v6850 = vld [vmem:[%s6432 + $0x4] sm:$0xf]
      %v6851 = vld [vmem:[%s6432 + $0x8] sm:$0x1]
      %v6852 = vld [vmem:[%s6432 + $0xc] sm:$0xf]
      %v6853 = vld [vmem:[%s6432 + $0x10] sm:$0xf]
      %v6854 = vld [vmem:[%s6432 + $0x14] sm:$0x1]
      %v6855 = vld [vmem:[%s6432 + $0x18] sm:$0xf]
      %v6856 = vld [vmem:[%s6432 + $0x1c] sm:$0xf]
      %v6857 = vld [vmem:[%s6432 + $0x20] sm:$0x1]
      %v6858 = vld [vmem:[%s6432 + $0x24] sm:$0xf]
      %v6859 = vld [vmem:[%s6432 + $0x28] sm:$0xf]
      %v6860 = vld [vmem:[%s6432 + $0x2c] sm:$0x1]
      %v6861 = vld [vmem:[%s6432 + $0x30] sm:$0xf]
      %v6862 = vld [vmem:[%s6432 + $0x34] sm:$0xf]
      %v6863 = vld [vmem:[%s6432 + $0x38] sm:$0x1]
      %v6864 = vld [vmem:[%s6432 + $0x3c] sm:$0xf]
      %v6865 = vld [vmem:[%s6432 + $0x40] sm:$0xf]
      %v6866 = vld [vmem:[%s6432 + $0x44] sm:$0x1]
      %v6867 = vld [vmem:[%s6432 + $0x48] sm:$0xf]
      %v6868 = vld [vmem:[%s6432 + $0x4c] sm:$0xf]
      %v6869 = vld [vmem:[%s6432 + $0x50] sm:$0x1]
      %v6870 = vld [vmem:[%s6432 + $0x54] sm:$0xf]
      %v6871 = vld [vmem:[%s6432 + $0x58] sm:$0xf]
      %v6872 = vld [vmem:[%s6432 + $0x5c] sm:$0x1]
      %v6874 = vshrl.u32 %v6849, 16
      %v6876 = vrot.slane %v6874, 4
      %v6877 = vshll.u32 %v6849, 16
      %v6879 = vrot.slane %v6877, 5
      %v6880 = vor.u32 %v6876, %v6879
      %v6881 = vrot.slane %v6880, 4
      %v6883 = vshll.u32 %v6850, 16
      %v6885 = vrot.slane %v6883, 5
      %v6886 = vsel %vm329, %v6881, %v6885
      %v6887 = vshrl.u32 %v6850, 16
      %v6889 = vrot.slane %v6887, 4
      %v6890 = vor.u32 %v6889, %v6885
      %v6891 = vrot.slane %v6890, 4
      %v6893 = vshll.u32 %v6851, 16
      %v6895 = vrot.slane %v6893, 5
      %v6896 = vsel %vm329, %v6891, %v6895
      %v6898 = vshrl.u32 %v6852, 16
      %v6900 = vrot.slane %v6898, 4
      %v6901 = vshll.u32 %v6852, 16
      %v6903 = vrot.slane %v6901, 5
      %v6904 = vor.u32 %v6900, %v6903
      %v6905 = vrot.slane %v6904, 4
      %v6907 = vshll.u32 %v6853, 16
      %v6909 = vrot.slane %v6907, 5
      %v6910 = vsel %vm329, %v6905, %v6909
      %v6911 = vshrl.u32 %v6853, 16
      %v6913 = vrot.slane %v6911, 4
      %v6914 = vor.u32 %v6913, %v6909
      %v6915 = vrot.slane %v6914, 4
      %v6917 = vshll.u32 %v6854, 16
      %v6919 = vrot.slane %v6917, 5
      %v6920 = vsel %vm329, %v6915, %v6919
      %v6922 = vshrl.u32 %v6855, 16
      %v6924 = vrot.slane %v6922, 4
      %v6925 = vshll.u32 %v6855, 16
      %v6927 = vrot.slane %v6925, 5
      %v6928 = vor.u32 %v6924, %v6927
      %v6929 = vrot.slane %v6928, 4
      %v6931 = vshll.u32 %v6856, 16
      %v6933 = vrot.slane %v6931, 5
      %v6934 = vsel %vm329, %v6929, %v6933
      %v6935 = vshrl.u32 %v6856, 16
      %v6937 = vrot.slane %v6935, 4
      %v6938 = vor.u32 %v6937, %v6933
      %v6939 = vrot.slane %v6938, 4
      %v6941 = vshll.u32 %v6857, 16
      %v6943 = vrot.slane %v6941, 5
      %v6944 = vsel %vm329, %v6939, %v6943
      %v6946 = vshrl.u32 %v6858, 16
      %v6948 = vrot.slane %v6946, 4
      %v6949 = vshll.u32 %v6858, 16
      %v6951 = vrot.slane %v6949, 5
      %v6952 = vor.u32 %v6948, %v6951
      %v6953 = vrot.slane %v6952, 4
      %v6955 = vshll.u32 %v6859, 16
      %v6957 = vrot.slane %v6955, 5
      %v6958 = vsel %vm329, %v6953, %v6957
      %v6959 = vshrl.u32 %v6859, 16
      %v6961 = vrot.slane %v6959, 4
      %v6962 = vor.u32 %v6961, %v6957
      %v6963 = vrot.slane %v6962, 4
      %v6965 = vshll.u32 %v6860, 16
      %v6967 = vrot.slane %v6965, 5
      %v6968 = vsel %vm329, %v6963, %v6967
      %v6970 = vshrl.u32 %v6861, 16
      %v6972 = vrot.slane %v6970, 4
      %v6973 = vshll.u32 %v6861, 16
      %v6975 = vrot.slane %v6973, 5
      %v6976 = vor.u32 %v6972, %v6975
      %v6977 = vrot.slane %v6976, 4
      %v6979 = vshll.u32 %v6862, 16
      %v6981 = vrot.slane %v6979, 5
      %v6982 = vsel %vm329, %v6977, %v6981
      %v6983 = vshrl.u32 %v6862, 16
      %v6985 = vrot.slane %v6983, 4
      %v6986 = vor.u32 %v6985, %v6981
      %v6987 = vrot.slane %v6986, 4
      %v6989 = vshll.u32 %v6863, 16
      %v6991 = vrot.slane %v6989, 5
      %v6992 = vsel %vm329, %v6987, %v6991
      %v6994 = vshrl.u32 %v6864, 16
      %v6996 = vrot.slane %v6994, 4
      %v6997 = vshll.u32 %v6864, 16
      %v6999 = vrot.slane %v6997, 5
      %v7000 = vor.u32 %v6996, %v6999
      %v7001 = vrot.slane %v7000, 4
      %v7003 = vshll.u32 %v6865, 16
      %v7005 = vrot.slane %v7003, 5
      %v7006 = vsel %vm329, %v7001, %v7005
      %v7007 = vshrl.u32 %v6865, 16
      %v7009 = vrot.slane %v7007, 4
      %v7010 = vor.u32 %v7009, %v7005
      %v7011 = vrot.slane %v7010, 4
      %v7013 = vshll.u32 %v6866, 16
      %v7015 = vrot.slane %v7013, 5
      %v7016 = vsel %vm329, %v7011, %v7015
      %v7018 = vshrl.u32 %v6867, 16
      %v7020 = vrot.slane %v7018, 4
      %v7021 = vshll.u32 %v6867, 16
      %v7023 = vrot.slane %v7021, 5
      %v7024 = vor.u32 %v7020, %v7023
      %v7025 = vrot.slane %v7024, 4
      %v7027 = vshll.u32 %v6868, 16
      %v7029 = vrot.slane %v7027, 5
      %v7030 = vsel %vm329, %v7025, %v7029
      %v7031 = vshrl.u32 %v6868, 16
      %v7033 = vrot.slane %v7031, 4
      %v7034 = vor.u32 %v7033, %v7029
      %v7035 = vrot.slane %v7034, 4
      %v7037 = vshll.u32 %v6869, 16
      %v7039 = vrot.slane %v7037, 5
      %v7040 = vsel %vm329, %v7035, %v7039
      %v7042 = vshrl.u32 %v6870, 16
      %v7044 = vrot.slane %v7042, 4
      %v7045 = vshll.u32 %v6870, 16
      %v7047 = vrot.slane %v7045, 5
      %v7048 = vor.u32 %v7044, %v7047
      %v7049 = vrot.slane %v7048, 4
      %v7051 = vshll.u32 %v6871, 16
      %v7053 = vrot.slane %v7051, 5
      %v7054 = vsel %vm329, %v7049, %v7053
      %v7055 = vshrl.u32 %v6871, 16
      %v7057 = vrot.slane %v7055, 4
      %v7058 = vor.u32 %v7057, %v7053
      %v7059 = vrot.slane %v7058, 4
      %v7061 = vshll.u32 %v6872, 16
      %v7063 = vrot.slane %v7061, 5
      %v7064 = vsel %vm329, %v7059, %v7063
      %v7081 = vunpack.c.l.bf16 %v6886
      %v7082 = vunpack.c.l.bf16 %v6896
      %v7083 = vunpack.c.l.bf16 %v6910
      %v7084 = vunpack.c.l.bf16 %v6920
      %v7085 = vunpack.c.l.bf16 %v6934
      %v7086 = vunpack.c.l.bf16 %v6944
      %v7087 = vunpack.c.l.bf16 %v6958
      %v7088 = vunpack.c.l.bf16 %v6968
      %v7089 = vunpack.c.l.bf16 %v6982
      %v7090 = vunpack.c.l.bf16 %v6992
      %v7091 = vunpack.c.l.bf16 %v7006
      %v7092 = vunpack.c.l.bf16 %v7016
      %v7093 = vunpack.c.l.bf16 %v7030
      %v7094 = vunpack.c.l.bf16 %v7040
      %v7095 = vunpack.c.l.bf16 %v7054
      %v7096 = vunpack.c.l.bf16 %v7064
      %7097 = vset.pattern.permute.xlu0 7
      %7098 = vperm.xlu0 %7097, %v2520
      %v7099 = vpop.permute.xlu0 %7098
      %7101 = vset.pattern.permute.xlu0 7
      %7102 = vperm.xlu0 %7101, %v2521
      %v7103 = vpop.permute.xlu0 %7102
      %7105 = vset.pattern.permute.xlu0 7
      %7106 = vperm.xlu0 %7105, %v2522
      %v7107 = vpop.permute.xlu0 %7106
      %7109 = vset.pattern.permute.xlu0 7
      %7110 = vperm.xlu0 %7109, %v2523
      %v7111 = vpop.permute.xlu0 %7110
      %7113 = vset.pattern.permute.xlu0 7
      %7114 = vperm.xlu0 %7113, %v2524
      %v7115 = vpop.permute.xlu0 %7114
      %7117 = vset.pattern.permute.xlu0 7
      %7118 = vperm.xlu0 %7117, %v2525
      %v7119 = vpop.permute.xlu0 %7118
      %7121 = vset.pattern.permute.xlu0 7
      %7122 = vperm.xlu0 %7121, %v2526
      %v7123 = vpop.permute.xlu0 %7122
      %7125 = vset.pattern.permute.xlu0 7
      %7126 = vperm.xlu0 %7125, %v2527
      %v7127 = vpop.permute.xlu0 %7126
      %7129 = vset.pattern.permute.xlu0 7
      %7130 = vperm.xlu0 %7129, %v2528
      %v7131 = vpop.permute.xlu0 %7130
      %7133 = vset.pattern.permute.xlu0 7
      %7134 = vperm.xlu0 %7133, %v2529
      %v7135 = vpop.permute.xlu0 %7134
      %7137 = vset.pattern.permute.xlu0 7
      %7138 = vperm.xlu0 %7137, %v2530
      %v7139 = vpop.permute.xlu0 %7138
      %7141 = vset.pattern.permute.xlu0 7
      %7142 = vperm.xlu0 %7141, %v2531
      %v7143 = vpop.permute.xlu0 %7142
      %7145 = vset.pattern.permute.xlu0 7
      %7146 = vperm.xlu0 %7145, %v2532
      %v7147 = vpop.permute.xlu0 %7146
      %7149 = vset.pattern.permute.xlu0 7
      %7150 = vperm.xlu0 %7149, %v2533
      %v7151 = vpop.permute.xlu0 %7150
      %7153 = vset.pattern.permute.xlu0 7
      %7154 = vperm.xlu0 %7153, %v2534
      %v7155 = vpop.permute.xlu0 %7154
      %7157 = vset.pattern.permute.xlu0 7
      %7158 = vperm.xlu0 %7157, %v2535
      %v7159 = vpop.permute.xlu0 %7158
      %v7161 = vmul.f32 %v7099, %v7081
      %v7162 = vmul.f32 %v7103, %v7082
      %v7163 = vmul.f32 %v7107, %v7083
      %v7164 = vmul.f32 %v7111, %v7084
      %v7165 = vmul.f32 %v7115, %v7085
      %v7166 = vmul.f32 %v7119, %v7086
      %v7167 = vmul.f32 %v7123, %v7087
      %v7168 = vmul.f32 %v7127, %v7088
      %v7169 = vmul.f32 %v7131, %v7089
      %v7170 = vmul.f32 %v7135, %v7090
      %v7171 = vmul.f32 %v7139, %v7091
      %v7172 = vmul.f32 %v7143, %v7092
      %v7173 = vmul.f32 %v7147, %v7093
      %v7174 = vmul.f32 %v7151, %v7094
      %v7175 = vmul.f32 %v7155, %v7095
      %v7176 = vmul.f32 %v7159, %v7096
      %v7177 = vadd.f32 %v6545, %v7161
      %v7178 = vadd.f32 %v6546, %v7162
      %v7179 = vadd.f32 %v6547, %v7163
      %v7180 = vadd.f32 %v6548, %v7164
      %v7181 = vadd.f32 %v6549, %v7165
      %v7182 = vadd.f32 %v6550, %v7166
      %v7183 = vadd.f32 %v6551, %v7167
      %v7184 = vadd.f32 %v6552, %v7168
      %v7185 = vadd.f32 %v6553, %v7169
      %v7186 = vadd.f32 %v6554, %v7170
      %v7187 = vadd.f32 %v6555, %v7171
      %v7188 = vadd.f32 %v6556, %v7172
      %v7189 = vadd.f32 %v6557, %v7173
      %v7190 = vadd.f32 %v6558, %v7174
      %v7191 = vadd.f32 %v6559, %v7175
      %v7192 = vadd.f32 %v6560, %v7176
      %7193 = vset.pattern.permute.xlu0 16
      %7194 = vperm.xlu0 %7193, %v2761
      %v7195 = vpop.permute.xlu0 %7194
      %7197 = vset.pattern.permute.xlu0 16
      %7198 = vperm.xlu0 %7197, %v2762
      %v7199 = vpop.permute.xlu0 %7198
      %7201 = vset.pattern.permute.xlu0 16
      %7202 = vperm.xlu0 %7201, %v2763
      %v7203 = vpop.permute.xlu0 %7202
      %7205 = vset.pattern.permute.xlu0 16
      %7206 = vperm.xlu0 %7205, %v2764
      %v7207 = vpop.permute.xlu0 %7206
      %7209 = vset.pattern.permute.xlu0 16
      %7210 = vperm.xlu0 %7209, %v2765
      %v7211 = vpop.permute.xlu0 %7210
      %7213 = vset.pattern.permute.xlu0 16
      %7214 = vperm.xlu0 %7213, %v2766
      %v7215 = vpop.permute.xlu0 %7214
      %7217 = vset.pattern.permute.xlu0 16
      %7218 = vperm.xlu0 %7217, %v2767
      %v7219 = vpop.permute.xlu0 %7218
      %7221 = vset.pattern.permute.xlu0 16
      %7222 = vperm.xlu0 %7221, %v2768
      %v7223 = vpop.permute.xlu0 %7222
      %7225 = vset.pattern.permute.xlu0 16
      %7226 = vperm.xlu0 %7225, %v2769
      %v7227 = vpop.permute.xlu0 %7226
      %7229 = vset.pattern.permute.xlu0 16
      %7230 = vperm.xlu0 %7229, %v2770
      %v7231 = vpop.permute.xlu0 %7230
      %7233 = vset.pattern.permute.xlu0 16
      %7234 = vperm.xlu0 %7233, %v2771
      %v7235 = vpop.permute.xlu0 %7234
      %7237 = vset.pattern.permute.xlu0 16
      %7238 = vperm.xlu0 %7237, %v2772
      %v7239 = vpop.permute.xlu0 %7238
      %7241 = vset.pattern.permute.xlu0 16
      %7242 = vperm.xlu0 %7241, %v2773
      %v7243 = vpop.permute.xlu0 %7242
      %7245 = vset.pattern.permute.xlu0 16
      %7246 = vperm.xlu0 %7245, %v2774
      %v7247 = vpop.permute.xlu0 %7246
      %7249 = vset.pattern.permute.xlu0 16
      %7250 = vperm.xlu0 %7249, %v2775
      %v7251 = vpop.permute.xlu0 %7250
      %7253 = vset.pattern.permute.xlu0 16
      %7254 = vperm.xlu0 %7253, %v2776
      %v7255 = vpop.permute.xlu0 %7254
      %v7257 = vmul.f32 %v7195, %v7081
      %v7258 = vmul.f32 %v7199, %v7082
      %v7259 = vmul.f32 %v7203, %v7083
      %v7260 = vmul.f32 %v7207, %v7084
      %v7261 = vmul.f32 %v7211, %v7085
      %v7262 = vmul.f32 %v7215, %v7086
      %v7263 = vmul.f32 %v7219, %v7087
      %v7264 = vmul.f32 %v7223, %v7088
      %v7265 = vmul.f32 %v7227, %v7089
      %v7266 = vmul.f32 %v7231, %v7090
      %v7267 = vmul.f32 %v7235, %v7091
      %v7268 = vmul.f32 %v7239, %v7092
      %v7269 = vmul.f32 %v7243, %v7093
      %v7270 = vmul.f32 %v7247, %v7094
      %v7271 = vmul.f32 %v7251, %v7095
      %v7272 = vmul.f32 %v7255, %v7096
      %v7273 = vadd.f32 %v6641, %v7257
      %v7274 = vadd.f32 %v6642, %v7258
      %v7275 = vadd.f32 %v6643, %v7259
      %v7276 = vadd.f32 %v6644, %v7260
      %v7277 = vadd.f32 %v6645, %v7261
      %v7278 = vadd.f32 %v6646, %v7262
      %v7279 = vadd.f32 %v6647, %v7263
      %v7280 = vadd.f32 %v6648, %v7264
      %v7281 = vadd.f32 %v6649, %v7265
      %v7282 = vadd.f32 %v6650, %v7266
      %v7283 = vadd.f32 %v6651, %v7267
      %v7284 = vadd.f32 %v6652, %v7268
      %v7285 = vadd.f32 %v6653, %v7269
      %v7286 = vadd.f32 %v6654, %v7270
      %v7287 = vadd.f32 %v6655, %v7271
      %v7288 = vadd.f32 %v6656, %v7272
      %7289 = vset.pattern.permute.xlu0 25
      %7290 = vperm.xlu0 %7289, %v3002
      %v7291 = vpop.permute.xlu0 %7290
      %7293 = vset.pattern.permute.xlu0 25
      %7294 = vperm.xlu0 %7293, %v3003
      %v7295 = vpop.permute.xlu0 %7294
      %7297 = vset.pattern.permute.xlu0 25
      %7298 = vperm.xlu0 %7297, %v3004
      %v7299 = vpop.permute.xlu0 %7298
      %7301 = vset.pattern.permute.xlu0 25
      %7302 = vperm.xlu0 %7301, %v3005
      %v7303 = vpop.permute.xlu0 %7302
      %7305 = vset.pattern.permute.xlu0 25
      %7306 = vperm.xlu0 %7305, %v3006
      %v7307 = vpop.permute.xlu0 %7306
      %7309 = vset.pattern.permute.xlu0 25
      %7310 = vperm.xlu0 %7309, %v3007
      %v7311 = vpop.permute.xlu0 %7310
      %7313 = vset.pattern.permute.xlu0 25
      %7314 = vperm.xlu0 %7313, %v3008
      %v7315 = vpop.permute.xlu0 %7314
      %7317 = vset.pattern.permute.xlu0 25
      %7318 = vperm.xlu0 %7317, %v3009
      %v7319 = vpop.permute.xlu0 %7318
      %7321 = vset.pattern.permute.xlu0 25
      %7322 = vperm.xlu0 %7321, %v3010
      %v7323 = vpop.permute.xlu0 %7322
      %7325 = vset.pattern.permute.xlu0 25
      %7326 = vperm.xlu0 %7325, %v3011
      %v7327 = vpop.permute.xlu0 %7326
      %7329 = vset.pattern.permute.xlu0 25
      %7330 = vperm.xlu0 %7329, %v3012
      %v7331 = vpop.permute.xlu0 %7330
      %7333 = vset.pattern.permute.xlu0 25
      %7334 = vperm.xlu0 %7333, %v3013
      %v7335 = vpop.permute.xlu0 %7334
      %7337 = vset.pattern.permute.xlu0 25
      %7338 = vperm.xlu0 %7337, %v3014
      %v7339 = vpop.permute.xlu0 %7338
      %7341 = vset.pattern.permute.xlu0 25
      %7342 = vperm.xlu0 %7341, %v3015
      %v7343 = vpop.permute.xlu0 %7342
      %7345 = vset.pattern.permute.xlu0 25
      %7346 = vperm.xlu0 %7345, %v3016
      %v7347 = vpop.permute.xlu0 %7346
      %7349 = vset.pattern.permute.xlu0 25
      %7350 = vperm.xlu0 %7349, %v3017
      %v7351 = vpop.permute.xlu0 %7350
      %v7353 = vmul.f32 %v7291, %v7081
      %v7354 = vmul.f32 %v7295, %v7082
      %v7355 = vmul.f32 %v7299, %v7083
      %v7356 = vmul.f32 %v7303, %v7084
      %v7357 = vmul.f32 %v7307, %v7085
      %v7358 = vmul.f32 %v7311, %v7086
      %v7359 = vmul.f32 %v7315, %v7087
      %v7360 = vmul.f32 %v7319, %v7088
      %v7361 = vmul.f32 %v7323, %v7089
      %v7362 = vmul.f32 %v7327, %v7090
      %v7363 = vmul.f32 %v7331, %v7091
      %v7364 = vmul.f32 %v7335, %v7092
      %v7365 = vmul.f32 %v7339, %v7093
      %v7366 = vmul.f32 %v7343, %v7094
      %v7367 = vmul.f32 %v7347, %v7095
      %v7368 = vmul.f32 %v7351, %v7096
      %v7369 = vadd.f32 %v6737, %v7353
      %v7370 = vadd.f32 %v6738, %v7354
      %v7371 = vadd.f32 %v6739, %v7355
      %v7372 = vadd.f32 %v6740, %v7356
      %v7373 = vadd.f32 %v6741, %v7357
      %v7374 = vadd.f32 %v6742, %v7358
      %v7375 = vadd.f32 %v6743, %v7359
      %v7376 = vadd.f32 %v6744, %v7360
      %v7377 = vadd.f32 %v6745, %v7361
      %v7378 = vadd.f32 %v6746, %v7362
      %v7379 = vadd.f32 %v6747, %v7363
      %v7380 = vadd.f32 %v6748, %v7364
      %v7381 = vadd.f32 %v6749, %v7365
      %v7382 = vadd.f32 %v6750, %v7366
      %v7383 = vadd.f32 %v6751, %v7367
      %v7384 = vadd.f32 %v6752, %v7368
      %7385 = vset.pattern.permute.xlu0 34
      %7386 = vperm.xlu0 %7385, %v3243
      %v7387 = vpop.permute.xlu0 %7386
      %7389 = vset.pattern.permute.xlu0 34
      %7390 = vperm.xlu0 %7389, %v3244
      %v7391 = vpop.permute.xlu0 %7390
      %7393 = vset.pattern.permute.xlu0 34
      %7394 = vperm.xlu0 %7393, %v3245
      %v7395 = vpop.permute.xlu0 %7394
      %7397 = vset.pattern.permute.xlu0 34
      %7398 = vperm.xlu0 %7397, %v3246
      %v7399 = vpop.permute.xlu0 %7398
      %7401 = vset.pattern.permute.xlu0 34
      %7402 = vperm.xlu0 %7401, %v3247
      %v7403 = vpop.permute.xlu0 %7402
      %7405 = vset.pattern.permute.xlu0 34
      %7406 = vperm.xlu0 %7405, %v3248
      %v7407 = vpop.permute.xlu0 %7406
      %7409 = vset.pattern.permute.xlu0 34
      %7410 = vperm.xlu0 %7409, %v3249
      %v7411 = vpop.permute.xlu0 %7410
      %7413 = vset.pattern.permute.xlu0 34
      %7414 = vperm.xlu0 %7413, %v3250
      %v7415 = vpop.permute.xlu0 %7414
      %7417 = vset.pattern.permute.xlu0 34
      %7418 = vperm.xlu0 %7417, %v3251
      %v7419 = vpop.permute.xlu0 %7418
      %7421 = vset.pattern.permute.xlu0 34
      %7422 = vperm.xlu0 %7421, %v3252
      %v7423 = vpop.permute.xlu0 %7422
      %7425 = vset.pattern.permute.xlu0 34
      %7426 = vperm.xlu0 %7425, %v3253
      %v7427 = vpop.permute.xlu0 %7426
      %7429 = vset.pattern.permute.xlu0 34
      %7430 = vperm.xlu0 %7429, %v3254
      %v7431 = vpop.permute.xlu0 %7430
      %7433 = vset.pattern.permute.xlu0 34
      %7434 = vperm.xlu0 %7433, %v3255
      %v7435 = vpop.permute.xlu0 %7434
      %7437 = vset.pattern.permute.xlu0 34
      %7438 = vperm.xlu0 %7437, %v3256
      %v7439 = vpop.permute.xlu0 %7438
      %7441 = vset.pattern.permute.xlu0 34
      %7442 = vperm.xlu0 %7441, %v3257
      %v7443 = vpop.permute.xlu0 %7442
      %7445 = vset.pattern.permute.xlu0 34
      %7446 = vperm.xlu0 %7445, %v3258
      %v7447 = vpop.permute.xlu0 %7446
      %v7449 = vmul.f32 %v7387, %v7081
      %v7450 = vmul.f32 %v7391, %v7082
      %v7451 = vmul.f32 %v7395, %v7083
      %v7452 = vmul.f32 %v7399, %v7084
      %v7453 = vmul.f32 %v7403, %v7085
      %v7454 = vmul.f32 %v7407, %v7086
      %v7455 = vmul.f32 %v7411, %v7087
      %v7456 = vmul.f32 %v7415, %v7088
      %v7457 = vmul.f32 %v7419, %v7089
      %v7458 = vmul.f32 %v7423, %v7090
      %v7459 = vmul.f32 %v7427, %v7091
      %v7460 = vmul.f32 %v7431, %v7092
      %v7461 = vmul.f32 %v7435, %v7093
      %v7462 = vmul.f32 %v7439, %v7094
      %v7463 = vmul.f32 %v7443, %v7095
      %v7464 = vmul.f32 %v7447, %v7096
      %v7465 = vadd.f32 %v6833, %v7449
      %v7466 = vadd.f32 %v6834, %v7450
      %v7467 = vadd.f32 %v6835, %v7451
      %v7468 = vadd.f32 %v6836, %v7452
      %v7469 = vadd.f32 %v6837, %v7453
      %v7470 = vadd.f32 %v6838, %v7454
      %v7471 = vadd.f32 %v6839, %v7455
      %v7472 = vadd.f32 %v6840, %v7456
      %v7473 = vadd.f32 %v6841, %v7457
      %v7474 = vadd.f32 %v6842, %v7458
      %v7475 = vadd.f32 %v6843, %v7459
      %v7476 = vadd.f32 %v6844, %v7460
      %v7477 = vadd.f32 %v6845, %v7461
      %v7478 = vadd.f32 %v6846, %v7462
      %v7479 = vadd.f32 %v6847, %v7463
      %v7480 = vadd.f32 %v6848, %v7464
      %v7481 = vld [vmem:[%s6432] sm:$0xe]
      %v7482 = vld [vmem:[%s6432 + $0xc] sm:$0xe]
      %v7483 = vld [vmem:[%s6432 + $0x18] sm:$0xe]
      %v7484 = vld [vmem:[%s6432 + $0x24] sm:$0xe]
      %v7485 = vld [vmem:[%s6432 + $0x30] sm:$0xe]
      %v7486 = vld [vmem:[%s6432 + $0x3c] sm:$0xe]
      %v7487 = vld [vmem:[%s6432 + $0x48] sm:$0xe]
      %v7488 = vld [vmem:[%s6432 + $0x54] sm:$0xe]
      %v7513 = vrot.slane %v7481, 5
      %v7514 = vrot.slane %v7513, 4
      %v7515 = vrot.slane %v6850, 5
      %v7516 = vsel %vm771, %v7514, %v7515
      %v7517 = vrot.slane %v7515, 4
      %v7518 = vrot.slane %v6851, 5
      %v7519 = vsel %vm771, %v7517, %v7518
      %v7520 = vrot.slane %v7482, 5
      %v7521 = vrot.slane %v7520, 4
      %v7522 = vrot.slane %v6853, 5
      %v7523 = vsel %vm771, %v7521, %v7522
      %v7524 = vrot.slane %v7522, 4
      %v7525 = vrot.slane %v6854, 5
      %v7526 = vsel %vm771, %v7524, %v7525
      %v7527 = vrot.slane %v7483, 5
      %v7528 = vrot.slane %v7527, 4
      %v7529 = vrot.slane %v6856, 5
      %v7530 = vsel %vm771, %v7528, %v7529
      %v7531 = vrot.slane %v7529, 4
      %v7532 = vrot.slane %v6857, 5
      %v7533 = vsel %vm771, %v7531, %v7532
      %v7534 = vrot.slane %v7484, 5
      %v7535 = vrot.slane %v7534, 4
      %v7536 = vrot.slane %v6859, 5
      %v7537 = vsel %vm771, %v7535, %v7536
      %v7538 = vrot.slane %v7536, 4
      %v7539 = vrot.slane %v6860, 5
      %v7540 = vsel %vm771, %v7538, %v7539
      %v7541 = vrot.slane %v7485, 5
      %v7542 = vrot.slane %v7541, 4
      %v7543 = vrot.slane %v6862, 5
      %v7544 = vsel %vm771, %v7542, %v7543
      %v7545 = vrot.slane %v7543, 4
      %v7546 = vrot.slane %v6863, 5
      %v7547 = vsel %vm771, %v7545, %v7546
      %v7548 = vrot.slane %v7486, 5
      %v7549 = vrot.slane %v7548, 4
      %v7550 = vrot.slane %v6865, 5
      %v7551 = vsel %vm771, %v7549, %v7550
      %v7552 = vrot.slane %v7550, 4
      %v7553 = vrot.slane %v6866, 5
      %v7554 = vsel %vm771, %v7552, %v7553
      %v7555 = vrot.slane %v7487, 5
      %v7556 = vrot.slane %v7555, 4
      %v7557 = vrot.slane %v6868, 5
      %v7558 = vsel %vm771, %v7556, %v7557
      %v7559 = vrot.slane %v7557, 4
      %v7560 = vrot.slane %v6869, 5
      %v7561 = vsel %vm771, %v7559, %v7560
      %v7562 = vrot.slane %v7488, 5
      %v7563 = vrot.slane %v7562, 4
      %v7564 = vrot.slane %v6871, 5
      %v7565 = vsel %vm771, %v7563, %v7564
      %v7566 = vrot.slane %v7564, 4
      %v7567 = vrot.slane %v6872, 5
      %v7568 = vsel %vm771, %v7566, %v7567
      %v7585 = vunpack.c.l.bf16 %v7516
      %v7586 = vunpack.c.l.bf16 %v7519
      %v7587 = vunpack.c.l.bf16 %v7523
      %v7588 = vunpack.c.l.bf16 %v7526
      %v7589 = vunpack.c.l.bf16 %v7530
      %v7590 = vunpack.c.l.bf16 %v7533
      %v7591 = vunpack.c.l.bf16 %v7537
      %v7592 = vunpack.c.l.bf16 %v7540
      %v7593 = vunpack.c.l.bf16 %v7544
      %v7594 = vunpack.c.l.bf16 %v7547
      %v7595 = vunpack.c.l.bf16 %v7551
      %v7596 = vunpack.c.l.bf16 %v7554
      %v7597 = vunpack.c.l.bf16 %v7558
      %v7598 = vunpack.c.l.bf16 %v7561
      %v7599 = vunpack.c.l.bf16 %v7565
      %v7600 = vunpack.c.l.bf16 %v7568
      %7601 = vset.pattern.permute.xlu0 8
      %7602 = vperm.xlu0 %7601, %v2520
      %v7603 = vpop.permute.xlu0 %7602
      %7605 = vset.pattern.permute.xlu0 8
      %7606 = vperm.xlu0 %7605, %v2521
      %v7607 = vpop.permute.xlu0 %7606
      %7609 = vset.pattern.permute.xlu0 8
      %7610 = vperm.xlu0 %7609, %v2522
      %v7611 = vpop.permute.xlu0 %7610
      %7613 = vset.pattern.permute.xlu0 8
      %7614 = vperm.xlu0 %7613, %v2523
      %v7615 = vpop.permute.xlu0 %7614
      %7617 = vset.pattern.permute.xlu0 8
      %7618 = vperm.xlu0 %7617, %v2524
      %v7619 = vpop.permute.xlu0 %7618
      %7621 = vset.pattern.permute.xlu0 8
      %7622 = vperm.xlu0 %7621, %v2525
      %v7623 = vpop.permute.xlu0 %7622
      %7625 = vset.pattern.permute.xlu0 8
      %7626 = vperm.xlu0 %7625, %v2526
      %v7627 = vpop.permute.xlu0 %7626
      %7629 = vset.pattern.permute.xlu0 8
      %7630 = vperm.xlu0 %7629, %v2527
      %v7631 = vpop.permute.xlu0 %7630
      %7633 = vset.pattern.permute.xlu0 8
      %7634 = vperm.xlu0 %7633, %v2528
      %v7635 = vpop.permute.xlu0 %7634
      %7637 = vset.pattern.permute.xlu0 8
      %7638 = vperm.xlu0 %7637, %v2529
      %v7639 = vpop.permute.xlu0 %7638
      %7641 = vset.pattern.permute.xlu0 8
      %7642 = vperm.xlu0 %7641, %v2530
      %v7643 = vpop.permute.xlu0 %7642
      %7645 = vset.pattern.permute.xlu0 8
      %7646 = vperm.xlu0 %7645, %v2531
      %v7647 = vpop.permute.xlu0 %7646
      %7649 = vset.pattern.permute.xlu0 8
      %7650 = vperm.xlu0 %7649, %v2532
      %v7651 = vpop.permute.xlu0 %7650
      %7653 = vset.pattern.permute.xlu0 8
      %7654 = vperm.xlu0 %7653, %v2533
      %v7655 = vpop.permute.xlu0 %7654
      %7657 = vset.pattern.permute.xlu0 8
      %7658 = vperm.xlu0 %7657, %v2534
      %v7659 = vpop.permute.xlu0 %7658
      %7661 = vset.pattern.permute.xlu0 8
      %7662 = vperm.xlu0 %7661, %v2535
      %v7663 = vpop.permute.xlu0 %7662
      %v7665 = vmul.f32 %v7603, %v7585
      %v7666 = vmul.f32 %v7607, %v7586
      %v7667 = vmul.f32 %v7611, %v7587
      %v7668 = vmul.f32 %v7615, %v7588
      %v7669 = vmul.f32 %v7619, %v7589
      %v7670 = vmul.f32 %v7623, %v7590
      %v7671 = vmul.f32 %v7627, %v7591
      %v7672 = vmul.f32 %v7631, %v7592
      %v7673 = vmul.f32 %v7635, %v7593
      %v7674 = vmul.f32 %v7639, %v7594
      %v7675 = vmul.f32 %v7643, %v7595
      %v7676 = vmul.f32 %v7647, %v7596
      %v7677 = vmul.f32 %v7651, %v7597
      %v7678 = vmul.f32 %v7655, %v7598
      %v7679 = vmul.f32 %v7659, %v7599
      %v7680 = vmul.f32 %v7663, %v7600
      %v7681 = vadd.f32 %v7177, %v7665
      %v7682 = vadd.f32 %v7178, %v7666
      %v7683 = vadd.f32 %v7179, %v7667
      %v7684 = vadd.f32 %v7180, %v7668
      %v7685 = vadd.f32 %v7181, %v7669
      %v7686 = vadd.f32 %v7182, %v7670
      %v7687 = vadd.f32 %v7183, %v7671
      %v7688 = vadd.f32 %v7184, %v7672
      %v7689 = vadd.f32 %v7185, %v7673
      %v7690 = vadd.f32 %v7186, %v7674
      %v7691 = vadd.f32 %v7187, %v7675
      %v7692 = vadd.f32 %v7188, %v7676
      %v7693 = vadd.f32 %v7189, %v7677
      %v7694 = vadd.f32 %v7190, %v7678
      %v7695 = vadd.f32 %v7191, %v7679
      %v7696 = vadd.f32 %v7192, %v7680
      %7697 = vset.pattern.permute.xlu0 17
      %7698 = vperm.xlu0 %7697, %v2761
      %v7699 = vpop.permute.xlu0 %7698
      %7701 = vset.pattern.permute.xlu0 17
      %7702 = vperm.xlu0 %7701, %v2762
      %v7703 = vpop.permute.xlu0 %7702
      %7705 = vset.pattern.permute.xlu0 17
      %7706 = vperm.xlu0 %7705, %v2763
      %v7707 = vpop.permute.xlu0 %7706
      %7709 = vset.pattern.permute.xlu0 17
      %7710 = vperm.xlu0 %7709, %v2764
      %v7711 = vpop.permute.xlu0 %7710
      %7713 = vset.pattern.permute.xlu0 17
      %7714 = vperm.xlu0 %7713, %v2765
      %v7715 = vpop.permute.xlu0 %7714
      %7717 = vset.pattern.permute.xlu0 17
      %7718 = vperm.xlu0 %7717, %v2766
      %v7719 = vpop.permute.xlu0 %7718
      %7721 = vset.pattern.permute.xlu0 17
      %7722 = vperm.xlu0 %7721, %v2767
      %v7723 = vpop.permute.xlu0 %7722
      %7725 = vset.pattern.permute.xlu0 17
      %7726 = vperm.xlu0 %7725, %v2768
      %v7727 = vpop.permute.xlu0 %7726
      %7729 = vset.pattern.permute.xlu0 17
      %7730 = vperm.xlu0 %7729, %v2769
      %v7731 = vpop.permute.xlu0 %7730
      %7733 = vset.pattern.permute.xlu0 17
      %7734 = vperm.xlu0 %7733, %v2770
      %v7735 = vpop.permute.xlu0 %7734
      %7737 = vset.pattern.permute.xlu0 17
      %7738 = vperm.xlu0 %7737, %v2771
      %v7739 = vpop.permute.xlu0 %7738
      %7741 = vset.pattern.permute.xlu0 17
      %7742 = vperm.xlu0 %7741, %v2772
      %v7743 = vpop.permute.xlu0 %7742
      %7745 = vset.pattern.permute.xlu0 17
      %7746 = vperm.xlu0 %7745, %v2773
      %v7747 = vpop.permute.xlu0 %7746
      %7749 = vset.pattern.permute.xlu0 17
      %7750 = vperm.xlu0 %7749, %v2774
      %v7751 = vpop.permute.xlu0 %7750
      %7753 = vset.pattern.permute.xlu0 17
      %7754 = vperm.xlu0 %7753, %v2775
      %v7755 = vpop.permute.xlu0 %7754
      %7757 = vset.pattern.permute.xlu0 17
      %7758 = vperm.xlu0 %7757, %v2776
      %v7759 = vpop.permute.xlu0 %7758
      %v7761 = vmul.f32 %v7699, %v7585
      %v7762 = vmul.f32 %v7703, %v7586
      %v7763 = vmul.f32 %v7707, %v7587
      %v7764 = vmul.f32 %v7711, %v7588
      %v7765 = vmul.f32 %v7715, %v7589
      %v7766 = vmul.f32 %v7719, %v7590
      %v7767 = vmul.f32 %v7723, %v7591
      %v7768 = vmul.f32 %v7727, %v7592
      %v7769 = vmul.f32 %v7731, %v7593
      %v7770 = vmul.f32 %v7735, %v7594
      %v7771 = vmul.f32 %v7739, %v7595
      %v7772 = vmul.f32 %v7743, %v7596
      %v7773 = vmul.f32 %v7747, %v7597
      %v7774 = vmul.f32 %v7751, %v7598
      %v7775 = vmul.f32 %v7755, %v7599
      %v7776 = vmul.f32 %v7759, %v7600
      %v7777 = vadd.f32 %v7273, %v7761
      %v7778 = vadd.f32 %v7274, %v7762
      %v7779 = vadd.f32 %v7275, %v7763
      %v7780 = vadd.f32 %v7276, %v7764
      %v7781 = vadd.f32 %v7277, %v7765
      %v7782 = vadd.f32 %v7278, %v7766
      %v7783 = vadd.f32 %v7279, %v7767
      %v7784 = vadd.f32 %v7280, %v7768
      %v7785 = vadd.f32 %v7281, %v7769
      %v7786 = vadd.f32 %v7282, %v7770
      %v7787 = vadd.f32 %v7283, %v7771
      %v7788 = vadd.f32 %v7284, %v7772
      %v7789 = vadd.f32 %v7285, %v7773
      %v7790 = vadd.f32 %v7286, %v7774
      %v7791 = vadd.f32 %v7287, %v7775
      %v7792 = vadd.f32 %v7288, %v7776
      %7793 = vset.pattern.permute.xlu0 26
      %7794 = vperm.xlu0 %7793, %v3002
      %v7795 = vpop.permute.xlu0 %7794
      %7797 = vset.pattern.permute.xlu0 26
      %7798 = vperm.xlu0 %7797, %v3003
      %v7799 = vpop.permute.xlu0 %7798
      %7801 = vset.pattern.permute.xlu0 26
      %7802 = vperm.xlu0 %7801, %v3004
      %v7803 = vpop.permute.xlu0 %7802
      %7805 = vset.pattern.permute.xlu0 26
      %7806 = vperm.xlu0 %7805, %v3005
      %v7807 = vpop.permute.xlu0 %7806
      %7809 = vset.pattern.permute.xlu0 26
      %7810 = vperm.xlu0 %7809, %v3006
      %v7811 = vpop.permute.xlu0 %7810
      %7813 = vset.pattern.permute.xlu0 26
      %7814 = vperm.xlu0 %7813, %v3007
      %v7815 = vpop.permute.xlu0 %7814
      %7817 = vset.pattern.permute.xlu0 26
      %7818 = vperm.xlu0 %7817, %v3008
      %v7819 = vpop.permute.xlu0 %7818
      %7821 = vset.pattern.permute.xlu0 26
      %7822 = vperm.xlu0 %7821, %v3009
      %v7823 = vpop.permute.xlu0 %7822
      %7825 = vset.pattern.permute.xlu0 26
      %7826 = vperm.xlu0 %7825, %v3010
      %v7827 = vpop.permute.xlu0 %7826
      %7829 = vset.pattern.permute.xlu0 26
      %7830 = vperm.xlu0 %7829, %v3011
      %v7831 = vpop.permute.xlu0 %7830
      %7833 = vset.pattern.permute.xlu0 26
      %7834 = vperm.xlu0 %7833, %v3012
      %v7835 = vpop.permute.xlu0 %7834
      %7837 = vset.pattern.permute.xlu0 26
      %7838 = vperm.xlu0 %7837, %v3013
      %v7839 = vpop.permute.xlu0 %7838
      %7841 = vset.pattern.permute.xlu0 26
      %7842 = vperm.xlu0 %7841, %v3014
      %v7843 = vpop.permute.xlu0 %7842
      %7845 = vset.pattern.permute.xlu0 26
      %7846 = vperm.xlu0 %7845, %v3015
      %v7847 = vpop.permute.xlu0 %7846
      %7849 = vset.pattern.permute.xlu0 26
      %7850 = vperm.xlu0 %7849, %v3016
      %v7851 = vpop.permute.xlu0 %7850
      %7853 = vset.pattern.permute.xlu0 26
      %7854 = vperm.xlu0 %7853, %v3017
      %v7855 = vpop.permute.xlu0 %7854
      %v7857 = vmul.f32 %v7795, %v7585
      %v7858 = vmul.f32 %v7799, %v7586
      %v7859 = vmul.f32 %v7803, %v7587
      %v7860 = vmul.f32 %v7807, %v7588
      %v7861 = vmul.f32 %v7811, %v7589
      %v7862 = vmul.f32 %v7815, %v7590
      %v7863 = vmul.f32 %v7819, %v7591
      %v7864 = vmul.f32 %v7823, %v7592
      %v7865 = vmul.f32 %v7827, %v7593
      %v7866 = vmul.f32 %v7831, %v7594
      %v7867 = vmul.f32 %v7835, %v7595
      %v7868 = vmul.f32 %v7839, %v7596
      %v7869 = vmul.f32 %v7843, %v7597
      %v7870 = vmul.f32 %v7847, %v7598
      %v7871 = vmul.f32 %v7851, %v7599
      %v7872 = vmul.f32 %v7855, %v7600
      %v7873 = vadd.f32 %v7369, %v7857
      %v7874 = vadd.f32 %v7370, %v7858
      %v7875 = vadd.f32 %v7371, %v7859
      %v7876 = vadd.f32 %v7372, %v7860
      %v7877 = vadd.f32 %v7373, %v7861
      %v7878 = vadd.f32 %v7374, %v7862
      %v7879 = vadd.f32 %v7375, %v7863
      %v7880 = vadd.f32 %v7376, %v7864
      %v7881 = vadd.f32 %v7377, %v7865
      %v7882 = vadd.f32 %v7378, %v7866
      %v7883 = vadd.f32 %v7379, %v7867
      %v7884 = vadd.f32 %v7380, %v7868
      %v7885 = vadd.f32 %v7381, %v7869
      %v7886 = vadd.f32 %v7382, %v7870
      %v7887 = vadd.f32 %v7383, %v7871
      %v7888 = vadd.f32 %v7384, %v7872
      %7889 = vset.pattern.permute.xlu0 35
      %7890 = vperm.xlu0 %7889, %v3243
      %v7891 = vpop.permute.xlu0 %7890
      %7893 = vset.pattern.permute.xlu0 35
      %7894 = vperm.xlu0 %7893, %v3244
      %v7895 = vpop.permute.xlu0 %7894
      %7897 = vset.pattern.permute.xlu0 35
      %7898 = vperm.xlu0 %7897, %v3245
      %v7899 = vpop.permute.xlu0 %7898
      %7901 = vset.pattern.permute.xlu0 35
      %7902 = vperm.xlu0 %7901, %v3246
      %v7903 = vpop.permute.xlu0 %7902
      %7905 = vset.pattern.permute.xlu0 35
      %7906 = vperm.xlu0 %7905, %v3247
      %v7907 = vpop.permute.xlu0 %7906
      %7909 = vset.pattern.permute.xlu0 35
      %7910 = vperm.xlu0 %7909, %v3248
      %v7911 = vpop.permute.xlu0 %7910
      %7913 = vset.pattern.permute.xlu0 35
      %7914 = vperm.xlu0 %7913, %v3249
      %v7915 = vpop.permute.xlu0 %7914
      %7917 = vset.pattern.permute.xlu0 35
      %7918 = vperm.xlu0 %7917, %v3250
      %v7919 = vpop.permute.xlu0 %7918
      %7921 = vset.pattern.permute.xlu0 35
      %7922 = vperm.xlu0 %7921, %v3251
      %v7923 = vpop.permute.xlu0 %7922
      %7925 = vset.pattern.permute.xlu0 35
      %7926 = vperm.xlu0 %7925, %v3252
      %v7927 = vpop.permute.xlu0 %7926
      %7929 = vset.pattern.permute.xlu0 35
      %7930 = vperm.xlu0 %7929, %v3253
      %v7931 = vpop.permute.xlu0 %7930
      %7933 = vset.pattern.permute.xlu0 35
      %7934 = vperm.xlu0 %7933, %v3254
      %v7935 = vpop.permute.xlu0 %7934
      %7937 = vset.pattern.permute.xlu0 35
      %7938 = vperm.xlu0 %7937, %v3255
      %v7939 = vpop.permute.xlu0 %7938
      %7941 = vset.pattern.permute.xlu0 35
      %7942 = vperm.xlu0 %7941, %v3256
      %v7943 = vpop.permute.xlu0 %7942
      %7945 = vset.pattern.permute.xlu0 35
      %7946 = vperm.xlu0 %7945, %v3257
      %v7947 = vpop.permute.xlu0 %7946
      %7949 = vset.pattern.permute.xlu0 35
      %7950 = vperm.xlu0 %7949, %v3258
      %v7951 = vpop.permute.xlu0 %7950
      %v7953 = vmul.f32 %v7891, %v7585
      %v7954 = vmul.f32 %v7895, %v7586
      %v7955 = vmul.f32 %v7899, %v7587
      %v7956 = vmul.f32 %v7903, %v7588
      %v7957 = vmul.f32 %v7907, %v7589
      %v7958 = vmul.f32 %v7911, %v7590
      %v7959 = vmul.f32 %v7915, %v7591
      %v7960 = vmul.f32 %v7919, %v7592
      %v7961 = vmul.f32 %v7923, %v7593
      %v7962 = vmul.f32 %v7927, %v7594
      %v7963 = vmul.f32 %v7931, %v7595
      %v7964 = vmul.f32 %v7935, %v7596
      %v7965 = vmul.f32 %v7939, %v7597
      %v7966 = vmul.f32 %v7943, %v7598
      %v7967 = vmul.f32 %v7947, %v7599
      %v7968 = vmul.f32 %v7951, %v7600
      %v7969 = vadd.f32 %v7465, %v7953
      %v7970 = vadd.f32 %v7466, %v7954
      %v7971 = vadd.f32 %v7467, %v7955
      %v7972 = vadd.f32 %v7468, %v7956
      %v7973 = vadd.f32 %v7469, %v7957
      %v7974 = vadd.f32 %v7470, %v7958
      %v7975 = vadd.f32 %v7471, %v7959
      %v7976 = vadd.f32 %v7472, %v7960
      %v7977 = vadd.f32 %v7473, %v7961
      %v7978 = vadd.f32 %v7474, %v7962
      %v7979 = vadd.f32 %v7475, %v7963
      %v7980 = vadd.f32 %v7476, %v7964
      %v7981 = vadd.f32 %v7477, %v7965
      %v7982 = vadd.f32 %v7478, %v7966
      %v7983 = vadd.f32 %v7479, %v7967
      %v7984 = vadd.f32 %v7480, %v7968
      %v7985 = vld [vmem:[%s5] sm:$0x1]
      %v7986 = vpack.c.bf16 %v7682, %v7681
      %v7987 = vpack.c.bf16 %v7684, %v7683
      %v7988 = vpack.c.bf16 %v7686, %v7685
      %v7989 = vpack.c.bf16 %v7688, %v7687
      %v7990 = vpack.c.bf16 %v7690, %v7689
      %v7991 = vpack.c.bf16 %v7692, %v7691
      %v7992 = vpack.c.bf16 %v7694, %v7693
      %v7993 = vpack.c.bf16 %v7696, %v7695
      %v7994 = vld [vmem:[%s4] sm:$0xf]
      %v7995 = vld [vmem:[%s4 + $0x4] sm:$0xf]
      %v7997 = vperm.slane %v7985, 0
      %v8001 = vunpack.c.l.b16 %v7994
      %v8002 = vunpack.c.l.b16 %v7995
      %v8003 = vpack.c.b16 %v8002, %v8001
      %vm8005 = vcmask 130048
      %v8007 = vsel %vm8005, %v7986, 0
      %v8010 = vsel %vm8005, %v7987, 0
      %v8013 = vsel %vm8005, %v7988, 0
      %v8016 = vsel %vm8005, %v7989, 0
      %v8019 = vsel %vm8005, %v7990, 0
      %v8022 = vsel %vm8005, %v7991, 0
      %v8025 = vsel %vm8005, %v7992, 0
      %v8028 = vsel %vm8005, %v7993, 0
      %8030 = vmatpush.bf16.msra.mxu0 0
      %8031 = vmatpush.bf16.msra.mxu0 0
      %8032 = vmatpush.bf16.msra.mxu0 0
      %8033 = vmatpush.bf16.msra.mxu0 0
      %8034 = vmatpush.bf16.msra.mxu0 0
      %8035 = vmatpush.bf16.msra.mxu0 0
      %8036 = vmatpush.bf16.msra.mxu0 0
      %8037 = vmatpush.bf16.msra.mxu0 %v8003
      %8038 = vmatmul.bf16.gmra.mxu0 %v8007
      %v8039 = vpop.f32.mrf.mxu0
      %v8040 = vadd.f32 %v7997, %v8039
      %v8041 = vpop.f32.mrf.mxu0
      %v8042 = vadd.f32 %v7997, %v8041
      %8043 = vmatmul.bf16.gmra.mxu0 %v8010
      %v8044 = vpop.f32.mrf.mxu0
      %v8045 = vadd.f32 %v7997, %v8044
      %v8046 = vpop.f32.mrf.mxu0
      %v8047 = vadd.f32 %v7997, %v8046
      %8048 = vmatmul.bf16.gmra.mxu0 %v8013
      %v8049 = vpop.f32.mrf.mxu0
      %v8050 = vadd.f32 %v7997, %v8049
      %v8051 = vpop.f32.mrf.mxu0
      %v8052 = vadd.f32 %v7997, %v8051
      %8053 = vmatmul.bf16.gmra.mxu0 %v8016
      %v8054 = vpop.f32.mrf.mxu0
      %v8055 = vadd.f32 %v7997, %v8054
      %v8056 = vpop.f32.mrf.mxu0
      %v8057 = vadd.f32 %v7997, %v8056
      %8058 = vmatmul.bf16.gmra.mxu0 %v8019
      %v8059 = vpop.f32.mrf.mxu0
      %v8060 = vadd.f32 %v7997, %v8059
      %v8061 = vpop.f32.mrf.mxu0
      %v8062 = vadd.f32 %v7997, %v8061
      %8063 = vmatmul.bf16.gmra.mxu0 %v8022
      %v8064 = vpop.f32.mrf.mxu0
      %v8065 = vadd.f32 %v7997, %v8064
      %v8066 = vpop.f32.mrf.mxu0
      %v8067 = vadd.f32 %v7997, %v8066
      %8068 = vmatmul.bf16.gmra.mxu0 %v8025
      %v8069 = vpop.f32.mrf.mxu0
      %v8070 = vadd.f32 %v7997, %v8069
      %v8071 = vpop.f32.mrf.mxu0
      %v8072 = vadd.f32 %v7997, %v8071
      %8073 = vmatmul.bf16.gmra.mxu0 %v8028
      %v8074 = vpop.f32.mrf.mxu0
      %v8075 = vadd.f32 %v7997, %v8074
      %v8076 = vpop.f32.mrf.mxu0
      %v8077 = vadd.f32 %v7997, %v8076
      %8078 = vdwg.mxu0
      %v8079 = vpack.c.bf16 %v7778, %v7777
      %v8080 = vpack.c.bf16 %v7780, %v7779
      %v8081 = vpack.c.bf16 %v7782, %v7781
      %v8082 = vpack.c.bf16 %v7784, %v7783
      %v8083 = vpack.c.bf16 %v7786, %v7785
      %v8084 = vpack.c.bf16 %v7788, %v7787
      %v8085 = vpack.c.bf16 %v7790, %v7789
      %v8086 = vpack.c.bf16 %v7792, %v7791
      %v8088 = vsel %vm8005, %v8079, 0
      %v8091 = vsel %vm8005, %v8080, 0
      %v8094 = vsel %vm8005, %v8081, 0
      %v8097 = vsel %vm8005, %v8082, 0
      %v8100 = vsel %vm8005, %v8083, 0
      %v8103 = vsel %vm8005, %v8084, 0
      %v8106 = vsel %vm8005, %v8085, 0
      %v8109 = vsel %vm8005, %v8086, 0
      %8111 = vmatpush.bf16.msra.mxu0 0
      %8112 = vmatpush.bf16.msra.mxu0 0
      %8113 = vmatpush.bf16.msra.mxu0 0
      %8114 = vmatpush.bf16.msra.mxu0 0
      %8115 = vmatpush.bf16.msra.mxu0 0
      %8116 = vmatpush.bf16.msra.mxu0 0
      %8117 = vmatpush.bf16.msra.mxu0 0
      %8118 = vmatpush.bf16.msra.mxu0 %v8003
      %8119 = vmatmul.bf16.gmra.mxu0 %v8088
      %v8120 = vpop.f32.mrf.mxu0
      %v8121 = vadd.f32 %v7997, %v8120
      %v8122 = vpop.f32.mrf.mxu0
      %v8123 = vadd.f32 %v7997, %v8122
      %8124 = vmatmul.bf16.gmra.mxu0 %v8091
      %v8125 = vpop.f32.mrf.mxu0
      %v8126 = vadd.f32 %v7997, %v8125
      %v8127 = vpop.f32.mrf.mxu0
      %v8128 = vadd.f32 %v7997, %v8127
      %8129 = vmatmul.bf16.gmra.mxu0 %v8094
      %v8130 = vpop.f32.mrf.mxu0
      %v8131 = vadd.f32 %v7997, %v8130
      %v8132 = vpop.f32.mrf.mxu0
      %v8133 = vadd.f32 %v7997, %v8132
      %8134 = vmatmul.bf16.gmra.mxu0 %v8097
      %v8135 = vpop.f32.mrf.mxu0
      %v8136 = vadd.f32 %v7997, %v8135
      %v8137 = vpop.f32.mrf.mxu0
      %v8138 = vadd.f32 %v7997, %v8137
      %8139 = vmatmul.bf16.gmra.mxu0 %v8100
      %v8140 = vpop.f32.mrf.mxu0
      %v8141 = vadd.f32 %v7997, %v8140
      %v8142 = vpop.f32.mrf.mxu0
      %v8143 = vadd.f32 %v7997, %v8142
      %8144 = vmatmul.bf16.gmra.mxu0 %v8103
      %v8145 = vpop.f32.mrf.mxu0
      %v8146 = vadd.f32 %v7997, %v8145
      %v8147 = vpop.f32.mrf.mxu0
      %v8148 = vadd.f32 %v7997, %v8147
      %8149 = vmatmul.bf16.gmra.mxu0 %v8106
      %v8150 = vpop.f32.mrf.mxu0
      %v8151 = vadd.f32 %v7997, %v8150
      %v8152 = vpop.f32.mrf.mxu0
      %v8153 = vadd.f32 %v7997, %v8152
      %8154 = vmatmul.bf16.gmra.mxu0 %v8109
      %v8155 = vpop.f32.mrf.mxu0
      %v8156 = vadd.f32 %v7997, %v8155
      %v8157 = vpop.f32.mrf.mxu0
      %v8158 = vadd.f32 %v7997, %v8157
      %8159 = vdwg.mxu0
      %v8160 = vpack.c.bf16 %v7874, %v7873
      %v8161 = vpack.c.bf16 %v7876, %v7875
      %v8162 = vpack.c.bf16 %v7878, %v7877
      %v8163 = vpack.c.bf16 %v7880, %v7879
      %v8164 = vpack.c.bf16 %v7882, %v7881
      %v8165 = vpack.c.bf16 %v7884, %v7883
      %v8166 = vpack.c.bf16 %v7886, %v7885
      %v8167 = vpack.c.bf16 %v7888, %v7887
      %v8169 = vsel %vm8005, %v8160, 0
      %v8172 = vsel %vm8005, %v8161, 0
      %v8175 = vsel %vm8005, %v8162, 0
      %v8178 = vsel %vm8005, %v8163, 0
      %v8181 = vsel %vm8005, %v8164, 0
      %v8184 = vsel %vm8005, %v8165, 0
      %v8187 = vsel %vm8005, %v8166, 0
      %v8190 = vsel %vm8005, %v8167, 0
      %8192 = vmatpush.bf16.msra.mxu0 0
      %8193 = vmatpush.bf16.msra.mxu0 0
      %8194 = vmatpush.bf16.msra.mxu0 0
      %8195 = vmatpush.bf16.msra.mxu0 0
      %8196 = vmatpush.bf16.msra.mxu0 0
      %8197 = vmatpush.bf16.msra.mxu0 0
      %8198 = vmatpush.bf16.msra.mxu0 0
      %8199 = vmatpush.bf16.msra.mxu0 %v8003
      %8200 = vmatmul.bf16.gmra.mxu0 %v8169
      %v8201 = vpop.f32.mrf.mxu0
      %v8202 = vadd.f32 %v7997, %v8201
      %v8203 = vpop.f32.mrf.mxu0
      %v8204 = vadd.f32 %v7997, %v8203
      %8205 = vmatmul.bf16.gmra.mxu0 %v8172
      %v8206 = vpop.f32.mrf.mxu0
      %v8207 = vadd.f32 %v7997, %v8206
      %v8208 = vpop.f32.mrf.mxu0
      %v8209 = vadd.f32 %v7997, %v8208
      %8210 = vmatmul.bf16.gmra.mxu0 %v8175
      %v8211 = vpop.f32.mrf.mxu0
      %v8212 = vadd.f32 %v7997, %v8211
      %v8213 = vpop.f32.mrf.mxu0
      %v8214 = vadd.f32 %v7997, %v8213
      %8215 = vmatmul.bf16.gmra.mxu0 %v8178
      %v8216 = vpop.f32.mrf.mxu0
      %v8217 = vadd.f32 %v7997, %v8216
      %v8218 = vpop.f32.mrf.mxu0
      %v8219 = vadd.f32 %v7997, %v8218
      %8220 = vmatmul.bf16.gmra.mxu0 %v8181
      %v8221 = vpop.f32.mrf.mxu0
      %v8222 = vadd.f32 %v7997, %v8221
      %v8223 = vpop.f32.mrf.mxu0
      %v8224 = vadd.f32 %v7997, %v8223
      %8225 = vmatmul.bf16.gmra.mxu0 %v8184
      %v8226 = vpop.f32.mrf.mxu0
      %v8227 = vadd.f32 %v7997, %v8226
      %v8228 = vpop.f32.mrf.mxu0
      %v8229 = vadd.f32 %v7997, %v8228
      %8230 = vmatmul.bf16.gmra.mxu0 %v8187
      %v8231 = vpop.f32.mrf.mxu0
      %v8232 = vadd.f32 %v7997, %v8231
      %v8233 = vpop.f32.mrf.mxu0
      %v8234 = vadd.f32 %v7997, %v8233
      %8235 = vmatmul.bf16.gmra.mxu0 %v8190
      %v8236 = vpop.f32.mrf.mxu0
      %v8237 = vadd.f32 %v7997, %v8236
      %v8238 = vpop.f32.mrf.mxu0
      %v8239 = vadd.f32 %v7997, %v8238
      %8240 = vdwg.mxu0
      %v8241 = vpack.c.bf16 %v7970, %v7969
      %v8242 = vpack.c.bf16 %v7972, %v7971
      %v8243 = vpack.c.bf16 %v7974, %v7973
      %v8244 = vpack.c.bf16 %v7976, %v7975
      %v8245 = vpack.c.bf16 %v7978, %v7977
      %v8246 = vpack.c.bf16 %v7980, %v7979
      %v8247 = vpack.c.bf16 %v7982, %v7981
      %v8248 = vpack.c.bf16 %v7984, %v7983
      %v8250 = vsel %vm8005, %v8241, 0
      %v8253 = vsel %vm8005, %v8242, 0
      %v8256 = vsel %vm8005, %v8243, 0
      %v8259 = vsel %vm8005, %v8244, 0
      %v8262 = vsel %vm8005, %v8245, 0
      %v8265 = vsel %vm8005, %v8246, 0
      %v8268 = vsel %vm8005, %v8247, 0
      %v8271 = vsel %vm8005, %v8248, 0
      %8273 = vmatpush.bf16.msra.mxu0 0
      %8274 = vmatpush.bf16.msra.mxu0 0
      %8275 = vmatpush.bf16.msra.mxu0 0
      %8276 = vmatpush.bf16.msra.mxu0 0
      %8277 = vmatpush.bf16.msra.mxu0 0
      %8278 = vmatpush.bf16.msra.mxu0 0
      %8279 = vmatpush.bf16.msra.mxu0 0
      %8280 = vmatpush.bf16.msra.mxu0 %v8003
      %8281 = vmatmul.bf16.gmra.mxu0 %v8250
      %v8282 = vpop.f32.mrf.mxu0
      %v8283 = vadd.f32 %v7997, %v8282
      %v8284 = vpop.f32.mrf.mxu0
      %v8285 = vadd.f32 %v7997, %v8284
      %8286 = vmatmul.bf16.gmra.mxu0 %v8253
      %v8287 = vpop.f32.mrf.mxu0
      %v8288 = vadd.f32 %v7997, %v8287
      %v8289 = vpop.f32.mrf.mxu0
      %v8290 = vadd.f32 %v7997, %v8289
      %8291 = vmatmul.bf16.gmra.mxu0 %v8256
      %v8292 = vpop.f32.mrf.mxu0
      %v8293 = vadd.f32 %v7997, %v8292
      %v8294 = vpop.f32.mrf.mxu0
      %v8295 = vadd.f32 %v7997, %v8294
      %8296 = vmatmul.bf16.gmra.mxu0 %v8259
      %v8297 = vpop.f32.mrf.mxu0
      %v8298 = vadd.f32 %v7997, %v8297
      %v8299 = vpop.f32.mrf.mxu0
      %v8300 = vadd.f32 %v7997, %v8299
      %8301 = vmatmul.bf16.gmra.mxu0 %v8262
      %v8302 = vpop.f32.mrf.mxu0
      %v8303 = vadd.f32 %v7997, %v8302
      %v8304 = vpop.f32.mrf.mxu0
      %v8305 = vadd.f32 %v7997, %v8304
      %8306 = vmatmul.bf16.gmra.mxu0 %v8265
      %v8307 = vpop.f32.mrf.mxu0
      %v8308 = vadd.f32 %v7997, %v8307
      %v8309 = vpop.f32.mrf.mxu0
      %v8310 = vadd.f32 %v7997, %v8309
      %8311 = vmatmul.bf16.gmra.mxu0 %v8268
      %v8312 = vpop.f32.mrf.mxu0
      %v8313 = vadd.f32 %v7997, %v8312
      %v8314 = vpop.f32.mrf.mxu0
      %v8315 = vadd.f32 %v7997, %v8314
      %8316 = vmatmul.bf16.gmra.mxu0 %v8271
      %v8317 = vpop.f32.mrf.mxu0
      %v8318 = vadd.f32 %v7997, %v8317
      %v8319 = vpop.f32.mrf.mxu0
      %v8320 = vadd.f32 %v7997, %v8319
      %8321 = vdwg.mxu0
      %v8338 = vrot.slane %v8040, 1
      %v8339 = vrot.slane %v8040, 2
      %v8340 = vrot.slane %v8040, 3
      %v8341 = vrot.slane %v8040, 4
      %v8342 = vrot.slane %v8040, 5
      %v8343 = vrot.slane %v8040, 6
      %v8344 = vrot.slane %v8040, 7
      %v8345 = vrot.slane %v8042, 1
      %v8346 = vrot.slane %v8042, 2
      %v8347 = vrot.slane %v8042, 3
      %v8348 = vrot.slane %v8042, 4
      %v8349 = vrot.slane %v8042, 5
      %v8350 = vrot.slane %v8042, 6
      %v8351 = vrot.slane %v8042, 7
      %v8352 = vrot.slane %v8045, 1
      %v8353 = vrot.slane %v8045, 2
      %v8354 = vrot.slane %v8045, 3
      %v8355 = vrot.slane %v8045, 4
      %v8356 = vrot.slane %v8045, 5
      %v8357 = vrot.slane %v8045, 6
      %v8358 = vrot.slane %v8045, 7
      %v8359 = vrot.slane %v8047, 1
      %v8360 = vrot.slane %v8047, 2
      %v8361 = vrot.slane %v8047, 3
      %v8362 = vrot.slane %v8047, 4
      %v8363 = vrot.slane %v8047, 5
      %v8364 = vrot.slane %v8047, 6
      %v8365 = vrot.slane %v8047, 7
      %v8366 = vrot.slane %v8050, 1
      %v8367 = vrot.slane %v8050, 2
      %v8368 = vrot.slane %v8050, 3
      %v8369 = vrot.slane %v8050, 4
      %v8370 = vrot.slane %v8050, 5
      %v8371 = vrot.slane %v8050, 6
      %v8372 = vrot.slane %v8050, 7
      %v8373 = vrot.slane %v8052, 1
      %v8374 = vrot.slane %v8052, 2
      %v8375 = vrot.slane %v8052, 3
      %v8376 = vrot.slane %v8052, 4
      %v8377 = vrot.slane %v8052, 5
      %v8378 = vrot.slane %v8052, 6
      %v8379 = vrot.slane %v8052, 7
      %v8380 = vrot.slane %v8055, 1
      %v8381 = vrot.slane %v8055, 2
      %v8382 = vrot.slane %v8055, 3
      %v8383 = vrot.slane %v8055, 4
      %v8384 = vrot.slane %v8055, 5
      %v8385 = vrot.slane %v8055, 6
      %v8386 = vrot.slane %v8055, 7
      %v8387 = vrot.slane %v8057, 1
      %v8388 = vrot.slane %v8057, 2
      %v8389 = vrot.slane %v8057, 3
      %v8390 = vrot.slane %v8057, 4
      %v8391 = vrot.slane %v8057, 5
      %v8392 = vrot.slane %v8057, 6
      %v8393 = vrot.slane %v8057, 7
      %v8394 = vrot.slane %v8060, 1
      %v8395 = vrot.slane %v8060, 2
      %v8396 = vrot.slane %v8060, 3
      %v8397 = vrot.slane %v8060, 4
      %v8398 = vrot.slane %v8060, 5
      %v8399 = vrot.slane %v8060, 6
      %v8400 = vrot.slane %v8060, 7
      %v8401 = vrot.slane %v8062, 1
      %v8402 = vrot.slane %v8062, 2
      %v8403 = vrot.slane %v8062, 3
      %v8404 = vrot.slane %v8062, 4
      %v8405 = vrot.slane %v8062, 5
      %v8406 = vrot.slane %v8062, 6
      %v8407 = vrot.slane %v8062, 7
      %v8408 = vrot.slane %v8065, 1
      %v8409 = vrot.slane %v8065, 2
      %v8410 = vrot.slane %v8065, 3
      %v8411 = vrot.slane %v8065, 4
      %v8412 = vrot.slane %v8065, 5
      %v8413 = vrot.slane %v8065, 6
      %v8414 = vrot.slane %v8065, 7
      %v8415 = vrot.slane %v8067, 1
      %v8416 = vrot.slane %v8067, 2
      %v8417 = vrot.slane %v8067, 3
      %v8418 = vrot.slane %v8067, 4
      %v8419 = vrot.slane %v8067, 5
      %v8420 = vrot.slane %v8067, 6
      %v8421 = vrot.slane %v8067, 7
      %v8422 = vrot.slane %v8070, 1
      %v8423 = vrot.slane %v8070, 2
      %v8424 = vrot.slane %v8070, 3
      %v8425 = vrot.slane %v8070, 4
      %v8426 = vrot.slane %v8070, 5
      %v8427 = vrot.slane %v8070, 6
      %v8428 = vrot.slane %v8070, 7
      %v8429 = vrot.slane %v8072, 1
      %v8430 = vrot.slane %v8072, 2
      %v8431 = vrot.slane %v8072, 3
      %v8432 = vrot.slane %v8072, 4
      %v8433 = vrot.slane %v8072, 5
      %v8434 = vrot.slane %v8072, 6
      %v8435 = vrot.slane %v8072, 7
      %v8436 = vrot.slane %v8075, 1
      %v8437 = vrot.slane %v8075, 2
      %v8438 = vrot.slane %v8075, 3
      %v8439 = vrot.slane %v8075, 4
      %v8440 = vrot.slane %v8075, 5
      %v8441 = vrot.slane %v8075, 6
      %v8442 = vrot.slane %v8075, 7
      %v8443 = vrot.slane %v8077, 1
      %v8444 = vrot.slane %v8077, 2
      %v8445 = vrot.slane %v8077, 3
      %v8446 = vrot.slane %v8077, 4
      %v8447 = vrot.slane %v8077, 5
      %v8448 = vrot.slane %v8077, 6
      %v8449 = vrot.slane %v8077, 7
      %v8578 = vrot.slane %v8121, 1
      %v8579 = vrot.slane %v8121, 2
      %v8580 = vrot.slane %v8121, 3
      %v8581 = vrot.slane %v8121, 4
      %v8582 = vrot.slane %v8121, 5
      %v8583 = vrot.slane %v8121, 6
      %v8584 = vrot.slane %v8121, 7
      %v8585 = vrot.slane %v8123, 1
      %v8586 = vrot.slane %v8123, 2
      %v8587 = vrot.slane %v8123, 3
      %v8588 = vrot.slane %v8123, 4
      %v8589 = vrot.slane %v8123, 5
      %v8590 = vrot.slane %v8123, 6
      %v8591 = vrot.slane %v8123, 7
      %v8592 = vrot.slane %v8126, 1
      %v8593 = vrot.slane %v8126, 2
      %v8594 = vrot.slane %v8126, 3
      %v8595 = vrot.slane %v8126, 4
      %v8596 = vrot.slane %v8126, 5
      %v8597 = vrot.slane %v8126, 6
      %v8598 = vrot.slane %v8126, 7
      %v8599 = vrot.slane %v8128, 1
      %v8600 = vrot.slane %v8128, 2
      %v8601 = vrot.slane %v8128, 3
      %v8602 = vrot.slane %v8128, 4
      %v8603 = vrot.slane %v8128, 5
      %v8604 = vrot.slane %v8128, 6
      %v8605 = vrot.slane %v8128, 7
      %v8606 = vrot.slane %v8131, 1
      %v8607 = vrot.slane %v8131, 2
      %v8608 = vrot.slane %v8131, 3
      %v8609 = vrot.slane %v8131, 4
      %v8610 = vrot.slane %v8131, 5
      %v8611 = vrot.slane %v8131, 6
      %v8612 = vrot.slane %v8131, 7
      %v8613 = vrot.slane %v8133, 1
      %v8614 = vrot.slane %v8133, 2
      %v8615 = vrot.slane %v8133, 3
      %v8616 = vrot.slane %v8133, 4
      %v8617 = vrot.slane %v8133, 5
      %v8618 = vrot.slane %v8133, 6
      %v8619 = vrot.slane %v8133, 7
      %v8620 = vrot.slane %v8136, 1
      %v8621 = vrot.slane %v8136, 2
      %v8622 = vrot.slane %v8136, 3
      %v8623 = vrot.slane %v8136, 4
      %v8624 = vrot.slane %v8136, 5
      %v8625 = vrot.slane %v8136, 6
      %v8626 = vrot.slane %v8136, 7
      %v8627 = vrot.slane %v8138, 1
      %v8628 = vrot.slane %v8138, 2
      %v8629 = vrot.slane %v8138, 3
      %v8630 = vrot.slane %v8138, 4
      %v8631 = vrot.slane %v8138, 5
      %v8632 = vrot.slane %v8138, 6
      %v8633 = vrot.slane %v8138, 7
      %v8634 = vrot.slane %v8141, 1
      %v8635 = vrot.slane %v8141, 2
      %v8636 = vrot.slane %v8141, 3
      %v8637 = vrot.slane %v8141, 4
      %v8638 = vrot.slane %v8141, 5
      %v8639 = vrot.slane %v8141, 6
      %v8640 = vrot.slane %v8141, 7
      %v8641 = vrot.slane %v8143, 1
      %v8642 = vrot.slane %v8143, 2
      %v8643 = vrot.slane %v8143, 3
      %v8644 = vrot.slane %v8143, 4
      %v8645 = vrot.slane %v8143, 5
      %v8646 = vrot.slane %v8143, 6
      %v8647 = vrot.slane %v8143, 7
      %v8648 = vrot.slane %v8146, 1
      %v8649 = vrot.slane %v8146, 2
      %v8650 = vrot.slane %v8146, 3
      %v8651 = vrot.slane %v8146, 4
      %v8652 = vrot.slane %v8146, 5
      %v8653 = vrot.slane %v8146, 6
      %v8654 = vrot.slane %v8146, 7
      %v8655 = vrot.slane %v8148, 1
      %v8656 = vrot.slane %v8148, 2
      %v8657 = vrot.slane %v8148, 3
      %v8658 = vrot.slane %v8148, 4
      %v8659 = vrot.slane %v8148, 5
      %v8660 = vrot.slane %v8148, 6
      %v8661 = vrot.slane %v8148, 7
      %v8662 = vrot.slane %v8151, 1
      %v8663 = vrot.slane %v8151, 2
      %v8664 = vrot.slane %v8151, 3
      %v8665 = vrot.slane %v8151, 4
      %v8666 = vrot.slane %v8151, 5
      %v8667 = vrot.slane %v8151, 6
      %v8668 = vrot.slane %v8151, 7
      %v8669 = vrot.slane %v8153, 1
      %v8670 = vrot.slane %v8153, 2
      %v8671 = vrot.slane %v8153, 3
      %v8672 = vrot.slane %v8153, 4
      %v8673 = vrot.slane %v8153, 5
      %v8674 = vrot.slane %v8153, 6
      %v8675 = vrot.slane %v8153, 7
      %v8676 = vrot.slane %v8156, 1
      %v8677 = vrot.slane %v8156, 2
      %v8678 = vrot.slane %v8156, 3
      %v8679 = vrot.slane %v8156, 4
      %v8680 = vrot.slane %v8156, 5
      %v8681 = vrot.slane %v8156, 6
      %v8682 = vrot.slane %v8156, 7
      %v8683 = vrot.slane %v8158, 1
      %v8684 = vrot.slane %v8158, 2
      %v8685 = vrot.slane %v8158, 3
      %v8686 = vrot.slane %v8158, 4
      %v8687 = vrot.slane %v8158, 5
      %v8688 = vrot.slane %v8158, 6
      %v8689 = vrot.slane %v8158, 7
      %v8690 = vperm.slane %v8121, 0
      %v8691 = vperm.slane %v8578, 0
      %v8692 = vperm.slane %v8579, 0
      %v8693 = vperm.slane %v8580, 0
      %v8694 = vperm.slane %v8581, 0
      %v8695 = vperm.slane %v8582, 0
      %v8696 = vperm.slane %v8583, 0
      %v8697 = vperm.slane %v8584, 0
      %v8698 = vperm.slane %v8123, 0
      %v8699 = vperm.slane %v8585, 0
      %v8700 = vperm.slane %v8586, 0
      %v8701 = vperm.slane %v8587, 0
      %v8702 = vperm.slane %v8588, 0
      %v8703 = vperm.slane %v8589, 0
      %v8704 = vperm.slane %v8590, 0
      %v8705 = vperm.slane %v8591, 0
      %v8706 = vperm.slane %v8126, 0
      %v8707 = vperm.slane %v8592, 0
      %v8708 = vperm.slane %v8593, 0
      %v8709 = vperm.slane %v8594, 0
      %v8710 = vperm.slane %v8595, 0
      %v8711 = vperm.slane %v8596, 0
      %v8712 = vperm.slane %v8597, 0
      %v8713 = vperm.slane %v8598, 0
      %v8714 = vperm.slane %v8128, 0
      %v8715 = vperm.slane %v8599, 0
      %v8716 = vperm.slane %v8600, 0
      %v8717 = vperm.slane %v8601, 0
      %v8718 = vperm.slane %v8602, 0
      %v8719 = vperm.slane %v8603, 0
      %v8720 = vperm.slane %v8604, 0
      %v8721 = vperm.slane %v8605, 0
      %v8722 = vperm.slane %v8131, 0
      %v8723 = vperm.slane %v8606, 0
      %v8724 = vperm.slane %v8607, 0
      %v8725 = vperm.slane %v8608, 0
      %v8726 = vperm.slane %v8609, 0
      %v8727 = vperm.slane %v8610, 0
      %v8728 = vperm.slane %v8611, 0
      %v8729 = vperm.slane %v8612, 0
      %v8730 = vperm.slane %v8133, 0
      %v8731 = vperm.slane %v8613, 0
      %v8732 = vperm.slane %v8614, 0
      %v8733 = vperm.slane %v8615, 0
      %v8734 = vperm.slane %v8616, 0
      %v8735 = vperm.slane %v8617, 0
      %v8736 = vperm.slane %v8618, 0
      %v8737 = vperm.slane %v8619, 0
      %v8738 = vperm.slane %v8136, 0
      %v8739 = vperm.slane %v8620, 0
      %v8740 = vperm.slane %v8621, 0
      %v8741 = vperm.slane %v8622, 0
      %v8742 = vperm.slane %v8623, 0
      %v8743 = vperm.slane %v8624, 0
      %v8744 = vperm.slane %v8625, 0
      %v8745 = vperm.slane %v8626, 0
      %v8746 = vperm.slane %v8138, 0
      %v8747 = vperm.slane %v8627, 0
      %v8748 = vperm.slane %v8628, 0
      %v8749 = vperm.slane %v8629, 0
      %v8750 = vperm.slane %v8630, 0
      %v8751 = vperm.slane %v8631, 0
      %v8752 = vperm.slane %v8632, 0
      %v8753 = vperm.slane %v8633, 0
      %v8754 = vperm.slane %v8141, 0
      %v8755 = vperm.slane %v8634, 0
      %v8756 = vperm.slane %v8635, 0
      %v8757 = vperm.slane %v8636, 0
      %v8758 = vperm.slane %v8637, 0
      %v8759 = vperm.slane %v8638, 0
      %v8760 = vperm.slane %v8639, 0
      %v8761 = vperm.slane %v8640, 0
      %v8762 = vperm.slane %v8143, 0
      %v8763 = vperm.slane %v8641, 0
      %v8764 = vperm.slane %v8642, 0
      %v8765 = vperm.slane %v8643, 0
      %v8766 = vperm.slane %v8644, 0
      %v8767 = vperm.slane %v8645, 0
      %v8768 = vperm.slane %v8646, 0
      %v8769 = vperm.slane %v8647, 0
      %v8770 = vperm.slane %v8146, 0
      %v8771 = vperm.slane %v8648, 0
      %v8772 = vperm.slane %v8649, 0
      %v8773 = vperm.slane %v8650, 0
      %v8774 = vperm.slane %v8651, 0
      %v8775 = vperm.slane %v8652, 0
      %v8776 = vperm.slane %v8653, 0
      %v8777 = vperm.slane %v8654, 0
      %v8778 = vperm.slane %v8148, 0
      %v8779 = vperm.slane %v8655, 0
      %v8780 = vperm.slane %v8656, 0
      %v8781 = vperm.slane %v8657, 0
      %v8782 = vperm.slane %v8658, 0
      %v8783 = vperm.slane %v8659, 0
      %v8784 = vperm.slane %v8660, 0
      %v8785 = vperm.slane %v8661, 0
      %v8786 = vperm.slane %v8151, 0
      %v8787 = vperm.slane %v8662, 0
      %v8788 = vperm.slane %v8663, 0
      %v8789 = vperm.slane %v8664, 0
      %v8790 = vperm.slane %v8665, 0
      %v8791 = vperm.slane %v8666, 0
      %v8792 = vperm.slane %v8667, 0
      %v8793 = vperm.slane %v8668, 0
      %v8794 = vperm.slane %v8153, 0
      %v8795 = vperm.slane %v8669, 0
      %v8796 = vperm.slane %v8670, 0
      %v8797 = vperm.slane %v8671, 0
      %v8798 = vperm.slane %v8672, 0
      %v8799 = vperm.slane %v8673, 0
      %v8800 = vperm.slane %v8674, 0
      %v8801 = vperm.slane %v8675, 0
      %v8802 = vperm.slane %v8156, 0
      %v8803 = vperm.slane %v8676, 0
      %v8804 = vperm.slane %v8677, 0
      %v8805 = vperm.slane %v8678, 0
      %v8806 = vperm.slane %v8679, 0
      %v8807 = vperm.slane %v8680, 0
      %v8808 = vperm.slane %v8681, 0
      %v8809 = vperm.slane %v8682, 0
      %v8810 = vperm.slane %v8158, 0
      %v8811 = vperm.slane %v8683, 0
      %v8812 = vperm.slane %v8684, 0
      %v8813 = vperm.slane %v8685, 0
      %v8814 = vperm.slane %v8686, 0
      %v8815 = vperm.slane %v8687, 0
      %v8816 = vperm.slane %v8688, 0
      %v8817 = vperm.slane %v8689, 0
      %vm8946 = vcmask 1040384
      %v8947 = vsel %vm8946, %v8040, %v8690
      %v8948 = vsel %vm8946, %v8338, %v8691
      %v8949 = vsel %vm8946, %v8339, %v8692
      %v8950 = vsel %vm8946, %v8340, %v8693
      %v8951 = vsel %vm8946, %v8341, %v8694
      %v8952 = vsel %vm8946, %v8342, %v8695
      %v8953 = vsel %vm8946, %v8343, %v8696
      %v8954 = vsel %vm8946, %v8344, %v8697
      %v8955 = vsel %vm8946, %v8042, %v8698
      %v8956 = vsel %vm8946, %v8345, %v8699
      %v8957 = vsel %vm8946, %v8346, %v8700
      %v8958 = vsel %vm8946, %v8347, %v8701
      %v8959 = vsel %vm8946, %v8348, %v8702
      %v8960 = vsel %vm8946, %v8349, %v8703
      %v8961 = vsel %vm8946, %v8350, %v8704
      %v8962 = vsel %vm8946, %v8351, %v8705
      %v8963 = vsel %vm8946, %v8045, %v8706
      %v8964 = vsel %vm8946, %v8352, %v8707
      %v8965 = vsel %vm8946, %v8353, %v8708
      %v8966 = vsel %vm8946, %v8354, %v8709
      %v8967 = vsel %vm8946, %v8355, %v8710
      %v8968 = vsel %vm8946, %v8356, %v8711
      %v8969 = vsel %vm8946, %v8357, %v8712
      %v8970 = vsel %vm8946, %v8358, %v8713
      %v8971 = vsel %vm8946, %v8047, %v8714
      %v8972 = vsel %vm8946, %v8359, %v8715
      %v8973 = vsel %vm8946, %v8360, %v8716
      %v8974 = vsel %vm8946, %v8361, %v8717
      %v8975 = vsel %vm8946, %v8362, %v8718
      %v8976 = vsel %vm8946, %v8363, %v8719
      %v8977 = vsel %vm8946, %v8364, %v8720
      %v8978 = vsel %vm8946, %v8365, %v8721
      %v8979 = vsel %vm8946, %v8050, %v8722
      %v8980 = vsel %vm8946, %v8366, %v8723
      %v8981 = vsel %vm8946, %v8367, %v8724
      %v8982 = vsel %vm8946, %v8368, %v8725
      %v8983 = vsel %vm8946, %v8369, %v8726
      %v8984 = vsel %vm8946, %v8370, %v8727
      %v8985 = vsel %vm8946, %v8371, %v8728
      %v8986 = vsel %vm8946, %v8372, %v8729
      %v8987 = vsel %vm8946, %v8052, %v8730
      %v8988 = vsel %vm8946, %v8373, %v8731
      %v8989 = vsel %vm8946, %v8374, %v8732
      %v8990 = vsel %vm8946, %v8375, %v8733
      %v8991 = vsel %vm8946, %v8376, %v8734
      %v8992 = vsel %vm8946, %v8377, %v8735
      %v8993 = vsel %vm8946, %v8378, %v8736
      %v8994 = vsel %vm8946, %v8379, %v8737
      %v8995 = vsel %vm8946, %v8055, %v8738
      %v8996 = vsel %vm8946, %v8380, %v8739
      %v8997 = vsel %vm8946, %v8381, %v8740
      %v8998 = vsel %vm8946, %v8382, %v8741
      %v8999 = vsel %vm8946, %v8383, %v8742
      %v9000 = vsel %vm8946, %v8384, %v8743
      %v9001 = vsel %vm8946, %v8385, %v8744
      %v9002 = vsel %vm8946, %v8386, %v8745
      %v9003 = vsel %vm8946, %v8057, %v8746
      %v9004 = vsel %vm8946, %v8387, %v8747
      %v9005 = vsel %vm8946, %v8388, %v8748
      %v9006 = vsel %vm8946, %v8389, %v8749
      %v9007 = vsel %vm8946, %v8390, %v8750
      %v9008 = vsel %vm8946, %v8391, %v8751
      %v9009 = vsel %vm8946, %v8392, %v8752
      %v9010 = vsel %vm8946, %v8393, %v8753
      %v9011 = vsel %vm8946, %v8060, %v8754
      %v9012 = vsel %vm8946, %v8394, %v8755
      %v9013 = vsel %vm8946, %v8395, %v8756
      %v9014 = vsel %vm8946, %v8396, %v8757
      %v9015 = vsel %vm8946, %v8397, %v8758
      %v9016 = vsel %vm8946, %v8398, %v8759
      %v9017 = vsel %vm8946, %v8399, %v8760
      %v9018 = vsel %vm8946, %v8400, %v8761
      %v9019 = vsel %vm8946, %v8062, %v8762
      %v9020 = vsel %vm8946, %v8401, %v8763
      %v9021 = vsel %vm8946, %v8402, %v8764
      %v9022 = vsel %vm8946, %v8403, %v8765
      %v9023 = vsel %vm8946, %v8404, %v8766
      %v9024 = vsel %vm8946, %v8405, %v8767
      %v9025 = vsel %vm8946, %v8406, %v8768
      %v9026 = vsel %vm8946, %v8407, %v8769
      %v9027 = vsel %vm8946, %v8065, %v8770
      %v9028 = vsel %vm8946, %v8408, %v8771
      %v9029 = vsel %vm8946, %v8409, %v8772
      %v9030 = vsel %vm8946, %v8410, %v8773
      %v9031 = vsel %vm8946, %v8411, %v8774
      %v9032 = vsel %vm8946, %v8412, %v8775
      %v9033 = vsel %vm8946, %v8413, %v8776
      %v9034 = vsel %vm8946, %v8414, %v8777
      %v9035 = vsel %vm8946, %v8067, %v8778
      %v9036 = vsel %vm8946, %v8415, %v8779
      %v9037 = vsel %vm8946, %v8416, %v8780
      %v9038 = vsel %vm8946, %v8417, %v8781
      %v9039 = vsel %vm8946, %v8418, %v8782
      %v9040 = vsel %vm8946, %v8419, %v8783
      %v9041 = vsel %vm8946, %v8420, %v8784
      %v9042 = vsel %vm8946, %v8421, %v8785
      %v9043 = vsel %vm8946, %v8070, %v8786
      %v9044 = vsel %vm8946, %v8422, %v8787
      %v9045 = vsel %vm8946, %v8423, %v8788
      %v9046 = vsel %vm8946, %v8424, %v8789
      %v9047 = vsel %vm8946, %v8425, %v8790
      %v9048 = vsel %vm8946, %v8426, %v8791
      %v9049 = vsel %vm8946, %v8427, %v8792
      %v9050 = vsel %vm8946, %v8428, %v8793
      %v9051 = vsel %vm8946, %v8072, %v8794
      %v9052 = vsel %vm8946, %v8429, %v8795
      %v9053 = vsel %vm8946, %v8430, %v8796
      %v9054 = vsel %vm8946, %v8431, %v8797
      %v9055 = vsel %vm8946, %v8432, %v8798
      %v9056 = vsel %vm8946, %v8433, %v8799
      %v9057 = vsel %vm8946, %v8434, %v8800
      %v9058 = vsel %vm8946, %v8435, %v8801
      %v9059 = vsel %vm8946, %v8075, %v8802
      %v9060 = vsel %vm8946, %v8436, %v8803
      %v9061 = vsel %vm8946, %v8437, %v8804
      %v9062 = vsel %vm8946, %v8438, %v8805
      %v9063 = vsel %vm8946, %v8439, %v8806
      %v9064 = vsel %vm8946, %v8440, %v8807
      %v9065 = vsel %vm8946, %v8441, %v8808
      %v9066 = vsel %vm8946, %v8442, %v8809
      %v9067 = vsel %vm8946, %v8077, %v8810
      %v9068 = vsel %vm8946, %v8443, %v8811
      %v9069 = vsel %vm8946, %v8444, %v8812
      %v9070 = vsel %vm8946, %v8445, %v8813
      %v9071 = vsel %vm8946, %v8446, %v8814
      %v9072 = vsel %vm8946, %v8447, %v8815
      %v9073 = vsel %vm8946, %v8448, %v8816
      %v9074 = vsel %vm8946, %v8449, %v8817
      %v9091 = vrot.slane %v8202, 1
      %v9092 = vrot.slane %v8202, 2
      %v9093 = vrot.slane %v8202, 3
      %v9094 = vrot.slane %v8202, 4
      %v9095 = vrot.slane %v8202, 5
      %v9096 = vrot.slane %v8202, 6
      %v9097 = vrot.slane %v8202, 7
      %v9098 = vrot.slane %v8204, 1
      %v9099 = vrot.slane %v8204, 2
      %v9100 = vrot.slane %v8204, 3
      %v9101 = vrot.slane %v8204, 4
      %v9102 = vrot.slane %v8204, 5
      %v9103 = vrot.slane %v8204, 6
      %v9104 = vrot.slane %v8204, 7
      %v9105 = vrot.slane %v8207, 1
      %v9106 = vrot.slane %v8207, 2
      %v9107 = vrot.slane %v8207, 3
      %v9108 = vrot.slane %v8207, 4
      %v9109 = vrot.slane %v8207, 5
      %v9110 = vrot.slane %v8207, 6
      %v9111 = vrot.slane %v8207, 7
      %v9112 = vrot.slane %v8209, 1
      %v9113 = vrot.slane %v8209, 2
      %v9114 = vrot.slane %v8209, 3
      %v9115 = vrot.slane %v8209, 4
      %v9116 = vrot.slane %v8209, 5
      %v9117 = vrot.slane %v8209, 6
      %v9118 = vrot.slane %v8209, 7
      %v9119 = vrot.slane %v8212, 1
      %v9120 = vrot.slane %v8212, 2
      %v9121 = vrot.slane %v8212, 3
      %v9122 = vrot.slane %v8212, 4
      %v9123 = vrot.slane %v8212, 5
      %v9124 = vrot.slane %v8212, 6
      %v9125 = vrot.slane %v8212, 7
      %v9126 = vrot.slane %v8214, 1
      %v9127 = vrot.slane %v8214, 2
      %v9128 = vrot.slane %v8214, 3
      %v9129 = vrot.slane %v8214, 4
      %v9130 = vrot.slane %v8214, 5
      %v9131 = vrot.slane %v8214, 6
      %v9132 = vrot.slane %v8214, 7
      %v9133 = vrot.slane %v8217, 1
      %v9134 = vrot.slane %v8217, 2
      %v9135 = vrot.slane %v8217, 3
      %v9136 = vrot.slane %v8217, 4
      %v9137 = vrot.slane %v8217, 5
      %v9138 = vrot.slane %v8217, 6
      %v9139 = vrot.slane %v8217, 7
      %v9140 = vrot.slane %v8219, 1
      %v9141 = vrot.slane %v8219, 2
      %v9142 = vrot.slane %v8219, 3
      %v9143 = vrot.slane %v8219, 4
      %v9144 = vrot.slane %v8219, 5
      %v9145 = vrot.slane %v8219, 6
      %v9146 = vrot.slane %v8219, 7
      %v9147 = vrot.slane %v8222, 1
      %v9148 = vrot.slane %v8222, 2
      %v9149 = vrot.slane %v8222, 3
      %v9150 = vrot.slane %v8222, 4
      %v9151 = vrot.slane %v8222, 5
      %v9152 = vrot.slane %v8222, 6
      %v9153 = vrot.slane %v8222, 7
      %v9154 = vrot.slane %v8224, 1
      %v9155 = vrot.slane %v8224, 2
      %v9156 = vrot.slane %v8224, 3
      %v9157 = vrot.slane %v8224, 4
      %v9158 = vrot.slane %v8224, 5
      %v9159 = vrot.slane %v8224, 6
      %v9160 = vrot.slane %v8224, 7
      %v9161 = vrot.slane %v8227, 1
      %v9162 = vrot.slane %v8227, 2
      %v9163 = vrot.slane %v8227, 3
      %v9164 = vrot.slane %v8227, 4
      %v9165 = vrot.slane %v8227, 5
      %v9166 = vrot.slane %v8227, 6
      %v9167 = vrot.slane %v8227, 7
      %v9168 = vrot.slane %v8229, 1
      %v9169 = vrot.slane %v8229, 2
      %v9170 = vrot.slane %v8229, 3
      %v9171 = vrot.slane %v8229, 4
      %v9172 = vrot.slane %v8229, 5
      %v9173 = vrot.slane %v8229, 6
      %v9174 = vrot.slane %v8229, 7
      %v9175 = vrot.slane %v8232, 1
      %v9176 = vrot.slane %v8232, 2
      %v9177 = vrot.slane %v8232, 3
      %v9178 = vrot.slane %v8232, 4
      %v9179 = vrot.slane %v8232, 5
      %v9180 = vrot.slane %v8232, 6
      %v9181 = vrot.slane %v8232, 7
      %v9182 = vrot.slane %v8234, 1
      %v9183 = vrot.slane %v8234, 2
      %v9184 = vrot.slane %v8234, 3
      %v9185 = vrot.slane %v8234, 4
      %v9186 = vrot.slane %v8234, 5
      %v9187 = vrot.slane %v8234, 6
      %v9188 = vrot.slane %v8234, 7
      %v9189 = vrot.slane %v8237, 1
      %v9190 = vrot.slane %v8237, 2
      %v9191 = vrot.slane %v8237, 3
      %v9192 = vrot.slane %v8237, 4
      %v9193 = vrot.slane %v8237, 5
      %v9194 = vrot.slane %v8237, 6
      %v9195 = vrot.slane %v8237, 7
      %v9196 = vrot.slane %v8239, 1
      %v9197 = vrot.slane %v8239, 2
      %v9198 = vrot.slane %v8239, 3
      %v9199 = vrot.slane %v8239, 4
      %v9200 = vrot.slane %v8239, 5
      %v9201 = vrot.slane %v8239, 6
      %v9202 = vrot.slane %v8239, 7
      %v9331 = vrot.slane %v8283, 1
      %v9332 = vrot.slane %v8283, 2
      %v9333 = vrot.slane %v8283, 3
      %v9334 = vrot.slane %v8283, 4
      %v9335 = vrot.slane %v8283, 5
      %v9336 = vrot.slane %v8283, 6
      %v9337 = vrot.slane %v8283, 7
      %v9338 = vrot.slane %v8285, 1
      %v9339 = vrot.slane %v8285, 2
      %v9340 = vrot.slane %v8285, 3
      %v9341 = vrot.slane %v8285, 4
      %v9342 = vrot.slane %v8285, 5
      %v9343 = vrot.slane %v8285, 6
      %v9344 = vrot.slane %v8285, 7
      %v9345 = vrot.slane %v8288, 1
      %v9346 = vrot.slane %v8288, 2
      %v9347 = vrot.slane %v8288, 3
      %v9348 = vrot.slane %v8288, 4
      %v9349 = vrot.slane %v8288, 5
      %v9350 = vrot.slane %v8288, 6
      %v9351 = vrot.slane %v8288, 7
      %v9352 = vrot.slane %v8290, 1
      %v9353 = vrot.slane %v8290, 2
      %v9354 = vrot.slane %v8290, 3
      %v9355 = vrot.slane %v8290, 4
      %v9356 = vrot.slane %v8290, 5
      %v9357 = vrot.slane %v8290, 6
      %v9358 = vrot.slane %v8290, 7
      %v9359 = vrot.slane %v8293, 1
      %v9360 = vrot.slane %v8293, 2
      %v9361 = vrot.slane %v8293, 3
      %v9362 = vrot.slane %v8293, 4
      %v9363 = vrot.slane %v8293, 5
      %v9364 = vrot.slane %v8293, 6
      %v9365 = vrot.slane %v8293, 7
      %v9366 = vrot.slane %v8295, 1
      %v9367 = vrot.slane %v8295, 2
      %v9368 = vrot.slane %v8295, 3
      %v9369 = vrot.slane %v8295, 4
      %v9370 = vrot.slane %v8295, 5
      %v9371 = vrot.slane %v8295, 6
      %v9372 = vrot.slane %v8295, 7
      %v9373 = vrot.slane %v8298, 1
      %v9374 = vrot.slane %v8298, 2
      %v9375 = vrot.slane %v8298, 3
      %v9376 = vrot.slane %v8298, 4
      %v9377 = vrot.slane %v8298, 5
      %v9378 = vrot.slane %v8298, 6
      %v9379 = vrot.slane %v8298, 7
      %v9380 = vrot.slane %v8300, 1
      %v9381 = vrot.slane %v8300, 2
      %v9382 = vrot.slane %v8300, 3
      %v9383 = vrot.slane %v8300, 4
      %v9384 = vrot.slane %v8300, 5
      %v9385 = vrot.slane %v8300, 6
      %v9386 = vrot.slane %v8300, 7
      %v9387 = vrot.slane %v8303, 1
      %v9388 = vrot.slane %v8303, 2
      %v9389 = vrot.slane %v8303, 3
      %v9390 = vrot.slane %v8303, 4
      %v9391 = vrot.slane %v8303, 5
      %v9392 = vrot.slane %v8303, 6
      %v9393 = vrot.slane %v8303, 7
      %v9394 = vrot.slane %v8305, 1
      %v9395 = vrot.slane %v8305, 2
      %v9396 = vrot.slane %v8305, 3
      %v9397 = vrot.slane %v8305, 4
      %v9398 = vrot.slane %v8305, 5
      %v9399 = vrot.slane %v8305, 6
      %v9400 = vrot.slane %v8305, 7
      %v9401 = vrot.slane %v8308, 1
      %v9402 = vrot.slane %v8308, 2
      %v9403 = vrot.slane %v8308, 3
      %v9404 = vrot.slane %v8308, 4
      %v9405 = vrot.slane %v8308, 5
      %v9406 = vrot.slane %v8308, 6
      %v9407 = vrot.slane %v8308, 7
      %v9408 = vrot.slane %v8310, 1
      %v9409 = vrot.slane %v8310, 2
      %v9410 = vrot.slane %v8310, 3
      %v9411 = vrot.slane %v8310, 4
      %v9412 = vrot.slane %v8310, 5
      %v9413 = vrot.slane %v8310, 6
      %v9414 = vrot.slane %v8310, 7
      %v9415 = vrot.slane %v8313, 1
      %v9416 = vrot.slane %v8313, 2
      %v9417 = vrot.slane %v8313, 3
      %v9418 = vrot.slane %v8313, 4
      %v9419 = vrot.slane %v8313, 5
      %v9420 = vrot.slane %v8313, 6
      %v9421 = vrot.slane %v8313, 7
      %v9422 = vrot.slane %v8315, 1
      %v9423 = vrot.slane %v8315, 2
      %v9424 = vrot.slane %v8315, 3
      %v9425 = vrot.slane %v8315, 4
      %v9426 = vrot.slane %v8315, 5
      %v9427 = vrot.slane %v8315, 6
      %v9428 = vrot.slane %v8315, 7
      %v9429 = vrot.slane %v8318, 1
      %v9430 = vrot.slane %v8318, 2
      %v9431 = vrot.slane %v8318, 3
      %v9432 = vrot.slane %v8318, 4
      %v9433 = vrot.slane %v8318, 5
      %v9434 = vrot.slane %v8318, 6
      %v9435 = vrot.slane %v8318, 7
      %v9436 = vrot.slane %v8320, 1
      %v9437 = vrot.slane %v8320, 2
      %v9438 = vrot.slane %v8320, 3
      %v9439 = vrot.slane %v8320, 4
      %v9440 = vrot.slane %v8320, 5
      %v9441 = vrot.slane %v8320, 6
      %v9442 = vrot.slane %v8320, 7
      %v9443 = vperm.slane %v8283, 0
      %v9444 = vperm.slane %v9331, 0
      %v9445 = vperm.slane %v9332, 0
      %v9446 = vperm.slane %v9333, 0
      %v9447 = vperm.slane %v9334, 0
      %v9448 = vperm.slane %v9335, 0
      %v9449 = vperm.slane %v9336, 0
      %v9450 = vperm.slane %v9337, 0
      %v9451 = vperm.slane %v8285, 0
      %v9452 = vperm.slane %v9338, 0
      %v9453 = vperm.slane %v9339, 0
      %v9454 = vperm.slane %v9340, 0
      %v9455 = vperm.slane %v9341, 0
      %v9456 = vperm.slane %v9342, 0
      %v9457 = vperm.slane %v9343, 0
      %v9458 = vperm.slane %v9344, 0
      %v9459 = vperm.slane %v8288, 0
      %v9460 = vperm.slane %v9345, 0
      %v9461 = vperm.slane %v9346, 0
      %v9462 = vperm.slane %v9347, 0
      %v9463 = vperm.slane %v9348, 0
      %v9464 = vperm.slane %v9349, 0
      %v9465 = vperm.slane %v9350, 0
      %v9466 = vperm.slane %v9351, 0
      %v9467 = vperm.slane %v8290, 0
      %v9468 = vperm.slane %v9352, 0
      %v9469 = vperm.slane %v9353, 0
      %v9470 = vperm.slane %v9354, 0
      %v9471 = vperm.slane %v9355, 0
      %v9472 = vperm.slane %v9356, 0
      %v9473 = vperm.slane %v9357, 0
      %v9474 = vperm.slane %v9358, 0
      %v9475 = vperm.slane %v8293, 0
      %v9476 = vperm.slane %v9359, 0
      %v9477 = vperm.slane %v9360, 0
      %v9478 = vperm.slane %v9361, 0
      %v9479 = vperm.slane %v9362, 0
      %v9480 = vperm.slane %v9363, 0
      %v9481 = vperm.slane %v9364, 0
      %v9482 = vperm.slane %v9365, 0
      %v9483 = vperm.slane %v8295, 0
      %v9484 = vperm.slane %v9366, 0
      %v9485 = vperm.slane %v9367, 0
      %v9486 = vperm.slane %v9368, 0
      %v9487 = vperm.slane %v9369, 0
      %v9488 = vperm.slane %v9370, 0
      %v9489 = vperm.slane %v9371, 0
      %v9490 = vperm.slane %v9372, 0
      %v9491 = vperm.slane %v8298, 0
      %v9492 = vperm.slane %v9373, 0
      %v9493 = vperm.slane %v9374, 0
      %v9494 = vperm.slane %v9375, 0
      %v9495 = vperm.slane %v9376, 0
      %v9496 = vperm.slane %v9377, 0
      %v9497 = vperm.slane %v9378, 0
      %v9498 = vperm.slane %v9379, 0
      %v9499 = vperm.slane %v8300, 0
      %v9500 = vperm.slane %v9380, 0
      %v9501 = vperm.slane %v9381, 0
      %v9502 = vperm.slane %v9382, 0
      %v9503 = vperm.slane %v9383, 0
      %v9504 = vperm.slane %v9384, 0
      %v9505 = vperm.slane %v9385, 0
      %v9506 = vperm.slane %v9386, 0
      %v9507 = vperm.slane %v8303, 0
      %v9508 = vperm.slane %v9387, 0
      %v9509 = vperm.slane %v9388, 0
      %v9510 = vperm.slane %v9389, 0
      %v9511 = vperm.slane %v9390, 0
      %v9512 = vperm.slane %v9391, 0
      %v9513 = vperm.slane %v9392, 0
      %v9514 = vperm.slane %v9393, 0
      %v9515 = vperm.slane %v8305, 0
      %v9516 = vperm.slane %v9394, 0
      %v9517 = vperm.slane %v9395, 0
      %v9518 = vperm.slane %v9396, 0
      %v9519 = vperm.slane %v9397, 0
      %v9520 = vperm.slane %v9398, 0
      %v9521 = vperm.slane %v9399, 0
      %v9522 = vperm.slane %v9400, 0
      %v9523 = vperm.slane %v8308, 0
      %v9524 = vperm.slane %v9401, 0
      %v9525 = vperm.slane %v9402, 0
      %v9526 = vperm.slane %v9403, 0
      %v9527 = vperm.slane %v9404, 0
      %v9528 = vperm.slane %v9405, 0
      %v9529 = vperm.slane %v9406, 0
      %v9530 = vperm.slane %v9407, 0
      %v9531 = vperm.slane %v8310, 0
      %v9532 = vperm.slane %v9408, 0
      %v9533 = vperm.slane %v9409, 0
      %v9534 = vperm.slane %v9410, 0
      %v9535 = vperm.slane %v9411, 0
      %v9536 = vperm.slane %v9412, 0
      %v9537 = vperm.slane %v9413, 0
      %v9538 = vperm.slane %v9414, 0
      %v9539 = vperm.slane %v8313, 0
      %v9540 = vperm.slane %v9415, 0
      %v9541 = vperm.slane %v9416, 0
      %v9542 = vperm.slane %v9417, 0
      %v9543 = vperm.slane %v9418, 0
      %v9544 = vperm.slane %v9419, 0
      %v9545 = vperm.slane %v9420, 0
      %v9546 = vperm.slane %v9421, 0
      %v9547 = vperm.slane %v8315, 0
      %v9548 = vperm.slane %v9422, 0
      %v9549 = vperm.slane %v9423, 0
      %v9550 = vperm.slane %v9424, 0
      %v9551 = vperm.slane %v9425, 0
      %v9552 = vperm.slane %v9426, 0
      %v9553 = vperm.slane %v9427, 0
      %v9554 = vperm.slane %v9428, 0
      %v9555 = vperm.slane %v8318, 0
      %v9556 = vperm.slane %v9429, 0
      %v9557 = vperm.slane %v9430, 0
      %v9558 = vperm.slane %v9431, 0
      %v9559 = vperm.slane %v9432, 0
      %v9560 = vperm.slane %v9433, 0
      %v9561 = vperm.slane %v9434, 0
      %v9562 = vperm.slane %v9435, 0
      %v9563 = vperm.slane %v8320, 0
      %v9564 = vperm.slane %v9436, 0
      %v9565 = vperm.slane %v9437, 0
      %v9566 = vperm.slane %v9438, 0
      %v9567 = vperm.slane %v9439, 0
      %v9568 = vperm.slane %v9440, 0
      %v9569 = vperm.slane %v9441, 0
      %v9570 = vperm.slane %v9442, 0
      %v9699 = vsel %vm8946, %v8202, %v9443
      %v9700 = vsel %vm8946, %v9091, %v9444
      %v9701 = vsel %vm8946, %v9092, %v9445
      %v9702 = vsel %vm8946, %v9093, %v9446
      %v9703 = vsel %vm8946, %v9094, %v9447
      %v9704 = vsel %vm8946, %v9095, %v9448
      %v9705 = vsel %vm8946, %v9096, %v9449
      %v9706 = vsel %vm8946, %v9097, %v9450
      %v9707 = vsel %vm8946, %v8204, %v9451
      %v9708 = vsel %vm8946, %v9098, %v9452
      %v9709 = vsel %vm8946, %v9099, %v9453
      %v9710 = vsel %vm8946, %v9100, %v9454
      %v9711 = vsel %vm8946, %v9101, %v9455
      %v9712 = vsel %vm8946, %v9102, %v9456
      %v9713 = vsel %vm8946, %v9103, %v9457
      %v9714 = vsel %vm8946, %v9104, %v9458
      %v9715 = vsel %vm8946, %v8207, %v9459
      %v9716 = vsel %vm8946, %v9105, %v9460
      %v9717 = vsel %vm8946, %v9106, %v9461
      %v9718 = vsel %vm8946, %v9107, %v9462
      %v9719 = vsel %vm8946, %v9108, %v9463
      %v9720 = vsel %vm8946, %v9109, %v9464
      %v9721 = vsel %vm8946, %v9110, %v9465
      %v9722 = vsel %vm8946, %v9111, %v9466
      %v9723 = vsel %vm8946, %v8209, %v9467
      %v9724 = vsel %vm8946, %v9112, %v9468
      %v9725 = vsel %vm8946, %v9113, %v9469
      %v9726 = vsel %vm8946, %v9114, %v9470
      %v9727 = vsel %vm8946, %v9115, %v9471
      %v9728 = vsel %vm8946, %v9116, %v9472
      %v9729 = vsel %vm8946, %v9117, %v9473
      %v9730 = vsel %vm8946, %v9118, %v9474
      %v9731 = vsel %vm8946, %v8212, %v9475
      %v9732 = vsel %vm8946, %v9119, %v9476
      %v9733 = vsel %vm8946, %v9120, %v9477
      %v9734 = vsel %vm8946, %v9121, %v9478
      %v9735 = vsel %vm8946, %v9122, %v9479
      %v9736 = vsel %vm8946, %v9123, %v9480
      %v9737 = vsel %vm8946, %v9124, %v9481
      %v9738 = vsel %vm8946, %v9125, %v9482
      %v9739 = vsel %vm8946, %v8214, %v9483
      %v9740 = vsel %vm8946, %v9126, %v9484
      %v9741 = vsel %vm8946, %v9127, %v9485
      %v9742 = vsel %vm8946, %v9128, %v9486
      %v9743 = vsel %vm8946, %v9129, %v9487
      %v9744 = vsel %vm8946, %v9130, %v9488
      %v9745 = vsel %vm8946, %v9131, %v9489
      %v9746 = vsel %vm8946, %v9132, %v9490
      %v9747 = vsel %vm8946, %v8217, %v9491
      %v9748 = vsel %vm8946, %v9133, %v9492
      %v9749 = vsel %vm8946, %v9134, %v9493
      %v9750 = vsel %vm8946, %v9135, %v9494
      %v9751 = vsel %vm8946, %v9136, %v9495
      %v9752 = vsel %vm8946, %v9137, %v9496
      %v9753 = vsel %vm8946, %v9138, %v9497
      %v9754 = vsel %vm8946, %v9139, %v9498
      %v9755 = vsel %vm8946, %v8219, %v9499
      %v9756 = vsel %vm8946, %v9140, %v9500
      %v9757 = vsel %vm8946, %v9141, %v9501
      %v9758 = vsel %vm8946, %v9142, %v9502
      %v9759 = vsel %vm8946, %v9143, %v9503
      %v9760 = vsel %vm8946, %v9144, %v9504
      %v9761 = vsel %vm8946, %v9145, %v9505
      %v9762 = vsel %vm8946, %v9146, %v9506
      %v9763 = vsel %vm8946, %v8222, %v9507
      %v9764 = vsel %vm8946, %v9147, %v9508
      %v9765 = vsel %vm8946, %v9148, %v9509
      %v9766 = vsel %vm8946, %v9149, %v9510
      %v9767 = vsel %vm8946, %v9150, %v9511
      %v9768 = vsel %vm8946, %v9151, %v9512
      %v9769 = vsel %vm8946, %v9152, %v9513
      %v9770 = vsel %vm8946, %v9153, %v9514
      %v9771 = vsel %vm8946, %v8224, %v9515
      %v9772 = vsel %vm8946, %v9154, %v9516
      %v9773 = vsel %vm8946, %v9155, %v9517
      %v9774 = vsel %vm8946, %v9156, %v9518
      %v9775 = vsel %vm8946, %v9157, %v9519
      %v9776 = vsel %vm8946, %v9158, %v9520
      %v9777 = vsel %vm8946, %v9159, %v9521
      %v9778 = vsel %vm8946, %v9160, %v9522
      %v9779 = vsel %vm8946, %v8227, %v9523
      %v9780 = vsel %vm8946, %v9161, %v9524
      %v9781 = vsel %vm8946, %v9162, %v9525
      %v9782 = vsel %vm8946, %v9163, %v9526
      %v9783 = vsel %vm8946, %v9164, %v9527
      %v9784 = vsel %vm8946, %v9165, %v9528
      %v9785 = vsel %vm8946, %v9166, %v9529
      %v9786 = vsel %vm8946, %v9167, %v9530
      %v9787 = vsel %vm8946, %v8229, %v9531
      %v9788 = vsel %vm8946, %v9168, %v9532
      %v9789 = vsel %vm8946, %v9169, %v9533
      %v9790 = vsel %vm8946, %v9170, %v9534
      %v9791 = vsel %vm8946, %v9171, %v9535
      %v9792 = vsel %vm8946, %v9172, %v9536
      %v9793 = vsel %vm8946, %v9173, %v9537
      %v9794 = vsel %vm8946, %v9174, %v9538
      %v9795 = vsel %vm8946, %v8232, %v9539
      %v9796 = vsel %vm8946, %v9175, %v9540
      %v9797 = vsel %vm8946, %v9176, %v9541
      %v9798 = vsel %vm8946, %v9177, %v9542
      %v9799 = vsel %vm8946, %v9178, %v9543
      %v9800 = vsel %vm8946, %v9179, %v9544
      %v9801 = vsel %vm8946, %v9180, %v9545
      %v9802 = vsel %vm8946, %v9181, %v9546
      %v9803 = vsel %vm8946, %v8234, %v9547
      %v9804 = vsel %vm8946, %v9182, %v9548
      %v9805 = vsel %vm8946, %v9183, %v9549
      %v9806 = vsel %vm8946, %v9184, %v9550
      %v9807 = vsel %vm8946, %v9185, %v9551
      %v9808 = vsel %vm8946, %v9186, %v9552
      %v9809 = vsel %vm8946, %v9187, %v9553
      %v9810 = vsel %vm8946, %v9188, %v9554
      %v9811 = vsel %vm8946, %v8237, %v9555
      %v9812 = vsel %vm8946, %v9189, %v9556
      %v9813 = vsel %vm8946, %v9190, %v9557
      %v9814 = vsel %vm8946, %v9191, %v9558
      %v9815 = vsel %vm8946, %v9192, %v9559
      %v9816 = vsel %vm8946, %v9193, %v9560
      %v9817 = vsel %vm8946, %v9194, %v9561
      %v9818 = vsel %vm8946, %v9195, %v9562
      %v9819 = vsel %vm8946, %v8239, %v9563
      %v9820 = vsel %vm8946, %v9196, %v9564
      %v9821 = vsel %vm8946, %v9197, %v9565
      %v9822 = vsel %vm8946, %v9198, %v9566
      %v9823 = vsel %vm8946, %v9199, %v9567
      %v9824 = vsel %vm8946, %v9200, %v9568
      %v9825 = vsel %vm8946, %v9201, %v9569
      %v9826 = vsel %vm8946, %v9202, %v9570
      %10083 = vst [vmem:[#allocation1] ss:$4 sm:$0xff] %v8947
      %s10084 = scalar_lea.vmem [#allocation1], 1
      %10085 = vst [vmem:[%s10084] ss:$4 sm:$0xff] %v8948
      %s10086 = scalar_lea.vmem [#allocation1], 2
      %10087 = vst [vmem:[%s10086] ss:$4 sm:$0xff] %v8949
      %s10088 = scalar_lea.vmem [#allocation1], 3
      %10089 = vst [vmem:[%s10088] ss:$4 sm:$0xff] %v8950
      %s10090 = scalar_lea.vmem [#allocation1], 32
      %10091 = vst [vmem:[%s10090] ss:$4 sm:$0xff] %v8951
      %s10092 = scalar_lea.vmem [#allocation1], 33
      %10093 = vst [vmem:[%s10092] ss:$4 sm:$0xff] %v8952
      %s10094 = scalar_lea.vmem [#allocation1], 34
      %10095 = vst [vmem:[%s10094] ss:$4 sm:$0xff] %v8953
      %s10096 = scalar_lea.vmem [#allocation1], 35
      %10097 = vst [vmem:[%s10096] ss:$4 sm:$0xff] %v8954
      %v10098 = vld.sshfl [vmem:[#allocation1] sm:$0xff pattern:$0x73625140]
      %v10099 = vld.sshfl [vmem:[#allocation1 + $0x20] sm:$0xff pattern:$0x73625140]
      %10100 = vst [vmem:[#allocation1] ss:$4 sm:$0xff] %v8955
      %10101 = vst [vmem:[%s10084] ss:$4 sm:$0xff] %v8956
      %10102 = vst [vmem:[%s10086] ss:$4 sm:$0xff] %v8957
      %10103 = vst [vmem:[%s10088] ss:$4 sm:$0xff] %v8958
      %10104 = vst [vmem:[%s10090] ss:$4 sm:$0xff] %v8959
      %10105 = vst [vmem:[%s10092] ss:$4 sm:$0xff] %v8960
      %10106 = vst [vmem:[%s10094] ss:$4 sm:$0xff] %v8961
      %10107 = vst [vmem:[%s10096] ss:$4 sm:$0xff] %v8962
      %v10108 = vld.sshfl [vmem:[#allocation1] sm:$0xff pattern:$0x73625140]
      %v10109 = vld.sshfl [vmem:[#allocation1 + $0x20] sm:$0xff pattern:$0x73625140]
      %10110 = vst [vmem:[#allocation1] ss:$4 sm:$0xff] %v9699
      %10111 = vst [vmem:[%s10084] ss:$4 sm:$0xff] %v9700
      %10112 = vst [vmem:[%s10086] ss:$4 sm:$0xff] %v9701
      %10113 = vst [vmem:[%s10088] ss:$4 sm:$0xff] %v9702
      %10114 = vst [vmem:[%s10090] ss:$4 sm:$0xff] %v9703
      %10115 = vst [vmem:[%s10092] ss:$4 sm:$0xff] %v9704
      %10116 = vst [vmem:[%s10094] ss:$4 sm:$0xff] %v9705
      %10117 = vst [vmem:[%s10096] ss:$4 sm:$0xff] %v9706
      %v10118 = vld.sshfl [vmem:[#allocation1] sm:$0xff pattern:$0x73625140]
      %v10119 = vld.sshfl [vmem:[#allocation1 + $0x20] sm:$0xff pattern:$0x73625140]
      %10120 = vst [vmem:[#allocation1] ss:$4 sm:$0xff] %v9707
      %10121 = vst [vmem:[%s10084] ss:$4 sm:$0xff] %v9708
      %10122 = vst [vmem:[%s10086] ss:$4 sm:$0xff] %v9709
      %10123 = vst [vmem:[%s10088] ss:$4 sm:$0xff] %v9710
      %10124 = vst [vmem:[%s10090] ss:$4 sm:$0xff] %v9711
      %10125 = vst [vmem:[%s10092] ss:$4 sm:$0xff] %v9712
      %10126 = vst [vmem:[%s10094] ss:$4 sm:$0xff] %v9713
      %10127 = vst [vmem:[%s10096] ss:$4 sm:$0xff] %v9714
      %v10128 = vld.sshfl [vmem:[#allocation1] sm:$0xff pattern:$0x73625140]
      %v10129 = vld.sshfl [vmem:[#allocation1 + $0x20] sm:$0xff pattern:$0x73625140]
      %10130 = vst [vmem:[#allocation1] ss:$4 sm:$0xff] %v8963
      %10131 = vst [vmem:[%s10084] ss:$4 sm:$0xff] %v8964
      %10132 = vst [vmem:[%s10086] ss:$4 sm:$0xff] %v8965
      %10133 = vst [vmem:[%s10088] ss:$4 sm:$0xff] %v8966
      %10134 = vst [vmem:[%s10090] ss:$4 sm:$0xff] %v8967
      %10135 = vst [vmem:[%s10092] ss:$4 sm:$0xff] %v8968
      %10136 = vst [vmem:[%s10094] ss:$4 sm:$0xff] %v8969
      %10137 = vst [vmem:[%s10096] ss:$4 sm:$0xff] %v8970
      %v10138 = vld.sshfl [vmem:[#allocation1] sm:$0xff pattern:$0x73625140]
      %v10139 = vld.sshfl [vmem:[#allocation1 + $0x20] sm:$0xff pattern:$0x73625140]
      %10140 = vst [vmem:[#allocation1] ss:$4 sm:$0xff] %v8971
      %10141 = vst [vmem:[%s10084] ss:$4 sm:$0xff] %v8972
      %10142 = vst [vmem:[%s10086] ss:$4 sm:$0xff] %v8973
      %10143 = vst [vmem:[%s10088] ss:$4 sm:$0xff] %v8974
      %10144 = vst [vmem:[%s10090] ss:$4 sm:$0xff] %v8975
      %10145 = vst [vmem:[%s10092] ss:$4 sm:$0xff] %v8976
      %10146 = vst [vmem:[%s10094] ss:$4 sm:$0xff] %v8977
      %10147 = vst [vmem:[%s10096] ss:$4 sm:$0xff] %v8978
      %v10148 = vld.sshfl [vmem:[#allocation1] sm:$0xff pattern:$0x73625140]
      %v10149 = vld.sshfl [vmem:[#allocation1 + $0x20] sm:$0xff pattern:$0x73625140]
      %10150 = vst [vmem:[#allocation1] ss:$4 sm:$0xff] %v9715
      %10151 = vst [vmem:[%s10084] ss:$4 sm:$0xff] %v9716
      %10152 = vst [vmem:[%s10086] ss:$4 sm:$0xff] %v9717
      %10153 = vst [vmem:[%s10088] ss:$4 sm:$0xff] %v9718
      %10154 = vst [vmem:[%s10090] ss:$4 sm:$0xff] %v9719
      %10155 = vst [vmem:[%s10092] ss:$4 sm:$0xff] %v9720
      %10156 = vst [vmem:[%s10094] ss:$4 sm:$0xff] %v9721
      %10157 = vst [vmem:[%s10096] ss:$4 sm:$0xff] %v9722
      %v10158 = vld.sshfl [vmem:[#allocation1] sm:$0xff pattern:$0x73625140]
      %v10159 = vld.sshfl [vmem:[#allocation1 + $0x20] sm:$0xff pattern:$0x73625140]
      %10160 = vst [vmem:[#allocation1] ss:$4 sm:$0xff] %v9723
      %10161 = vst [vmem:[%s10084] ss:$4 sm:$0xff] %v9724
      %10162 = vst [vmem:[%s10086] ss:$4 sm:$0xff] %v9725
      %10163 = vst [vmem:[%s10088] ss:$4 sm:$0xff] %v9726
      %10164 = vst [vmem:[%s10090] ss:$4 sm:$0xff] %v9727
      %10165 = vst [vmem:[%s10092] ss:$4 sm:$0xff] %v9728
      %10166 = vst [vmem:[%s10094] ss:$4 sm:$0xff] %v9729
      %10167 = vst [vmem:[%s10096] ss:$4 sm:$0xff] %v9730
      %v10168 = vld.sshfl [vmem:[#allocation1] sm:$0xff pattern:$0x73625140]
      %v10169 = vld.sshfl [vmem:[#allocation1 + $0x20] sm:$0xff pattern:$0x73625140]
      %10170 = vst [vmem:[#allocation1] ss:$4 sm:$0xff] %v8979
      %10171 = vst [vmem:[%s10084] ss:$4 sm:$0xff] %v8980
      %10172 = vst [vmem:[%s10086] ss:$4 sm:$0xff] %v8981
      %10173 = vst [vmem:[%s10088] ss:$4 sm:$0xff] %v8982
      %10174 = vst [vmem:[%s10090] ss:$4 sm:$0xff] %v8983
      %10175 = vst [vmem:[%s10092] ss:$4 sm:$0xff] %v8984
      %10176 = vst [vmem:[%s10094] ss:$4 sm:$0xff] %v8985
      %10177 = vst [vmem:[%s10096] ss:$4 sm:$0xff] %v8986
      %v10178 = vld.sshfl [vmem:[#allocation1] sm:$0xff pattern:$0x73625140]
      %v10179 = vld.sshfl [vmem:[#allocation1 + $0x20] sm:$0xff pattern:$0x73625140]
      %10180 = vst [vmem:[#allocation1] ss:$4 sm:$0xff] %v8987
      %10181 = vst [vmem:[%s10084] ss:$4 sm:$0xff] %v8988
      %10182 = vst [vmem:[%s10086] ss:$4 sm:$0xff] %v8989
      %10183 = vst [vmem:[%s10088] ss:$4 sm:$0xff] %v8990
      %10184 = vst [vmem:[%s10090] ss:$4 sm:$0xff] %v8991
      %10185 = vst [vmem:[%s10092] ss:$4 sm:$0xff] %v8992
      %10186 = vst [vmem:[%s10094] ss:$4 sm:$0xff] %v8993
      %10187 = vst [vmem:[%s10096] ss:$4 sm:$0xff] %v8994
      %v10188 = vld.sshfl [vmem:[#allocation1] sm:$0xff pattern:$0x73625140]
      %v10189 = vld.sshfl [vmem:[#allocation1 + $0x20] sm:$0xff pattern:$0x73625140]
      %10190 = vst [vmem:[#allocation1] ss:$4 sm:$0xff] %v9731
      %10191 = vst [vmem:[%s10084] ss:$4 sm:$0xff] %v9732
      %10192 = vst [vmem:[%s10086] ss:$4 sm:$0xff] %v9733
      %10193 = vst [vmem:[%s10088] ss:$4 sm:$0xff] %v9734
      %10194 = vst [vmem:[%s10090] ss:$4 sm:$0xff] %v9735
      %10195 = vst [vmem:[%s10092] ss:$4 sm:$0xff] %v9736
      %10196 = vst [vmem:[%s10094] ss:$4 sm:$0xff] %v9737
      %10197 = vst [vmem:[%s10096] ss:$4 sm:$0xff] %v9738
      %v10198 = vld.sshfl [vmem:[#allocation1] sm:$0xff pattern:$0x73625140]
      %v10199 = vld.sshfl [vmem:[#allocation1 + $0x20] sm:$0xff pattern:$0x73625140]
      %10200 = vst [vmem:[#allocation1] ss:$4 sm:$0xff] %v9739
      %10201 = vst [vmem:[%s10084] ss:$4 sm:$0xff] %v9740
      %10202 = vst [vmem:[%s10086] ss:$4 sm:$0xff] %v9741
      %10203 = vst [vmem:[%s10088] ss:$4 sm:$0xff] %v9742
      %10204 = vst [vmem:[%s10090] ss:$4 sm:$0xff] %v9743
      %10205 = vst [vmem:[%s10092] ss:$4 sm:$0xff] %v9744
      %10206 = vst [vmem:[%s10094] ss:$4 sm:$0xff] %v9745
      %10207 = vst [vmem:[%s10096] ss:$4 sm:$0xff] %v9746
      %v10208 = vld.sshfl [vmem:[#allocation1] sm:$0xff pattern:$0x73625140]
      %v10209 = vld.sshfl [vmem:[#allocation1 + $0x20] sm:$0xff pattern:$0x73625140]
      %10210 = vst [vmem:[#allocation1] ss:$4 sm:$0xff] %v8995
      %10211 = vst [vmem:[%s10084] ss:$4 sm:$0xff] %v8996
      %10212 = vst [vmem:[%s10086] ss:$4 sm:$0xff] %v8997
      %10213 = vst [vmem:[%s10088] ss:$4 sm:$0xff] %v8998
      %10214 = vst [vmem:[%s10090] ss:$4 sm:$0xff] %v8999
      %10215 = vst [vmem:[%s10092] ss:$4 sm:$0xff] %v9000
      %10216 = vst [vmem:[%s10094] ss:$4 sm:$0xff] %v9001
      %10217 = vst [vmem:[%s10096] ss:$4 sm:$0xff] %v9002
      %v10218 = vld.sshfl [vmem:[#allocation1] sm:$0xff pattern:$0x73625140]
      %v10219 = vld.sshfl [vmem:[#allocation1 + $0x20] sm:$0xff pattern:$0x73625140]
      %10220 = vst [vmem:[#allocation1] ss:$4 sm:$0xff] %v9003
      %10221 = vst [vmem:[%s10084] ss:$4 sm:$0xff] %v9004
      %10222 = vst [vmem:[%s10086] ss:$4 sm:$0xff] %v9005
      %10223 = vst [vmem:[%s10088] ss:$4 sm:$0xff] %v9006
      %10224 = vst [vmem:[%s10090] ss:$4 sm:$0xff] %v9007
      %10225 = vst [vmem:[%s10092] ss:$4 sm:$0xff] %v9008
      %10226 = vst [vmem:[%s10094] ss:$4 sm:$0xff] %v9009
      %10227 = vst [vmem:[%s10096] ss:$4 sm:$0xff] %v9010
      %v10228 = vld.sshfl [vmem:[#allocation1] sm:$0xff pattern:$0x73625140]
      %v10229 = vld.sshfl [vmem:[#allocation1 + $0x20] sm:$0xff pattern:$0x73625140]
      %10230 = vst [vmem:[#allocation1] ss:$4 sm:$0xff] %v9747
      %10231 = vst [vmem:[%s10084] ss:$4 sm:$0xff] %v9748
      %10232 = vst [vmem:[%s10086] ss:$4 sm:$0xff] %v9749
      %10233 = vst [vmem:[%s10088] ss:$4 sm:$0xff] %v9750
      %10234 = vst [vmem:[%s10090] ss:$4 sm:$0xff] %v9751
      %10235 = vst [vmem:[%s10092] ss:$4 sm:$0xff] %v9752
      %10236 = vst [vmem:[%s10094] ss:$4 sm:$0xff] %v9753
      %10237 = vst [vmem:[%s10096] ss:$4 sm:$0xff] %v9754
      %v10238 = vld.sshfl [vmem:[#allocation1] sm:$0xff pattern:$0x73625140]
      %v10239 = vld.sshfl [vmem:[#allocation1 + $0x20] sm:$0xff pattern:$0x73625140]
      %10240 = vst [vmem:[#allocation1] ss:$4 sm:$0xff] %v9755
      %10241 = vst [vmem:[%s10084] ss:$4 sm:$0xff] %v9756
      %10242 = vst [vmem:[%s10086] ss:$4 sm:$0xff] %v9757
      %10243 = vst [vmem:[%s10088] ss:$4 sm:$0xff] %v9758
      %10244 = vst [vmem:[%s10090] ss:$4 sm:$0xff] %v9759
      %10245 = vst [vmem:[%s10092] ss:$4 sm:$0xff] %v9760
      %10246 = vst [vmem:[%s10094] ss:$4 sm:$0xff] %v9761
      %10247 = vst [vmem:[%s10096] ss:$4 sm:$0xff] %v9762
      %v10248 = vld.sshfl [vmem:[#allocation1] sm:$0xff pattern:$0x73625140]
      %v10249 = vld.sshfl [vmem:[#allocation1 + $0x20] sm:$0xff pattern:$0x73625140]
      %10250 = vst [vmem:[#allocation1] ss:$4 sm:$0xff] %v9011
      %10251 = vst [vmem:[%s10084] ss:$4 sm:$0xff] %v9012
      %10252 = vst [vmem:[%s10086] ss:$4 sm:$0xff] %v9013
      %10253 = vst [vmem:[%s10088] ss:$4 sm:$0xff] %v9014
      %10254 = vst [vmem:[%s10090] ss:$4 sm:$0xff] %v9015
      %10255 = vst [vmem:[%s10092] ss:$4 sm:$0xff] %v9016
      %10256 = vst [vmem:[%s10094] ss:$4 sm:$0xff] %v9017
      %10257 = vst [vmem:[%s10096] ss:$4 sm:$0xff] %v9018
      %v10258 = vld.sshfl [vmem:[#allocation1] sm:$0xff pattern:$0x73625140]
      %v10259 = vld.sshfl [vmem:[#allocation1 + $0x20] sm:$0xff pattern:$0x73625140]
      %10260 = vst [vmem:[#allocation1] ss:$4 sm:$0xff] %v9019
      %10261 = vst [vmem:[%s10084] ss:$4 sm:$0xff] %v9020
      %10262 = vst [vmem:[%s10086] ss:$4 sm:$0xff] %v9021
      %10263 = vst [vmem:[%s10088] ss:$4 sm:$0xff] %v9022
      %10264 = vst [vmem:[%s10090] ss:$4 sm:$0xff] %v9023
      %10265 = vst [vmem:[%s10092] ss:$4 sm:$0xff] %v9024
      %10266 = vst [vmem:[%s10094] ss:$4 sm:$0xff] %v9025
      %10267 = vst [vmem:[%s10096] ss:$4 sm:$0xff] %v9026
      %v10268 = vld.sshfl [vmem:[#allocation1] sm:$0xff pattern:$0x73625140]
      %v10269 = vld.sshfl [vmem:[#allocation1 + $0x20] sm:$0xff pattern:$0x73625140]
      %10270 = vst [vmem:[#allocation1] ss:$4 sm:$0xff] %v9763
      %10271 = vst [vmem:[%s10084] ss:$4 sm:$0xff] %v9764
      %10272 = vst [vmem:[%s10086] ss:$4 sm:$0xff] %v9765
      %10273 = vst [vmem:[%s10088] ss:$4 sm:$0xff] %v9766
      %10274 = vst [vmem:[%s10090] ss:$4 sm:$0xff] %v9767
      %10275 = vst [vmem:[%s10092] ss:$4 sm:$0xff] %v9768
      %10276 = vst [vmem:[%s10094] ss:$4 sm:$0xff] %v9769
      %10277 = vst [vmem:[%s10096] ss:$4 sm:$0xff] %v9770
      %v10278 = vld.sshfl [vmem:[#allocation1] sm:$0xff pattern:$0x73625140]
      %v10279 = vld.sshfl [vmem:[#allocation1 + $0x20] sm:$0xff pattern:$0x73625140]
      %10280 = vst [vmem:[#allocation1] ss:$4 sm:$0xff] %v9771
      %10281 = vst [vmem:[%s10084] ss:$4 sm:$0xff] %v9772
      %10282 = vst [vmem:[%s10086] ss:$4 sm:$0xff] %v9773
      %10283 = vst [vmem:[%s10088] ss:$4 sm:$0xff] %v9774
      %10284 = vst [vmem:[%s10090] ss:$4 sm:$0xff] %v9775
      %10285 = vst [vmem:[%s10092] ss:$4 sm:$0xff] %v9776
      %10286 = vst [vmem:[%s10094] ss:$4 sm:$0xff] %v9777
      %10287 = vst [vmem:[%s10096] ss:$4 sm:$0xff] %v9778
      %v10288 = vld.sshfl [vmem:[#allocation1] sm:$0xff pattern:$0x73625140]
      %v10289 = vld.sshfl [vmem:[#allocation1 + $0x20] sm:$0xff pattern:$0x73625140]
      %10290 = vst [vmem:[#allocation1] ss:$4 sm:$0xff] %v9027
      %10291 = vst [vmem:[%s10084] ss:$4 sm:$0xff] %v9028
      %10292 = vst [vmem:[%s10086] ss:$4 sm:$0xff] %v9029
      %10293 = vst [vmem:[%s10088] ss:$4 sm:$0xff] %v9030
      %10294 = vst [vmem:[%s10090] ss:$4 sm:$0xff] %v9031
      %10295 = vst [vmem:[%s10092] ss:$4 sm:$0xff] %v9032
      %10296 = vst [vmem:[%s10094] ss:$4 sm:$0xff] %v9033
      %10297 = vst [vmem:[%s10096] ss:$4 sm:$0xff] %v9034
      %v10298 = vld.sshfl [vmem:[#allocation1] sm:$0xff pattern:$0x73625140]
      %v10299 = vld.sshfl [vmem:[#allocation1 + $0x20] sm:$0xff pattern:$0x73625140]
      %10300 = vst [vmem:[#allocation1] ss:$4 sm:$0xff] %v9035
      %10301 = vst [vmem:[%s10084] ss:$4 sm:$0xff] %v9036
      %10302 = vst [vmem:[%s10086] ss:$4 sm:$0xff] %v9037
      %10303 = vst [vmem:[%s10088] ss:$4 sm:$0xff] %v9038
      %10304 = vst [vmem:[%s10090] ss:$4 sm:$0xff] %v9039
      %10305 = vst [vmem:[%s10092] ss:$4 sm:$0xff] %v9040
      %10306 = vst [vmem:[%s10094] ss:$4 sm:$0xff] %v9041
      %10307 = vst [vmem:[%s10096] ss:$4 sm:$0xff] %v9042
      %v10308 = vld.sshfl [vmem:[#allocation1] sm:$0xff pattern:$0x73625140]
      %v10309 = vld.sshfl [vmem:[#allocation1 + $0x20] sm:$0xff pattern:$0x73625140]
      %10310 = vst [vmem:[#allocation1] ss:$4 sm:$0xff] %v9779
      %10311 = vst [vmem:[%s10084] ss:$4 sm:$0xff] %v9780
      %10312 = vst [vmem:[%s10086] ss:$4 sm:$0xff] %v9781
      %10313 = vst [vmem:[%s10088] ss:$4 sm:$0xff] %v9782
      %10314 = vst [vmem:[%s10090] ss:$4 sm:$0xff] %v9783
      %10315 = vst [vmem:[%s10092] ss:$4 sm:$0xff] %v9784
      %10316 = vst [vmem:[%s10094] ss:$4 sm:$0xff] %v9785
      %10317 = vst [vmem:[%s10096] ss:$4 sm:$0xff] %v9786
      %v10318 = vld.sshfl [vmem:[#allocation1] sm:$0xff pattern:$0x73625140]
      %v10319 = vld.sshfl [vmem:[#allocation1 + $0x20] sm:$0xff pattern:$0x73625140]
      %10320 = vst [vmem:[#allocation1] ss:$4 sm:$0xff] %v9787
      %10321 = vst [vmem:[%s10084] ss:$4 sm:$0xff] %v9788
      %10322 = vst [vmem:[%s10086] ss:$4 sm:$0xff] %v9789
      %10323 = vst [vmem:[%s10088] ss:$4 sm:$0xff] %v9790
      %10324 = vst [vmem:[%s10090] ss:$4 sm:$0xff] %v9791
      %10325 = vst [vmem:[%s10092] ss:$4 sm:$0xff] %v9792
      %10326 = vst [vmem:[%s10094] ss:$4 sm:$0xff] %v9793
      %10327 = vst [vmem:[%s10096] ss:$4 sm:$0xff] %v9794
      %v10328 = vld.sshfl [vmem:[#allocation1] sm:$0xff pattern:$0x73625140]
      %v10329 = vld.sshfl [vmem:[#allocation1 + $0x20] sm:$0xff pattern:$0x73625140]
      %10330 = vst [vmem:[#allocation1] ss:$4 sm:$0xff] %v9043
      %10331 = vst [vmem:[%s10084] ss:$4 sm:$0xff] %v9044
      %10332 = vst [vmem:[%s10086] ss:$4 sm:$0xff] %v9045
      %10333 = vst [vmem:[%s10088] ss:$4 sm:$0xff] %v9046
      %10334 = vst [vmem:[%s10090] ss:$4 sm:$0xff] %v9047
      %10335 = vst [vmem:[%s10092] ss:$4 sm:$0xff] %v9048
      %10336 = vst [vmem:[%s10094] ss:$4 sm:$0xff] %v9049
      %10337 = vst [vmem:[%s10096] ss:$4 sm:$0xff] %v9050
      %v10338 = vld.sshfl [vmem:[#allocation1] sm:$0xff pattern:$0x73625140]
      %v10339 = vld.sshfl [vmem:[#allocation1 + $0x20] sm:$0xff pattern:$0x73625140]
      %10340 = vst [vmem:[#allocation1] ss:$4 sm:$0xff] %v9051
      %10341 = vst [vmem:[%s10084] ss:$4 sm:$0xff] %v9052
      %10342 = vst [vmem:[%s10086] ss:$4 sm:$0xff] %v9053
      %10343 = vst [vmem:[%s10088] ss:$4 sm:$0xff] %v9054
      %10344 = vst [vmem:[%s10090] ss:$4 sm:$0xff] %v9055
      %10345 = vst [vmem:[%s10092] ss:$4 sm:$0xff] %v9056
      %10346 = vst [vmem:[%s10094] ss:$4 sm:$0xff] %v9057
      %10347 = vst [vmem:[%s10096] ss:$4 sm:$0xff] %v9058
      %v10348 = vld.sshfl [vmem:[#allocation1] sm:$0xff pattern:$0x73625140]
      %v10349 = vld.sshfl [vmem:[#allocation1 + $0x20] sm:$0xff pattern:$0x73625140]
      %10350 = vst [vmem:[#allocation1] ss:$4 sm:$0xff] %v9795
      %10351 = vst [vmem:[%s10084] ss:$4 sm:$0xff] %v9796
      %10352 = vst [vmem:[%s10086] ss:$4 sm:$0xff] %v9797
      %10353 = vst [vmem:[%s10088] ss:$4 sm:$0xff] %v9798
      %10354 = vst [vmem:[%s10090] ss:$4 sm:$0xff] %v9799
      %10355 = vst [vmem:[%s10092] ss:$4 sm:$0xff] %v9800
      %10356 = vst [vmem:[%s10094] ss:$4 sm:$0xff] %v9801
      %10357 = vst [vmem:[%s10096] ss:$4 sm:$0xff] %v9802
      %v10358 = vld.sshfl [vmem:[#allocation1] sm:$0xff pattern:$0x73625140]
      %v10359 = vld.sshfl [vmem:[#allocation1 + $0x20] sm:$0xff pattern:$0x73625140]
      %10360 = vst [vmem:[#allocation1] ss:$4 sm:$0xff] %v9803
      %10361 = vst [vmem:[%s10084] ss:$4 sm:$0xff] %v9804
      %10362 = vst [vmem:[%s10086] ss:$4 sm:$0xff] %v9805
      %10363 = vst [vmem:[%s10088] ss:$4 sm:$0xff] %v9806
      %10364 = vst [vmem:[%s10090] ss:$4 sm:$0xff] %v9807
      %10365 = vst [vmem:[%s10092] ss:$4 sm:$0xff] %v9808
      %10366 = vst [vmem:[%s10094] ss:$4 sm:$0xff] %v9809
      %10367 = vst [vmem:[%s10096] ss:$4 sm:$0xff] %v9810
      %v10368 = vld.sshfl [vmem:[#allocation1] sm:$0xff pattern:$0x73625140]
      %v10369 = vld.sshfl [vmem:[#allocation1 + $0x20] sm:$0xff pattern:$0x73625140]
      %10370 = vst [vmem:[#allocation1] ss:$4 sm:$0xff] %v9059
      %10371 = vst [vmem:[%s10084] ss:$4 sm:$0xff] %v9060
      %10372 = vst [vmem:[%s10086] ss:$4 sm:$0xff] %v9061
      %10373 = vst [vmem:[%s10088] ss:$4 sm:$0xff] %v9062
      %10374 = vst [vmem:[%s10090] ss:$4 sm:$0xff] %v9063
      %10375 = vst [vmem:[%s10092] ss:$4 sm:$0xff] %v9064
      %10376 = vst [vmem:[%s10094] ss:$4 sm:$0xff] %v9065
      %10377 = vst [vmem:[%s10096] ss:$4 sm:$0xff] %v9066
      %v10378 = vld.sshfl [vmem:[#allocation1] sm:$0xff pattern:$0x73625140]
      %v10379 = vld.sshfl [vmem:[#allocation1 + $0x20] sm:$0xff pattern:$0x73625140]
      %10380 = vst [vmem:[#allocation1] ss:$4 sm:$0xff] %v9067
      %10381 = vst [vmem:[%s10084] ss:$4 sm:$0xff] %v9068
      %10382 = vst [vmem:[%s10086] ss:$4 sm:$0xff] %v9069
      %10383 = vst [vmem:[%s10088] ss:$4 sm:$0xff] %v9070
      %10384 = vst [vmem:[%s10090] ss:$4 sm:$0xff] %v9071
      %10385 = vst [vmem:[%s10092] ss:$4 sm:$0xff] %v9072
      %10386 = vst [vmem:[%s10094] ss:$4 sm:$0xff] %v9073
      %10387 = vst [vmem:[%s10096] ss:$4 sm:$0xff] %v9074
      %v10388 = vld.sshfl [vmem:[#allocation1] sm:$0xff pattern:$0x73625140]
      %v10389 = vld.sshfl [vmem:[#allocation1 + $0x20] sm:$0xff pattern:$0x73625140]
      %10390 = vst [vmem:[#allocation1] ss:$4 sm:$0xff] %v9811
      %10391 = vst [vmem:[%s10084] ss:$4 sm:$0xff] %v9812
      %10392 = vst [vmem:[%s10086] ss:$4 sm:$0xff] %v9813
      %10393 = vst [vmem:[%s10088] ss:$4 sm:$0xff] %v9814
      %10394 = vst [vmem:[%s10090] ss:$4 sm:$0xff] %v9815
      %10395 = vst [vmem:[%s10092] ss:$4 sm:$0xff] %v9816
      %10396 = vst [vmem:[%s10094] ss:$4 sm:$0xff] %v9817
      %10397 = vst [vmem:[%s10096] ss:$4 sm:$0xff] %v9818
      %v10398 = vld.sshfl [vmem:[#allocation1] sm:$0xff pattern:$0x73625140]
      %v10399 = vld.sshfl [vmem:[#allocation1 + $0x20] sm:$0xff pattern:$0x73625140]
      %10400 = vst [vmem:[#allocation1] ss:$4 sm:$0xff] %v9819
      %10401 = vst [vmem:[%s10084] ss:$4 sm:$0xff] %v9820
      %10402 = vst [vmem:[%s10086] ss:$4 sm:$0xff] %v9821
      %10403 = vst [vmem:[%s10088] ss:$4 sm:$0xff] %v9822
      %10404 = vst [vmem:[%s10090] ss:$4 sm:$0xff] %v9823
      %10405 = vst [vmem:[%s10092] ss:$4 sm:$0xff] %v9824
      %10406 = vst [vmem:[%s10094] ss:$4 sm:$0xff] %v9825
      %10407 = vst [vmem:[%s10096] ss:$4 sm:$0xff] %v9826
      %v10408 = vld.sshfl [vmem:[#allocation1] sm:$0xff pattern:$0x73625140]
      %v10409 = vld.sshfl [vmem:[#allocation1 + $0x20] sm:$0xff pattern:$0x73625140]
      %10474 = vst.msk [vmem:[%s295] sm:$0xff] %vm8005, %v10098
      %10475 = vst.msk [vmem:[%s295 + $0x8] sm:$0xff] %vm8005, %v10099
      %10476 = vst.msk [vmem:[%s295 + $0x10] sm:$0xff] %vm8005, %v10108
      %10477 = vst.msk [vmem:[%s295 + $0x18] sm:$0xff] %vm8005, %v10109
      %10478 = vst.msk [vmem:[%s295 + $0x20] sm:$0xff] %vm8005, %v10118
      %10479 = vst.msk [vmem:[%s295 + $0x28] sm:$0xff] %vm8005, %v10119
      %10480 = vst.msk [vmem:[%s295 + $0x30] sm:$0xff] %vm8005, %v10128
      %10481 = vst.msk [vmem:[%s295 + $0x38] sm:$0xff] %vm8005, %v10129
      %10482 = vst.msk [vmem:[%s295 + $0x40] sm:$0xff] %vm8005, %v10138
      %10483 = vst.msk [vmem:[%s295 + $0x48] sm:$0xff] %vm8005, %v10139
      %10484 = vst.msk [vmem:[%s295 + $0x50] sm:$0xff] %vm8005, %v10148
      %10485 = vst.msk [vmem:[%s295 + $0x58] sm:$0xff] %vm8005, %v10149
      %10486 = vst.msk [vmem:[%s295 + $0x60] sm:$0xff] %vm8005, %v10158
      %10487 = vst.msk [vmem:[%s295 + $0x68] sm:$0xff] %vm8005, %v10159
      %10488 = vst.msk [vmem:[%s295 + $0x70] sm:$0xff] %vm8005, %v10168
      %10489 = vst.msk [vmem:[%s295 + $0x78] sm:$0xff] %vm8005, %v10169
      %10490 = vst.msk [vmem:[%s295 + $0x80] sm:$0xff] %vm8005, %v10178
      %10491 = vst.msk [vmem:[%s295 + $0x88] sm:$0xff] %vm8005, %v10179
      %10492 = vst.msk [vmem:[%s295 + $0x90] sm:$0xff] %vm8005, %v10188
      %10493 = vst.msk [vmem:[%s295 + $0x98] sm:$0xff] %vm8005, %v10189
      %10494 = vst.msk [vmem:[%s295 + $0xa0] sm:$0xff] %vm8005, %v10198
      %10495 = vst.msk [vmem:[%s295 + $0xa8] sm:$0xff] %vm8005, %v10199
      %10496 = vst.msk [vmem:[%s295 + $0xb0] sm:$0xff] %vm8005, %v10208
      %10497 = vst.msk [vmem:[%s295 + $0xb8] sm:$0xff] %vm8005, %v10209
      %10498 = vst.msk [vmem:[%s295 + $0xc0] sm:$0xff] %vm8005, %v10218
      %10499 = vst.msk [vmem:[%s295 + $0xc8] sm:$0xff] %vm8005, %v10219
      %10500 = vst.msk [vmem:[%s295 + $0xd0] sm:$0xff] %vm8005, %v10228
      %10501 = vst.msk [vmem:[%s295 + $0xd8] sm:$0xff] %vm8005, %v10229
      %10502 = vst.msk [vmem:[%s295 + $0xe0] sm:$0xff] %vm8005, %v10238
      %10503 = vst.msk [vmem:[%s295 + $0xe8] sm:$0xff] %vm8005, %v10239
      %10504 = vst.msk [vmem:[%s295 + $0xf0] sm:$0xff] %vm8005, %v10248
      %10505 = vst.msk [vmem:[%s295 + $0xf8] sm:$0xff] %vm8005, %v10249
      %10506 = vst.msk [vmem:[%s295 + $0x100] sm:$0xff] %vm8005, %v10258
      %10507 = vst.msk [vmem:[%s295 + $0x108] sm:$0xff] %vm8005, %v10259
      %10508 = vst.msk [vmem:[%s295 + $0x110] sm:$0xff] %vm8005, %v10268
      %10509 = vst.msk [vmem:[%s295 + $0x118] sm:$0xff] %vm8005, %v10269
      %10510 = vst.msk [vmem:[%s295 + $0x120] sm:$0xff] %vm8005, %v10278
      %10511 = vst.msk [vmem:[%s295 + $0x128] sm:$0xff] %vm8005, %v10279
      %10512 = vst.msk [vmem:[%s295 + $0x130] sm:$0xff] %vm8005, %v10288
      %10513 = vst.msk [vmem:[%s295 + $0x138] sm:$0xff] %vm8005, %v10289
      %10514 = vst.msk [vmem:[%s295 + $0x140] sm:$0xff] %vm8005, %v10298
      %10515 = vst.msk [vmem:[%s295 + $0x148] sm:$0xff] %vm8005, %v10299
      %10516 = vst.msk [vmem:[%s295 + $0x150] sm:$0xff] %vm8005, %v10308
      %10517 = vst.msk [vmem:[%s295 + $0x158] sm:$0xff] %vm8005, %v10309
      %10518 = vst.msk [vmem:[%s295 + $0x160] sm:$0xff] %vm8005, %v10318
      %10519 = vst.msk [vmem:[%s295 + $0x168] sm:$0xff] %vm8005, %v10319
      %10520 = vst.msk [vmem:[%s295 + $0x170] sm:$0xff] %vm8005, %v10328
      %10521 = vst.msk [vmem:[%s295 + $0x178] sm:$0xff] %vm8005, %v10329
      %10522 = vst.msk [vmem:[%s295 + $0x180] sm:$0xff] %vm8005, %v10338
      %10523 = vst.msk [vmem:[%s295 + $0x188] sm:$0xff] %vm8005, %v10339
      %10524 = vst.msk [vmem:[%s295 + $0x190] sm:$0xff] %vm8005, %v10348
      %10525 = vst.msk [vmem:[%s295 + $0x198] sm:$0xff] %vm8005, %v10349
      %10526 = vst.msk [vmem:[%s295 + $0x1a0] sm:$0xff] %vm8005, %v10358
      %10527 = vst.msk [vmem:[%s295 + $0x1a8] sm:$0xff] %vm8005, %v10359
      %10528 = vst.msk [vmem:[%s295 + $0x1b0] sm:$0xff] %vm8005, %v10368
      %10529 = vst.msk [vmem:[%s295 + $0x1b8] sm:$0xff] %vm8005, %v10369
      %10530 = vst.msk [vmem:[%s295 + $0x1c0] sm:$0xff] %vm8005, %v10378
      %10531 = vst.msk [vmem:[%s295 + $0x1c8] sm:$0xff] %vm8005, %v10379
      %10532 = vst.msk [vmem:[%s295 + $0x1d0] sm:$0xff] %vm8005, %v10388
      %10533 = vst.msk [vmem:[%s295 + $0x1d8] sm:$0xff] %vm8005, %v10389
      %10534 = vst.msk [vmem:[%s295 + $0x1e0] sm:$0xff] %vm8005, %v10398
      %10535 = vst.msk [vmem:[%s295 + $0x1e8] sm:$0xff] %vm8005, %v10399
      %10536 = vst.msk [vmem:[%s295 + $0x1f0] sm:$0xff] %vm8005, %v10408
      %10537 = vst.msk [vmem:[%s295 + $0x1f8] sm:$0xff] %vm8005, %v10409
      %s10538 = smul.u32 16, %s22
      %p10539 = scmp.lt.s32.totalorder %s21, 1
      %s10540 = scalar_select %p10539, %s21, 1
      %p10541 = scmp.lt.s32.totalorder %s10538, 31
      %s10542 = scalar_select %p10541, %s10538, 31
      %s10543 = smul.addr %s10542, 4
      %s10544 = smul.addr %s10540, 128
      %s10545 = sadd.s32 %s10543, %s10544
      %s10546 = smul.addr %s10545, 8
      %s10547 = scalar_lea.vmem %s6, %s10546
      // Predicated region
      $region45: #{carafe_forward.3} parent=43 // pred_check
        %p10548 = pneg %p185
      $region46: #{carafe_forward.3} parent=43 // pred_check_branch
        %10550 = sbr.rel (%p10548) target = $region48
      $region47: #{carafe_forward.3} parent=43 // pred_region
        %s10551 = smul.u32 16, %s22
      $region48: #{carafe_forward.3} parent=43 // pred_fallthru
        _
    $region44: #{carafe_forward.3} parent=5 // pred_fallthru
      _
    %p10552 = scmp.le.s32.totalorder 2, %s12
    // Predicated region
    $region49: #{carafe_forward.3} parent=5 // pred_check
      %p10553 = pneg %p10552
    $region50: #{carafe_forward.3} parent=5 // pred_check_branch
      %10555 = sbr.rel (%p10553) target = $region52
    $region51: #{carafe_forward.3} parent=5 // pred_region
      %s10556 = ssub.s32 %s12, 2
      // Predicated region
      $region53: #{carafe_forward.3} parent=51 // pred_check
        %p10557 = pneg %p191
      $region54: #{carafe_forward.3} parent=51 // pred_check_branch
        %10559 = sbr.rel (%p10557) target = $region56
      $region55: #{carafe_forward.3} parent=51 // pred_region
        %s10560 = smul.u32 16, %s24
        %p10561 = scmp.lt.s32.totalorder %s23, 1
        %s10562 = scalar_select %p10561, %s23, 1
        %p10563 = scmp.lt.s32.totalorder %s10560, 31
        %s10564 = scalar_select %p10563, %s10560, 31
        %s10565 = smul.addr %s10564, 4
        %s10566 = smul.addr %s10562, 128
        %s10567 = sadd.s32 %s10565, %s10566
        %s10568 = smul.addr %s10567, 8
        %s10569 = scalar_lea.vmem %s6, %s10568
      $region56: #{carafe_forward.3} parent=51 // pred_fallthru
        _
    $region52: #{carafe_forward.3} parent=5 // pred_fallthru
      _
  $region6: #{carafe_forward.3} parent=0 // loop_footer
    %s16 = sadd.s32 1, %s12
  $region7: #{carafe_forward.3} parent=0 // loop_footer_branch
    %11 = sbr.rel target = $region3
  $region8: #{carafe_forward.3} parent=0 // loop_exit
    _

</llo_original>
